<compile_context>
chip_gen: v7x
topology: tpu7x:2x2x1
jax: 0.10.0
libtpu: 0.0.40
codegen_flags: <defaults>
</compile_context>

<pallas_src>
import functools

import jax
import jax.numpy as jnp
from jax.experimental import pallas as pl


# ------------------------------ XLA-side im2col -------------------------------

def _round_up(n, m):
    return ((n + m - 1) // m) * m


def _pool_phase_patches(x_nhwc, k, *, pixel_major):
    """Build the four 2x2-pool-phase im2col slabs, stacked along M.

    x_nhwc: (B, H, W, C).  Returns (patches, M, Mp): patches is (4*Mp, k*k*C);
    each Mp-row block is one pool phase (rows beyond M are zero padding so the
    blocks start at sublane-aligned offsets).  Rows inside a block are ordered
    (b, ip, jp) if not pixel_major, else (ip, jp, b); columns are (di, dj, c).
    """
    B, H, W, C = x_nhwc.shape
    Ho, Wo = H - k + 1, W - k + 1
    Hp, Wp = Ho // 2, Wo // 2
    K = k * k * C
    M = B * Hp * Wp
    Mp = _round_up(M, 8)

    shifts = [x_nhwc[:, di:di + Ho, dj:dj + Wo, :]
              for di in range(k) for dj in range(k)]
    full = jnp.concatenate(shifts, axis=-1)                        # (B, Ho, Wo, K)
    slabs = []
    for sh in (0, 1):
        for sw in (0, 1):
            s = full[:, sh::2, sw::2, :][:, :Hp, :Wp, :]           # (B, Hp, Wp, K)
            if pixel_major:
                s = jnp.transpose(s, (1, 2, 0, 3))                 # (Hp, Wp, B, K)
            s = s.reshape(M, K)
            if Mp != M:
                s = jnp.pad(s, ((0, Mp - M), (0, 0)))
            slabs.append(s)
    return jnp.concatenate(slabs, axis=0), M, Mp                   # (4*Mp, K)


# --------------------- in-kernel building blocks (values) ---------------------

def _conv_pool_relu(p, w, b, m, mp):
    """ONE stacked MXU matmul over the 4 pool-phase slabs, then max/bias/ReLU."""
    y = jnp.dot(p, w, preferred_element_type=jnp.float32)          # (4*mp, O)
    y = jnp.maximum(jnp.maximum(y[0:m], y[mp:mp + m]),
                    jnp.maximum(y[2 * mp:2 * mp + m], y[3 * mp:3 * mp + m]))
    return jnp.maximum(y + b, 0.0)                                 # (m, O)


def _pixelwise_fc(g, w_pix_ref, batch, npix):
    """y[b] = sum_p g[p*batch + b, :] @ w_pix[p]  (fc over (pixel, channel))."""
    n = w_pix_ref.shape[2]
    acc = jnp.zeros((batch, n), jnp.float32)
    for p in range(npix):
        acc = acc + jnp.dot(g[p * batch:(p + 1) * batch, :], w_pix_ref[p],
                            preferred_element_type=jnp.float32)
    return acc


# ------------------------- K1 / K3: conv + pool + relu ------------------------

def _conv_stage_kernel(p_ref, w_ref, b_ref, o_ref, *, m, mp):
    o_ref[...] = _conv_pool_relu(p_ref[...], w_ref[...], b_ref[...], m, mp)


def conv_pool_relu(patches, w, b, m, mp):
    o = w.shape[1]
    return pl.pallas_call(
        functools.partial(_conv_stage_kernel, m=m, mp=mp),
        out_shape=jax.ShapeDtypeStruct((m, o), jnp.float32),
        cost_estimate=pl.CostEstimate(
            flops=int(2 * patches.shape[0] * patches.shape[1] * o),
            transcendentals=0,
            bytes_accessed=int(4 * (patches.size + w.size + b.size + m * o))),
    )(patches, w, b)


# ------------ K2: loc conv2 + fc_loc -> theta -> affine grid_sample -----------

def _loc_tail_kernel(p_ref, wc_ref, bc_ref, w1p_ref, b1_ref, w2_ref, b2_ref,
                     x_ref, o_ref, *, m, mp, batch):
    # localization conv2 + 2x2 maxpool + ReLU; rows ordered (pixel, batch)
    g = _conv_pool_relu(p_ref[...], wc_ref[...], bc_ref[...], m, mp)     # (m, 10)
    npix = m // batch

    # fc_loc: Linear(90,32) + ReLU + Linear(32,6) -> theta (batch, 6)
    h = jnp.maximum(_pixelwise_fc(g, w1p_ref, batch, npix) + b1_ref[...], 0.0)
    theta = jnp.dot(h, w2_ref[...], preferred_element_type=jnp.float32) + b2_ref[...]

    # affine_grid + grid_sample (bilinear, zero padding, align_corners=False)
    H, W = x_ref.shape[1], x_ref.shape[2]
    HW = H * W
    pidx = jax.lax.broadcasted_iota(jnp.int32, (1, HW), 1).astype(jnp.float32)
    i_out = jnp.floor(pidx / float(W))
    j_out = pidx - float(W) * i_out
    xn = (2.0 * j_out + 1.0 - W) / W                                     # (1, HW)
    yn = (2.0 * i_out + 1.0 - H) / H
    gx = theta[:, 0:1] * xn + theta[:, 1:2] * yn + theta[:, 2:3]         # (batch, HW)
    gy = theta[:, 3:4] * xn + theta[:, 4:5] * yn + theta[:, 5:6]
    px = ((gx + 1.0) * W - 1.0) * 0.5                                    # input coords
    py = ((gy + 1.0) * H - 1.0) * 0.5
    row_iota = jax.lax.broadcasted_iota(jnp.int32, (H, HW), 0).astype(jnp.float32)
    col_iota = jax.lax.broadcasted_iota(jnp.int32, (W, HW), 0).astype(jnp.float32)

    for b in range(batch):
        y0 = jnp.floor(py[b:b + 1, :]); wy = py[b:b + 1, :] - y0
        x0 = jnp.floor(px[b:b + 1, :]); wx = px[b:b + 1, :] - x0
        # 2-tap per-axis factors; out-of-range taps match no iota row -> zero pad.
        rt = (jnp.where(row_iota == y0, 1.0 - wy, 0.0)
              + jnp.where(row_iota == y0 + 1.0, wy, 0.0))                # (H, HW)
        ct = (jnp.where(col_iota == x0, 1.0 - wx, 0.0)
              + jnp.where(col_iota == x0 + 1.0, wx, 0.0))                # (W, HW)
        t = jnp.dot(x_ref[b], ct, preferred_element_type=jnp.float32)    # (H, HW)
        o_ref[pl.ds(b, 1), :] = jnp.sum(rt * t, axis=0, keepdims=True)


def loc_tail_and_sample(patches, x_img, pk, m, mp):
    batch, H, W = x_img.shape
    HW = H * W
    return pl.pallas_call(
        functools.partial(_loc_tail_kernel, m=m, mp=mp, batch=batch),
        out_shape=jax.ShapeDtypeStruct((batch, HW), jnp.float32),
        cost_estimate=pl.CostEstimate(
            flops=int(2 * patches.shape[0] * patches.shape[1] * 10
                      + 2 * batch * (90 * 32 + 32 * 6)
                      + 2 * batch * H * W * HW + 8 * batch * H * HW),
            transcendentals=0,
            bytes_accessed=int(4 * (patches.size + x_img.size + batch * HW
                                    + pk["loc2_w"].size + pk["fc_loc1_wp"].size))),
    )(patches, pk["loc2_w"], pk["loc2_b"], pk["fc_loc1_wp"], pk["fc_loc1_b"],
      pk["fc_loc2_w"], pk["fc_loc2_b"], x_img)


# ------------- K4: classifier conv2 + fc1 + fc2 + log_softmax -----------------

def _classifier_head_kernel(p_ref, wc_ref, bc_ref, w1p_ref, b1_ref, w2_ref, b2_ref,
                            o_ref, *, m, mp, batch):
    # TODO(synk): Dropout2d on conv2's output is stochastic; identity (inference).
    g = _conv_pool_relu(p_ref[...], wc_ref[...], bc_ref[...], m, mp)     # (m, 20)
    npix = m // batch
    h = jnp.maximum(_pixelwise_fc(g, w1p_ref, batch, npix) + b1_ref[...], 0.0)
    # TODO(synk): F.dropout between fc1 and fc2 is stochastic; identity (inference).
    y = jnp.dot(h, w2_ref[...], preferred_element_type=jnp.float32) + b2_ref[...]
    mx = jnp.max(y, axis=-1, keepdims=True)
    e = jnp.exp(y - mx)
    o_ref[...] = y - mx - jnp.log(jnp.sum(e, axis=-1, keepdims=True))


def classifier_head(patches, pk, m, mp, batch):
    n_out = pk["fc2_w"].shape[1]
    return pl.pallas_call(
        functools.partial(_classifier_head_kernel, m=m, mp=mp, batch=batch),
        out_shape=jax.ShapeDtypeStruct((batch, n_out), jnp.float32),
        cost_estimate=pl.CostEstimate(
            flops=int(2 * patches.shape[0] * patches.shape[1] * 20
                      + 2 * batch * (320 * 160 + 160 * n_out)),
            transcendentals=int(2 * batch * n_out),
            bytes_accessed=int(4 * (patches.size + pk["conv2_w"].size
                                    + pk["fc1_wp"].size + pk["fc2_w"].size
                                    + batch * n_out))),
    )(patches, pk["conv2_w"], pk["conv2_b"], pk["fc1_wp"], pk["fc1_b"],
      pk["fc2_w"], pk["fc2_b"])


# ----------------------------- parameters ------------------------------------

def init_params(key, out_dim=10):
    def u(k, shape, fan_in):
        bound = 1.0 / jnp.sqrt(jnp.float32(fan_in))
        return jax.random.uniform(k, shape, jnp.float32, -bound, bound)

    ks = jax.random.split(key, 14)
    return {
        "conv1_w": u(ks[0], (10, 1, 5, 5), 1 * 25),
        "conv1_b": u(ks[1], (10,), 1 * 25),
        "conv2_w": u(ks[2], (20, 10, 5, 5), 10 * 25),
        "conv2_b": u(ks[3], (20,), 10 * 25),
        "fc1_w":   u(ks[4], (160, 320), 320),
        "fc1_b":   u(ks[5], (160,), 320),
        "fc2_w":   u(ks[6], (out_dim, 160), 160),
        "fc2_b":   u(ks[7], (out_dim,), 160),
        "loc_conv1_w": u(ks[8], (8, 1, 7, 7), 1 * 49),
        "loc_conv1_b": u(ks[9], (8,), 1 * 49),
        "loc_conv2_w": u(ks[10], (10, 8, 5, 5), 8 * 25),
        "loc_conv2_b": u(ks[11], (10,), 8 * 25),
        "fc_loc1_w": u(ks[12], (32, 90), 90),
        "fc_loc1_b": u(ks[13], (32,), 90),
        # Matches the module's explicit init: identity affine transform.
        "fc_loc2_w": jnp.zeros((6, 32), jnp.float32),
        "fc_loc2_b": jnp.array([1, 0, 0, 0, 1, 0], jnp.float32),
    }


def pack_params(p):
    """One-time weight packing into kernel-ready layouts (no per-step XLA glue)."""
    def conv_w(w):                       # (O, C, k, k) -> (k*k*C, O), rows (di, dj, c)
        o, c, k, _ = w.shape
        return jnp.transpose(w, (2, 3, 1, 0)).reshape(k * k * c, o)

    def row(b):
        return b.reshape(1, -1)

    def fc_pixel_blocks(w, c, hp, wp):   # (N, c*hp*wp) torch (c,h,w) order -> (hp*wp, c, N)
        n = w.shape[0]
        return jnp.transpose(w.reshape(n, c, hp, wp), (2, 3, 1, 0)).reshape(hp * wp, c, n)

    packed = {
        "loc1_w": conv_w(p["loc_conv1_w"]), "loc1_b": row(p["loc_conv1_b"]),
        "loc2_w": conv_w(p["loc_conv2_w"]), "loc2_b": row(p["loc_conv2_b"]),
        "conv1_w": conv_w(p["conv1_w"]),    "conv1_b": row(p["conv1_b"]),
        "conv2_w": conv_w(p["conv2_w"]),    "conv2_b": row(p["conv2_b"]),
        "fc_loc1_wp": fc_pixel_blocks(p["fc_loc1_w"], 10, 3, 3),
        "fc_loc1_b":  row(p["fc_loc1_b"]),
        "fc_loc2_w":  p["fc_loc2_w"].T,       # (32, 6)
        "fc_loc2_b":  row(p["fc_loc2_b"]),
        "fc1_wp": fc_pixel_blocks(p["fc1_w"], 20, 4, 4),
        "fc1_b":  row(p["fc1_b"]),
        "fc2_w":  p["fc2_w"].T,               # (160, out_dim)
        "fc2_b":  row(p["fc2_b"]),
    }
    return jax.tree_util.tree_map(lambda a: a.astype(jnp.float32), packed)


# ------------------------------- forward -------------------------------------

def forward(pk, x):
    """Forward pass of SpatialTransformerNet (inference).  x: (B, 1, 28, 28)."""
    B = x.shape[0]
    xf = x.astype(jnp.float32)
    x_img = xf[:, 0]                                               # (B, 28, 28)
    x_nhwc = jnp.transpose(xf, (0, 2, 3, 1))                       # (B, 28, 28, 1)

    # ---- stn localization conv1 (K1) ----
    p1, m1, mp1 = _pool_phase_patches(x_nhwc, 7, pixel_major=False)
    a1 = conv_pool_relu(p1, pk["loc1_w"], pk["loc1_b"], m1, mp1)   # (B*11*11, 8)
    a1 = a1.reshape(B, 11, 11, 8)

    # ---- loc conv2 + fc_loc -> theta -> affine_grid + grid_sample (K2) ----
    p2, m2, mp2 = _pool_phase_patches(a1, 5, pixel_major=True)
    xt = loc_tail_and_sample(p2, x_img, pk, m2, mp2)               # (B, 784)

    # ---- classifier conv1 (K3) ----
    p3, m3, mp3 = _pool_phase_patches(xt.reshape(B, 28, 28, 1), 5, pixel_major=False)
    c1 = conv_pool_relu(p3, pk["conv1_w"], pk["conv1_b"], m3, mp3)  # (B*12*12, 10)
    c1 = c1.reshape(B, 12, 12, 10)

    # ---- classifier conv2 + fc head + log_softmax (K4) ----
    p4, m4, mp4 = _pool_phase_patches(c1, 5, pixel_major=True)
    return classifier_head(p4, pk, m4, mp4, B)                     # (B, out_dim)


# --------------------------------- main ---------------------------------------

if __name__ == "__main__":
    key = jax.random.PRNGKey(0)
    pkey, xkey = jax.random.split(key)
    out_dim = 10
    params = init_params(pkey, out_dim=out_dim)
    packed = pack_params(params)          # one-time weight packing (outside jit)
    # Input must be (B, 1, 28, 28): the module hard-codes 10*3*3 and 320 features.
    x = jax.random.normal(xkey, (2, 1, 28, 28), jnp.float32)
    out = jax.jit(forward)(packed, x)
    out = jax.block_until_ready(out)
    assert out.shape == (2, out_dim)
    assert bool(jnp.all(jnp.isfinite(out)))
    print("KERNEL_OK")
</pallas_src>

<mosaic_0001>
module attributes {stable_mosaic.version = 11 : i64} {
  func.func @_conv_stage_kernel(%arg0: memref<992x49xf32, #tpu.memory_space<vmem>>, %arg1: memref<49x8xf32, #tpu.memory_space<vmem>>, %arg2: memref<1x8xf32, #tpu.memory_space<vmem>>, %arg3: memref<242x8xf32, #tpu.memory_space<vmem>>) attributes {dimension_semantics = [], scalar_prefetch = 0 : i64, scratch_operands = 0 : i64, tpu.core_type = #tpu.core_type<tc>} {
    %c0 = arith.constant 0 : index
    %c0_0 = arith.constant 0 : index
    %0 = vector.load %arg0[%c0, %c0_0] : memref<992x49xf32, #tpu.memory_space<vmem>>, vector<992x49xf32>
    %c0_1 = arith.constant 0 : index
    %c0_2 = arith.constant 0 : index
    %1 = vector.load %arg1[%c0_1, %c0_2] : memref<49x8xf32, #tpu.memory_space<vmem>>, vector<49x8xf32>
    %c0_3 = arith.constant 0 : index
    %c0_4 = arith.constant 0 : index
    %2 = vector.load %arg2[%c0_3, %c0_4] : memref<1x8xf32, #tpu.memory_space<vmem>>, vector<1x8xf32>
    %cst = arith.constant dense<0.000000e+00> : vector<992x8xf32>
    %3 = tpu.matmul %0, %1, %cst {dimension_numbers = #tpu.dot_dimension_numbers<[1], [0], [0], [1], [0, 0, 1, 1], [], []>} : vector<992x49xf32>, vector<49x8xf32>, vector<992x8xf32> -> vector<992x8xf32>
    %4 = vector.extract_strided_slice %3 {offsets = [0, 0], sizes = [242, 8], strides = [1, 1]} : vector<992x8xf32> to vector<242x8xf32>
    %5 = vector.extract_strided_slice %3 {offsets = [248, 0], sizes = [242, 8], strides = [1, 1]} : vector<992x8xf32> to vector<242x8xf32>
    %6 = arith.maximumf %4, %5 : vector<242x8xf32>
    %7 = vector.extract_strided_slice %3 {offsets = [496, 0], sizes = [242, 8], strides = [1, 1]} : vector<992x8xf32> to vector<242x8xf32>
    %8 = vector.extract_strided_slice %3 {offsets = [744, 0], sizes = [242, 8], strides = [1, 1]} : vector<992x8xf32> to vector<242x8xf32>
    %9 = arith.maximumf %7, %8 : vector<242x8xf32>
    %10 = arith.maximumf %6, %9 : vector<242x8xf32>
    %11 = vector.broadcast %2 : vector<1x8xf32> to vector<242x8xf32>
    %12 = arith.addf %10, %11 : vector<242x8xf32>
    %cst_5 = arith.constant 0.000000e+00 : f32
    %13 = vector.broadcast %cst_5 : f32 to vector<242x8xf32>
    %14 = arith.maximumf %12, %13 : vector<242x8xf32>
    %c0_6 = arith.constant 0 : index
    %c0_7 = arith.constant 0 : index
    %15 = vector.load %arg3[%c0_6, %c0_7] : memref<242x8xf32, #tpu.memory_space<vmem>>, vector<242x8xf32>
    tpu.vector_store %arg3[%c0_6, %c0_7], %14 {strides = array<i32>} : memref<242x8xf32, #tpu.memory_space<vmem>>, vector<242x8xf32>,
    return
  }
}

module attributes {stable_mosaic.version = 11 : i64} {
  func.func @_loc_tail_kernel(%arg0: memref<96x200xf32, #tpu.memory_space<vmem>>, %arg1: memref<200x10xf32, #tpu.memory_space<vmem>>, %arg2: memref<1x10xf32, #tpu.memory_space<vmem>>, %arg3: memref<9x10x32xf32, #tpu.memory_space<vmem>>, %arg4: memref<1x32xf32, #tpu.memory_space<vmem>>, %arg5: memref<32x6xf32, #tpu.memory_space<vmem>>, %arg6: memref<1x6xf32, #tpu.memory_space<vmem>>, %arg7: memref<2x28x28xf32, #tpu.memory_space<vmem>>, %arg8: memref<2x784xf32, #tpu.memory_space<vmem>>) attributes {dimension_semantics = [], scalar_prefetch = 0 : i64, scratch_operands = 0 : i64, tpu.core_type = #tpu.core_type<tc>} {
    %c0 = arith.constant 0 : index
    %c0_0 = arith.constant 0 : index
    %0 = vector.load %arg0[%c0, %c0_0] : memref<96x200xf32, #tpu.memory_space<vmem>>, vector<96x200xf32>
    %c0_1 = arith.constant 0 : index
    %c0_2 = arith.constant 0 : index
    %1 = vector.load %arg1[%c0_1, %c0_2] : memref<200x10xf32, #tpu.memory_space<vmem>>, vector<200x10xf32>
    %c0_3 = arith.constant 0 : index
    %c0_4 = arith.constant 0 : index
    %2 = vector.load %arg2[%c0_3, %c0_4] : memref<1x10xf32, #tpu.memory_space<vmem>>, vector<1x10xf32>
    %cst = arith.constant dense<0.000000e+00> : vector<96x10xf32>
    %3 = tpu.matmul %0, %1, %cst {dimension_numbers = #tpu.dot_dimension_numbers<[1], [0], [0], [1], [0, 0, 1, 1], [], []>} : vector<96x200xf32>, vector<200x10xf32>, vector<96x10xf32> -> vector<96x10xf32>
    %4 = vector.extract_strided_slice %3 {offsets = [0, 0], sizes = [18, 10], strides = [1, 1]} : vector<96x10xf32> to vector<18x10xf32>
    %5 = vector.extract_strided_slice %3 {offsets = [24, 0], sizes = [18, 10], strides = [1, 1]} : vector<96x10xf32> to vector<18x10xf32>
    %6 = arith.maximumf %4, %5 : vector<18x10xf32>
    %7 = vector.extract_strided_slice %3 {offsets = [48, 0], sizes = [18, 10], strides = [1, 1]} : vector<96x10xf32> to vector<18x10xf32>
    %8 = vector.extract_strided_slice %3 {offsets = [72, 0], sizes = [18, 10], strides = [1, 1]} : vector<96x10xf32> to vector<18x10xf32>
    %9 = arith.maximumf %7, %8 : vector<18x10xf32>
    %10 = arith.maximumf %6, %9 : vector<18x10xf32>
    %11 = vector.broadcast %2 : vector<1x10xf32> to vector<18x10xf32>
    %12 = arith.addf %10, %11 : vector<18x10xf32>
    %cst_5 = arith.constant 0.000000e+00 : f32
    %13 = vector.broadcast %cst_5 : f32 to vector<18x10xf32>
    %14 = arith.maximumf %12, %13 : vector<18x10xf32>
    %cst_6 = arith.constant 0.000000e+00 : f32
    %15 = vector.broadcast %cst_6 : f32 to vector<2x32xf32>
    %16 = vector.extract_strided_slice %14 {offsets = [0, 0], sizes = [2, 10], strides = [1, 1]} : vector<18x10xf32> to vector<2x10xf32>
    %c0_7 = arith.constant 0 : index
    %c0_8 = arith.constant 0 : index
    %c0_9 = arith.constant 0 : index
    %17 = vector.load %arg3[%c0_7, %c0_8, %c0_9] : memref<9x10x32xf32, #tpu.memory_space<vmem>>, vector<1x10x32xf32>
    %18 = vector.shape_cast %17 : vector<1x10x32xf32> to vector<10x32xf32>
    %cst_10 = arith.constant dense<0.000000e+00> : vector<2x32xf32>
    %19 = tpu.matmul %16, %18, %cst_10 {dimension_numbers = #tpu.dot_dimension_numbers<[1], [0], [0], [1], [0, 0, 1, 1], [], []>} : vector<2x10xf32>, vector<10x32xf32>, vector<2x32xf32> -> vector<2x32xf32>
    %20 = arith.addf %15, %19 : vector<2x32xf32>
    %21 = vector.extract_strided_slice %14 {offsets = [2, 0], sizes = [2, 10], strides = [1, 1]} : vector<18x10xf32> to vector<2x10xf32>
    %c1 = arith.constant 1 : index
    %c0_11 = arith.constant 0 : index
    %c0_12 = arith.constant 0 : index
    %22 = vector.load %arg3[%c1, %c0_11, %c0_12] : memref<9x10x32xf32, #tpu.memory_space<vmem>>, vector<1x10x32xf32>
    %23 = vector.shape_cast %22 : vector<1x10x32xf32> to vector<10x32xf32>
    %cst_13 = arith.constant dense<0.000000e+00> : vector<2x32xf32>
    %24 = tpu.matmul %21, %23, %cst_13 {dimension_numbers = #tpu.dot_dimension_numbers<[1], [0], [0], [1], [0, 0, 1, 1], [], []>} : vector<2x10xf32>, vector<10x32xf32>, vector<2x32xf32> -> vector<2x32xf32>
    %25 = arith.addf %20, %24 : vector<2x32xf32>
    %26 = vector.extract_strided_slice %14 {offsets = [4, 0], sizes = [2, 10], strides = [1, 1]} : vector<18x10xf32> to vector<2x10xf32>
    %c2 = arith.constant 2 : index
    %c0_14 = arith.constant 0 : index
    %c0_15 = arith.constant 0 : index
    %27 = vector.load %arg3[%c2, %c0_14, %c0_15] : memref<9x10x32xf32, #tpu.memory_space<vmem>>, vector<1x10x32xf32>
    %28 = vector.shape_cast %27 : vector<1x10x32xf32> to vector<10x32xf32>
    %cst_16 = arith.constant dense<0.000000e+00> : vector<2x32xf32>
    %29 = tpu.matmul %26, %28, %cst_16 {dimension_numbers = #tpu.dot_dimension_numbers<[1], [0], [0], [1], [0, 0, 1, 1], [], []>} : vector<2x10xf32>, vector<10x32xf32>, vector<2x32xf32> -> vector<2x32xf32>
    %30 = arith.addf %25, %29 : vector<2x32xf32>
    %31 = vector.extract_strided_slice %14 {offsets = [6, 0], sizes = [2, 10], strides = [1, 1]} : vector<18x10xf32> to vector<2x10xf32>
    %c3 = arith.constant 3 : index
    %c0_17 = arith.constant 0 : index
    %c0_18 = arith.constant 0 : index
    %32 = vector.load %arg3[%c3, %c0_17, %c0_18] : memref<9x10x32xf32, #tpu.memory_space<vmem>>, vector<1x10x32xf32>
    %33 = vector.shape_cast %32 : vector<1x10x32xf32> to vector<10x32xf32>
    %cst_19 = arith.constant dense<0.000000e+00> : vector<2x32xf32>
    %34 = tpu.matmul %31, %33, %cst_19 {dimension_numbers = #tpu.dot_dimension_numbers<[1], [0], [0], [1], [0, 0, 1, 1], [], []>} : vector<2x10xf32>, vector<10x32xf32>, vector<2x32xf32> -> vector<2x32xf32>
    %35 = arith.addf %30, %34 : vector<2x32xf32>
    %36 = vector.extract_strided_slice %14 {offsets = [8, 0], sizes = [2, 10], strides = [1, 1]} : vector<18x10xf32> to vector<2x10xf32>
    %c4 = arith.constant 4 : index
    %c0_20 = arith.constant 0 : index
    %c0_21 = arith.constant 0 : index
    %37 = vector.load %arg3[%c4, %c0_20, %c0_21] : memref<9x10x32xf32, #tpu.memory_space<vmem>>, vector<1x10x32xf32>
    %38 = vector.shape_cast %37 : vector<1x10x32xf32> to vector<10x32xf32>
    %cst_22 = arith.constant dense<0.000000e+00> : vector<2x32xf32>
    %39 = tpu.matmul %36, %38, %cst_22 {dimension_numbers = #tpu.dot_dimension_numbers<[1], [0], [0], [1], [0, 0, 1, 1], [], []>} : vector<2x10xf32>, vector<10x32xf32>, vector<2x32xf32> -> vector<2x32xf32>
    %40 = arith.addf %35, %39 : vector<2x32xf32>
    %41 = vector.extract_strided_slice %14 {offsets = [10, 0], sizes = [2, 10], strides = [1, 1]} : vector<18x10xf32> to vector<2x10xf32>
    %c5 = arith.constant 5 : index
    %c0_23 = arith.constant 0 : index
    %c0_24 = arith.constant 0 : index
    %42 = vector.load %arg3[%c5, %c0_23, %c0_24] : memref<9x10x32xf32, #tpu.memory_space<vmem>>, vector<1x10x32xf32>
    %43 = vector.shape_cast %42 : vector<1x10x32xf32> to vector<10x32xf32>
    %cst_25 = arith.constant dense<0.000000e+00> : vector<2x32xf32>
    %44 = tpu.matmul %41, %43, %cst_25 {dimension_numbers = #tpu.dot_dimension_numbers<[1], [0], [0], [1], [0, 0, 1, 1], [], []>} : vector<2x10xf32>, vector<10x32xf32>, vector<2x32xf32> -> vector<2x32xf32>
    %45 = arith.addf %40, %44 : vector<2x32xf32>
    %46 = vector.extract_strided_slice %14 {offsets = [12, 0], sizes = [2, 10], strides = [1, 1]} : vector<18x10xf32> to vector<2x10xf32>
    %c6 = arith.constant 6 : index
    %c0_26 = arith.constant 0 : index
    %c0_27 = arith.constant 0 : index
    %47 = vector.load %arg3[%c6, %c0_26, %c0_27] : memref<9x10x32xf32, #tpu.memory_space<vmem>>, vector<1x10x32xf32>
    %48 = vector.shape_cast %47 : vector<1x10x32xf32> to vector<10x32xf32>
    %cst_28 = arith.constant dense<0.000000e+00> : vector<2x32xf32>
    %49 = tpu.matmul %46, %48, %cst_28 {dimension_numbers = #tpu.dot_dimension_numbers<[1], [0], [0], [1], [0, 0, 1, 1], [], []>} : vector<2x10xf32>, vector<10x32xf32>, vector<2x32xf32> -> vector<2x32xf32>
    %50 = arith.addf %45, %49 : vector<2x32xf32>
    %51 = vector.extract_strided_slice %14 {offsets = [14, 0], sizes = [2, 10], strides = [1, 1]} : vector<18x10xf32> to vector<2x10xf32>
    %c7 = arith.constant 7 : index
    %c0_29 = arith.constant 0 : index
    %c0_30 = arith.constant 0 : index
    %52 = vector.load %arg3[%c7, %c0_29, %c0_30] : memref<9x10x32xf32, #tpu.memory_space<vmem>>, vector<1x10x32xf32>
    %53 = vector.shape_cast %52 : vector<1x10x32xf32> to vector<10x32xf32>
    %cst_31 = arith.constant dense<0.000000e+00> : vector<2x32xf32>
    %54 = tpu.matmul %51, %53, %cst_31 {dimension_numbers = #tpu.dot_dimension_numbers<[1], [0], [0], [1], [0, 0, 1, 1], [], []>} : vector<2x10xf32>, vector<10x32xf32>, vector<2x32xf32> -> vector<2x32xf32>
    %55 = arith.addf %50, %54 : vector<2x32xf32>
    %56 = vector.extract_strided_slice %14 {offsets = [16, 0], sizes = [2, 10], strides = [1, 1]} : vector<18x10xf32> to vector<2x10xf32>
    %c8 = arith.constant 8 : index
    %c0_32 = arith.constant 0 : index
    %c0_33 = arith.constant 0 : index
    %57 = vector.load %arg3[%c8, %c0_32, %c0_33] : memref<9x10x32xf32, #tpu.memory_space<vmem>>, vector<1x10x32xf32>
    %58 = vector.shape_cast %57 : vector<1x10x32xf32> to vector<10x32xf32>
    %cst_34 = arith.constant dense<0.000000e+00> : vector<2x32xf32>
    %59 = tpu.matmul %56, %58, %cst_34 {dimension_numbers = #tpu.dot_dimension_numbers<[1], [0], [0], [1], [0, 0, 1, 1], [], []>} : vector<2x10xf32>, vector<10x32xf32>, vector<2x32xf32> -> vector<2x32xf32>
    %60 = arith.addf %55, %59 : vector<2x32xf32>
    %c0_35 = arith.constant 0 : index
    %c0_36 = arith.constant 0 : index
    %61 = vector.load %arg4[%c0_35, %c0_36] : memref<1x32xf32, #tpu.memory_space<vmem>>, vector<1x32xf32>
    %62 = vector.broadcast %61 : vector<1x32xf32> to vector<2x32xf32>
    %63 = arith.addf %60, %62 : vector<2x32xf32>
    %cst_37 = arith.constant 0.000000e+00 : f32
    %64 = vector.broadcast %cst_37 : f32 to vector<2x32xf32>
    %65 = arith.maximumf %63, %64 : vector<2x32xf32>
    %c0_38 = arith.constant 0 : index
    %c0_39 = arith.constant 0 : index
    %66 = vector.load %arg5[%c0_38, %c0_39] : memref<32x6xf32, #tpu.memory_space<vmem>>, vector<32x6xf32>
    %cst_40 = arith.constant dense<0.000000e+00> : vector<2x6xf32>
    %67 = tpu.matmul %65, %66, %cst_40 {dimension_numbers = #tpu.dot_dimension_numbers<[1], [0], [0], [1], [0, 0, 1, 1], [], []>} : vector<2x32xf32>, vector<32x6xf32>, vector<2x6xf32> -> vector<2x6xf32>
    %c0_41 = arith.constant 0 : index
    %c0_42 = arith.constant 0 : index
    %68 = vector.load %arg6[%c0_41, %c0_42] : memref<1x6xf32, #tpu.memory_space<vmem>>, vector<1x6xf32>
    %69 = vector.broadcast %68 : vector<1x6xf32> to vector<2x6xf32>
    %70 = arith.addf %67, %69 : vector<2x6xf32>
    %71 = tpu.iota {dimensions = array<i32: 1>} : vector<1x784xi32>
    %72 = arith.sitofp %71 : vector<1x784xi32> to vector<1x784xf32>
    %cst_43 = arith.constant 2.800000e+01 : f32
    %73 = vector.broadcast %cst_43 : f32 to vector<1x784xf32>
    %74 = arith.divf %72, %73 : vector<1x784xf32>
    %75 = math.floor %74 : vector<1x784xf32>
    %cst_44 = arith.constant 2.800000e+01 : f32
    %76 = vector.broadcast %cst_44 : f32 to vector<1x784xf32>
    %77 = arith.mulf %76, %75 : vector<1x784xf32>
    %78 = arith.subf %72, %77 : vector<1x784xf32>
    %cst_45 = arith.constant 2.000000e+00 : f32
    %79 = vector.broadcast %cst_45 : f32 to vector<1x784xf32>
    %80 = arith.mulf %79, %78 : vector<1x784xf32>
    %cst_46 = arith.constant 1.000000e+00 : f32
    %81 = vector.broadcast %cst_46 : f32 to vector<1x784xf32>
    %82 = arith.addf %80, %81 : vector<1x784xf32>
    %cst_47 = arith.constant 2.800000e+01 : f32
    %83 = vector.broadcast %cst_47 : f32 to vector<1x784xf32>
    %84 = arith.subf %82, %83 : vector<1x784xf32>
    %cst_48 = arith.constant 2.800000e+01 : f32
    %85 = vector.broadcast %cst_48 : f32 to vector<1x784xf32>
    %86 = arith.divf %84, %85 : vector<1x784xf32>
    %cst_49 = arith.constant 2.000000e+00 : f32
    %87 = vector.broadcast %cst_49 : f32 to vector<1x784xf32>
    %88 = arith.mulf %87, %75 : vector<1x784xf32>
    %cst_50 = arith.constant 1.000000e+00 : f32
    %89 = vector.broadcast %cst_50 : f32 to vector<1x784xf32>
    %90 = arith.addf %88, %89 : vector<1x784xf32>
    %cst_51 = arith.constant 2.800000e+01 : f32
    %91 = vector.broadcast %cst_51 : f32 to vector<1x784xf32>
    %92 = arith.subf %90, %91 : vector<1x784xf32>
    %cst_52 = arith.constant 2.800000e+01 : f32
    %93 = vector.broadcast %cst_52 : f32 to vector<1x784xf32>
    %94 = arith.divf %92, %93 : vector<1x784xf32>
    %95 = vector.extract_strided_slice %70 {offsets = [0, 0], sizes = [2, 1], strides = [1, 1]} : vector<2x6xf32> to vector<2x1xf32>
    %96 = vector.broadcast %95 : vector<2x1xf32> to vector<2x784xf32>
    %97 = vector.broadcast %86 : vector<1x784xf32> to vector<2x784xf32>
    %98 = arith.mulf %96, %97 : vector<2x784xf32>
    %99 = vector.extract_strided_slice %70 {offsets = [0, 1], sizes = [2, 1], strides = [1, 1]} : vector<2x6xf32> to vector<2x1xf32>
    %100 = vector.broadcast %99 : vector<2x1xf32> to vector<2x784xf32>
    %101 = vector.broadcast %94 : vector<1x784xf32> to vector<2x784xf32>
    %102 = arith.mulf %100, %101 : vector<2x784xf32>
    %103 = arith.addf %98, %102 : vector<2x784xf32>
    %104 = vector.extract_strided_slice %70 {offsets = [0, 2], sizes = [2, 1], strides = [1, 1]} : vector<2x6xf32> to vector<2x1xf32>
    %105 = vector.broadcast %104 : vector<2x1xf32> to vector<2x784xf32>
    %106 = arith.addf %103, %105 : vector<2x784xf32>
    %107 = vector.extract_strided_slice %70 {offsets = [0, 3], sizes = [2, 1], strides = [1, 1]} : vector<2x6xf32> to vector<2x1xf32>
    %108 = vector.broadcast %107 : vector<2x1xf32> to vector<2x784xf32>
    %109 = vector.broadcast %86 : vector<1x784xf32> to vector<2x784xf32>
    %110 = arith.mulf %108, %109 : vector<2x784xf32>
    %111 = vector.extract_strided_slice %70 {offsets = [0, 4], sizes = [2, 1], strides = [1, 1]} : vector<2x6xf32> to vector<2x1xf32>
    %112 = vector.broadcast %111 : vector<2x1xf32> to vector<2x784xf32>
    %113 = vector.broadcast %94 : vector<1x784xf32> to vector<2x784xf32>
    %114 = arith.mulf %112, %113 : vector<2x784xf32>
    %115 = arith.addf %110, %114 : vector<2x784xf32>
    %116 = vector.extract_strided_slice %70 {offsets = [0, 5], sizes = [2, 1], strides = [1, 1]} : vector<2x6xf32> to vector<2x1xf32>
    %117 = vector.broadcast %116 : vector<2x1xf32> to vector<2x784xf32>
    %118 = arith.addf %115, %117 : vector<2x784xf32>
    %cst_53 = arith.constant 1.000000e+00 : f32
    %119 = vector.broadcast %cst_53 : f32 to vector<2x784xf32>
    %120 = arith.addf %106, %119 : vector<2x784xf32>
    %cst_54 = arith.constant 2.800000e+01 : f32
    %121 = vector.broadcast %cst_54 : f32 to vector<2x784xf32>
    %122 = arith.mulf %120, %121 : vector<2x784xf32>
    %cst_55 = arith.constant 1.000000e+00 : f32
    %123 = vector.broadcast %cst_55 : f32 to vector<2x784xf32>
    %124 = arith.subf %122, %123 : vector<2x784xf32>
    %cst_56 = arith.constant 5.000000e-01 : f32
    %125 = vector.broadcast %cst_56 : f32 to vector<2x784xf32>
    %126 = arith.mulf %124, %125 : vector<2x784xf32>
    %cst_57 = arith.constant 1.000000e+00 : f32
    %127 = vector.broadcast %cst_57 : f32 to vector<2x784xf32>
    %128 = arith.addf %118, %127 : vector<2x784xf32>
    %cst_58 = arith.constant 2.800000e+01 : f32
    %129 = vector.broadcast %cst_58 : f32 to vector<2x784xf32>
    %130 = arith.mulf %128, %129 : vector<2x784xf32>
    %cst_59 = arith.constant 1.000000e+00 : f32
    %131 = vector.broadcast %cst_59 : f32 to vector<2x784xf32>
    %132 = arith.subf %130, %131 : vector<2x784xf32>
    %cst_60 = arith.constant 5.000000e-01 : f32
    %133 = vector.broadcast %cst_60 : f32 to vector<2x784xf32>
    %134 = arith.mulf %132, %133 : vector<2x784xf32>
    %135 = tpu.iota {dimensions = array<i32: 0>} : vector<28x784xi32>
    %136 = arith.sitofp %135 : vector<28x784xi32> to vector<28x784xf32>
    %137 = tpu.iota {dimensions = array<i32: 0>} : vector<28x784xi32>
    %138 = arith.sitofp %137 : vector<28x784xi32> to vector<28x784xf32>
    %139 = vector.extract_strided_slice %134 {offsets = [0, 0], sizes = [1, 784], strides = [1, 1]} : vector<2x784xf32> to vector<1x784xf32>
    %140 = math.floor %139 : vector<1x784xf32>
    %141 = vector.extract_strided_slice %134 {offsets = [0, 0], sizes = [1, 784], strides = [1, 1]} : vector<2x784xf32> to vector<1x784xf32>
    %142 = arith.subf %141, %140 : vector<1x784xf32>
    %143 = vector.extract_strided_slice %126 {offsets = [0, 0], sizes = [1, 784], strides = [1, 1]} : vector<2x784xf32> to vector<1x784xf32>
    %144 = math.floor %143 : vector<1x784xf32>
    %145 = vector.extract_strided_slice %126 {offsets = [0, 0], sizes = [1, 784], strides = [1, 1]} : vector<2x784xf32> to vector<1x784xf32>
    %146 = arith.subf %145, %144 : vector<1x784xf32>
    %147 = vector.broadcast %140 : vector<1x784xf32> to vector<28x784xf32>
    %148 = arith.cmpf oeq, %136, %147 : vector<28x784xf32>
    %cst_61 = arith.constant 1.000000e+00 : f32
    %149 = vector.broadcast %cst_61 : f32 to vector<1x784xf32>
    %150 = arith.subf %149, %142 : vector<1x784xf32>
    %cst_62 = arith.constant 0.000000e+00 : f32
    %151 = vector.shape_cast %150 : vector<1x784xf32> to vector<1x784xf32>
    %152 = vector.broadcast %151 : vector<1x784xf32> to vector<28x784xf32>
    %153 = vector.broadcast %cst_62 : f32 to vector<28x784xf32>
    %154 = arith.select %148, %152, %153 : vector<28x784xi1>, vector<28x784xf32>
    %cst_63 = arith.constant 1.000000e+00 : f32
    %155 = vector.broadcast %cst_63 : f32 to vector<1x784xf32>
    %156 = arith.addf %140, %155 : vector<1x784xf32>
    %157 = vector.broadcast %156 : vector<1x784xf32> to vector<28x784xf32>
    %158 = arith.cmpf oeq, %136, %157 : vector<28x784xf32>
    %cst_64 = arith.constant 0.000000e+00 : f32
    %159 = vector.shape_cast %142 : vector<1x784xf32> to vector<1x784xf32>
    %160 = vector.broadcast %159 : vector<1x784xf32> to vector<28x784xf32>
    %161 = vector.broadcast %cst_64 : f32 to vector<28x784xf32>
    %162 = arith.select %158, %160, %161 : vector<28x784xi1>, vector<28x784xf32>
    %163 = arith.addf %154, %162 : vector<28x784xf32>
    %164 = vector.broadcast %144 : vector<1x784xf32> to vector<28x784xf32>
    %165 = arith.cmpf oeq, %138, %164 : vector<28x784xf32>
    %cst_65 = arith.constant 1.000000e+00 : f32
    %166 = vector.broadcast %cst_65 : f32 to vector<1x784xf32>
    %167 = arith.subf %166, %146 : vector<1x784xf32>
    %cst_66 = arith.constant 0.000000e+00 : f32
    %168 = vector.shape_cast %167 : vector<1x784xf32> to vector<1x784xf32>
    %169 = vector.broadcast %168 : vector<1x784xf32> to vector<28x784xf32>
    %170 = vector.broadcast %cst_66 : f32 to vector<28x784xf32>
    %171 = arith.select %165, %169, %170 : vector<28x784xi1>, vector<28x784xf32>
    %cst_67 = arith.constant 1.000000e+00 : f32
    %172 = vector.broadcast %cst_67 : f32 to vector<1x784xf32>
    %173 = arith.addf %144, %172 : vector<1x784xf32>
    %174 = vector.broadcast %173 : vector<1x784xf32> to vector<28x784xf32>
    %175 = arith.cmpf oeq, %138, %174 : vector<28x784xf32>
    %cst_68 = arith.constant 0.000000e+00 : f32
    %176 = vector.shape_cast %146 : vector<1x784xf32> to vector<1x784xf32>
    %177 = vector.broadcast %176 : vector<1x784xf32> to vector<28x784xf32>
    %178 = vector.broadcast %cst_68 : f32 to vector<28x784xf32>
    %179 = arith.select %175, %177, %178 : vector<28x784xi1>, vector<28x784xf32>
    %180 = arith.addf %171, %179 : vector<28x784xf32>
    %c0_69 = arith.constant 0 : index
    %c0_70 = arith.constant 0 : index
    %c0_71 = arith.constant 0 : index
    %181 = vector.load %arg7[%c0_69, %c0_70, %c0_71] : memref<2x28x28xf32, #tpu.memory_space<vmem>>, vector<1x28x28xf32>
    %182 = vector.shape_cast %181 : vector<1x28x28xf32> to vector<28x28xf32>
    %cst_72 = arith.constant dense<0.000000e+00> : vector<28x784xf32>
    %183 = tpu.matmul %182, %180, %cst_72 {dimension_numbers = #tpu.dot_dimension_numbers<[1], [0], [0], [1], [0, 0, 1, 1], [], []>} : vector<28x28xf32>, vector<28x784xf32>, vector<28x784xf32> -> vector<28x784xf32>
    %184 = arith.mulf %163, %183 : vector<28x784xf32>
    %cst_73 = arith.constant dense<0.000000e+00> : vector<784xf32>
    %185 = vector.multi_reduction <add>, %184, %cst_73 [0] : vector<28x784xf32> to vector<784xf32>
    %186 = vector.shape_cast %185 : vector<784xf32> to vector<1x784xf32>
    %c0_74 = arith.constant 0 : index
    %c0_75 = arith.constant 0 : index
    %187 = vector.load %arg8[%c0_74, %c0_75] : memref<2x784xf32, #tpu.memory_space<vmem>>, vector<1x784xf32>
    tpu.vector_store %arg8[%c0_74, %c0_75], %186 {strides = array<i32>} : memref<2x784xf32, #tpu.memory_space<vmem>>, vector<1x784xf32>,
    %188 = vector.extract_strided_slice %134 {offsets = [1, 0], sizes = [1, 784], strides = [1, 1]} : vector<2x784xf32> to vector<1x784xf32>
    %189 = math.floor %188 : vector<1x784xf32>
    %190 = vector.extract_strided_slice %134 {offsets = [1, 0], sizes = [1, 784], strides = [1, 1]} : vector<2x784xf32> to vector<1x784xf32>
    %191 = arith.subf %190, %189 : vector<1x784xf32>
    %192 = vector.extract_strided_slice %126 {offsets = [1, 0], sizes = [1, 784], strides = [1, 1]} : vector<2x784xf32> to vector<1x784xf32>
    %193 = math.floor %192 : vector<1x784xf32>
    %194 = vector.extract_strided_slice %126 {offsets = [1, 0], sizes = [1, 784], strides = [1, 1]} : vector<2x784xf32> to vector<1x784xf32>
    %195 = arith.subf %194, %193 : vector<1x784xf32>
    %196 = vector.broadcast %189 : vector<1x784xf32> to vector<28x784xf32>
    %197 = arith.cmpf oeq, %136, %196 : vector<28x784xf32>
    %cst_76 = arith.constant 1.000000e+00 : f32
    %198 = vector.broadcast %cst_76 : f32 to vector<1x784xf32>
    %199 = arith.subf %198, %191 : vector<1x784xf32>
    %cst_77 = arith.constant 0.000000e+00 : f32
    %200 = vector.shape_cast %199 : vector<1x784xf32> to vector<1x784xf32>
    %201 = vector.broadcast %200 : vector<1x784xf32> to vector<28x784xf32>
    %202 = vector.broadcast %cst_77 : f32 to vector<28x784xf32>
    %203 = arith.select %197, %201, %202 : vector<28x784xi1>, vector<28x784xf32>
    %cst_78 = arith.constant 1.000000e+00 : f32
    %204 = vector.broadcast %cst_78 : f32 to vector<1x784xf32>
    %205 = arith.addf %189, %204 : vector<1x784xf32>
    %206 = vector.broadcast %205 : vector<1x784xf32> to vector<28x784xf32>
    %207 = arith.cmpf oeq, %136, %206 : vector<28x784xf32>
    %cst_79 = arith.constant 0.000000e+00 : f32
    %208 = vector.shape_cast %191 : vector<1x784xf32> to vector<1x784xf32>
    %209 = vector.broadcast %208 : vector<1x784xf32> to vector<28x784xf32>
    %210 = vector.broadcast %cst_79 : f32 to vector<28x784xf32>
    %211 = arith.select %207, %209, %210 : vector<28x784xi1>, vector<28x784xf32>
    %212 = arith.addf %203, %211 : vector<28x784xf32>
    %213 = vector.broadcast %193 : vector<1x784xf32> to vector<28x784xf32>
    %214 = arith.cmpf oeq, %138, %213 : vector<28x784xf32>
    %cst_80 = arith.constant 1.000000e+00 : f32
    %215 = vector.broadcast %cst_80 : f32 to vector<1x784xf32>
    %216 = arith.subf %215, %195 : vector<1x784xf32>
    %cst_81 = arith.constant 0.000000e+00 : f32
    %217 = vector.shape_cast %216 : vector<1x784xf32> to vector<1x784xf32>
    %218 = vector.broadcast %217 : vector<1x784xf32> to vector<28x784xf32>
    %219 = vector.broadcast %cst_81 : f32 to vector<28x784xf32>
    %220 = arith.select %214, %218, %219 : vector<28x784xi1>, vector<28x784xf32>
    %cst_82 = arith.constant 1.000000e+00 : f32
    %221 = vector.broadcast %cst_82 : f32 to vector<1x784xf32>
    %222 = arith.addf %193, %221 : vector<1x784xf32>
    %223 = vector.broadcast %222 : vector<1x784xf32> to vector<28x784xf32>
    %224 = arith.cmpf oeq, %138, %223 : vector<28x784xf32>
    %cst_83 = arith.constant 0.000000e+00 : f32
    %225 = vector.shape_cast %195 : vector<1x784xf32> to vector<1x784xf32>
    %226 = vector.broadcast %225 : vector<1x784xf32> to vector<28x784xf32>
    %227 = vector.broadcast %cst_83 : f32 to vector<28x784xf32>
    %228 = arith.select %224, %226, %227 : vector<28x784xi1>, vector<28x784xf32>
    %229 = arith.addf %220, %228 : vector<28x784xf32>
    %c1_84 = arith.constant 1 : index
    %c0_85 = arith.constant 0 : index
    %c0_86 = arith.constant 0 : index
    %230 = vector.load %arg7[%c1_84, %c0_85, %c0_86] : memref<2x28x28xf32, #tpu.memory_space<vmem>>, vector<1x28x28xf32>
    %231 = vector.shape_cast %230 : vector<1x28x28xf32> to vector<28x28xf32>
    %cst_87 = arith.constant dense<0.000000e+00> : vector<28x784xf32>
    %232 = tpu.matmul %231, %229, %cst_87 {dimension_numbers = #tpu.dot_dimension_numbers<[1], [0], [0], [1], [0, 0, 1, 1], [], []>} : vector<28x28xf32>, vector<28x784xf32>, vector<28x784xf32> -> vector<28x784xf32>
    %233 = arith.mulf %212, %232 : vector<28x784xf32>
    %cst_88 = arith.constant dense<0.000000e+00> : vector<784xf32>
    %234 = vector.multi_reduction <add>, %233, %cst_88 [0] : vector<28x784xf32> to vector<784xf32>
    %235 = vector.shape_cast %234 : vector<784xf32> to vector<1x784xf32>
    %c1_89 = arith.constant 1 : index
    %c0_90 = arith.constant 0 : index
    %236 = vector.load %arg8[%c1_89, %c0_90] : memref<2x784xf32, #tpu.memory_space<vmem>>, vector<1x784xf32>
    tpu.vector_store %arg8[%c1_89, %c0_90], %235 {strides = array<i32>} : memref<2x784xf32, #tpu.memory_space<vmem>>, vector<1x784xf32>,
    return
  }
}

module attributes {stable_mosaic.version = 11 : i64} {
  func.func @_conv_stage_kernel(%arg0: memref<1152x25xf32, #tpu.memory_space<vmem>>, %arg1: memref<25x10xf32, #tpu.memory_space<vmem>>, %arg2: memref<1x10xf32, #tpu.memory_space<vmem>>, %arg3: memref<288x10xf32, #tpu.memory_space<vmem>>) attributes {dimension_semantics = [], scalar_prefetch = 0 : i64, scratch_operands = 0 : i64, tpu.core_type = #tpu.core_type<tc>} {
    %c0 = arith.constant 0 : index
    %c0_0 = arith.constant 0 : index
    %0 = vector.load %arg0[%c0, %c0_0] : memref<1152x25xf32, #tpu.memory_space<vmem>>, vector<1152x25xf32>
    %c0_1 = arith.constant 0 : index
    %c0_2 = arith.constant 0 : index
    %1 = vector.load %arg1[%c0_1, %c0_2] : memref<25x10xf32, #tpu.memory_space<vmem>>, vector<25x10xf32>
    %c0_3 = arith.constant 0 : index
    %c0_4 = arith.constant 0 : index
    %2 = vector.load %arg2[%c0_3, %c0_4] : memref<1x10xf32, #tpu.memory_space<vmem>>, vector<1x10xf32>
    %cst = arith.constant dense<0.000000e+00> : vector<1152x10xf32>
    %3 = tpu.matmul %0, %1, %cst {dimension_numbers = #tpu.dot_dimension_numbers<[1], [0], [0], [1], [0, 0, 1, 1], [], []>} : vector<1152x25xf32>, vector<25x10xf32>, vector<1152x10xf32> -> vector<1152x10xf32>
    %4 = vector.extract_strided_slice %3 {offsets = [0, 0], sizes = [288, 10], strides = [1, 1]} : vector<1152x10xf32> to vector<288x10xf32>
    %5 = vector.extract_strided_slice %3 {offsets = [288, 0], sizes = [288, 10], strides = [1, 1]} : vector<1152x10xf32> to vector<288x10xf32>
    %6 = arith.maximumf %4, %5 : vector<288x10xf32>
    %7 = vector.extract_strided_slice %3 {offsets = [576, 0], sizes = [288, 10], strides = [1, 1]} : vector<1152x10xf32> to vector<288x10xf32>
    %8 = vector.extract_strided_slice %3 {offsets = [864, 0], sizes = [288, 10], strides = [1, 1]} : vector<1152x10xf32> to vector<288x10xf32>
    %9 = arith.maximumf %7, %8 : vector<288x10xf32>
    %10 = arith.maximumf %6, %9 : vector<288x10xf32>
    %11 = vector.broadcast %2 : vector<1x10xf32> to vector<288x10xf32>
    %12 = arith.addf %10, %11 : vector<288x10xf32>
    %cst_5 = arith.constant 0.000000e+00 : f32
    %13 = vector.broadcast %cst_5 : f32 to vector<288x10xf32>
    %14 = arith.maximumf %12, %13 : vector<288x10xf32>
    %c0_6 = arith.constant 0 : index
    %c0_7 = arith.constant 0 : index
    %15 = vector.load %arg3[%c0_6, %c0_7] : memref<288x10xf32, #tpu.memory_space<vmem>>, vector<288x10xf32>
    tpu.vector_store %arg3[%c0_6, %c0_7], %14 {strides = array<i32>} : memref<288x10xf32, #tpu.memory_space<vmem>>, vector<288x10xf32>,
    return
  }
}

module attributes {stable_mosaic.version = 11 : i64} {
  func.func @_classifier_head_kernel(%arg0: memref<128x250xf32, #tpu.memory_space<vmem>>, %arg1: memref<250x20xf32, #tpu.memory_space<vmem>>, %arg2: memref<1x20xf32, #tpu.memory_space<vmem>>, %arg3: memref<16x20x160xf32, #tpu.memory_space<vmem>>, %arg4: memref<1x160xf32, #tpu.memory_space<vmem>>, %arg5: memref<160x10xf32, #tpu.memory_space<vmem>>, %arg6: memref<1x10xf32, #tpu.memory_space<vmem>>, %arg7: memref<2x10xf32, #tpu.memory_space<vmem>>) attributes {dimension_semantics = [], scalar_prefetch = 0 : i64, scratch_operands = 0 : i64, tpu.core_type = #tpu.core_type<tc>} {
    %c0 = arith.constant 0 : index
    %c0_0 = arith.constant 0 : index
    %0 = vector.load %arg0[%c0, %c0_0] : memref<128x250xf32, #tpu.memory_space<vmem>>, vector<128x250xf32>
    %c0_1 = arith.constant 0 : index
    %c0_2 = arith.constant 0 : index
    %1 = vector.load %arg1[%c0_1, %c0_2] : memref<250x20xf32, #tpu.memory_space<vmem>>, vector<250x20xf32>
    %c0_3 = arith.constant 0 : index
    %c0_4 = arith.constant 0 : index
    %2 = vector.load %arg2[%c0_3, %c0_4] : memref<1x20xf32, #tpu.memory_space<vmem>>, vector<1x20xf32>
    %cst = arith.constant dense<0.000000e+00> : vector<128x20xf32>
    %3 = tpu.matmul %0, %1, %cst {dimension_numbers = #tpu.dot_dimension_numbers<[1], [0], [0], [1], [0, 0, 1, 1], [], []>} : vector<128x250xf32>, vector<250x20xf32>, vector<128x20xf32> -> vector<128x20xf32>
    %4 = vector.extract_strided_slice %3 {offsets = [0, 0], sizes = [32, 20], strides = [1, 1]} : vector<128x20xf32> to vector<32x20xf32>
    %5 = vector.extract_strided_slice %3 {offsets = [32, 0], sizes = [32, 20], strides = [1, 1]} : vector<128x20xf32> to vector<32x20xf32>
    %6 = arith.maximumf %4, %5 : vector<32x20xf32>
    %7 = vector.extract_strided_slice %3 {offsets = [64, 0], sizes = [32, 20], strides = [1, 1]} : vector<128x20xf32> to vector<32x20xf32>
    %8 = vector.extract_strided_slice %3 {offsets = [96, 0], sizes = [32, 20], strides = [1, 1]} : vector<128x20xf32> to vector<32x20xf32>
    %9 = arith.maximumf %7, %8 : vector<32x20xf32>
    %10 = arith.maximumf %6, %9 : vector<32x20xf32>
    %11 = vector.broadcast %2 : vector<1x20xf32> to vector<32x20xf32>
    %12 = arith.addf %10, %11 : vector<32x20xf32>
    %cst_5 = arith.constant 0.000000e+00 : f32
    %13 = vector.broadcast %cst_5 : f32 to vector<32x20xf32>
    %14 = arith.maximumf %12, %13 : vector<32x20xf32>
    %cst_6 = arith.constant 0.000000e+00 : f32
    %15 = vector.broadcast %cst_6 : f32 to vector<2x160xf32>
    %16 = vector.extract_strided_slice %14 {offsets = [0, 0], sizes = [2, 20], strides = [1, 1]} : vector<32x20xf32> to vector<2x20xf32>
    %c0_7 = arith.constant 0 : index
    %c0_8 = arith.constant 0 : index
    %c0_9 = arith.constant 0 : index
    %17 = vector.load %arg3[%c0_7, %c0_8, %c0_9] : memref<16x20x160xf32, #tpu.memory_space<vmem>>, vector<1x20x160xf32>
    %18 = vector.shape_cast %17 : vector<1x20x160xf32> to vector<20x160xf32>
    %cst_10 = arith.constant dense<0.000000e+00> : vector<2x160xf32>
    %19 = tpu.matmul %16, %18, %cst_10 {dimension_numbers = #tpu.dot_dimension_numbers<[1], [0], [0], [1], [0, 0, 1, 1], [], []>} : vector<2x20xf32>, vector<20x160xf32>, vector<2x160xf32> -> vector<2x160xf32>
    %20 = arith.addf %15, %19 : vector<2x160xf32>
    %21 = vector.extract_strided_slice %14 {offsets = [2, 0], sizes = [2, 20], strides = [1, 1]} : vector<32x20xf32> to vector<2x20xf32>
    %c1 = arith.constant 1 : index
    %c0_11 = arith.constant 0 : index
    %c0_12 = arith.constant 0 : index
    %22 = vector.load %arg3[%c1, %c0_11, %c0_12] : memref<16x20x160xf32, #tpu.memory_space<vmem>>, vector<1x20x160xf32>
    %23 = vector.shape_cast %22 : vector<1x20x160xf32> to vector<20x160xf32>
    %cst_13 = arith.constant dense<0.000000e+00> : vector<2x160xf32>
    %24 = tpu.matmul %21, %23, %cst_13 {dimension_numbers = #tpu.dot_dimension_numbers<[1], [0], [0], [1], [0, 0, 1, 1], [], []>} : vector<2x20xf32>, vector<20x160xf32>, vector<2x160xf32> -> vector<2x160xf32>
    %25 = arith.addf %20, %24 : vector<2x160xf32>
    %26 = vector.extract_strided_slice %14 {offsets = [4, 0], sizes = [2, 20], strides = [1, 1]} : vector<32x20xf32> to vector<2x20xf32>
    %c2 = arith.constant 2 : index
    %c0_14 = arith.constant 0 : index
    %c0_15 = arith.constant 0 : index
    %27 = vector.load %arg3[%c2, %c0_14, %c0_15] : memref<16x20x160xf32, #tpu.memory_space<vmem>>, vector<1x20x160xf32>
    %28 = vector.shape_cast %27 : vector<1x20x160xf32> to vector<20x160xf32>
    %cst_16 = arith.constant dense<0.000000e+00> : vector<2x160xf32>
    %29 = tpu.matmul %26, %28, %cst_16 {dimension_numbers = #tpu.dot_dimension_numbers<[1], [0], [0], [1], [0, 0, 1, 1], [], []>} : vector<2x20xf32>, vector<20x160xf32>, vector<2x160xf32> -> vector<2x160xf32>
    %30 = arith.addf %25, %29 : vector<2x160xf32>
    %31 = vector.extract_strided_slice %14 {offsets = [6, 0], sizes = [2, 20], strides = [1, 1]} : vector<32x20xf32> to vector<2x20xf32>
    %c3 = arith.constant 3 : index
    %c0_17 = arith.constant 0 : index
    %c0_18 = arith.constant 0 : index
    %32 = vector.load %arg3[%c3, %c0_17, %c0_18] : memref<16x20x160xf32, #tpu.memory_space<vmem>>, vector<1x20x160xf32>
    %33 = vector.shape_cast %32 : vector<1x20x160xf32> to vector<20x160xf32>
    %cst_19 = arith.constant dense<0.000000e+00> : vector<2x160xf32>
    %34 = tpu.matmul %31, %33, %cst_19 {dimension_numbers = #tpu.dot_dimension_numbers<[1], [0], [0], [1], [0, 0, 1, 1], [], []>} : vector<2x20xf32>, vector<20x160xf32>, vector<2x160xf32> -> vector<2x160xf32>
    %35 = arith.addf %30, %34 : vector<2x160xf32>
    %36 = vector.extract_strided_slice %14 {offsets = [8, 0], sizes = [2, 20], strides = [1, 1]} : vector<32x20xf32> to vector<2x20xf32>
    %c4 = arith.constant 4 : index
    %c0_20 = arith.constant 0 : index
    %c0_21 = arith.constant 0 : index
    %37 = vector.load %arg3[%c4, %c0_20, %c0_21] : memref<16x20x160xf32, #tpu.memory_space<vmem>>, vector<1x20x160xf32>
    %38 = vector.shape_cast %37 : vector<1x20x160xf32> to vector<20x160xf32>
    %cst_22 = arith.constant dense<0.000000e+00> : vector<2x160xf32>
    %39 = tpu.matmul %36, %38, %cst_22 {dimension_numbers = #tpu.dot_dimension_numbers<[1], [0], [0], [1], [0, 0, 1, 1], [], []>} : vector<2x20xf32>, vector<20x160xf32>, vector<2x160xf32> -> vector<2x160xf32>
    %40 = arith.addf %35, %39 : vector<2x160xf32>
    %41 = vector.extract_strided_slice %14 {offsets = [10, 0], sizes = [2, 20], strides = [1, 1]} : vector<32x20xf32> to vector<2x20xf32>
    %c5 = arith.constant 5 : index
    %c0_23 = arith.constant 0 : index
    %c0_24 = arith.constant 0 : index
    %42 = vector.load %arg3[%c5, %c0_23, %c0_24] : memref<16x20x160xf32, #tpu.memory_space<vmem>>, vector<1x20x160xf32>
    %43 = vector.shape_cast %42 : vector<1x20x160xf32> to vector<20x160xf32>
    %cst_25 = arith.constant dense<0.000000e+00> : vector<2x160xf32>
    %44 = tpu.matmul %41, %43, %cst_25 {dimension_numbers = #tpu.dot_dimension_numbers<[1], [0], [0], [1], [0, 0, 1, 1], [], []>} : vector<2x20xf32>, vector<20x160xf32>, vector<2x160xf32> -> vector<2x160xf32>
    %45 = arith.addf %40, %44 : vector<2x160xf32>
    %46 = vector.extract_strided_slice %14 {offsets = [12, 0], sizes = [2, 20], strides = [1, 1]} : vector<32x20xf32> to vector<2x20xf32>
    %c6 = arith.constant 6 : index
    %c0_26 = arith.constant 0 : index
    %c0_27 = arith.constant 0 : index
    %47 = vector.load %arg3[%c6, %c0_26, %c0_27] : memref<16x20x160xf32, #tpu.memory_space<vmem>>, vector<1x20x160xf32>
    %48 = vector.shape_cast %47 : vector<1x20x160xf32> to vector<20x160xf32>
    %cst_28 = arith.constant dense<0.000000e+00> : vector<2x160xf32>
    %49 = tpu.matmul %46, %48, %cst_28 {dimension_numbers = #tpu.dot_dimension_numbers<[1], [0], [0], [1], [0, 0, 1, 1], [], []>} : vector<2x20xf32>, vector<20x160xf32>, vector<2x160xf32> -> vector<2x160xf32>
    %50 = arith.addf %45, %49 : vector<2x160xf32>
    %51 = vector.extract_strided_slice %14 {offsets = [14, 0], sizes = [2, 20], strides = [1, 1]} : vector<32x20xf32> to vector<2x20xf32>
    %c7 = arith.constant 7 : index
    %c0_29 = arith.constant 0 : index
    %c0_30 = arith.constant 0 : index
    %52 = vector.load %arg3[%c7, %c0_29, %c0_30] : memref<16x20x160xf32, #tpu.memory_space<vmem>>, vector<1x20x160xf32>
    %53 = vector.shape_cast %52 : vector<1x20x160xf32> to vector<20x160xf32>
    %cst_31 = arith.constant dense<0.000000e+00> : vector<2x160xf32>
    %54 = tpu.matmul %51, %53, %cst_31 {dimension_numbers = #tpu.dot_dimension_numbers<[1], [0], [0], [1], [0, 0, 1, 1], [], []>} : vector<2x20xf32>, vector<20x160xf32>, vector<2x160xf32> -> vector<2x160xf32>
    %55 = arith.addf %50, %54 : vector<2x160xf32>
    %56 = vector.extract_strided_slice %14 {offsets = [16, 0], sizes = [2, 20], strides = [1, 1]} : vector<32x20xf32> to vector<2x20xf32>
    %c8 = arith.constant 8 : index
    %c0_32 = arith.constant 0 : index
    %c0_33 = arith.constant 0 : index
    %57 = vector.load %arg3[%c8, %c0_32, %c0_33] : memref<16x20x160xf32, #tpu.memory_space<vmem>>, vector<1x20x160xf32>
    %58 = vector.shape_cast %57 : vector<1x20x160xf32> to vector<20x160xf32>
    %cst_34 = arith.constant dense<0.000000e+00> : vector<2x160xf32>
    %59 = tpu.matmul %56, %58, %cst_34 {dimension_numbers = #tpu.dot_dimension_numbers<[1], [0], [0], [1], [0, 0, 1, 1], [], []>} : vector<2x20xf32>, vector<20x160xf32>, vector<2x160xf32> -> vector<2x160xf32>
    %60 = arith.addf %55, %59 : vector<2x160xf32>
    %61 = vector.extract_strided_slice %14 {offsets = [18, 0], sizes = [2, 20], strides = [1, 1]} : vector<32x20xf32> to vector<2x20xf32>
    %c9 = arith.constant 9 : index
    %c0_35 = arith.constant 0 : index
    %c0_36 = arith.constant 0 : index
    %62 = vector.load %arg3[%c9, %c0_35, %c0_36] : memref<16x20x160xf32, #tpu.memory_space<vmem>>, vector<1x20x160xf32>
    %63 = vector.shape_cast %62 : vector<1x20x160xf32> to vector<20x160xf32>
    %cst_37 = arith.constant dense<0.000000e+00> : vector<2x160xf32>
    %64 = tpu.matmul %61, %63, %cst_37 {dimension_numbers = #tpu.dot_dimension_numbers<[1], [0], [0], [1], [0, 0, 1, 1], [], []>} : vector<2x20xf32>, vector<20x160xf32>, vector<2x160xf32> -> vector<2x160xf32>
    %65 = arith.addf %60, %64 : vector<2x160xf32>
    %66 = vector.extract_strided_slice %14 {offsets = [20, 0], sizes = [2, 20], strides = [1, 1]} : vector<32x20xf32> to vector<2x20xf32>
    %c10 = arith.constant 10 : index
    %c0_38 = arith.constant 0 : index
    %c0_39 = arith.constant 0 : index
    %67 = vector.load %arg3[%c10, %c0_38, %c0_39] : memref<16x20x160xf32, #tpu.memory_space<vmem>>, vector<1x20x160xf32>
    %68 = vector.shape_cast %67 : vector<1x20x160xf32> to vector<20x160xf32>
    %cst_40 = arith.constant dense<0.000000e+00> : vector<2x160xf32>
    %69 = tpu.matmul %66, %68, %cst_40 {dimension_numbers = #tpu.dot_dimension_numbers<[1], [0], [0], [1], [0, 0, 1, 1], [], []>} : vector<2x20xf32>, vector<20x160xf32>, vector<2x160xf32> -> vector<2x160xf32>
    %70 = arith.addf %65, %69 : vector<2x160xf32>
    %71 = vector.extract_strided_slice %14 {offsets = [22, 0], sizes = [2, 20], strides = [1, 1]} : vector<32x20xf32> to vector<2x20xf32>
    %c11 = arith.constant 11 : index
    %c0_41 = arith.constant 0 : index
    %c0_42 = arith.constant 0 : index
    %72 = vector.load %arg3[%c11, %c0_41, %c0_42] : memref<16x20x160xf32, #tpu.memory_space<vmem>>, vector<1x20x160xf32>
    %73 = vector.shape_cast %72 : vector<1x20x160xf32> to vector<20x160xf32>
    %cst_43 = arith.constant dense<0.000000e+00> : vector<2x160xf32>
    %74 = tpu.matmul %71, %73, %cst_43 {dimension_numbers = #tpu.dot_dimension_numbers<[1], [0], [0], [1], [0, 0, 1, 1], [], []>} : vector<2x20xf32>, vector<20x160xf32>, vector<2x160xf32> -> vector<2x160xf32>
    %75 = arith.addf %70, %74 : vector<2x160xf32>
    %76 = vector.extract_strided_slice %14 {offsets = [24, 0], sizes = [2, 20], strides = [1, 1]} : vector<32x20xf32> to vector<2x20xf32>
    %c12 = arith.constant 12 : index
    %c0_44 = arith.constant 0 : index
    %c0_45 = arith.constant 0 : index
    %77 = vector.load %arg3[%c12, %c0_44, %c0_45] : memref<16x20x160xf32, #tpu.memory_space<vmem>>, vector<1x20x160xf32>
    %78 = vector.shape_cast %77 : vector<1x20x160xf32> to vector<20x160xf32>
    %cst_46 = arith.constant dense<0.000000e+00> : vector<2x160xf32>
    %79 = tpu.matmul %76, %78, %cst_46 {dimension_numbers = #tpu.dot_dimension_numbers<[1], [0], [0], [1], [0, 0, 1, 1], [], []>} : vector<2x20xf32>, vector<20x160xf32>, vector<2x160xf32> -> vector<2x160xf32>
    %80 = arith.addf %75, %79 : vector<2x160xf32>
    %81 = vector.extract_strided_slice %14 {offsets = [26, 0], sizes = [2, 20], strides = [1, 1]} : vector<32x20xf32> to vector<2x20xf32>
    %c13 = arith.constant 13 : index
    %c0_47 = arith.constant 0 : index
    %c0_48 = arith.constant 0 : index
    %82 = vector.load %arg3[%c13, %c0_47, %c0_48] : memref<16x20x160xf32, #tpu.memory_space<vmem>>, vector<1x20x160xf32>
    %83 = vector.shape_cast %82 : vector<1x20x160xf32> to vector<20x160xf32>
    %cst_49 = arith.constant dense<0.000000e+00> : vector<2x160xf32>
    %84 = tpu.matmul %81, %83, %cst_49 {dimension_numbers = #tpu.dot_dimension_numbers<[1], [0], [0], [1], [0, 0, 1, 1], [], []>} : vector<2x20xf32>, vector<20x160xf32>, vector<2x160xf32> -> vector<2x160xf32>
    %85 = arith.addf %80, %84 : vector<2x160xf32>
    %86 = vector.extract_strided_slice %14 {offsets = [28, 0], sizes = [2, 20], strides = [1, 1]} : vector<32x20xf32> to vector<2x20xf32>
    %c14 = arith.constant 14 : index
    %c0_50 = arith.constant 0 : index
    %c0_51 = arith.constant 0 : index
    %87 = vector.load %arg3[%c14, %c0_50, %c0_51] : memref<16x20x160xf32, #tpu.memory_space<vmem>>, vector<1x20x160xf32>
    %88 = vector.shape_cast %87 : vector<1x20x160xf32> to vector<20x160xf32>
    %cst_52 = arith.constant dense<0.000000e+00> : vector<2x160xf32>
    %89 = tpu.matmul %86, %88, %cst_52 {dimension_numbers = #tpu.dot_dimension_numbers<[1], [0], [0], [1], [0, 0, 1, 1], [], []>} : vector<2x20xf32>, vector<20x160xf32>, vector<2x160xf32> -> vector<2x160xf32>
    %90 = arith.addf %85, %89 : vector<2x160xf32>
    %91 = vector.extract_strided_slice %14 {offsets = [30, 0], sizes = [2, 20], strides = [1, 1]} : vector<32x20xf32> to vector<2x20xf32>
    %c15 = arith.constant 15 : index
    %c0_53 = arith.constant 0 : index
    %c0_54 = arith.constant 0 : index
    %92 = vector.load %arg3[%c15, %c0_53, %c0_54] : memref<16x20x160xf32, #tpu.memory_space<vmem>>, vector<1x20x160xf32>
    %93 = vector.shape_cast %92 : vector<1x20x160xf32> to vector<20x160xf32>
    %cst_55 = arith.constant dense<0.000000e+00> : vector<2x160xf32>
    %94 = tpu.matmul %91, %93, %cst_55 {dimension_numbers = #tpu.dot_dimension_numbers<[1], [0], [0], [1], [0, 0, 1, 1], [], []>} : vector<2x20xf32>, vector<20x160xf32>, vector<2x160xf32> -> vector<2x160xf32>
    %95 = arith.addf %90, %94 : vector<2x160xf32>
    %c0_56 = arith.constant 0 : index
    %c0_57 = arith.constant 0 : index
    %96 = vector.load %arg4[%c0_56, %c0_57] : memref<1x160xf32, #tpu.memory_space<vmem>>, vector<1x160xf32>
    %97 = vector.broadcast %96 : vector<1x160xf32> to vector<2x160xf32>
    %98 = arith.addf %95, %97 : vector<2x160xf32>
    %cst_58 = arith.constant 0.000000e+00 : f32
    %99 = vector.broadcast %cst_58 : f32 to vector<2x160xf32>
    %100 = arith.maximumf %98, %99 : vector<2x160xf32>
    %c0_59 = arith.constant 0 : index
    %c0_60 = arith.constant 0 : index
    %101 = vector.load %arg5[%c0_59, %c0_60] : memref<160x10xf32, #tpu.memory_space<vmem>>, vector<160x10xf32>
    %cst_61 = arith.constant dense<0.000000e+00> : vector<2x10xf32>
    %102 = tpu.matmul %100, %101, %cst_61 {dimension_numbers = #tpu.dot_dimension_numbers<[1], [0], [0], [1], [0, 0, 1, 1], [], []>} : vector<2x160xf32>, vector<160x10xf32>, vector<2x10xf32> -> vector<2x10xf32>
    %c0_62 = arith.constant 0 : index
    %c0_63 = arith.constant 0 : index
    %103 = vector.load %arg6[%c0_62, %c0_63] : memref<1x10xf32, #tpu.memory_space<vmem>>, vector<1x10xf32>
    %104 = vector.broadcast %103 : vector<1x10xf32> to vector<2x10xf32>
    %105 = arith.addf %102, %104 : vector<2x10xf32>
    %cst_64 = arith.constant dense<0xFF800000> : vector<2xf32>
    %106 = vector.multi_reduction <maximumf>, %105, %cst_64 [1] : vector<2x10xf32> to vector<2xf32>
    %107 = vector.shape_cast %106 : vector<2xf32> to vector<2x1xf32>
    %108 = vector.broadcast %107 : vector<2x1xf32> to vector<2x10xf32>
    %109 = arith.subf %105, %108 : vector<2x10xf32>
    %110 = math.exp %109 : vector<2x10xf32>
    %111 = vector.broadcast %107 : vector<2x1xf32> to vector<2x10xf32>
    %112 = arith.subf %105, %111 : vector<2x10xf32>
    %cst_65 = arith.constant dense<0.000000e+00> : vector<2xf32>
    %113 = vector.multi_reduction <add>, %110, %cst_65 [1] : vector<2x10xf32> to vector<2xf32>
    %114 = vector.shape_cast %113 : vector<2xf32> to vector<2x1xf32>
    %115 = math.log %114 : vector<2x1xf32>
    %116 = vector.broadcast %115 : vector<2x1xf32> to vector<2x10xf32>
    %117 = arith.subf %112, %116 : vector<2x10xf32>
    %c0_66 = arith.constant 0 : index
    %c0_67 = arith.constant 0 : index
    %118 = vector.load %arg7[%c0_66, %c0_67] : memref<2x10xf32, #tpu.memory_space<vmem>>, vector<2x10xf32>
    tpu.vector_store %arg7[%c0_66, %c0_67], %117 {strides = array<i32>} : memref<2x10xf32, #tpu.memory_space<vmem>>, vector<2x10xf32>,
    return
  }
}

</mosaic_0001>

<llo_original>
// kernel: forward.4
$region0: #{forward.4}
  #allocation0 [shape = 'u32[]', space=smem, size = 0x4, offset = 0x4, fixed_abs, tag = 'smem constant byte address 0x4 - core index']
  #allocation1 [shape = 'u32[144,128]{1,0:T(1,128)}', space=vmem, size = 0x12000, scoped, tag = 'internal scratch']
  %s0 = inlined_call_operand.vmem [shape: f32[992,49], index: 0, kind: input, shape index: {}]
  %s1 = inlined_call_operand.vmem [shape: f32[49,8], index: 1, kind: input, shape index: {}]
  %s2 = inlined_call_operand.vmem [shape: f32[1,8], index: 2, kind: input, shape index: {}]
  %s3 = inlined_call_operand.vmem [shape: f32[242,8], index: 3, kind: output, shape index: {}]
  %s4 = sld [smem:[#allocation0]]
  $region22: #{forward.4} parent=0
    _
  %s6 = ssub.s32 1, %s4
  %s7 = scalar_select 0, %s6, %s4
  // Predicated region
  $region2: #{forward.4} parent=0 // pred_check
    _
  $region3: #{forward.4} parent=0 // pred_check_branch
    %9 = sbr.rel (0) target = $region5
  $region4: #{forward.4} parent=0 // pred_region
    _
  $region5: #{forward.4} parent=0 // pred_fallthru
    _
  // Predicated region
  $region6: #{forward.4} parent=0 // pred_check
    _
  $region7: #{forward.4} parent=0 // pred_check_branch
    %11 = sbr.rel (0) target = $region9
  $region8: #{forward.4} parent=0 // pred_region
    _
  $region9: #{forward.4} parent=0 // pred_fallthru
    _
  // Predicated region
  $region10: #{forward.4} parent=0 // pred_check
    _
  $region11: #{forward.4} parent=0 // pred_check_branch
    %13 = sbr.rel (0) target = $region13
  $region12: #{forward.4} parent=0 // pred_region
    _
  $region13: #{forward.4} parent=0 // pred_fallthru
    _
  %v14 = vld [vmem:[%s0] sm:$0xff]
  %v15 = vld [vmem:[%s0 + $0x8] sm:$0xff]
  %v16 = vld [vmem:[%s0 + $0x10] sm:$0xff]
  %v17 = vld [vmem:[%s0 + $0x18] sm:$0xff]
  %v18 = vld [vmem:[%s0 + $0x20] sm:$0xff]
  %v19 = vld [vmem:[%s0 + $0x28] sm:$0xff]
  %v20 = vld [vmem:[%s0 + $0x30] sm:$0xff]
  %v21 = vld [vmem:[%s0 + $0x38] sm:$0xff]
  %v22 = vld [vmem:[%s0 + $0x40] sm:$0xff]
  %v23 = vld [vmem:[%s0 + $0x48] sm:$0xff]
  %v24 = vld [vmem:[%s0 + $0x50] sm:$0xff]
  %v25 = vld [vmem:[%s0 + $0x58] sm:$0xff]
  %v26 = vld [vmem:[%s0 + $0x60] sm:$0xff]
  %v27 = vld [vmem:[%s0 + $0x68] sm:$0xff]
  %v28 = vld [vmem:[%s0 + $0x70] sm:$0xff]
  %v29 = vld [vmem:[%s0 + $0x78] sm:$0xff]
  %v30 = vld [vmem:[%s0 + $0x80] sm:$0xff]
  %v31 = vld [vmem:[%s0 + $0x88] sm:$0xff]
  %v32 = vld [vmem:[%s0 + $0x90] sm:$0xff]
  %v33 = vld [vmem:[%s0 + $0x98] sm:$0xff]
  %v34 = vld [vmem:[%s0 + $0xa0] sm:$0xff]
  %v35 = vld [vmem:[%s0 + $0xa8] sm:$0xff]
  %v36 = vld [vmem:[%s0 + $0xb0] sm:$0xff]
  %v37 = vld [vmem:[%s0 + $0xb8] sm:$0xff]
  %v38 = vld [vmem:[%s0 + $0xc0] sm:$0xff]
  %v39 = vld [vmem:[%s0 + $0xc8] sm:$0xff]
  %v40 = vld [vmem:[%s0 + $0xd0] sm:$0xff]
  %v41 = vld [vmem:[%s0 + $0xd8] sm:$0xff]
  %v42 = vld [vmem:[%s0 + $0xe0] sm:$0xff]
  %v43 = vld [vmem:[%s0 + $0xe8] sm:$0xff]
  %v44 = vld [vmem:[%s0 + $0xf0] sm:$0xff]
  %v45 = vld [vmem:[%s0 + $0xf8] sm:$0xff]
  %v46 = vld [vmem:[%s0 + $0x100] sm:$0xff]
  %v47 = vld [vmem:[%s0 + $0x108] sm:$0xff]
  %v48 = vld [vmem:[%s0 + $0x110] sm:$0xff]
  %v49 = vld [vmem:[%s0 + $0x118] sm:$0xff]
  %v50 = vld [vmem:[%s0 + $0x120] sm:$0xff]
  %v51 = vld [vmem:[%s0 + $0x128] sm:$0xff]
  %v52 = vld [vmem:[%s0 + $0x130] sm:$0xff]
  %v53 = vld [vmem:[%s0 + $0x138] sm:$0xff]
  %v54 = vld [vmem:[%s0 + $0x140] sm:$0xff]
  %v55 = vld [vmem:[%s0 + $0x148] sm:$0xff]
  %v56 = vld [vmem:[%s0 + $0x150] sm:$0xff]
  %v57 = vld [vmem:[%s0 + $0x158] sm:$0xff]
  %v58 = vld [vmem:[%s0 + $0x160] sm:$0xff]
  %v59 = vld [vmem:[%s0 + $0x168] sm:$0xff]
  %v60 = vld [vmem:[%s0 + $0x170] sm:$0xff]
  %v61 = vld [vmem:[%s0 + $0x178] sm:$0xff]
  %v62 = vld [vmem:[%s0 + $0x180] sm:$0xff]
  %v63 = vld [vmem:[%s0 + $0x188] sm:$0xff]
  %v64 = vld [vmem:[%s0 + $0x190] sm:$0xff]
  %v65 = vld [vmem:[%s0 + $0x198] sm:$0xff]
  %v66 = vld [vmem:[%s0 + $0x1a0] sm:$0xff]
  %v67 = vld [vmem:[%s0 + $0x1a8] sm:$0xff]
  %v68 = vld [vmem:[%s0 + $0x1b0] sm:$0xff]
  %v69 = vld [vmem:[%s0 + $0x1b8] sm:$0xff]
  %v70 = vld [vmem:[%s0 + $0x1c0] sm:$0xff]
  %v71 = vld [vmem:[%s0 + $0x1c8] sm:$0xff]
  %v72 = vld [vmem:[%s0 + $0x1d0] sm:$0xff]
  %v73 = vld [vmem:[%s0 + $0x1d8] sm:$0xff]
  %v74 = vld [vmem:[%s0 + $0x1e0] sm:$0xff]
  %v75 = vld [vmem:[%s0 + $0x1e8] sm:$0xff]
  %v76 = vld [vmem:[%s0 + $0x1f0] sm:$0xff]
  %v77 = vld [vmem:[%s0 + $0x1f8] sm:$0xff]
  %v78 = vld [vmem:[%s0 + $0x200] sm:$0xff]
  %v79 = vld [vmem:[%s0 + $0x208] sm:$0xff]
  %v80 = vld [vmem:[%s0 + $0x210] sm:$0xff]
  %v81 = vld [vmem:[%s0 + $0x218] sm:$0xff]
  %v82 = vld [vmem:[%s0 + $0x220] sm:$0xff]
  %v83 = vld [vmem:[%s0 + $0x228] sm:$0xff]
  %v84 = vld [vmem:[%s0 + $0x230] sm:$0xff]
  %v85 = vld [vmem:[%s0 + $0x238] sm:$0xff]
  %v86 = vld [vmem:[%s0 + $0x240] sm:$0xff]
  %v87 = vld [vmem:[%s0 + $0x248] sm:$0xff]
  %v88 = vld [vmem:[%s0 + $0x250] sm:$0xff]
  %v89 = vld [vmem:[%s0 + $0x258] sm:$0xff]
  %v90 = vld [vmem:[%s0 + $0x260] sm:$0xff]
  %v91 = vld [vmem:[%s0 + $0x268] sm:$0xff]
  %v92 = vld [vmem:[%s0 + $0x270] sm:$0xff]
  %v93 = vld [vmem:[%s0 + $0x278] sm:$0xff]
  %v94 = vld [vmem:[%s0 + $0x280] sm:$0xff]
  %v95 = vld [vmem:[%s0 + $0x288] sm:$0xff]
  %v96 = vld [vmem:[%s0 + $0x290] sm:$0xff]
  %v97 = vld [vmem:[%s0 + $0x298] sm:$0xff]
  %v98 = vld [vmem:[%s0 + $0x2a0] sm:$0xff]
  %v99 = vld [vmem:[%s0 + $0x2a8] sm:$0xff]
  %v100 = vld [vmem:[%s0 + $0x2b0] sm:$0xff]
  %v101 = vld [vmem:[%s0 + $0x2b8] sm:$0xff]
  %v102 = vld [vmem:[%s0 + $0x2c0] sm:$0xff]
  %v103 = vld [vmem:[%s0 + $0x2c8] sm:$0xff]
  %v104 = vld [vmem:[%s0 + $0x2d0] sm:$0xff]
  %v105 = vld [vmem:[%s0 + $0x2d8] sm:$0xff]
  %v106 = vld [vmem:[%s0 + $0x2e0] sm:$0xff]
  %v107 = vld [vmem:[%s0 + $0x2e8] sm:$0xff]
  %v108 = vld [vmem:[%s0 + $0x2f0] sm:$0xff]
  %v109 = vld [vmem:[%s0 + $0x2f8] sm:$0xff]
  %v110 = vld [vmem:[%s0 + $0x300] sm:$0xff]
  %v111 = vld [vmem:[%s0 + $0x308] sm:$0xff]
  %v112 = vld [vmem:[%s0 + $0x310] sm:$0xff]
  %v113 = vld [vmem:[%s0 + $0x318] sm:$0xff]
  %v114 = vld [vmem:[%s0 + $0x320] sm:$0xff]
  %v115 = vld [vmem:[%s0 + $0x328] sm:$0xff]
  %v116 = vld [vmem:[%s0 + $0x330] sm:$0xff]
  %v117 = vld [vmem:[%s0 + $0x338] sm:$0xff]
  %v118 = vld [vmem:[%s0 + $0x340] sm:$0xff]
  %v119 = vld [vmem:[%s0 + $0x348] sm:$0xff]
  %v120 = vld [vmem:[%s0 + $0x350] sm:$0xff]
  %v121 = vld [vmem:[%s0 + $0x358] sm:$0xff]
  %v122 = vld [vmem:[%s0 + $0x360] sm:$0xff]
  %v123 = vld [vmem:[%s0 + $0x368] sm:$0xff]
  %v124 = vld [vmem:[%s0 + $0x370] sm:$0xff]
  %v125 = vld [vmem:[%s0 + $0x378] sm:$0xff]
  %v126 = vld [vmem:[%s0 + $0x380] sm:$0xff]
  %v127 = vld [vmem:[%s0 + $0x388] sm:$0xff]
  %v128 = vld [vmem:[%s0 + $0x390] sm:$0xff]
  %v129 = vld [vmem:[%s0 + $0x398] sm:$0xff]
  %v130 = vld [vmem:[%s0 + $0x3a0] sm:$0xff]
  %v131 = vld [vmem:[%s0 + $0x3a8] sm:$0xff]
  %v132 = vld [vmem:[%s0 + $0x3b0] sm:$0xff]
  %v133 = vld [vmem:[%s0 + $0x3b8] sm:$0xff]
  %v134 = vld [vmem:[%s0 + $0x3c0] sm:$0xff]
  %v135 = vld [vmem:[%s0 + $0x3c8] sm:$0xff]
  %v136 = vld [vmem:[%s0 + $0x3d0] sm:$0xff]
  %v137 = vld [vmem:[%s0 + $0x3d8] sm:$0xff]
  %v138 = vld [vmem:[%s1] sm:$0xff]
  %v139 = vld [vmem:[%s1 + $0x8] sm:$0xff]
  %v140 = vld [vmem:[%s1 + $0x10] sm:$0xff]
  %v141 = vld [vmem:[%s1 + $0x18] sm:$0xff]
  %v142 = vld [vmem:[%s1 + $0x20] sm:$0xff]
  %v143 = vld [vmem:[%s1 + $0x28] sm:$0xff]
  %v144 = vld [vmem:[%s1 + $0x30] sm:$0x1]
  %v145 = vld [vmem:[%s2] sm:$0x1]
  %vm146 = vcmask 400384
  %v148 = vsel %vm146, %v14, 0
  %v151 = vsel %vm146, %v15, 0
  %v154 = vsel %vm146, %v16, 0
  %v157 = vsel %vm146, %v17, 0
  %v160 = vsel %vm146, %v18, 0
  %v163 = vsel %vm146, %v19, 0
  %v166 = vsel %vm146, %v20, 0
  %v169 = vsel %vm146, %v21, 0
  %v172 = vsel %vm146, %v22, 0
  %v175 = vsel %vm146, %v23, 0
  %v178 = vsel %vm146, %v24, 0
  %v181 = vsel %vm146, %v25, 0
  %v184 = vsel %vm146, %v26, 0
  %v187 = vsel %vm146, %v27, 0
  %v190 = vsel %vm146, %v28, 0
  %v193 = vsel %vm146, %v29, 0
  %v196 = vsel %vm146, %v30, 0
  %v199 = vsel %vm146, %v31, 0
  %v202 = vsel %vm146, %v32, 0
  %v205 = vsel %vm146, %v33, 0
  %v208 = vsel %vm146, %v34, 0
  %v211 = vsel %vm146, %v35, 0
  %v214 = vsel %vm146, %v36, 0
  %v217 = vsel %vm146, %v37, 0
  %v220 = vsel %vm146, %v38, 0
  %v223 = vsel %vm146, %v39, 0
  %v226 = vsel %vm146, %v40, 0
  %v229 = vsel %vm146, %v41, 0
  %v232 = vsel %vm146, %v42, 0
  %v235 = vsel %vm146, %v43, 0
  %v238 = vsel %vm146, %v44, 0
  %v241 = vsel %vm146, %v45, 0
  %v244 = vsel %vm146, %v46, 0
  %v247 = vsel %vm146, %v47, 0
  %v250 = vsel %vm146, %v48, 0
  %v253 = vsel %vm146, %v49, 0
  %v256 = vsel %vm146, %v50, 0
  %v259 = vsel %vm146, %v51, 0
  %v262 = vsel %vm146, %v52, 0
  %v265 = vsel %vm146, %v53, 0
  %v268 = vsel %vm146, %v54, 0
  %v271 = vsel %vm146, %v55, 0
  %v274 = vsel %vm146, %v56, 0
  %v277 = vsel %vm146, %v57, 0
  %v280 = vsel %vm146, %v58, 0
  %v283 = vsel %vm146, %v59, 0
  %v286 = vsel %vm146, %v60, 0
  %v289 = vsel %vm146, %v61, 0
  %v292 = vsel %vm146, %v62, 0
  %v295 = vsel %vm146, %v63, 0
  %v298 = vsel %vm146, %v64, 0
  %v301 = vsel %vm146, %v65, 0
  %v304 = vsel %vm146, %v66, 0
  %v307 = vsel %vm146, %v67, 0
  %v310 = vsel %vm146, %v68, 0
  %v313 = vsel %vm146, %v69, 0
  %v316 = vsel %vm146, %v70, 0
  %v319 = vsel %vm146, %v71, 0
  %v322 = vsel %vm146, %v72, 0
  %v325 = vsel %vm146, %v73, 0
  %v328 = vsel %vm146, %v74, 0
  %v331 = vsel %vm146, %v75, 0
  %v334 = vsel %vm146, %v76, 0
  %v337 = vsel %vm146, %v77, 0
  %v340 = vsel %vm146, %v78, 0
  %v343 = vsel %vm146, %v79, 0
  %v346 = vsel %vm146, %v80, 0
  %v349 = vsel %vm146, %v81, 0
  %v352 = vsel %vm146, %v82, 0
  %v355 = vsel %vm146, %v83, 0
  %v358 = vsel %vm146, %v84, 0
  %v361 = vsel %vm146, %v85, 0
  %v364 = vsel %vm146, %v86, 0
  %v367 = vsel %vm146, %v87, 0
  %v370 = vsel %vm146, %v88, 0
  %v373 = vsel %vm146, %v89, 0
  %v376 = vsel %vm146, %v90, 0
  %v379 = vsel %vm146, %v91, 0
  %v382 = vsel %vm146, %v92, 0
  %v385 = vsel %vm146, %v93, 0
  %v388 = vsel %vm146, %v94, 0
  %v391 = vsel %vm146, %v95, 0
  %v394 = vsel %vm146, %v96, 0
  %v397 = vsel %vm146, %v97, 0
  %v400 = vsel %vm146, %v98, 0
  %v403 = vsel %vm146, %v99, 0
  %v406 = vsel %vm146, %v100, 0
  %v409 = vsel %vm146, %v101, 0
  %v412 = vsel %vm146, %v102, 0
  %v415 = vsel %vm146, %v103, 0
  %v418 = vsel %vm146, %v104, 0
  %v421 = vsel %vm146, %v105, 0
  %v424 = vsel %vm146, %v106, 0
  %v427 = vsel %vm146, %v107, 0
  %v430 = vsel %vm146, %v108, 0
  %v433 = vsel %vm146, %v109, 0
  %v436 = vsel %vm146, %v110, 0
  %v439 = vsel %vm146, %v111, 0
  %v442 = vsel %vm146, %v112, 0
  %v445 = vsel %vm146, %v113, 0
  %v448 = vsel %vm146, %v114, 0
  %v451 = vsel %vm146, %v115, 0
  %v454 = vsel %vm146, %v116, 0
  %v457 = vsel %vm146, %v117, 0
  %v460 = vsel %vm146, %v118, 0
  %v463 = vsel %vm146, %v119, 0
  %v466 = vsel %vm146, %v120, 0
  %v469 = vsel %vm146, %v121, 0
  %v472 = vsel %vm146, %v122, 0
  %v475 = vsel %vm146, %v123, 0
  %v478 = vsel %vm146, %v124, 0
  %v481 = vsel %vm146, %v125, 0
  %v484 = vsel %vm146, %v126, 0
  %v487 = vsel %vm146, %v127, 0
  %v490 = vsel %vm146, %v128, 0
  %v493 = vsel %vm146, %v129, 0
  %v496 = vsel %vm146, %v130, 0
  %v499 = vsel %vm146, %v131, 0
  %v502 = vsel %vm146, %v132, 0
  %v505 = vsel %vm146, %v133, 0
  %v508 = vsel %vm146, %v134, 0
  %v511 = vsel %vm146, %v135, 0
  %v514 = vsel %vm146, %v136, 0
  %v517 = vsel %vm146, %v137, 0
  %vm519 = vcmask 1040384
  %v521 = vsel %vm519, %v144, 0
  %523 = vmatprep.subr.mxu0 0.0
  %524 = vmatpush1.msra.mxu0 %v138
  %525 = vmatprep.subr.mxu0 0.0
  %526 = vmatpush1.msra.mxu0 %v139
  %527 = vmatprep.subr.mxu0 0.0
  %528 = vmatpush1.msra.mxu0 %v140
  %529 = vmatprep.subr.mxu0 0.0
  %530 = vmatpush1.msra.mxu0 %v141
  %531 = vmatprep.subr.mxu0 0.0
  %532 = vmatpush1.msra.mxu0 %v142
  %533 = vmatprep.subr.mxu0 0.0
  %534 = vmatpush1.msra.mxu0 %v143
  %535 = vmatprep.subr.mxu0 0.0
  %536 = vmatpush1.msra.mxu0 %v521
  %537 = vmatprep.subr.mxu0 0.0
  %538 = vmatpush1.msra.mxu0 0.0
  %539 = vmatprep.subr.mxu0 0.0
  %540 = vmatpush1.msra.mxu0 0.0
  %541 = vmatprep.subr.mxu0 0.0
  %542 = vmatpush1.msra.mxu0 0.0
  %543 = vmatprep.subr.mxu0 0.0
  %544 = vmatpush1.msra.mxu0 0.0
  %545 = vmatprep.subr.mxu0 0.0
  %546 = vmatpush1.msra.mxu0 0.0
  %547 = vmatprep.subr.mxu0 0.0
  %548 = vmatpush1.msra.mxu0 0.0
  %549 = vmatprep.subr.mxu0 0.0
  %550 = vmatpush1.msra.mxu0 0.0
  %551 = vmatprep.subr.mxu0 0.0
  %552 = vmatpush1.msra.mxu0 0.0
  %553 = vmatprep.subr.mxu0 0.0
  %554 = vmatpush1.msra.mxu0 0.0
  %555 = vmatprep.subr.mxu0 0.0
  %556 = vmatpush1.msra.mxu0 0.0
  %557 = vmatprep.subr.mxu0 0.0
  %558 = vmatpush1.msra.mxu0 0.0
  %559 = vmatprep.subr.mxu0 0.0
  %560 = vmatpush1.msra.mxu0 0.0
  %561 = vmatprep.subr.mxu0 0.0
  %562 = vmatpush1.msra.mxu0 0.0
  %563 = vmatprep.subr.mxu0 0.0
  %564 = vmatpush1.msra.mxu0 0.0
  %565 = vmatprep.subr.mxu0 0.0
  %566 = vmatpush1.msra.mxu0 0.0
  %567 = vmatprep.subr.mxu0 0.0
  %568 = vmatpush1.msra.mxu0 0.0
  %569 = vmatprep.subr.mxu0 0.0
  %570 = vmatpush1.msra.mxu0 0.0
  %571 = vmatprep.subr.mxu0 0.0
  %572 = vmatpush1.msra.mxu0 0.0
  %573 = vmatprep.subr.mxu0 0.0
  %574 = vmatpush1.msra.mxu0 0.0
  %575 = vmatprep.subr.mxu0 0.0
  %576 = vmatpush1.msra.mxu0 0.0
  %577 = vmatprep.subr.mxu0 0.0
  %578 = vmatpush1.msra.mxu0 0.0
  %579 = vmatprep.subr.mxu0 0.0
  %580 = vmatpush1.msra.mxu0 0.0
  %581 = vmatprep.subr.mxu0 0.0
  %582 = vmatpush1.msra.mxu0 0.0
  %583 = vmatprep.subr.mxu0 0.0
  %584 = vmatpush1.msra.mxu0 0.0
  %585 = vmatprep.subr.mxu0 0.0
  %586 = vmatpush1.msra.mxu0 0.0
  %587 = vmatprep.mubr.f32.mxu0 0.0
  %588 = vmatmul.mubr.f32.gmra.mrb[0].mxu0 %v148
  %v589 = vpop.f32.mrb[0].mxu0
  %v590 = vadd.f32 0.0, %v589
  %v591 = vpop.f32.mrb[0].mxu0
  %592 = vmatprep.mubr.f32.mxu0 0.0
  %593 = vmatmul.mubr.f32.gmra.mrb[0].mxu0 %v151
  %v594 = vpop.f32.mrb[0].mxu0
  %v595 = vadd.f32 0.0, %v594
  %v596 = vpop.f32.mrb[0].mxu0
  %597 = vmatprep.mubr.f32.mxu0 0.0
  %598 = vmatmul.mubr.f32.gmra.mrb[0].mxu0 %v154
  %v599 = vpop.f32.mrb[0].mxu0
  %v600 = vadd.f32 0.0, %v599
  %v601 = vpop.f32.mrb[0].mxu0
  %602 = vmatprep.mubr.f32.mxu0 0.0
  %603 = vmatmul.mubr.f32.gmra.mrb[0].mxu0 %v157
  %v604 = vpop.f32.mrb[0].mxu0
  %v605 = vadd.f32 0.0, %v604
  %v606 = vpop.f32.mrb[0].mxu0
  %607 = vmatprep.mubr.f32.mxu0 0.0
  %608 = vmatmul.mubr.f32.gmra.mrb[0].mxu0 %v160
  %v609 = vpop.f32.mrb[0].mxu0
  %v610 = vadd.f32 0.0, %v609
  %v611 = vpop.f32.mrb[0].mxu0
  %612 = vmatprep.mubr.f32.mxu0 0.0
  %613 = vmatmul.mubr.f32.gmra.mrb[0].mxu0 %v163
  %v614 = vpop.f32.mrb[0].mxu0
  %v615 = vadd.f32 0.0, %v614
  %v616 = vpop.f32.mrb[0].mxu0
  %617 = vmatprep.mubr.f32.mxu0 0.0
  %618 = vmatmul.mubr.f32.gmra.mrb[0].mxu0 %v166
  %v619 = vpop.f32.mrb[0].mxu0
  %v620 = vadd.f32 0.0, %v619
  %v621 = vpop.f32.mrb[0].mxu0
  %622 = vmatprep.mubr.f32.mxu0 0.0
  %623 = vmatmul.mubr.f32.gmra.mrb[0].mxu0 %v169
  %v624 = vpop.f32.mrb[0].mxu0
  %v625 = vadd.f32 0.0, %v624
  %v626 = vpop.f32.mrb[0].mxu0
  %627 = vmatprep.mubr.f32.mxu0 0.0
  %628 = vmatmul.mubr.f32.gmra.mrb[0].mxu0 %v172
  %v629 = vpop.f32.mrb[0].mxu0
  %v630 = vadd.f32 0.0, %v629
  %v631 = vpop.f32.mrb[0].mxu0
  %632 = vmatprep.mubr.f32.mxu0 0.0
  %633 = vmatmul.mubr.f32.gmra.mrb[0].mxu0 %v175
  %v634 = vpop.f32.mrb[0].mxu0
  %v635 = vadd.f32 0.0, %v634
  %v636 = vpop.f32.mrb[0].mxu0
  %637 = vmatprep.mubr.f32.mxu0 0.0
  %638 = vmatmul.mubr.f32.gmra.mrb[0].mxu0 %v178
  %v639 = vpop.f32.mrb[0].mxu0
  %v640 = vadd.f32 0.0, %v639
  %v641 = vpop.f32.mrb[0].mxu0
  %642 = vmatprep.mubr.f32.mxu0 0.0
  %643 = vmatmul.mubr.f32.gmra.mrb[0].mxu0 %v181
  %v644 = vpop.f32.mrb[0].mxu0
  %v645 = vadd.f32 0.0, %v644
  %v646 = vpop.f32.mrb[0].mxu0
  %647 = vmatprep.mubr.f32.mxu0 0.0
  %648 = vmatmul.mubr.f32.gmra.mrb[0].mxu0 %v184
  %v649 = vpop.f32.mrb[0].mxu0
  %v650 = vadd.f32 0.0, %v649
  %v651 = vpop.f32.mrb[0].mxu0
  %652 = vmatprep.mubr.f32.mxu0 0.0
  %653 = vmatmul.mubr.f32.gmra.mrb[0].mxu0 %v187
  %v654 = vpop.f32.mrb[0].mxu0
  %v655 = vadd.f32 0.0, %v654
  %v656 = vpop.f32.mrb[0].mxu0
  %657 = vmatprep.mubr.f32.mxu0 0.0
  %658 = vmatmul.mubr.f32.gmra.mrb[0].mxu0 %v190
  %v659 = vpop.f32.mrb[0].mxu0
  %v660 = vadd.f32 0.0, %v659
  %v661 = vpop.f32.mrb[0].mxu0
  %662 = vmatprep.mubr.f32.mxu0 0.0
  %663 = vmatmul.mubr.f32.gmra.mrb[0].mxu0 %v193
  %v664 = vpop.f32.mrb[0].mxu0
  %v665 = vadd.f32 0.0, %v664
  %v666 = vpop.f32.mrb[0].mxu0
  %667 = vmatprep.mubr.f32.mxu0 0.0
  %668 = vmatmul.mubr.f32.gmra.mrb[0].mxu0 %v196
  %v669 = vpop.f32.mrb[0].mxu0
  %v670 = vadd.f32 0.0, %v669
  %v671 = vpop.f32.mrb[0].mxu0
  %672 = vmatprep.mubr.f32.mxu0 0.0
  %673 = vmatmul.mubr.f32.gmra.mrb[0].mxu0 %v199
  %v674 = vpop.f32.mrb[0].mxu0
  %v675 = vadd.f32 0.0, %v674
  %v676 = vpop.f32.mrb[0].mxu0
  %677 = vmatprep.mubr.f32.mxu0 0.0
  %678 = vmatmul.mubr.f32.gmra.mrb[0].mxu0 %v202
  %v679 = vpop.f32.mrb[0].mxu0
  %v680 = vadd.f32 0.0, %v679
  %v681 = vpop.f32.mrb[0].mxu0
  %682 = vmatprep.mubr.f32.mxu0 0.0
  %683 = vmatmul.mubr.f32.gmra.mrb[0].mxu0 %v205
  %v684 = vpop.f32.mrb[0].mxu0
  %v685 = vadd.f32 0.0, %v684
  %v686 = vpop.f32.mrb[0].mxu0
  %687 = vmatprep.mubr.f32.mxu0 0.0
  %688 = vmatmul.mubr.f32.gmra.mrb[0].mxu0 %v208
  %v689 = vpop.f32.mrb[0].mxu0
  %v690 = vadd.f32 0.0, %v689
  %v691 = vpop.f32.mrb[0].mxu0
  %692 = vmatprep.mubr.f32.mxu0 0.0
  %693 = vmatmul.mubr.f32.gmra.mrb[0].mxu0 %v211
  %v694 = vpop.f32.mrb[0].mxu0
  %v695 = vadd.f32 0.0, %v694
  %v696 = vpop.f32.mrb[0].mxu0
  %697 = vmatprep.mubr.f32.mxu0 0.0
  %698 = vmatmul.mubr.f32.gmra.mrb[0].mxu0 %v214
  %v699 = vpop.f32.mrb[0].mxu0
  %v700 = vadd.f32 0.0, %v699
  %v701 = vpop.f32.mrb[0].mxu0
  %702 = vmatprep.mubr.f32.mxu0 0.0
  %703 = vmatmul.mubr.f32.gmra.mrb[0].mxu0 %v217
  %v704 = vpop.f32.mrb[0].mxu0
  %v705 = vadd.f32 0.0, %v704
  %v706 = vpop.f32.mrb[0].mxu0
  %707 = vmatprep.mubr.f32.mxu0 0.0
  %708 = vmatmul.mubr.f32.gmra.mrb[0].mxu0 %v220
  %v709 = vpop.f32.mrb[0].mxu0
  %v710 = vadd.f32 0.0, %v709
  %v711 = vpop.f32.mrb[0].mxu0
  %712 = vmatprep.mubr.f32.mxu0 0.0
  %713 = vmatmul.mubr.f32.gmra.mrb[0].mxu0 %v223
  %v714 = vpop.f32.mrb[0].mxu0
  %v715 = vadd.f32 0.0, %v714
  %v716 = vpop.f32.mrb[0].mxu0
  %717 = vmatprep.mubr.f32.mxu0 0.0
  %718 = vmatmul.mubr.f32.gmra.mrb[0].mxu0 %v226
  %v719 = vpop.f32.mrb[0].mxu0
  %v720 = vadd.f32 0.0, %v719
  %v721 = vpop.f32.mrb[0].mxu0
  %722 = vmatprep.mubr.f32.mxu0 0.0
  %723 = vmatmul.mubr.f32.gmra.mrb[0].mxu0 %v229
  %v724 = vpop.f32.mrb[0].mxu0
  %v725 = vadd.f32 0.0, %v724
  %v726 = vpop.f32.mrb[0].mxu0
  %727 = vmatprep.mubr.f32.mxu0 0.0
  %728 = vmatmul.mubr.f32.gmra.mrb[0].mxu0 %v232
  %v729 = vpop.f32.mrb[0].mxu0
  %v730 = vadd.f32 0.0, %v729
  %v731 = vpop.f32.mrb[0].mxu0
  %732 = vmatprep.mubr.f32.mxu0 0.0
  %733 = vmatmul.mubr.f32.gmra.mrb[0].mxu0 %v235
  %v734 = vpop.f32.mrb[0].mxu0
  %v735 = vadd.f32 0.0, %v734
  %v736 = vpop.f32.mrb[0].mxu0
  %737 = vmatprep.mubr.f32.mxu0 0.0
  %738 = vmatmul.mubr.f32.gmra.mrb[0].mxu0 %v238
  %v739 = vpop.f32.mrb[0].mxu0
  %v740 = vadd.f32 0.0, %v739
  %v741 = vpop.f32.mrb[0].mxu0
  %742 = vmatprep.mubr.f32.mxu0 0.0
  %743 = vmatmul.mubr.f32.gmra.mrb[0].mxu0 %v241
  %v744 = vpop.f32.mrb[0].mxu0
  %v745 = vadd.f32 0.0, %v744
  %v746 = vpop.f32.mrb[0].mxu0
  %747 = vmatprep.mubr.f32.mxu0 0.0
  %748 = vmatmul.mubr.f32.gmra.mrb[0].mxu0 %v244
  %v749 = vpop.f32.mrb[0].mxu0
  %v750 = vadd.f32 0.0, %v749
  %v751 = vpop.f32.mrb[0].mxu0
  %752 = vmatprep.mubr.f32.mxu0 0.0
  %753 = vmatmul.mubr.f32.gmra.mrb[0].mxu0 %v247
  %v754 = vpop.f32.mrb[0].mxu0
  %v755 = vadd.f32 0.0, %v754
  %v756 = vpop.f32.mrb[0].mxu0
  %757 = vmatprep.mubr.f32.mxu0 0.0
  %758 = vmatmul.mubr.f32.gmra.mrb[0].mxu0 %v250
  %v759 = vpop.f32.mrb[0].mxu0
  %v760 = vadd.f32 0.0, %v759
  %v761 = vpop.f32.mrb[0].mxu0
  %762 = vmatprep.mubr.f32.mxu0 0.0
  %763 = vmatmul.mubr.f32.gmra.mrb[0].mxu0 %v253
  %v764 = vpop.f32.mrb[0].mxu0
  %v765 = vadd.f32 0.0, %v764
  %v766 = vpop.f32.mrb[0].mxu0
  %767 = vmatprep.mubr.f32.mxu0 0.0
  %768 = vmatmul.mubr.f32.gmra.mrb[0].mxu0 %v256
  %v769 = vpop.f32.mrb[0].mxu0
  %v770 = vadd.f32 0.0, %v769
  %v771 = vpop.f32.mrb[0].mxu0
  %772 = vmatprep.mubr.f32.mxu0 0.0
  %773 = vmatmul.mubr.f32.gmra.mrb[0].mxu0 %v259
  %v774 = vpop.f32.mrb[0].mxu0
  %v775 = vadd.f32 0.0, %v774
  %v776 = vpop.f32.mrb[0].mxu0
  %777 = vmatprep.mubr.f32.mxu0 0.0
  %778 = vmatmul.mubr.f32.gmra.mrb[0].mxu0 %v262
  %v779 = vpop.f32.mrb[0].mxu0
  %v780 = vadd.f32 0.0, %v779
  %v781 = vpop.f32.mrb[0].mxu0
  %782 = vmatprep.mubr.f32.mxu0 0.0
  %783 = vmatmul.mubr.f32.gmra.mrb[0].mxu0 %v265
  %v784 = vpop.f32.mrb[0].mxu0
  %v785 = vadd.f32 0.0, %v784
  %v786 = vpop.f32.mrb[0].mxu0
  %787 = vmatprep.mubr.f32.mxu0 0.0
  %788 = vmatmul.mubr.f32.gmra.mrb[0].mxu0 %v268
  %v789 = vpop.f32.mrb[0].mxu0
  %v790 = vadd.f32 0.0, %v789
  %v791 = vpop.f32.mrb[0].mxu0
  %792 = vmatprep.mubr.f32.mxu0 0.0
  %793 = vmatmul.mubr.f32.gmra.mrb[0].mxu0 %v271
  %v794 = vpop.f32.mrb[0].mxu0
  %v795 = vadd.f32 0.0, %v794
  %v796 = vpop.f32.mrb[0].mxu0
  %797 = vmatprep.mubr.f32.mxu0 0.0
  %798 = vmatmul.mubr.f32.gmra.mrb[0].mxu0 %v274
  %v799 = vpop.f32.mrb[0].mxu0
  %v800 = vadd.f32 0.0, %v799
  %v801 = vpop.f32.mrb[0].mxu0
  %802 = vmatprep.mubr.f32.mxu0 0.0
  %803 = vmatmul.mubr.f32.gmra.mrb[0].mxu0 %v277
  %v804 = vpop.f32.mrb[0].mxu0
  %v805 = vadd.f32 0.0, %v804
  %v806 = vpop.f32.mrb[0].mxu0
  %807 = vmatprep.mubr.f32.mxu0 0.0
  %808 = vmatmul.mubr.f32.gmra.mrb[0].mxu0 %v280
  %v809 = vpop.f32.mrb[0].mxu0
  %v810 = vadd.f32 0.0, %v809
  %v811 = vpop.f32.mrb[0].mxu0
  %812 = vmatprep.mubr.f32.mxu0 0.0
  %813 = vmatmul.mubr.f32.gmra.mrb[0].mxu0 %v283
  %v814 = vpop.f32.mrb[0].mxu0
  %v815 = vadd.f32 0.0, %v814
  %v816 = vpop.f32.mrb[0].mxu0
  %817 = vmatprep.mubr.f32.mxu0 0.0
  %818 = vmatmul.mubr.f32.gmra.mrb[0].mxu0 %v286
  %v819 = vpop.f32.mrb[0].mxu0
  %v820 = vadd.f32 0.0, %v819
  %v821 = vpop.f32.mrb[0].mxu0
  %822 = vmatprep.mubr.f32.mxu0 0.0
  %823 = vmatmul.mubr.f32.gmra.mrb[0].mxu0 %v289
  %v824 = vpop.f32.mrb[0].mxu0
  %v825 = vadd.f32 0.0, %v824
  %v826 = vpop.f32.mrb[0].mxu0
  %827 = vmatprep.mubr.f32.mxu0 0.0
  %828 = vmatmul.mubr.f32.gmra.mrb[0].mxu0 %v292
  %v829 = vpop.f32.mrb[0].mxu0
  %v830 = vadd.f32 0.0, %v829
  %v831 = vpop.f32.mrb[0].mxu0
  %832 = vmatprep.mubr.f32.mxu0 0.0
  %833 = vmatmul.mubr.f32.gmra.mrb[0].mxu0 %v295
  %v834 = vpop.f32.mrb[0].mxu0
  %v835 = vadd.f32 0.0, %v834
  %v836 = vpop.f32.mrb[0].mxu0
  %837 = vmatprep.mubr.f32.mxu0 0.0
  %838 = vmatmul.mubr.f32.gmra.mrb[0].mxu0 %v298
  %v839 = vpop.f32.mrb[0].mxu0
  %v840 = vadd.f32 0.0, %v839
  %v841 = vpop.f32.mrb[0].mxu0
  %842 = vmatprep.mubr.f32.mxu0 0.0
  %843 = vmatmul.mubr.f32.gmra.mrb[0].mxu0 %v301
  %v844 = vpop.f32.mrb[0].mxu0
  %v845 = vadd.f32 0.0, %v844
  %v846 = vpop.f32.mrb[0].mxu0
  %847 = vmatprep.mubr.f32.mxu0 0.0
  %848 = vmatmul.mubr.f32.gmra.mrb[0].mxu0 %v304
  %v849 = vpop.f32.mrb[0].mxu0
  %v850 = vadd.f32 0.0, %v849
  %v851 = vpop.f32.mrb[0].mxu0
  %852 = vmatprep.mubr.f32.mxu0 0.0
  %853 = vmatmul.mubr.f32.gmra.mrb[0].mxu0 %v307
  %v854 = vpop.f32.mrb[0].mxu0
  %v855 = vadd.f32 0.0, %v854
  %v856 = vpop.f32.mrb[0].mxu0
  %857 = vmatprep.mubr.f32.mxu0 0.0
  %858 = vmatmul.mubr.f32.gmra.mrb[0].mxu0 %v310
  %v859 = vpop.f32.mrb[0].mxu0
  %v860 = vadd.f32 0.0, %v859
  %v861 = vpop.f32.mrb[0].mxu0
  %862 = vmatprep.mubr.f32.mxu0 0.0
  %863 = vmatmul.mubr.f32.gmra.mrb[0].mxu0 %v313
  %v864 = vpop.f32.mrb[0].mxu0
  %v865 = vadd.f32 0.0, %v864
  %v866 = vpop.f32.mrb[0].mxu0
  %867 = vmatprep.mubr.f32.mxu0 0.0
  %868 = vmatmul.mubr.f32.gmra.mrb[0].mxu0 %v316
  %v869 = vpop.f32.mrb[0].mxu0
  %v870 = vadd.f32 0.0, %v869
  %v871 = vpop.f32.mrb[0].mxu0
  %872 = vmatprep.mubr.f32.mxu0 0.0
  %873 = vmatmul.mubr.f32.gmra.mrb[0].mxu0 %v319
  %v874 = vpop.f32.mrb[0].mxu0
  %v875 = vadd.f32 0.0, %v874
  %v876 = vpop.f32.mrb[0].mxu0
  %877 = vmatprep.mubr.f32.mxu0 0.0
  %878 = vmatmul.mubr.f32.gmra.mrb[0].mxu0 %v322
  %v879 = vpop.f32.mrb[0].mxu0
  %v880 = vadd.f32 0.0, %v879
  %v881 = vpop.f32.mrb[0].mxu0
  %882 = vmatprep.mubr.f32.mxu0 0.0
  %883 = vmatmul.mubr.f32.gmra.mrb[0].mxu0 %v325
  %v884 = vpop.f32.mrb[0].mxu0
  %v885 = vadd.f32 0.0, %v884
  %v886 = vpop.f32.mrb[0].mxu0
  %887 = vmatprep.mubr.f32.mxu0 0.0
  %888 = vmatmul.mubr.f32.gmra.mrb[0].mxu0 %v328
  %v889 = vpop.f32.mrb[0].mxu0
  %v890 = vadd.f32 0.0, %v889
  %v891 = vpop.f32.mrb[0].mxu0
  %892 = vmatprep.mubr.f32.mxu0 0.0
  %893 = vmatmul.mubr.f32.gmra.mrb[0].mxu0 %v331
  %v894 = vpop.f32.mrb[0].mxu0
  %v895 = vadd.f32 0.0, %v894
  %v896 = vpop.f32.mrb[0].mxu0
  %897 = vmatprep.mubr.f32.mxu0 0.0
  %898 = vmatmul.mubr.f32.gmra.mrb[0].mxu0 %v334
  %v899 = vpop.f32.mrb[0].mxu0
  %v900 = vadd.f32 0.0, %v899
  %v901 = vpop.f32.mrb[0].mxu0
  %902 = vmatprep.mubr.f32.mxu0 0.0
  %903 = vmatmul.mubr.f32.gmra.mrb[0].mxu0 %v337
  %v904 = vpop.f32.mrb[0].mxu0
  %v905 = vadd.f32 0.0, %v904
  %v906 = vpop.f32.mrb[0].mxu0
  %907 = vmatprep.mubr.f32.mxu0 0.0
  %908 = vmatmul.mubr.f32.gmra.mrb[0].mxu0 %v340
  %v909 = vpop.f32.mrb[0].mxu0
  %v910 = vadd.f32 0.0, %v909
  %v911 = vpop.f32.mrb[0].mxu0
  %912 = vmatprep.mubr.f32.mxu0 0.0
  %913 = vmatmul.mubr.f32.gmra.mrb[0].mxu0 %v343
  %v914 = vpop.f32.mrb[0].mxu0
  %v915 = vadd.f32 0.0, %v914
  %v916 = vpop.f32.mrb[0].mxu0
  %917 = vmatprep.mubr.f32.mxu0 0.0
  %918 = vmatmul.mubr.f32.gmra.mrb[0].mxu0 %v346
  %v919 = vpop.f32.mrb[0].mxu0
  %v920 = vadd.f32 0.0, %v919
  %v921 = vpop.f32.mrb[0].mxu0
  %922 = vmatprep.mubr.f32.mxu0 0.0
  %923 = vmatmul.mubr.f32.gmra.mrb[0].mxu0 %v349
  %v924 = vpop.f32.mrb[0].mxu0
  %v925 = vadd.f32 0.0, %v924
  %v926 = vpop.f32.mrb[0].mxu0
  %927 = vmatprep.mubr.f32.mxu0 0.0
  %928 = vmatmul.mubr.f32.gmra.mrb[0].mxu0 %v352
  %v929 = vpop.f32.mrb[0].mxu0
  %v930 = vadd.f32 0.0, %v929
  %v931 = vpop.f32.mrb[0].mxu0
  %932 = vmatprep.mubr.f32.mxu0 0.0
  %933 = vmatmul.mubr.f32.gmra.mrb[0].mxu0 %v355
  %v934 = vpop.f32.mrb[0].mxu0
  %v935 = vadd.f32 0.0, %v934
  %v936 = vpop.f32.mrb[0].mxu0
  %937 = vmatprep.mubr.f32.mxu0 0.0
  %938 = vmatmul.mubr.f32.gmra.mrb[0].mxu0 %v358
  %v939 = vpop.f32.mrb[0].mxu0
  %v940 = vadd.f32 0.0, %v939
  %v941 = vpop.f32.mrb[0].mxu0
  %942 = vmatprep.mubr.f32.mxu0 0.0
  %943 = vmatmul.mubr.f32.gmra.mrb[0].mxu0 %v361
  %v944 = vpop.f32.mrb[0].mxu0
  %v945 = vadd.f32 0.0, %v944
  %v946 = vpop.f32.mrb[0].mxu0
  %947 = vmatprep.mubr.f32.mxu0 0.0
  %948 = vmatmul.mubr.f32.gmra.mrb[0].mxu0 %v364
  %v949 = vpop.f32.mrb[0].mxu0
  %v950 = vadd.f32 0.0, %v949
  %v951 = vpop.f32.mrb[0].mxu0
  %952 = vmatprep.mubr.f32.mxu0 0.0
  %953 = vmatmul.mubr.f32.gmra.mrb[0].mxu0 %v367
  %v954 = vpop.f32.mrb[0].mxu0
  %v955 = vadd.f32 0.0, %v954
  %v956 = vpop.f32.mrb[0].mxu0
  %957 = vmatprep.mubr.f32.mxu0 0.0
  %958 = vmatmul.mubr.f32.gmra.mrb[0].mxu0 %v370
  %v959 = vpop.f32.mrb[0].mxu0
  %v960 = vadd.f32 0.0, %v959
  %v961 = vpop.f32.mrb[0].mxu0
  %962 = vmatprep.mubr.f32.mxu0 0.0
  %963 = vmatmul.mubr.f32.gmra.mrb[0].mxu0 %v373
  %v964 = vpop.f32.mrb[0].mxu0
  %v965 = vadd.f32 0.0, %v964
  %v966 = vpop.f32.mrb[0].mxu0
  %967 = vmatprep.mubr.f32.mxu0 0.0
  %968 = vmatmul.mubr.f32.gmra.mrb[0].mxu0 %v376
  %v969 = vpop.f32.mrb[0].mxu0
  %v970 = vadd.f32 0.0, %v969
  %v971 = vpop.f32.mrb[0].mxu0
  %972 = vmatprep.mubr.f32.mxu0 0.0
  %973 = vmatmul.mubr.f32.gmra.mrb[0].mxu0 %v379
  %v974 = vpop.f32.mrb[0].mxu0
  %v975 = vadd.f32 0.0, %v974
  %v976 = vpop.f32.mrb[0].mxu0
  %977 = vmatprep.mubr.f32.mxu0 0.0
  %978 = vmatmul.mubr.f32.gmra.mrb[0].mxu0 %v382
  %v979 = vpop.f32.mrb[0].mxu0
  %v980 = vadd.f32 0.0, %v979
  %v981 = vpop.f32.mrb[0].mxu0
  %982 = vmatprep.mubr.f32.mxu0 0.0
  %983 = vmatmul.mubr.f32.gmra.mrb[0].mxu0 %v385
  %v984 = vpop.f32.mrb[0].mxu0
  %v985 = vadd.f32 0.0, %v984
  %v986 = vpop.f32.mrb[0].mxu0
  %987 = vmatprep.mubr.f32.mxu0 0.0
  %988 = vmatmul.mubr.f32.gmra.mrb[0].mxu0 %v388
  %v989 = vpop.f32.mrb[0].mxu0
  %v990 = vadd.f32 0.0, %v989
  %v991 = vpop.f32.mrb[0].mxu0
  %992 = vmatprep.mubr.f32.mxu0 0.0
  %993 = vmatmul.mubr.f32.gmra.mrb[0].mxu0 %v391
  %v994 = vpop.f32.mrb[0].mxu0
  %v995 = vadd.f32 0.0, %v994
  %v996 = vpop.f32.mrb[0].mxu0
  %997 = vmatprep.mubr.f32.mxu0 0.0
  %998 = vmatmul.mubr.f32.gmra.mrb[0].mxu0 %v394
  %v999 = vpop.f32.mrb[0].mxu0
  %v1000 = vadd.f32 0.0, %v999
  %v1001 = vpop.f32.mrb[0].mxu0
  %1002 = vmatprep.mubr.f32.mxu0 0.0
  %1003 = vmatmul.mubr.f32.gmra.mrb[0].mxu0 %v397
  %v1004 = vpop.f32.mrb[0].mxu0
  %v1005 = vadd.f32 0.0, %v1004
  %v1006 = vpop.f32.mrb[0].mxu0
  %1007 = vmatprep.mubr.f32.mxu0 0.0
  %1008 = vmatmul.mubr.f32.gmra.mrb[0].mxu0 %v400
  %v1009 = vpop.f32.mrb[0].mxu0
  %v1010 = vadd.f32 0.0, %v1009
  %v1011 = vpop.f32.mrb[0].mxu0
  %1012 = vmatprep.mubr.f32.mxu0 0.0
  %1013 = vmatmul.mubr.f32.gmra.mrb[0].mxu0 %v403
  %v1014 = vpop.f32.mrb[0].mxu0
  %v1015 = vadd.f32 0.0, %v1014
  %v1016 = vpop.f32.mrb[0].mxu0
  %1017 = vmatprep.mubr.f32.mxu0 0.0
  %1018 = vmatmul.mubr.f32.gmra.mrb[0].mxu0 %v406
  %v1019 = vpop.f32.mrb[0].mxu0
  %v1020 = vadd.f32 0.0, %v1019
  %v1021 = vpop.f32.mrb[0].mxu0
  %1022 = vmatprep.mubr.f32.mxu0 0.0
  %1023 = vmatmul.mubr.f32.gmra.mrb[0].mxu0 %v409
  %v1024 = vpop.f32.mrb[0].mxu0
  %v1025 = vadd.f32 0.0, %v1024
  %v1026 = vpop.f32.mrb[0].mxu0
  %1027 = vmatprep.mubr.f32.mxu0 0.0
  %1028 = vmatmul.mubr.f32.gmra.mrb[0].mxu0 %v412
  %v1029 = vpop.f32.mrb[0].mxu0
  %v1030 = vadd.f32 0.0, %v1029
  %v1031 = vpop.f32.mrb[0].mxu0
  %1032 = vmatprep.mubr.f32.mxu0 0.0
  %1033 = vmatmul.mubr.f32.gmra.mrb[0].mxu0 %v415
  %v1034 = vpop.f32.mrb[0].mxu0
  %v1035 = vadd.f32 0.0, %v1034
  %v1036 = vpop.f32.mrb[0].mxu0
  %1037 = vmatprep.mubr.f32.mxu0 0.0
  %1038 = vmatmul.mubr.f32.gmra.mrb[0].mxu0 %v418
  %v1039 = vpop.f32.mrb[0].mxu0
  %v1040 = vadd.f32 0.0, %v1039
  %v1041 = vpop.f32.mrb[0].mxu0
  %1042 = vmatprep.mubr.f32.mxu0 0.0
  %1043 = vmatmul.mubr.f32.gmra.mrb[0].mxu0 %v421
  %v1044 = vpop.f32.mrb[0].mxu0
  %v1045 = vadd.f32 0.0, %v1044
  %v1046 = vpop.f32.mrb[0].mxu0
  %1047 = vmatprep.mubr.f32.mxu0 0.0
  %1048 = vmatmul.mubr.f32.gmra.mrb[0].mxu0 %v424
  %v1049 = vpop.f32.mrb[0].mxu0
  %v1050 = vadd.f32 0.0, %v1049
  %v1051 = vpop.f32.mrb[0].mxu0
  %1052 = vmatprep.mubr.f32.mxu0 0.0
  %1053 = vmatmul.mubr.f32.gmra.mrb[0].mxu0 %v427
  %v1054 = vpop.f32.mrb[0].mxu0
  %v1055 = vadd.f32 0.0, %v1054
  %v1056 = vpop.f32.mrb[0].mxu0
  %1057 = vmatprep.mubr.f32.mxu0 0.0
  %1058 = vmatmul.mubr.f32.gmra.mrb[0].mxu0 %v430
  %v1059 = vpop.f32.mrb[0].mxu0
  %v1060 = vadd.f32 0.0, %v1059
  %v1061 = vpop.f32.mrb[0].mxu0
  %1062 = vmatprep.mubr.f32.mxu0 0.0
  %1063 = vmatmul.mubr.f32.gmra.mrb[0].mxu0 %v433
  %v1064 = vpop.f32.mrb[0].mxu0
  %v1065 = vadd.f32 0.0, %v1064
  %v1066 = vpop.f32.mrb[0].mxu0
  %1067 = vmatprep.mubr.f32.mxu0 0.0
  %1068 = vmatmul.mubr.f32.gmra.mrb[0].mxu0 %v436
  %v1069 = vpop.f32.mrb[0].mxu0
  %v1070 = vadd.f32 0.0, %v1069
  %v1071 = vpop.f32.mrb[0].mxu0
  %1072 = vmatprep.mubr.f32.mxu0 0.0
  %1073 = vmatmul.mubr.f32.gmra.mrb[0].mxu0 %v439
  %v1074 = vpop.f32.mrb[0].mxu0
  %v1075 = vadd.f32 0.0, %v1074
  %v1076 = vpop.f32.mrb[0].mxu0
  %1077 = vmatprep.mubr.f32.mxu0 0.0
  %1078 = vmatmul.mubr.f32.gmra.mrb[0].mxu0 %v442
  %v1079 = vpop.f32.mrb[0].mxu0
  %v1080 = vadd.f32 0.0, %v1079
  %v1081 = vpop.f32.mrb[0].mxu0
  %1082 = vmatprep.mubr.f32.mxu0 0.0
  %1083 = vmatmul.mubr.f32.gmra.mrb[0].mxu0 %v445
  %v1084 = vpop.f32.mrb[0].mxu0
  %v1085 = vadd.f32 0.0, %v1084
  %v1086 = vpop.f32.mrb[0].mxu0
  %1087 = vmatprep.mubr.f32.mxu0 0.0
  %1088 = vmatmul.mubr.f32.gmra.mrb[0].mxu0 %v448
  %v1089 = vpop.f32.mrb[0].mxu0
  %v1090 = vadd.f32 0.0, %v1089
  %v1091 = vpop.f32.mrb[0].mxu0
  %1092 = vmatprep.mubr.f32.mxu0 0.0
  %1093 = vmatmul.mubr.f32.gmra.mrb[0].mxu0 %v451
  %v1094 = vpop.f32.mrb[0].mxu0
  %v1095 = vadd.f32 0.0, %v1094
  %v1096 = vpop.f32.mrb[0].mxu0
  %1097 = vmatprep.mubr.f32.mxu0 0.0
  %1098 = vmatmul.mubr.f32.gmra.mrb[0].mxu0 %v454
  %v1099 = vpop.f32.mrb[0].mxu0
  %v1100 = vadd.f32 0.0, %v1099
  %v1101 = vpop.f32.mrb[0].mxu0
  %1102 = vmatprep.mubr.f32.mxu0 0.0
  %1103 = vmatmul.mubr.f32.gmra.mrb[0].mxu0 %v457
  %v1104 = vpop.f32.mrb[0].mxu0
  %v1105 = vadd.f32 0.0, %v1104
  %v1106 = vpop.f32.mrb[0].mxu0
  %1107 = vmatprep.mubr.f32.mxu0 0.0
  %1108 = vmatmul.mubr.f32.gmra.mrb[0].mxu0 %v460
  %v1109 = vpop.f32.mrb[0].mxu0
  %v1110 = vadd.f32 0.0, %v1109
  %v1111 = vpop.f32.mrb[0].mxu0
  %1112 = vmatprep.mubr.f32.mxu0 0.0
  %1113 = vmatmul.mubr.f32.gmra.mrb[0].mxu0 %v463
  %v1114 = vpop.f32.mrb[0].mxu0
  %v1115 = vadd.f32 0.0, %v1114
  %v1116 = vpop.f32.mrb[0].mxu0
  %1117 = vmatprep.mubr.f32.mxu0 0.0
  %1118 = vmatmul.mubr.f32.gmra.mrb[0].mxu0 %v466
  %v1119 = vpop.f32.mrb[0].mxu0
  %v1120 = vadd.f32 0.0, %v1119
  %v1121 = vpop.f32.mrb[0].mxu0
  %1122 = vmatprep.mubr.f32.mxu0 0.0
  %1123 = vmatmul.mubr.f32.gmra.mrb[0].mxu0 %v469
  %v1124 = vpop.f32.mrb[0].mxu0
  %v1125 = vadd.f32 0.0, %v1124
  %v1126 = vpop.f32.mrb[0].mxu0
  %1127 = vmatprep.mubr.f32.mxu0 0.0
  %1128 = vmatmul.mubr.f32.gmra.mrb[0].mxu0 %v472
  %v1129 = vpop.f32.mrb[0].mxu0
  %v1130 = vadd.f32 0.0, %v1129
  %v1131 = vpop.f32.mrb[0].mxu0
  %1132 = vmatprep.mubr.f32.mxu0 0.0
  %1133 = vmatmul.mubr.f32.gmra.mrb[0].mxu0 %v475
  %v1134 = vpop.f32.mrb[0].mxu0
  %v1135 = vadd.f32 0.0, %v1134
  %v1136 = vpop.f32.mrb[0].mxu0
  %1137 = vmatprep.mubr.f32.mxu0 0.0
  %1138 = vmatmul.mubr.f32.gmra.mrb[0].mxu0 %v478
  %v1139 = vpop.f32.mrb[0].mxu0
  %v1140 = vadd.f32 0.0, %v1139
  %v1141 = vpop.f32.mrb[0].mxu0
  %1142 = vmatprep.mubr.f32.mxu0 0.0
  %1143 = vmatmul.mubr.f32.gmra.mrb[0].mxu0 %v481
  %v1144 = vpop.f32.mrb[0].mxu0
  %v1145 = vadd.f32 0.0, %v1144
  %v1146 = vpop.f32.mrb[0].mxu0
  %1147 = vmatprep.mubr.f32.mxu0 0.0
  %1148 = vmatmul.mubr.f32.gmra.mrb[0].mxu0 %v484
  %v1149 = vpop.f32.mrb[0].mxu0
  %v1150 = vadd.f32 0.0, %v1149
  %v1151 = vpop.f32.mrb[0].mxu0
  %1152 = vmatprep.mubr.f32.mxu0 0.0
  %1153 = vmatmul.mubr.f32.gmra.mrb[0].mxu0 %v487
  %v1154 = vpop.f32.mrb[0].mxu0
  %v1155 = vadd.f32 0.0, %v1154
  %v1156 = vpop.f32.mrb[0].mxu0
  %1157 = vmatprep.mubr.f32.mxu0 0.0
  %1158 = vmatmul.mubr.f32.gmra.mrb[0].mxu0 %v490
  %v1159 = vpop.f32.mrb[0].mxu0
  %v1160 = vadd.f32 0.0, %v1159
  %v1161 = vpop.f32.mrb[0].mxu0
  %1162 = vmatprep.mubr.f32.mxu0 0.0
  %1163 = vmatmul.mubr.f32.gmra.mrb[0].mxu0 %v493
  %v1164 = vpop.f32.mrb[0].mxu0
  %v1165 = vadd.f32 0.0, %v1164
  %v1166 = vpop.f32.mrb[0].mxu0
  %1167 = vmatprep.mubr.f32.mxu0 0.0
  %1168 = vmatmul.mubr.f32.gmra.mrb[0].mxu0 %v496
  %v1169 = vpop.f32.mrb[0].mxu0
  %v1170 = vadd.f32 0.0, %v1169
  %v1171 = vpop.f32.mrb[0].mxu0
  %1172 = vmatprep.mubr.f32.mxu0 0.0
  %1173 = vmatmul.mubr.f32.gmra.mrb[0].mxu0 %v499
  %v1174 = vpop.f32.mrb[0].mxu0
  %v1175 = vadd.f32 0.0, %v1174
  %v1176 = vpop.f32.mrb[0].mxu0
  %1177 = vmatprep.mubr.f32.mxu0 0.0
  %1178 = vmatmul.mubr.f32.gmra.mrb[0].mxu0 %v502
  %v1179 = vpop.f32.mrb[0].mxu0
  %v1180 = vadd.f32 0.0, %v1179
  %v1181 = vpop.f32.mrb[0].mxu0
  %1182 = vmatprep.mubr.f32.mxu0 0.0
  %1183 = vmatmul.mubr.f32.gmra.mrb[0].mxu0 %v505
  %v1184 = vpop.f32.mrb[0].mxu0
  %v1185 = vadd.f32 0.0, %v1184
  %v1186 = vpop.f32.mrb[0].mxu0
  %1187 = vmatprep.mubr.f32.mxu0 0.0
  %1188 = vmatmul.mubr.f32.gmra.mrb[0].mxu0 %v508
  %v1189 = vpop.f32.mrb[0].mxu0
  %v1190 = vadd.f32 0.0, %v1189
  %v1191 = vpop.f32.mrb[0].mxu0
  %1192 = vmatprep.mubr.f32.mxu0 0.0
  %1193 = vmatmul.mubr.f32.gmra.mrb[0].mxu0 %v511
  %v1194 = vpop.f32.mrb[0].mxu0
  %v1195 = vadd.f32 0.0, %v1194
  %v1196 = vpop.f32.mrb[0].mxu0
  %1197 = vmatprep.mubr.f32.mxu0 0.0
  %1198 = vmatmul.mubr.f32.gmra.mrb[0].mxu0 %v514
  %v1199 = vpop.f32.mrb[0].mxu0
  %v1200 = vadd.f32 0.0, %v1199
  %v1201 = vpop.f32.mrb[0].mxu0
  %1202 = vmatprep.mubr.f32.mxu0 0.0
  %1203 = vmatmul.mubr.f32.gmra.mrb[0].mxu0 %v517
  %v1204 = vpop.f32.mrb[0].mxu0
  %v1205 = vadd.f32 0.0, %v1204
  %v1206 = vpop.f32.mrb[0].mxu0
  %1207 = vdwg.mxu0
  %v1208 = vmax.f32 %v590, %v745
  %v1209 = vmax.f32 %v595, %v750
  %v1210 = vmax.f32 %v600, %v755
  %v1211 = vmax.f32 %v605, %v760
  %v1212 = vmax.f32 %v610, %v765
  %v1213 = vmax.f32 %v615, %v770
  %v1214 = vmax.f32 %v620, %v775
  %v1215 = vmax.f32 %v625, %v780
  %v1216 = vmax.f32 %v630, %v785
  %v1217 = vmax.f32 %v635, %v790
  %v1218 = vmax.f32 %v640, %v795
  %v1219 = vmax.f32 %v645, %v800
  %v1220 = vmax.f32 %v650, %v805
  %v1221 = vmax.f32 %v655, %v810
  %v1222 = vmax.f32 %v660, %v815
  %v1223 = vmax.f32 %v665, %v820
  %v1224 = vmax.f32 %v670, %v825
  %v1225 = vmax.f32 %v675, %v830
  %v1226 = vmax.f32 %v680, %v835
  %v1227 = vmax.f32 %v685, %v840
  %v1228 = vmax.f32 %v690, %v845
  %v1229 = vmax.f32 %v695, %v850
  %v1230 = vmax.f32 %v700, %v855
  %v1231 = vmax.f32 %v705, %v860
  %v1232 = vmax.f32 %v710, %v865
  %v1233 = vmax.f32 %v715, %v870
  %v1234 = vmax.f32 %v720, %v875
  %v1235 = vmax.f32 %v725, %v880
  %v1236 = vmax.f32 %v730, %v885
  %v1237 = vmax.f32 %v735, %v890
  %v1238 = vmax.f32 %v740, %v895
  %v1239 = vmax.f32 %v900, %v1055
  %v1240 = vmax.f32 %v905, %v1060
  %v1241 = vmax.f32 %v910, %v1065
  %v1242 = vmax.f32 %v915, %v1070
  %v1243 = vmax.f32 %v920, %v1075
  %v1244 = vmax.f32 %v925, %v1080
  %v1245 = vmax.f32 %v930, %v1085
  %v1246 = vmax.f32 %v935, %v1090
  %v1247 = vmax.f32 %v940, %v1095
  %v1248 = vmax.f32 %v945, %v1100
  %v1249 = vmax.f32 %v950, %v1105
  %v1250 = vmax.f32 %v955, %v1110
  %v1251 = vmax.f32 %v960, %v1115
  %v1252 = vmax.f32 %v965, %v1120
  %v1253 = vmax.f32 %v970, %v1125
  %v1254 = vmax.f32 %v975, %v1130
  %v1255 = vmax.f32 %v980, %v1135
  %v1256 = vmax.f32 %v985, %v1140
  %v1257 = vmax.f32 %v990, %v1145
  %v1258 = vmax.f32 %v995, %v1150
  %v1259 = vmax.f32 %v1000, %v1155
  %v1260 = vmax.f32 %v1005, %v1160
  %v1261 = vmax.f32 %v1010, %v1165
  %v1262 = vmax.f32 %v1015, %v1170
  %v1263 = vmax.f32 %v1020, %v1175
  %v1264 = vmax.f32 %v1025, %v1180
  %v1265 = vmax.f32 %v1030, %v1185
  %v1266 = vmax.f32 %v1035, %v1190
  %v1267 = vmax.f32 %v1040, %v1195
  %v1268 = vmax.f32 %v1045, %v1200
  %v1269 = vmax.f32 %v1050, %v1205
  %v1270 = vmax.f32 %v1208, %v1239
  %v1271 = vmax.f32 %v1209, %v1240
  %v1272 = vmax.f32 %v1210, %v1241
  %v1273 = vmax.f32 %v1211, %v1242
  %v1274 = vmax.f32 %v1212, %v1243
  %v1275 = vmax.f32 %v1213, %v1244
  %v1276 = vmax.f32 %v1214, %v1245
  %v1277 = vmax.f32 %v1215, %v1246
  %v1278 = vmax.f32 %v1216, %v1247
  %v1279 = vmax.f32 %v1217, %v1248
  %v1280 = vmax.f32 %v1218, %v1249
  %v1281 = vmax.f32 %v1219, %v1250
  %v1282 = vmax.f32 %v1220, %v1251
  %v1283 = vmax.f32 %v1221, %v1252
  %v1284 = vmax.f32 %v1222, %v1253
  %v1285 = vmax.f32 %v1223, %v1254
  %v1286 = vmax.f32 %v1224, %v1255
  %v1287 = vmax.f32 %v1225, %v1256
  %v1288 = vmax.f32 %v1226, %v1257
  %v1289 = vmax.f32 %v1227, %v1258
  %v1290 = vmax.f32 %v1228, %v1259
  %v1291 = vmax.f32 %v1229, %v1260
  %v1292 = vmax.f32 %v1230, %v1261
  %v1293 = vmax.f32 %v1231, %v1262
  %v1294 = vmax.f32 %v1232, %v1263
  %v1295 = vmax.f32 %v1233, %v1264
  %v1296 = vmax.f32 %v1234, %v1265
  %v1297 = vmax.f32 %v1235, %v1266
  %v1298 = vmax.f32 %v1236, %v1267
  %v1299 = vmax.f32 %v1237, %v1268
  %v1300 = vmax.f32 %v1238, %v1269
  %v1302 = vlaneseq
  %v1303 = vshrl.u32 %v1302, 7
  %v1304 = vsub.s32 0, %v1303
  %v1305 = vrot.slane %v145, %v1304
  %v1307 = vadd.f32 %v1270, %v1305
  %v1308 = vadd.f32 %v1271, %v1305
  %v1309 = vadd.f32 %v1272, %v1305
  %v1310 = vadd.f32 %v1273, %v1305
  %v1311 = vadd.f32 %v1274, %v1305
  %v1312 = vadd.f32 %v1275, %v1305
  %v1313 = vadd.f32 %v1276, %v1305
  %v1314 = vadd.f32 %v1277, %v1305
  %v1315 = vadd.f32 %v1278, %v1305
  %v1316 = vadd.f32 %v1279, %v1305
  %v1317 = vadd.f32 %v1280, %v1305
  %v1318 = vadd.f32 %v1281, %v1305
  %v1319 = vadd.f32 %v1282, %v1305
  %v1320 = vadd.f32 %v1283, %v1305
  %v1321 = vadd.f32 %v1284, %v1305
  %v1322 = vadd.f32 %v1285, %v1305
  %v1323 = vadd.f32 %v1286, %v1305
  %v1324 = vadd.f32 %v1287, %v1305
  %v1325 = vadd.f32 %v1288, %v1305
  %v1326 = vadd.f32 %v1289, %v1305
  %v1327 = vadd.f32 %v1290, %v1305
  %v1328 = vadd.f32 %v1291, %v1305
  %v1329 = vadd.f32 %v1292, %v1305
  %v1330 = vadd.f32 %v1293, %v1305
  %v1331 = vadd.f32 %v1294, %v1305
  %v1332 = vadd.f32 %v1295, %v1305
  %v1333 = vadd.f32 %v1296, %v1305
  %v1334 = vadd.f32 %v1297, %v1305
  %v1335 = vadd.f32 %v1298, %v1305
  %v1336 = vadd.f32 %v1299, %v1305
  %v1337 = vadd.f32 %v1300, %v1305
  %v1338 = vmax.f32 %v1307, 0.0
  %v1339 = vmax.f32 %v1308, 0.0
  %v1340 = vmax.f32 %v1309, 0.0
  %v1341 = vmax.f32 %v1310, 0.0
  %v1342 = vmax.f32 %v1311, 0.0
  %v1343 = vmax.f32 %v1312, 0.0
  %v1344 = vmax.f32 %v1313, 0.0
  %v1345 = vmax.f32 %v1314, 0.0
  %v1346 = vmax.f32 %v1315, 0.0
  %v1347 = vmax.f32 %v1316, 0.0
  %v1348 = vmax.f32 %v1317, 0.0
  %v1349 = vmax.f32 %v1318, 0.0
  %v1350 = vmax.f32 %v1319, 0.0
  %v1351 = vmax.f32 %v1320, 0.0
  %v1352 = vmax.f32 %v1321, 0.0
  %v1353 = vmax.f32 %v1322, 0.0
  %v1354 = vmax.f32 %v1323, 0.0
  %v1355 = vmax.f32 %v1324, 0.0
  %v1356 = vmax.f32 %v1325, 0.0
  %v1357 = vmax.f32 %v1326, 0.0
  %v1358 = vmax.f32 %v1327, 0.0
  %v1359 = vmax.f32 %v1328, 0.0
  %v1360 = vmax.f32 %v1329, 0.0
  %v1361 = vmax.f32 %v1330, 0.0
  %v1362 = vmax.f32 %v1331, 0.0
  %v1363 = vmax.f32 %v1332, 0.0
  %v1364 = vmax.f32 %v1333, 0.0
  %v1365 = vmax.f32 %v1334, 0.0
  %v1366 = vmax.f32 %v1335, 0.0
  %v1367 = vmax.f32 %v1336, 0.0
  %v1368 = vmax.f32 %v1337, 0.0
  %vm1369 = vcmask 64512
  %1370 = vst.msk [vmem:[%s3] sm:$0xff] %vm1369, %v1338
  %1371 = vst.msk [vmem:[%s3 + $0x8] sm:$0xff] %vm1369, %v1339
  %1372 = vst.msk [vmem:[%s3 + $0x10] sm:$0xff] %vm1369, %v1340
  %1373 = vst.msk [vmem:[%s3 + $0x18] sm:$0xff] %vm1369, %v1341
  %1374 = vst.msk [vmem:[%s3 + $0x20] sm:$0xff] %vm1369, %v1342
  %1375 = vst.msk [vmem:[%s3 + $0x28] sm:$0xff] %vm1369, %v1343
  %1376 = vst.msk [vmem:[%s3 + $0x30] sm:$0xff] %vm1369, %v1344
  %1377 = vst.msk [vmem:[%s3 + $0x38] sm:$0xff] %vm1369, %v1345
  %1378 = vst.msk [vmem:[%s3 + $0x40] sm:$0xff] %vm1369, %v1346
  %1379 = vst.msk [vmem:[%s3 + $0x48] sm:$0xff] %vm1369, %v1347
  %1380 = vst.msk [vmem:[%s3 + $0x50] sm:$0xff] %vm1369, %v1348
  %1381 = vst.msk [vmem:[%s3 + $0x58] sm:$0xff] %vm1369, %v1349
  %1382 = vst.msk [vmem:[%s3 + $0x60] sm:$0xff] %vm1369, %v1350
  %1383 = vst.msk [vmem:[%s3 + $0x68] sm:$0xff] %vm1369, %v1351
  %1384 = vst.msk [vmem:[%s3 + $0x70] sm:$0xff] %vm1369, %v1352
  %1385 = vst.msk [vmem:[%s3 + $0x78] sm:$0xff] %vm1369, %v1353
  %1386 = vst.msk [vmem:[%s3 + $0x80] sm:$0xff] %vm1369, %v1354
  %1387 = vst.msk [vmem:[%s3 + $0x88] sm:$0xff] %vm1369, %v1355
  %1388 = vst.msk [vmem:[%s3 + $0x90] sm:$0xff] %vm1369, %v1356
  %1389 = vst.msk [vmem:[%s3 + $0x98] sm:$0xff] %vm1369, %v1357
  %1390 = vst.msk [vmem:[%s3 + $0xa0] sm:$0xff] %vm1369, %v1358
  %1391 = vst.msk [vmem:[%s3 + $0xa8] sm:$0xff] %vm1369, %v1359
  %1392 = vst.msk [vmem:[%s3 + $0xb0] sm:$0xff] %vm1369, %v1360
  %1393 = vst.msk [vmem:[%s3 + $0xb8] sm:$0xff] %vm1369, %v1361
  %1394 = vst.msk [vmem:[%s3 + $0xc0] sm:$0xff] %vm1369, %v1362
  %1395 = vst.msk [vmem:[%s3 + $0xc8] sm:$0xff] %vm1369, %v1363
  %1396 = vst.msk [vmem:[%s3 + $0xd0] sm:$0xff] %vm1369, %v1364
  %1397 = vst.msk [vmem:[%s3 + $0xd8] sm:$0xff] %vm1369, %v1365
  %1398 = vst.msk [vmem:[%s3 + $0xe0] sm:$0xff] %vm1369, %v1366
  %1399 = vst.msk [vmem:[%s3 + $0xe8] sm:$0xff] %vm1369, %v1367
  %vm1400 = vcmask 58368
  %1401 = vst.msk [vmem:[%s3 + $0xf0] sm:$0x3] %vm1400, %v1368
  // Predicated region
  $region14: #{forward.4} parent=0 // pred_check
    _
  $region15: #{forward.4} parent=0 // pred_check_branch
    %1403 = sbr.rel (0) target = $region17
  $region16: #{forward.4} parent=0 // pred_region
    _
  $region17: #{forward.4} parent=0 // pred_fallthru
    _
  // Predicated region
  $region18: #{forward.4} parent=0 // pred_check
    _
  $region19: #{forward.4} parent=0 // pred_check_branch
    %1405 = sbr.rel (0) target = $region21
  $region20: #{forward.4} parent=0 // pred_region
    _
  $region21: #{forward.4} parent=0 // pred_fallthru
    _

// kernel: forward.5
$region0: #{forward.5}
  #allocation0 [shape = 'u32[]', space=smem, size = 0x4, offset = 0x4, fixed_abs, tag = 'smem constant byte address 0x4 - core index']
  #allocation1 [shape = 'u32[144,128]{1,0:T(1,128)}', space=vmem, size = 0x12000, scoped, tag = 'internal scratch']
  %s0 = inlined_call_operand.vmem [shape: f32[96,200], index: 0, kind: input, shape index: {}]
  %s1 = inlined_call_operand.vmem [shape: f32[200,10], index: 1, kind: input, shape index: {}]
  %s2 = inlined_call_operand.vmem [shape: f32[1,10], index: 2, kind: input, shape index: {}]
  %s3 = inlined_call_operand.vmem [shape: f32[9,10,32], index: 3, kind: input, shape index: {}]
  %s4 = inlined_call_operand.vmem [shape: f32[1,32], index: 4, kind: input, shape index: {}]
  %s5 = inlined_call_operand.vmem [shape: f32[32,6], index: 5, kind: input, shape index: {}]
  %s6 = inlined_call_operand.vmem [shape: f32[1,6], index: 6, kind: input, shape index: {}]
  %s7 = inlined_call_operand.vmem [shape: f32[2,28,28], index: 7, kind: input, shape index: {}]
  %s8 = inlined_call_operand.vmem [shape: f32[2,784], index: 8, kind: output, shape index: {}]
  %s9 = sld [smem:[#allocation0]]
  $region42: #{forward.5} parent=0
    _
  %s11 = ssub.s32 1, %s9
  %s12 = scalar_select 0, %s11, %s9
  // Predicated region
  $region2: #{forward.5} parent=0 // pred_check
    _
  $region3: #{forward.5} parent=0 // pred_check_branch
    %14 = sbr.rel (0) target = $region5
  $region4: #{forward.5} parent=0 // pred_region
    _
  $region5: #{forward.5} parent=0 // pred_fallthru
    _
  // Predicated region
  $region6: #{forward.5} parent=0 // pred_check
    _
  $region7: #{forward.5} parent=0 // pred_check_branch
    %16 = sbr.rel (0) target = $region9
  $region8: #{forward.5} parent=0 // pred_region
    _
  $region9: #{forward.5} parent=0 // pred_fallthru
    _
  // Predicated region
  $region10: #{forward.5} parent=0 // pred_check
    _
  $region11: #{forward.5} parent=0 // pred_check_branch
    %18 = sbr.rel (0) target = $region13
  $region12: #{forward.5} parent=0 // pred_region
    _
  $region13: #{forward.5} parent=0 // pred_fallthru
    _
  // Predicated region
  $region14: #{forward.5} parent=0 // pred_check
    _
  $region15: #{forward.5} parent=0 // pred_check_branch
    %20 = sbr.rel (0) target = $region17
  $region16: #{forward.5} parent=0 // pred_region
    _
  $region17: #{forward.5} parent=0 // pred_fallthru
    _
  // Predicated region
  $region18: #{forward.5} parent=0 // pred_check
    _
  $region19: #{forward.5} parent=0 // pred_check_branch
    %22 = sbr.rel (0) target = $region21
  $region20: #{forward.5} parent=0 // pred_region
    _
  $region21: #{forward.5} parent=0 // pred_fallthru
    _
  // Predicated region
  $region22: #{forward.5} parent=0 // pred_check
    _
  $region23: #{forward.5} parent=0 // pred_check_branch
    %24 = sbr.rel (0) target = $region25
  $region24: #{forward.5} parent=0 // pred_region
    _
  $region25: #{forward.5} parent=0 // pred_fallthru
    _
  // Predicated region
  $region26: #{forward.5} parent=0 // pred_check
    _
  $region27: #{forward.5} parent=0 // pred_check_branch
    %26 = sbr.rel (0) target = $region29
  $region28: #{forward.5} parent=0 // pred_region
    _
  $region29: #{forward.5} parent=0 // pred_fallthru
    _
  // Predicated region
  $region30: #{forward.5} parent=0 // pred_check
    _
  $region31: #{forward.5} parent=0 // pred_check_branch
    %28 = sbr.rel (0) target = $region33
  $region32: #{forward.5} parent=0 // pred_region
    _
  $region33: #{forward.5} parent=0 // pred_fallthru
    _
  %v29 = vld [vmem:[%s0] sm:$0xff]
  %v30 = vld [vmem:[%s0 + $0x8] sm:$0xff]
  %v31 = vld [vmem:[%s0 + $0x10] sm:$0xff]
  %v32 = vld [vmem:[%s0 + $0x18] sm:$0xff]
  %v33 = vld [vmem:[%s0 + $0x20] sm:$0xff]
  %v34 = vld [vmem:[%s0 + $0x28] sm:$0xff]
  %v35 = vld [vmem:[%s0 + $0x30] sm:$0xff]
  %v36 = vld [vmem:[%s0 + $0x38] sm:$0xff]
  %v37 = vld [vmem:[%s0 + $0x40] sm:$0xff]
  %v38 = vld [vmem:[%s0 + $0x48] sm:$0xff]
  %v39 = vld [vmem:[%s0 + $0x50] sm:$0xff]
  %v40 = vld [vmem:[%s0 + $0x58] sm:$0xff]
  %v41 = vld [vmem:[%s0 + $0x60] sm:$0xff]
  %v42 = vld [vmem:[%s0 + $0x68] sm:$0xff]
  %v43 = vld [vmem:[%s0 + $0x70] sm:$0xff]
  %v44 = vld [vmem:[%s0 + $0x78] sm:$0xff]
  %v45 = vld [vmem:[%s0 + $0x80] sm:$0xff]
  %v46 = vld [vmem:[%s0 + $0x88] sm:$0xff]
  %v47 = vld [vmem:[%s0 + $0x90] sm:$0xff]
  %v48 = vld [vmem:[%s0 + $0x98] sm:$0xff]
  %v49 = vld [vmem:[%s0 + $0xa0] sm:$0xff]
  %v50 = vld [vmem:[%s0 + $0xa8] sm:$0xff]
  %v51 = vld [vmem:[%s0 + $0xb0] sm:$0xff]
  %v52 = vld [vmem:[%s0 + $0xb8] sm:$0xff]
  %v53 = vld [vmem:[%s1] sm:$0xff]
  %v54 = vld [vmem:[%s1 + $0x8] sm:$0xff]
  %v55 = vld [vmem:[%s1 + $0x10] sm:$0xff]
  %v56 = vld [vmem:[%s1 + $0x18] sm:$0xff]
  %v57 = vld [vmem:[%s1 + $0x20] sm:$0xff]
  %v58 = vld [vmem:[%s1 + $0x28] sm:$0xff]
  %v59 = vld [vmem:[%s1 + $0x30] sm:$0xff]
  %v60 = vld [vmem:[%s1 + $0x38] sm:$0xff]
  %v61 = vld [vmem:[%s1 + $0x40] sm:$0xff]
  %v62 = vld [vmem:[%s1 + $0x48] sm:$0xff]
  %v63 = vld [vmem:[%s1 + $0x50] sm:$0xff]
  %v64 = vld [vmem:[%s1 + $0x58] sm:$0xff]
  %v65 = vld [vmem:[%s1 + $0x60] sm:$0xff]
  %v66 = vld [vmem:[%s1 + $0x68] sm:$0xff]
  %v67 = vld [vmem:[%s1 + $0x70] sm:$0xff]
  %v68 = vld [vmem:[%s1 + $0x78] sm:$0xff]
  %v69 = vld [vmem:[%s1 + $0x80] sm:$0xff]
  %v70 = vld [vmem:[%s1 + $0x88] sm:$0xff]
  %v71 = vld [vmem:[%s1 + $0x90] sm:$0xff]
  %v72 = vld [vmem:[%s1 + $0x98] sm:$0xff]
  %v73 = vld [vmem:[%s1 + $0xa0] sm:$0xff]
  %v74 = vld [vmem:[%s1 + $0xa8] sm:$0xff]
  %v75 = vld [vmem:[%s1 + $0xb0] sm:$0xff]
  %v76 = vld [vmem:[%s1 + $0xb8] sm:$0xff]
  %v77 = vld [vmem:[%s1 + $0xc0] sm:$0xff]
  %v78 = vld [vmem:[%s2] sm:$0x1]
  %vm79 = vcmask 588800
  %v81 = vsel %vm79, %v30, 0
  %v84 = vsel %vm79, %v32, 0
  %v87 = vsel %vm79, %v34, 0
  %v90 = vsel %vm79, %v36, 0
  %v93 = vsel %vm79, %v38, 0
  %v96 = vsel %vm79, %v40, 0
  %v99 = vsel %vm79, %v42, 0
  %v102 = vsel %vm79, %v44, 0
  %v105 = vsel %vm79, %v46, 0
  %v108 = vsel %vm79, %v48, 0
  %v111 = vsel %vm79, %v50, 0
  %v114 = vsel %vm79, %v52, 0
  %116 = vmatprep.subr.mxu0 0.0
  %117 = vmatpush1.msra.mxu0 %v53
  %118 = vmatprep.subr.mxu0 0.0
  %119 = vmatpush1.msra.mxu0 %v54
  %120 = vmatprep.subr.mxu0 0.0
  %121 = vmatpush1.msra.mxu0 %v55
  %122 = vmatprep.subr.mxu0 0.0
  %123 = vmatpush1.msra.mxu0 %v56
  %124 = vmatprep.subr.mxu0 0.0
  %125 = vmatpush1.msra.mxu0 %v57
  %126 = vmatprep.subr.mxu0 0.0
  %127 = vmatpush1.msra.mxu0 %v58
  %128 = vmatprep.subr.mxu0 0.0
  %129 = vmatpush1.msra.mxu0 %v59
  %130 = vmatprep.subr.mxu0 0.0
  %131 = vmatpush1.msra.mxu0 %v60
  %132 = vmatprep.subr.mxu0 0.0
  %133 = vmatpush1.msra.mxu0 %v61
  %134 = vmatprep.subr.mxu0 0.0
  %135 = vmatpush1.msra.mxu0 %v62
  %136 = vmatprep.subr.mxu0 0.0
  %137 = vmatpush1.msra.mxu0 %v63
  %138 = vmatprep.subr.mxu0 0.0
  %139 = vmatpush1.msra.mxu0 %v64
  %140 = vmatprep.subr.mxu0 0.0
  %141 = vmatpush1.msra.mxu0 %v65
  %142 = vmatprep.subr.mxu0 0.0
  %143 = vmatpush1.msra.mxu0 %v66
  %144 = vmatprep.subr.mxu0 0.0
  %145 = vmatpush1.msra.mxu0 %v67
  %146 = vmatprep.subr.mxu0 0.0
  %147 = vmatpush1.msra.mxu0 %v68
  %148 = vmatprep.subr.mxu0 0.0
  %149 = vmatpush1.msra.mxu0 %v69
  %150 = vmatprep.subr.mxu0 0.0
  %151 = vmatpush1.msra.mxu0 %v70
  %152 = vmatprep.subr.mxu0 0.0
  %153 = vmatpush1.msra.mxu0 %v71
  %154 = vmatprep.subr.mxu0 0.0
  %155 = vmatpush1.msra.mxu0 %v72
  %156 = vmatprep.subr.mxu0 0.0
  %157 = vmatpush1.msra.mxu0 %v73
  %158 = vmatprep.subr.mxu0 0.0
  %159 = vmatpush1.msra.mxu0 %v74
  %160 = vmatprep.subr.mxu0 0.0
  %161 = vmatpush1.msra.mxu0 %v75
  %162 = vmatprep.subr.mxu0 0.0
  %163 = vmatpush1.msra.mxu0 %v76
  %164 = vmatprep.subr.mxu0 0.0
  %165 = vmatpush1.msra.mxu0 %v77
  %166 = vmatprep.subr.mxu0 0.0
  %167 = vmatpush1.msra.mxu0 0.0
  %168 = vmatprep.subr.mxu0 0.0
  %169 = vmatpush1.msra.mxu0 0.0
  %170 = vmatprep.subr.mxu0 0.0
  %171 = vmatpush1.msra.mxu0 0.0
  %172 = vmatprep.subr.mxu0 0.0
  %173 = vmatpush1.msra.mxu0 0.0
  %174 = vmatprep.subr.mxu0 0.0
  %175 = vmatpush1.msra.mxu0 0.0
  %176 = vmatprep.subr.mxu0 0.0
  %177 = vmatpush1.msra.mxu0 0.0
  %178 = vmatprep.subr.mxu0 0.0
  %179 = vmatpush1.msra.mxu0 0.0
  %180 = vmatprep.mubr.f32.mxu0 %v81
  %181 = vmatmul.mubr.f32.gmra.mrb[0].mxu0 %v29
  %v182 = vpop.f32.mrb[0].mxu0
  %v183 = vadd.f32 0.0, %v182
  %v184 = vpop.f32.mrb[0].mxu0
  %185 = vmatprep.mubr.f32.mxu0 %v84
  %186 = vmatmul.mubr.f32.gmra.mrb[0].mxu0 %v31
  %v187 = vpop.f32.mrb[0].mxu0
  %v188 = vadd.f32 0.0, %v187
  %v189 = vpop.f32.mrb[0].mxu0
  %190 = vmatprep.mubr.f32.mxu0 %v87
  %191 = vmatmul.mubr.f32.gmra.mrb[0].mxu0 %v33
  %v192 = vpop.f32.mrb[0].mxu0
  %v193 = vadd.f32 0.0, %v192
  %v194 = vpop.f32.mrb[0].mxu0
  %195 = vmatprep.mubr.f32.mxu0 %v90
  %196 = vmatmul.mubr.f32.gmra.mrb[0].mxu0 %v35
  %v197 = vpop.f32.mrb[0].mxu0
  %v198 = vadd.f32 0.0, %v197
  %v199 = vpop.f32.mrb[0].mxu0
  %200 = vmatprep.mubr.f32.mxu0 %v93
  %201 = vmatmul.mubr.f32.gmra.mrb[0].mxu0 %v37
  %v202 = vpop.f32.mrb[0].mxu0
  %v203 = vadd.f32 0.0, %v202
  %v204 = vpop.f32.mrb[0].mxu0
  %205 = vmatprep.mubr.f32.mxu0 %v96
  %206 = vmatmul.mubr.f32.gmra.mrb[0].mxu0 %v39
  %v207 = vpop.f32.mrb[0].mxu0
  %v208 = vadd.f32 0.0, %v207
  %v209 = vpop.f32.mrb[0].mxu0
  %210 = vmatprep.mubr.f32.mxu0 %v99
  %211 = vmatmul.mubr.f32.gmra.mrb[0].mxu0 %v41
  %v212 = vpop.f32.mrb[0].mxu0
  %v213 = vadd.f32 0.0, %v212
  %v214 = vpop.f32.mrb[0].mxu0
  %215 = vmatprep.mubr.f32.mxu0 %v102
  %216 = vmatmul.mubr.f32.gmra.mrb[0].mxu0 %v43
  %v217 = vpop.f32.mrb[0].mxu0
  %v218 = vadd.f32 0.0, %v217
  %v219 = vpop.f32.mrb[0].mxu0
  %220 = vmatprep.mubr.f32.mxu0 %v105
  %221 = vmatmul.mubr.f32.gmra.mrb[0].mxu0 %v45
  %v222 = vpop.f32.mrb[0].mxu0
  %v223 = vadd.f32 0.0, %v222
  %v224 = vpop.f32.mrb[0].mxu0
  %225 = vmatprep.mubr.f32.mxu0 %v108
  %226 = vmatmul.mubr.f32.gmra.mrb[0].mxu0 %v47
  %v227 = vpop.f32.mrb[0].mxu0
  %v228 = vadd.f32 0.0, %v227
  %v229 = vpop.f32.mrb[0].mxu0
  %230 = vmatprep.mubr.f32.mxu0 %v111
  %231 = vmatmul.mubr.f32.gmra.mrb[0].mxu0 %v49
  %v232 = vpop.f32.mrb[0].mxu0
  %v233 = vadd.f32 0.0, %v232
  %v234 = vpop.f32.mrb[0].mxu0
  %235 = vmatprep.mubr.f32.mxu0 %v114
  %236 = vmatmul.mubr.f32.gmra.mrb[0].mxu0 %v51
  %v237 = vpop.f32.mrb[0].mxu0
  %v238 = vadd.f32 0.0, %v237
  %v239 = vpop.f32.mrb[0].mxu0
  %240 = vdwg.mxu0
  %v241 = vmax.f32 %v183, %v198
  %v242 = vmax.f32 %v188, %v203
  %v243 = vmax.f32 %v193, %v208
  %v244 = vmax.f32 %v213, %v228
  %v245 = vmax.f32 %v218, %v233
  %v246 = vmax.f32 %v223, %v238
  %v247 = vmax.f32 %v241, %v244
  %v248 = vmax.f32 %v242, %v245
  %v249 = vmax.f32 %v243, %v246
  %v251 = vlaneseq
  %v252 = vshrl.u32 %v251, 7
  %v253 = vsub.s32 0, %v252
  %v254 = vrot.slane %v78, %v253
  %v256 = vadd.f32 %v247, %v254
  %v257 = vadd.f32 %v248, %v254
  %v258 = vadd.f32 %v249, %v254
  %v259 = vmax.f32 %v256, 0.0
  %v260 = vmax.f32 %v257, 0.0
  %v261 = vmax.f32 %v258, 0.0
  %v262 = vld [vmem:[%s3] sm:$0xff]
  %v263 = vld [vmem:[%s3 + $0x8] sm:$0x3]
  %s264 = scalar_lea.vmem %s3, 16
  %v265 = vld [vmem:[%s264] sm:$0xff]
  %v266 = vld [vmem:[%s264 + $0x8] sm:$0x3]
  %v268 = vrot.slane %v259, 2
  %vm269 = vcmask 80896
  %v270 = vsel %vm269, %v268, 0
  %vm272 = vcmask 1041408
  %v274 = vsel %vm272, %v266, 0
  %276 = vmatprep.subr.mxu0 0.0
  %277 = vmatpush1.msra.mxu0 %v265
  %278 = vmatprep.subr.mxu0 0.0
  %279 = vmatpush1.msra.mxu0 %v274
  %280 = vmatprep.subr.mxu0 0.0
  %281 = vmatpush1.msra.mxu0 0.0
  %282 = vmatprep.subr.mxu0 0.0
  %283 = vmatpush1.msra.mxu0 0.0
  %284 = vmatprep.subr.mxu0 0.0
  %285 = vmatpush1.msra.mxu0 0.0
  %286 = vmatprep.subr.mxu0 0.0
  %287 = vmatpush1.msra.mxu0 0.0
  %288 = vmatprep.subr.mxu0 0.0
  %289 = vmatpush1.msra.mxu0 0.0
  %290 = vmatprep.subr.mxu0 0.0
  %291 = vmatpush1.msra.mxu0 0.0
  %292 = vmatprep.subr.mxu0 0.0
  %293 = vmatpush1.msra.mxu0 0.0
  %294 = vmatprep.subr.mxu0 0.0
  %295 = vmatpush1.msra.mxu0 0.0
  %296 = vmatprep.subr.mxu0 0.0
  %297 = vmatpush1.msra.mxu0 0.0
  %298 = vmatprep.subr.mxu0 0.0
  %299 = vmatpush1.msra.mxu0 0.0
  %300 = vmatprep.subr.mxu0 0.0
  %301 = vmatpush1.msra.mxu0 0.0
  %302 = vmatprep.subr.mxu0 0.0
  %303 = vmatpush1.msra.mxu0 0.0
  %304 = vmatprep.subr.mxu0 0.0
  %305 = vmatpush1.msra.mxu0 0.0
  %306 = vmatprep.subr.mxu0 0.0
  %307 = vmatpush1.msra.mxu0 0.0
  %308 = vmatprep.subr.mxu0 0.0
  %309 = vmatpush1.msra.mxu0 0.0
  %310 = vmatprep.subr.mxu0 0.0
  %311 = vmatpush1.msra.mxu0 0.0
  %312 = vmatprep.subr.mxu0 0.0
  %313 = vmatpush1.msra.mxu0 0.0
  %314 = vmatprep.subr.mxu0 0.0
  %315 = vmatpush1.msra.mxu0 0.0
  %316 = vmatprep.subr.mxu0 0.0
  %317 = vmatpush1.msra.mxu0 0.0
  %318 = vmatprep.subr.mxu0 0.0
  %319 = vmatpush1.msra.mxu0 0.0
  %320 = vmatprep.subr.mxu0 0.0
  %321 = vmatpush1.msra.mxu0 0.0
  %322 = vmatprep.subr.mxu0 0.0
  %323 = vmatpush1.msra.mxu0 0.0
  %324 = vmatprep.subr.mxu0 0.0
  %325 = vmatpush1.msra.mxu0 0.0
  %326 = vmatprep.subr.mxu0 0.0
  %327 = vmatpush1.msra.mxu0 0.0
  %328 = vmatprep.subr.mxu0 0.0
  %329 = vmatpush1.msra.mxu0 0.0
  %330 = vmatprep.subr.mxu0 0.0
  %331 = vmatpush1.msra.mxu0 0.0
  %332 = vmatprep.subr.mxu0 0.0
  %333 = vmatpush1.msra.mxu0 0.0
  %334 = vmatprep.subr.mxu0 0.0
  %335 = vmatpush1.msra.mxu0 0.0
  %336 = vmatprep.subr.mxu0 0.0
  %337 = vmatpush1.msra.mxu0 0.0
  %338 = vmatprep.subr.mxu0 0.0
  %339 = vmatpush1.msra.mxu0 0.0
  %340 = vmatprep.mubr.f32.mxu0 0.0
  %341 = vmatmul.mubr.f32.gmra.mrb[0].mxu0 %v270
  %v342 = vpop.f32.mrb[0].mxu0
  %v343 = vadd.f32 0.0, %v342
  %v344 = vpop.f32.mrb[0].mxu0
  %345 = vdwg.mxu0
  %v346 = vsel %vm269, %v259, 0
  %v349 = vsel %vm272, %v263, 0
  %351 = vmatprep.subr.mxu0 0.0
  %352 = vmatpush1.msra.mxu0 %v262
  %353 = vmatprep.subr.mxu0 0.0
  %354 = vmatpush1.msra.mxu0 %v349
  %355 = vmatprep.subr.mxu0 0.0
  %356 = vmatpush1.msra.mxu0 0.0
  %357 = vmatprep.subr.mxu0 0.0
  %358 = vmatpush1.msra.mxu0 0.0
  %359 = vmatprep.subr.mxu0 0.0
  %360 = vmatpush1.msra.mxu0 0.0
  %361 = vmatprep.subr.mxu0 0.0
  %362 = vmatpush1.msra.mxu0 0.0
  %363 = vmatprep.subr.mxu0 0.0
  %364 = vmatpush1.msra.mxu0 0.0
  %365 = vmatprep.subr.mxu0 0.0
  %366 = vmatpush1.msra.mxu0 0.0
  %367 = vmatprep.subr.mxu0 0.0
  %368 = vmatpush1.msra.mxu0 0.0
  %369 = vmatprep.subr.mxu0 0.0
  %370 = vmatpush1.msra.mxu0 0.0
  %371 = vmatprep.subr.mxu0 0.0
  %372 = vmatpush1.msra.mxu0 0.0
  %373 = vmatprep.subr.mxu0 0.0
  %374 = vmatpush1.msra.mxu0 0.0
  %375 = vmatprep.subr.mxu0 0.0
  %376 = vmatpush1.msra.mxu0 0.0
  %377 = vmatprep.subr.mxu0 0.0
  %378 = vmatpush1.msra.mxu0 0.0
  %379 = vmatprep.subr.mxu0 0.0
  %380 = vmatpush1.msra.mxu0 0.0
  %381 = vmatprep.subr.mxu0 0.0
  %382 = vmatpush1.msra.mxu0 0.0
  %383 = vmatprep.subr.mxu0 0.0
  %384 = vmatpush1.msra.mxu0 0.0
  %385 = vmatprep.subr.mxu0 0.0
  %386 = vmatpush1.msra.mxu0 0.0
  %387 = vmatprep.subr.mxu0 0.0
  %388 = vmatpush1.msra.mxu0 0.0
  %389 = vmatprep.subr.mxu0 0.0
  %390 = vmatpush1.msra.mxu0 0.0
  %391 = vmatprep.subr.mxu0 0.0
  %392 = vmatpush1.msra.mxu0 0.0
  %393 = vmatprep.subr.mxu0 0.0
  %394 = vmatpush1.msra.mxu0 0.0
  %395 = vmatprep.subr.mxu0 0.0
  %396 = vmatpush1.msra.mxu0 0.0
  %397 = vmatprep.subr.mxu0 0.0
  %398 = vmatpush1.msra.mxu0 0.0
  %399 = vmatprep.subr.mxu0 0.0
  %400 = vmatpush1.msra.mxu0 0.0
  %401 = vmatprep.subr.mxu0 0.0
  %402 = vmatpush1.msra.mxu0 0.0
  %403 = vmatprep.subr.mxu0 0.0
  %404 = vmatpush1.msra.mxu0 0.0
  %405 = vmatprep.subr.mxu0 0.0
  %406 = vmatpush1.msra.mxu0 0.0
  %407 = vmatprep.subr.mxu0 0.0
  %408 = vmatpush1.msra.mxu0 0.0
  %409 = vmatprep.subr.mxu0 0.0
  %410 = vmatpush1.msra.mxu0 0.0
  %411 = vmatprep.subr.mxu0 0.0
  %412 = vmatpush1.msra.mxu0 0.0
  %413 = vmatprep.subr.mxu0 0.0
  %414 = vmatpush1.msra.mxu0 0.0
  %415 = vmatprep.mubr.f32.mxu0 0.0
  %416 = vmatmul.mubr.f32.gmra.mrb[0].mxu0 %v346
  %v417 = vpop.f32.mrb[0].mxu0
  %v418 = vadd.f32 %v343, %v417
  %v419 = vpop.f32.mrb[0].mxu0
  %420 = vdwg.mxu0
  %s421 = scalar_lea.vmem %s3, 32
  %v422 = vld [vmem:[%s421] sm:$0xff]
  %v423 = vld [vmem:[%s421 + $0x8] sm:$0x3]
  %v424 = vrot.slane %v259, 4
  %v425 = vsel %vm269, %v424, 0
  %v428 = vsel %vm272, %v423, 0
  %430 = vmatprep.subr.mxu0 0.0
  %431 = vmatpush1.msra.mxu0 %v422
  %432 = vmatprep.subr.mxu0 0.0
  %433 = vmatpush1.msra.mxu0 %v428
  %434 = vmatprep.subr.mxu0 0.0
  %435 = vmatpush1.msra.mxu0 0.0
  %436 = vmatprep.subr.mxu0 0.0
  %437 = vmatpush1.msra.mxu0 0.0
  %438 = vmatprep.subr.mxu0 0.0
  %439 = vmatpush1.msra.mxu0 0.0
  %440 = vmatprep.subr.mxu0 0.0
  %441 = vmatpush1.msra.mxu0 0.0
  %442 = vmatprep.subr.mxu0 0.0
  %443 = vmatpush1.msra.mxu0 0.0
  %444 = vmatprep.subr.mxu0 0.0
  %445 = vmatpush1.msra.mxu0 0.0
  %446 = vmatprep.subr.mxu0 0.0
  %447 = vmatpush1.msra.mxu0 0.0
  %448 = vmatprep.subr.mxu0 0.0
  %449 = vmatpush1.msra.mxu0 0.0
  %450 = vmatprep.subr.mxu0 0.0
  %451 = vmatpush1.msra.mxu0 0.0
  %452 = vmatprep.subr.mxu0 0.0
  %453 = vmatpush1.msra.mxu0 0.0
  %454 = vmatprep.subr.mxu0 0.0
  %455 = vmatpush1.msra.mxu0 0.0
  %456 = vmatprep.subr.mxu0 0.0
  %457 = vmatpush1.msra.mxu0 0.0
  %458 = vmatprep.subr.mxu0 0.0
  %459 = vmatpush1.msra.mxu0 0.0
  %460 = vmatprep.subr.mxu0 0.0
  %461 = vmatpush1.msra.mxu0 0.0
  %462 = vmatprep.subr.mxu0 0.0
  %463 = vmatpush1.msra.mxu0 0.0
  %464 = vmatprep.subr.mxu0 0.0
  %465 = vmatpush1.msra.mxu0 0.0
  %466 = vmatprep.subr.mxu0 0.0
  %467 = vmatpush1.msra.mxu0 0.0
  %468 = vmatprep.subr.mxu0 0.0
  %469 = vmatpush1.msra.mxu0 0.0
  %470 = vmatprep.subr.mxu0 0.0
  %471 = vmatpush1.msra.mxu0 0.0
  %472 = vmatprep.subr.mxu0 0.0
  %473 = vmatpush1.msra.mxu0 0.0
  %474 = vmatprep.subr.mxu0 0.0
  %475 = vmatpush1.msra.mxu0 0.0
  %476 = vmatprep.subr.mxu0 0.0
  %477 = vmatpush1.msra.mxu0 0.0
  %478 = vmatprep.subr.mxu0 0.0
  %479 = vmatpush1.msra.mxu0 0.0
  %480 = vmatprep.subr.mxu0 0.0
  %481 = vmatpush1.msra.mxu0 0.0
  %482 = vmatprep.subr.mxu0 0.0
  %483 = vmatpush1.msra.mxu0 0.0
  %484 = vmatprep.subr.mxu0 0.0
  %485 = vmatpush1.msra.mxu0 0.0
  %486 = vmatprep.subr.mxu0 0.0
  %487 = vmatpush1.msra.mxu0 0.0
  %488 = vmatprep.subr.mxu0 0.0
  %489 = vmatpush1.msra.mxu0 0.0
  %490 = vmatprep.subr.mxu0 0.0
  %491 = vmatpush1.msra.mxu0 0.0
  %492 = vmatprep.subr.mxu0 0.0
  %493 = vmatpush1.msra.mxu0 0.0
  %494 = vmatprep.mubr.f32.mxu0 0.0
  %495 = vmatmul.mubr.f32.gmra.mrb[0].mxu0 %v425
  %v496 = vpop.f32.mrb[0].mxu0
  %v497 = vadd.f32 0.0, %v496
  %v498 = vpop.f32.mrb[0].mxu0
  %499 = vdwg.mxu0
  %v500 = vadd.f32 %v418, %v497
  %s501 = scalar_lea.vmem %s3, 48
  %v502 = vld [vmem:[%s501] sm:$0xff]
  %v503 = vld [vmem:[%s501 + $0x8] sm:$0x3]
  %v504 = vrot.slane %v259, 6
  %v505 = vsel %vm269, %v504, 0
  %v508 = vsel %vm272, %v503, 0
  %510 = vmatprep.subr.mxu0 0.0
  %511 = vmatpush1.msra.mxu0 %v502
  %512 = vmatprep.subr.mxu0 0.0
  %513 = vmatpush1.msra.mxu0 %v508
  %514 = vmatprep.subr.mxu0 0.0
  %515 = vmatpush1.msra.mxu0 0.0
  %516 = vmatprep.subr.mxu0 0.0
  %517 = vmatpush1.msra.mxu0 0.0
  %518 = vmatprep.subr.mxu0 0.0
  %519 = vmatpush1.msra.mxu0 0.0
  %520 = vmatprep.subr.mxu0 0.0
  %521 = vmatpush1.msra.mxu0 0.0
  %522 = vmatprep.subr.mxu0 0.0
  %523 = vmatpush1.msra.mxu0 0.0
  %524 = vmatprep.subr.mxu0 0.0
  %525 = vmatpush1.msra.mxu0 0.0
  %526 = vmatprep.subr.mxu0 0.0
  %527 = vmatpush1.msra.mxu0 0.0
  %528 = vmatprep.subr.mxu0 0.0
  %529 = vmatpush1.msra.mxu0 0.0
  %530 = vmatprep.subr.mxu0 0.0
  %531 = vmatpush1.msra.mxu0 0.0
  %532 = vmatprep.subr.mxu0 0.0
  %533 = vmatpush1.msra.mxu0 0.0
  %534 = vmatprep.subr.mxu0 0.0
  %535 = vmatpush1.msra.mxu0 0.0
  %536 = vmatprep.subr.mxu0 0.0
  %537 = vmatpush1.msra.mxu0 0.0
  %538 = vmatprep.subr.mxu0 0.0
  %539 = vmatpush1.msra.mxu0 0.0
  %540 = vmatprep.subr.mxu0 0.0
  %541 = vmatpush1.msra.mxu0 0.0
  %542 = vmatprep.subr.mxu0 0.0
  %543 = vmatpush1.msra.mxu0 0.0
  %544 = vmatprep.subr.mxu0 0.0
  %545 = vmatpush1.msra.mxu0 0.0
  %546 = vmatprep.subr.mxu0 0.0
  %547 = vmatpush1.msra.mxu0 0.0
  %548 = vmatprep.subr.mxu0 0.0
  %549 = vmatpush1.msra.mxu0 0.0
  %550 = vmatprep.subr.mxu0 0.0
  %551 = vmatpush1.msra.mxu0 0.0
  %552 = vmatprep.subr.mxu0 0.0
  %553 = vmatpush1.msra.mxu0 0.0
  %554 = vmatprep.subr.mxu0 0.0
  %555 = vmatpush1.msra.mxu0 0.0
  %556 = vmatprep.subr.mxu0 0.0
  %557 = vmatpush1.msra.mxu0 0.0
  %558 = vmatprep.subr.mxu0 0.0
  %559 = vmatpush1.msra.mxu0 0.0
  %560 = vmatprep.subr.mxu0 0.0
  %561 = vmatpush1.msra.mxu0 0.0
  %562 = vmatprep.subr.mxu0 0.0
  %563 = vmatpush1.msra.mxu0 0.0
  %564 = vmatprep.subr.mxu0 0.0
  %565 = vmatpush1.msra.mxu0 0.0
  %566 = vmatprep.subr.mxu0 0.0
  %567 = vmatpush1.msra.mxu0 0.0
  %568 = vmatprep.subr.mxu0 0.0
  %569 = vmatpush1.msra.mxu0 0.0
  %570 = vmatprep.subr.mxu0 0.0
  %571 = vmatpush1.msra.mxu0 0.0
  %572 = vmatprep.subr.mxu0 0.0
  %573 = vmatpush1.msra.mxu0 0.0
  %574 = vmatprep.mubr.f32.mxu0 0.0
  %575 = vmatmul.mubr.f32.gmra.mrb[0].mxu0 %v505
  %v576 = vpop.f32.mrb[0].mxu0
  %v577 = vadd.f32 0.0, %v576
  %v578 = vpop.f32.mrb[0].mxu0
  %579 = vdwg.mxu0
  %v580 = vadd.f32 %v500, %v577
  %s581 = scalar_lea.vmem %s3, 64
  %v582 = vld [vmem:[%s581] sm:$0xff]
  %v583 = vld [vmem:[%s581 + $0x8] sm:$0x3]
  %v585 = vsel %vm269, %v260, 0
  %v588 = vsel %vm272, %v583, 0
  %590 = vmatprep.subr.mxu0 0.0
  %591 = vmatpush1.msra.mxu0 %v582
  %592 = vmatprep.subr.mxu0 0.0
  %593 = vmatpush1.msra.mxu0 %v588
  %594 = vmatprep.subr.mxu0 0.0
  %595 = vmatpush1.msra.mxu0 0.0
  %596 = vmatprep.subr.mxu0 0.0
  %597 = vmatpush1.msra.mxu0 0.0
  %598 = vmatprep.subr.mxu0 0.0
  %599 = vmatpush1.msra.mxu0 0.0
  %600 = vmatprep.subr.mxu0 0.0
  %601 = vmatpush1.msra.mxu0 0.0
  %602 = vmatprep.subr.mxu0 0.0
  %603 = vmatpush1.msra.mxu0 0.0
  %604 = vmatprep.subr.mxu0 0.0
  %605 = vmatpush1.msra.mxu0 0.0
  %606 = vmatprep.subr.mxu0 0.0
  %607 = vmatpush1.msra.mxu0 0.0
  %608 = vmatprep.subr.mxu0 0.0
  %609 = vmatpush1.msra.mxu0 0.0
  %610 = vmatprep.subr.mxu0 0.0
  %611 = vmatpush1.msra.mxu0 0.0
  %612 = vmatprep.subr.mxu0 0.0
  %613 = vmatpush1.msra.mxu0 0.0
  %614 = vmatprep.subr.mxu0 0.0
  %615 = vmatpush1.msra.mxu0 0.0
  %616 = vmatprep.subr.mxu0 0.0
  %617 = vmatpush1.msra.mxu0 0.0
  %618 = vmatprep.subr.mxu0 0.0
  %619 = vmatpush1.msra.mxu0 0.0
  %620 = vmatprep.subr.mxu0 0.0
  %621 = vmatpush1.msra.mxu0 0.0
  %622 = vmatprep.subr.mxu0 0.0
  %623 = vmatpush1.msra.mxu0 0.0
  %624 = vmatprep.subr.mxu0 0.0
  %625 = vmatpush1.msra.mxu0 0.0
  %626 = vmatprep.subr.mxu0 0.0
  %627 = vmatpush1.msra.mxu0 0.0
  %628 = vmatprep.subr.mxu0 0.0
  %629 = vmatpush1.msra.mxu0 0.0
  %630 = vmatprep.subr.mxu0 0.0
  %631 = vmatpush1.msra.mxu0 0.0
  %632 = vmatprep.subr.mxu0 0.0
  %633 = vmatpush1.msra.mxu0 0.0
  %634 = vmatprep.subr.mxu0 0.0
  %635 = vmatpush1.msra.mxu0 0.0
  %636 = vmatprep.subr.mxu0 0.0
  %637 = vmatpush1.msra.mxu0 0.0
  %638 = vmatprep.subr.mxu0 0.0
  %639 = vmatpush1.msra.mxu0 0.0
  %640 = vmatprep.subr.mxu0 0.0
  %641 = vmatpush1.msra.mxu0 0.0
  %642 = vmatprep.subr.mxu0 0.0
  %643 = vmatpush1.msra.mxu0 0.0
  %644 = vmatprep.subr.mxu0 0.0
  %645 = vmatpush1.msra.mxu0 0.0
  %646 = vmatprep.subr.mxu0 0.0
  %647 = vmatpush1.msra.mxu0 0.0
  %648 = vmatprep.subr.mxu0 0.0
  %649 = vmatpush1.msra.mxu0 0.0
  %650 = vmatprep.subr.mxu0 0.0
  %651 = vmatpush1.msra.mxu0 0.0
  %652 = vmatprep.subr.mxu0 0.0
  %653 = vmatpush1.msra.mxu0 0.0
  %654 = vmatprep.mubr.f32.mxu0 0.0
  %655 = vmatmul.mubr.f32.gmra.mrb[0].mxu0 %v585
  %v656 = vpop.f32.mrb[0].mxu0
  %v657 = vadd.f32 0.0, %v656
  %v658 = vpop.f32.mrb[0].mxu0
  %659 = vdwg.mxu0
  %v660 = vadd.f32 %v580, %v657
  %s661 = scalar_lea.vmem %s3, 80
  %v662 = vld [vmem:[%s661] sm:$0xff]
  %v663 = vld [vmem:[%s661 + $0x8] sm:$0x3]
  %v664 = vrot.slane %v260, 2
  %v665 = vsel %vm269, %v664, 0
  %v668 = vsel %vm272, %v663, 0
  %670 = vmatprep.subr.mxu0 0.0
  %671 = vmatpush1.msra.mxu0 %v662
  %672 = vmatprep.subr.mxu0 0.0
  %673 = vmatpush1.msra.mxu0 %v668
  %674 = vmatprep.subr.mxu0 0.0
  %675 = vmatpush1.msra.mxu0 0.0
  %676 = vmatprep.subr.mxu0 0.0
  %677 = vmatpush1.msra.mxu0 0.0
  %678 = vmatprep.subr.mxu0 0.0
  %679 = vmatpush1.msra.mxu0 0.0
  %680 = vmatprep.subr.mxu0 0.0
  %681 = vmatpush1.msra.mxu0 0.0
  %682 = vmatprep.subr.mxu0 0.0
  %683 = vmatpush1.msra.mxu0 0.0
  %684 = vmatprep.subr.mxu0 0.0
  %685 = vmatpush1.msra.mxu0 0.0
  %686 = vmatprep.subr.mxu0 0.0
  %687 = vmatpush1.msra.mxu0 0.0
  %688 = vmatprep.subr.mxu0 0.0
  %689 = vmatpush1.msra.mxu0 0.0
  %690 = vmatprep.subr.mxu0 0.0
  %691 = vmatpush1.msra.mxu0 0.0
  %692 = vmatprep.subr.mxu0 0.0
  %693 = vmatpush1.msra.mxu0 0.0
  %694 = vmatprep.subr.mxu0 0.0
  %695 = vmatpush1.msra.mxu0 0.0
  %696 = vmatprep.subr.mxu0 0.0
  %697 = vmatpush1.msra.mxu0 0.0
  %698 = vmatprep.subr.mxu0 0.0
  %699 = vmatpush1.msra.mxu0 0.0
  %700 = vmatprep.subr.mxu0 0.0
  %701 = vmatpush1.msra.mxu0 0.0
  %702 = vmatprep.subr.mxu0 0.0
  %703 = vmatpush1.msra.mxu0 0.0
  %704 = vmatprep.subr.mxu0 0.0
  %705 = vmatpush1.msra.mxu0 0.0
  %706 = vmatprep.subr.mxu0 0.0
  %707 = vmatpush1.msra.mxu0 0.0
  %708 = vmatprep.subr.mxu0 0.0
  %709 = vmatpush1.msra.mxu0 0.0
  %710 = vmatprep.subr.mxu0 0.0
  %711 = vmatpush1.msra.mxu0 0.0
  %712 = vmatprep.subr.mxu0 0.0
  %713 = vmatpush1.msra.mxu0 0.0
  %714 = vmatprep.subr.mxu0 0.0
  %715 = vmatpush1.msra.mxu0 0.0
  %716 = vmatprep.subr.mxu0 0.0
  %717 = vmatpush1.msra.mxu0 0.0
  %718 = vmatprep.subr.mxu0 0.0
  %719 = vmatpush1.msra.mxu0 0.0
  %720 = vmatprep.subr.mxu0 0.0
  %721 = vmatpush1.msra.mxu0 0.0
  %722 = vmatprep.subr.mxu0 0.0
  %723 = vmatpush1.msra.mxu0 0.0
  %724 = vmatprep.subr.mxu0 0.0
  %725 = vmatpush1.msra.mxu0 0.0
  %726 = vmatprep.subr.mxu0 0.0
  %727 = vmatpush1.msra.mxu0 0.0
  %728 = vmatprep.subr.mxu0 0.0
  %729 = vmatpush1.msra.mxu0 0.0
  %730 = vmatprep.subr.mxu0 0.0
  %731 = vmatpush1.msra.mxu0 0.0
  %732 = vmatprep.subr.mxu0 0.0
  %733 = vmatpush1.msra.mxu0 0.0
  %734 = vmatprep.mubr.f32.mxu0 0.0
  %735 = vmatmul.mubr.f32.gmra.mrb[0].mxu0 %v665
  %v736 = vpop.f32.mrb[0].mxu0
  %v737 = vadd.f32 0.0, %v736
  %v738 = vpop.f32.mrb[0].mxu0
  %739 = vdwg.mxu0
  %v740 = vadd.f32 %v660, %v737
  %s741 = scalar_lea.vmem %s3, 96
  %v742 = vld [vmem:[%s741] sm:$0xff]
  %v743 = vld [vmem:[%s741 + $0x8] sm:$0x3]
  %v744 = vrot.slane %v260, 4
  %v745 = vsel %vm269, %v744, 0
  %v748 = vsel %vm272, %v743, 0
  %750 = vmatprep.subr.mxu0 0.0
  %751 = vmatpush1.msra.mxu0 %v742
  %752 = vmatprep.subr.mxu0 0.0
  %753 = vmatpush1.msra.mxu0 %v748
  %754 = vmatprep.subr.mxu0 0.0
  %755 = vmatpush1.msra.mxu0 0.0
  %756 = vmatprep.subr.mxu0 0.0
  %757 = vmatpush1.msra.mxu0 0.0
  %758 = vmatprep.subr.mxu0 0.0
  %759 = vmatpush1.msra.mxu0 0.0
  %760 = vmatprep.subr.mxu0 0.0
  %761 = vmatpush1.msra.mxu0 0.0
  %762 = vmatprep.subr.mxu0 0.0
  %763 = vmatpush1.msra.mxu0 0.0
  %764 = vmatprep.subr.mxu0 0.0
  %765 = vmatpush1.msra.mxu0 0.0
  %766 = vmatprep.subr.mxu0 0.0
  %767 = vmatpush1.msra.mxu0 0.0
  %768 = vmatprep.subr.mxu0 0.0
  %769 = vmatpush1.msra.mxu0 0.0
  %770 = vmatprep.subr.mxu0 0.0
  %771 = vmatpush1.msra.mxu0 0.0
  %772 = vmatprep.subr.mxu0 0.0
  %773 = vmatpush1.msra.mxu0 0.0
  %774 = vmatprep.subr.mxu0 0.0
  %775 = vmatpush1.msra.mxu0 0.0
  %776 = vmatprep.subr.mxu0 0.0
  %777 = vmatpush1.msra.mxu0 0.0
  %778 = vmatprep.subr.mxu0 0.0
  %779 = vmatpush1.msra.mxu0 0.0
  %780 = vmatprep.subr.mxu0 0.0
  %781 = vmatpush1.msra.mxu0 0.0
  %782 = vmatprep.subr.mxu0 0.0
  %783 = vmatpush1.msra.mxu0 0.0
  %784 = vmatprep.subr.mxu0 0.0
  %785 = vmatpush1.msra.mxu0 0.0
  %786 = vmatprep.subr.mxu0 0.0
  %787 = vmatpush1.msra.mxu0 0.0
  %788 = vmatprep.subr.mxu0 0.0
  %789 = vmatpush1.msra.mxu0 0.0
  %790 = vmatprep.subr.mxu0 0.0
  %791 = vmatpush1.msra.mxu0 0.0
  %792 = vmatprep.subr.mxu0 0.0
  %793 = vmatpush1.msra.mxu0 0.0
  %794 = vmatprep.subr.mxu0 0.0
  %795 = vmatpush1.msra.mxu0 0.0
  %796 = vmatprep.subr.mxu0 0.0
  %797 = vmatpush1.msra.mxu0 0.0
  %798 = vmatprep.subr.mxu0 0.0
  %799 = vmatpush1.msra.mxu0 0.0
  %800 = vmatprep.subr.mxu0 0.0
  %801 = vmatpush1.msra.mxu0 0.0
  %802 = vmatprep.subr.mxu0 0.0
  %803 = vmatpush1.msra.mxu0 0.0
  %804 = vmatprep.subr.mxu0 0.0
  %805 = vmatpush1.msra.mxu0 0.0
  %806 = vmatprep.subr.mxu0 0.0
  %807 = vmatpush1.msra.mxu0 0.0
  %808 = vmatprep.subr.mxu0 0.0
  %809 = vmatpush1.msra.mxu0 0.0
  %810 = vmatprep.subr.mxu0 0.0
  %811 = vmatpush1.msra.mxu0 0.0
  %812 = vmatprep.subr.mxu0 0.0
  %813 = vmatpush1.msra.mxu0 0.0
  %814 = vmatprep.mubr.f32.mxu0 0.0
  %815 = vmatmul.mubr.f32.gmra.mrb[0].mxu0 %v745
  %v816 = vpop.f32.mrb[0].mxu0
  %v817 = vadd.f32 0.0, %v816
  %v818 = vpop.f32.mrb[0].mxu0
  %819 = vdwg.mxu0
  %v820 = vadd.f32 %v740, %v817
  %s821 = scalar_lea.vmem %s3, 112
  %v822 = vld [vmem:[%s821] sm:$0xff]
  %v823 = vld [vmem:[%s821 + $0x8] sm:$0x3]
  %v824 = vrot.slane %v260, 6
  %v825 = vsel %vm269, %v824, 0
  %v828 = vsel %vm272, %v823, 0
  %830 = vmatprep.subr.mxu0 0.0
  %831 = vmatpush1.msra.mxu0 %v822
  %832 = vmatprep.subr.mxu0 0.0
  %833 = vmatpush1.msra.mxu0 %v828
  %834 = vmatprep.subr.mxu0 0.0
  %835 = vmatpush1.msra.mxu0 0.0
  %836 = vmatprep.subr.mxu0 0.0
  %837 = vmatpush1.msra.mxu0 0.0
  %838 = vmatprep.subr.mxu0 0.0
  %839 = vmatpush1.msra.mxu0 0.0
  %840 = vmatprep.subr.mxu0 0.0
  %841 = vmatpush1.msra.mxu0 0.0
  %842 = vmatprep.subr.mxu0 0.0
  %843 = vmatpush1.msra.mxu0 0.0
  %844 = vmatprep.subr.mxu0 0.0
  %845 = vmatpush1.msra.mxu0 0.0
  %846 = vmatprep.subr.mxu0 0.0
  %847 = vmatpush1.msra.mxu0 0.0
  %848 = vmatprep.subr.mxu0 0.0
  %849 = vmatpush1.msra.mxu0 0.0
  %850 = vmatprep.subr.mxu0 0.0
  %851 = vmatpush1.msra.mxu0 0.0
  %852 = vmatprep.subr.mxu0 0.0
  %853 = vmatpush1.msra.mxu0 0.0
  %854 = vmatprep.subr.mxu0 0.0
  %855 = vmatpush1.msra.mxu0 0.0
  %856 = vmatprep.subr.mxu0 0.0
  %857 = vmatpush1.msra.mxu0 0.0
  %858 = vmatprep.subr.mxu0 0.0
  %859 = vmatpush1.msra.mxu0 0.0
  %860 = vmatprep.subr.mxu0 0.0
  %861 = vmatpush1.msra.mxu0 0.0
  %862 = vmatprep.subr.mxu0 0.0
  %863 = vmatpush1.msra.mxu0 0.0
  %864 = vmatprep.subr.mxu0 0.0
  %865 = vmatpush1.msra.mxu0 0.0
  %866 = vmatprep.subr.mxu0 0.0
  %867 = vmatpush1.msra.mxu0 0.0
  %868 = vmatprep.subr.mxu0 0.0
  %869 = vmatpush1.msra.mxu0 0.0
  %870 = vmatprep.subr.mxu0 0.0
  %871 = vmatpush1.msra.mxu0 0.0
  %872 = vmatprep.subr.mxu0 0.0
  %873 = vmatpush1.msra.mxu0 0.0
  %874 = vmatprep.subr.mxu0 0.0
  %875 = vmatpush1.msra.mxu0 0.0
  %876 = vmatprep.subr.mxu0 0.0
  %877 = vmatpush1.msra.mxu0 0.0
  %878 = vmatprep.subr.mxu0 0.0
  %879 = vmatpush1.msra.mxu0 0.0
  %880 = vmatprep.subr.mxu0 0.0
  %881 = vmatpush1.msra.mxu0 0.0
  %882 = vmatprep.subr.mxu0 0.0
  %883 = vmatpush1.msra.mxu0 0.0
  %884 = vmatprep.subr.mxu0 0.0
  %885 = vmatpush1.msra.mxu0 0.0
  %886 = vmatprep.subr.mxu0 0.0
  %887 = vmatpush1.msra.mxu0 0.0
  %888 = vmatprep.subr.mxu0 0.0
  %889 = vmatpush1.msra.mxu0 0.0
  %890 = vmatprep.subr.mxu0 0.0
  %891 = vmatpush1.msra.mxu0 0.0
  %892 = vmatprep.subr.mxu0 0.0
  %893 = vmatpush1.msra.mxu0 0.0
  %894 = vmatprep.mubr.f32.mxu0 0.0
  %895 = vmatmul.mubr.f32.gmra.mrb[0].mxu0 %v825
  %v896 = vpop.f32.mrb[0].mxu0
  %v897 = vadd.f32 0.0, %v896
  %v898 = vpop.f32.mrb[0].mxu0
  %899 = vdwg.mxu0
  %v900 = vadd.f32 %v820, %v897
  %s901 = scalar_lea.vmem %s3, 128
  %v902 = vld [vmem:[%s901] sm:$0xff]
  %v903 = vld [vmem:[%s901 + $0x8] sm:$0x3]
  %v905 = vsel %vm269, %v261, 0
  %v908 = vsel %vm272, %v903, 0
  %910 = vmatprep.subr.mxu0 0.0
  %911 = vmatpush1.msra.mxu0 %v902
  %912 = vmatprep.subr.mxu0 0.0
  %913 = vmatpush1.msra.mxu0 %v908
  %914 = vmatprep.subr.mxu0 0.0
  %915 = vmatpush1.msra.mxu0 0.0
  %916 = vmatprep.subr.mxu0 0.0
  %917 = vmatpush1.msra.mxu0 0.0
  %918 = vmatprep.subr.mxu0 0.0
  %919 = vmatpush1.msra.mxu0 0.0
  %920 = vmatprep.subr.mxu0 0.0
  %921 = vmatpush1.msra.mxu0 0.0
  %922 = vmatprep.subr.mxu0 0.0
  %923 = vmatpush1.msra.mxu0 0.0
  %924 = vmatprep.subr.mxu0 0.0
  %925 = vmatpush1.msra.mxu0 0.0
  %926 = vmatprep.subr.mxu0 0.0
  %927 = vmatpush1.msra.mxu0 0.0
  %928 = vmatprep.subr.mxu0 0.0
  %929 = vmatpush1.msra.mxu0 0.0
  %930 = vmatprep.subr.mxu0 0.0
  %931 = vmatpush1.msra.mxu0 0.0
  %932 = vmatprep.subr.mxu0 0.0
  %933 = vmatpush1.msra.mxu0 0.0
  %934 = vmatprep.subr.mxu0 0.0
  %935 = vmatpush1.msra.mxu0 0.0
  %936 = vmatprep.subr.mxu0 0.0
  %937 = vmatpush1.msra.mxu0 0.0
  %938 = vmatprep.subr.mxu0 0.0
  %939 = vmatpush1.msra.mxu0 0.0
  %940 = vmatprep.subr.mxu0 0.0
  %941 = vmatpush1.msra.mxu0 0.0
  %942 = vmatprep.subr.mxu0 0.0
  %943 = vmatpush1.msra.mxu0 0.0
  %944 = vmatprep.subr.mxu0 0.0
  %945 = vmatpush1.msra.mxu0 0.0
  %946 = vmatprep.subr.mxu0 0.0
  %947 = vmatpush1.msra.mxu0 0.0
  %948 = vmatprep.subr.mxu0 0.0
  %949 = vmatpush1.msra.mxu0 0.0
  %950 = vmatprep.subr.mxu0 0.0
  %951 = vmatpush1.msra.mxu0 0.0
  %952 = vmatprep.subr.mxu0 0.0
  %953 = vmatpush1.msra.mxu0 0.0
  %954 = vmatprep.subr.mxu0 0.0
  %955 = vmatpush1.msra.mxu0 0.0
  %956 = vmatprep.subr.mxu0 0.0
  %957 = vmatpush1.msra.mxu0 0.0
  %958 = vmatprep.subr.mxu0 0.0
  %959 = vmatpush1.msra.mxu0 0.0
  %960 = vmatprep.subr.mxu0 0.0
  %961 = vmatpush1.msra.mxu0 0.0
  %962 = vmatprep.subr.mxu0 0.0
  %963 = vmatpush1.msra.mxu0 0.0
  %964 = vmatprep.subr.mxu0 0.0
  %965 = vmatpush1.msra.mxu0 0.0
  %966 = vmatprep.subr.mxu0 0.0
  %967 = vmatpush1.msra.mxu0 0.0
  %968 = vmatprep.subr.mxu0 0.0
  %969 = vmatpush1.msra.mxu0 0.0
  %970 = vmatprep.subr.mxu0 0.0
  %971 = vmatpush1.msra.mxu0 0.0
  %972 = vmatprep.subr.mxu0 0.0
  %973 = vmatpush1.msra.mxu0 0.0
  %974 = vmatprep.mubr.f32.mxu0 0.0
  %975 = vmatmul.mubr.f32.gmra.mrb[0].mxu0 %v905
  %v976 = vpop.f32.mrb[0].mxu0
  %v977 = vadd.f32 0.0, %v976
  %v978 = vpop.f32.mrb[0].mxu0
  %979 = vdwg.mxu0
  %v980 = vadd.f32 %v900, %v977
  %v981 = vld [vmem:[%s4] sm:$0x1]
  %v983 = vlaneseq
  %v984 = vshrl.u32 %v983, 7
  %v985 = vsub.s32 0, %v984
  %v986 = vrot.slane %v981, %v985
  %v988 = vadd.f32 %v980, %v986
  %v989 = vmax.f32 %v988, 0.0
  %v990 = vld [vmem:[%s5] sm:$0xff]
  %v991 = vld [vmem:[%s5 + $0x8] sm:$0xff]
  %v992 = vld [vmem:[%s5 + $0x10] sm:$0xff]
  %v993 = vld [vmem:[%s5 + $0x18] sm:$0xff]
  %v994 = vld [vmem:[%s6] sm:$0x1]
  %v996 = vlaneseq
  %v997 = vshrl.u32 %v996, 7
  %v998 = vsub.s32 0, %v997
  %v999 = vrot.slane %v994, %v998
  %vm1001 = vcmask 261120
  %v1003 = vsel %vm1001, %v989, 0
  %1005 = vmatprep.subr.mxu0 0.0
  %1006 = vmatpush1.msra.mxu0 %v990
  %1007 = vmatprep.subr.mxu0 0.0
  %1008 = vmatpush1.msra.mxu0 %v991
  %1009 = vmatprep.subr.mxu0 0.0
  %1010 = vmatpush1.msra.mxu0 %v992
  %1011 = vmatprep.subr.mxu0 0.0
  %1012 = vmatpush1.msra.mxu0 %v993
  %1013 = vmatprep.subr.mxu0 0.0
  %1014 = vmatpush1.msra.mxu0 0.0
  %1015 = vmatprep.subr.mxu0 0.0
  %1016 = vmatpush1.msra.mxu0 0.0
  %1017 = vmatprep.subr.mxu0 0.0
  %1018 = vmatpush1.msra.mxu0 0.0
  %1019 = vmatprep.subr.mxu0 0.0
  %1020 = vmatpush1.msra.mxu0 0.0
  %1021 = vmatprep.subr.mxu0 0.0
  %1022 = vmatpush1.msra.mxu0 0.0
  %1023 = vmatprep.subr.mxu0 0.0
  %1024 = vmatpush1.msra.mxu0 0.0
  %1025 = vmatprep.subr.mxu0 0.0
  %1026 = vmatpush1.msra.mxu0 0.0
  %1027 = vmatprep.subr.mxu0 0.0
  %1028 = vmatpush1.msra.mxu0 0.0
  %1029 = vmatprep.subr.mxu0 0.0
  %1030 = vmatpush1.msra.mxu0 0.0
  %1031 = vmatprep.subr.mxu0 0.0
  %1032 = vmatpush1.msra.mxu0 0.0
  %1033 = vmatprep.subr.mxu0 0.0
  %1034 = vmatpush1.msra.mxu0 0.0
  %1035 = vmatprep.subr.mxu0 0.0
  %1036 = vmatpush1.msra.mxu0 0.0
  %1037 = vmatprep.subr.mxu0 0.0
  %1038 = vmatpush1.msra.mxu0 0.0
  %1039 = vmatprep.subr.mxu0 0.0
  %1040 = vmatpush1.msra.mxu0 0.0
  %1041 = vmatprep.subr.mxu0 0.0
  %1042 = vmatpush1.msra.mxu0 0.0
  %1043 = vmatprep.subr.mxu0 0.0
  %1044 = vmatpush1.msra.mxu0 0.0
  %1045 = vmatprep.subr.mxu0 0.0
  %1046 = vmatpush1.msra.mxu0 0.0
  %1047 = vmatprep.subr.mxu0 0.0
  %1048 = vmatpush1.msra.mxu0 0.0
  %1049 = vmatprep.subr.mxu0 0.0
  %1050 = vmatpush1.msra.mxu0 0.0
  %1051 = vmatprep.subr.mxu0 0.0
  %1052 = vmatpush1.msra.mxu0 0.0
  %1053 = vmatprep.subr.mxu0 0.0
  %1054 = vmatpush1.msra.mxu0 0.0
  %1055 = vmatprep.subr.mxu0 0.0
  %1056 = vmatpush1.msra.mxu0 0.0
  %1057 = vmatprep.subr.mxu0 0.0
  %1058 = vmatpush1.msra.mxu0 0.0
  %1059 = vmatprep.subr.mxu0 0.0
  %1060 = vmatpush1.msra.mxu0 0.0
  %1061 = vmatprep.subr.mxu0 0.0
  %1062 = vmatpush1.msra.mxu0 0.0
  %1063 = vmatprep.subr.mxu0 0.0
  %1064 = vmatpush1.msra.mxu0 0.0
  %1065 = vmatprep.subr.mxu0 0.0
  %1066 = vmatpush1.msra.mxu0 0.0
  %1067 = vmatprep.subr.mxu0 0.0
  %1068 = vmatpush1.msra.mxu0 0.0
  %1069 = vmatprep.mubr.f32.mxu0 0.0
  %1070 = vmatmul.mubr.f32.gmra.mrb[0].mxu0 %v1003
  %v1071 = vpop.f32.mrb[0].mxu0
  %v1072 = vadd.f32 %v999, %v1071
  %v1073 = vpop.f32.mrb[0].mxu0
  %1074 = vdwg.mxu0
  %v1075 = vlaneseq
  %v1076 = vand.u32 %v1075, 127
  %v1077 = vadd.s32 %v1076, 128
  %v1078 = vadd.s32 %v1076, 256
  %v1079 = vadd.s32 %v1076, 384
  %v1080 = vadd.s32 %v1076, 512
  %v1081 = vadd.s32 %v1076, 640
  %v1082 = vadd.s32 %v1076, 768
  %v1083 = vcvt.s32.f32 %v1076
  %v1084 = vcvt.s32.f32 %v1077
  %v1085 = vcvt.s32.f32 %v1078
  %v1086 = vcvt.s32.f32 %v1079
  %v1087 = vcvt.s32.f32 %v1080
  %v1088 = vcvt.s32.f32 %v1081
  %v1089 = vcvt.s32.f32 %v1082
  %v1090 = vrcp.pop 28.0
  %v1091 = vmul.f32 %v1083, %v1090
  %v1092 = vmul.f32 %v1084, %v1090
  %v1093 = vmul.f32 %v1085, %v1090
  %v1094 = vmul.f32 %v1086, %v1090
  %v1095 = vmul.f32 %v1087, %v1090
  %v1096 = vmul.f32 %v1088, %v1090
  %v1097 = vmul.f32 %v1089, %v1090
  %v1098 = vfloor.f32 %v1091
  %v1099 = vfloor.f32 %v1092
  %v1100 = vfloor.f32 %v1093
  %v1101 = vfloor.f32 %v1094
  %v1102 = vfloor.f32 %v1095
  %v1103 = vfloor.f32 %v1096
  %v1104 = vfloor.f32 %v1097
  %v1105 = vmul.f32 %v1098, 28.0
  %v1106 = vmul.f32 %v1099, 28.0
  %v1107 = vmul.f32 %v1100, 28.0
  %v1108 = vmul.f32 %v1101, 28.0
  %v1109 = vmul.f32 %v1102, 28.0
  %v1110 = vmul.f32 %v1103, 28.0
  %v1111 = vmul.f32 %v1104, 28.0
  %v1112 = vsub.f32 %v1083, %v1105
  %v1113 = vsub.f32 %v1084, %v1106
  %v1114 = vsub.f32 %v1085, %v1107
  %v1115 = vsub.f32 %v1086, %v1108
  %v1116 = vsub.f32 %v1087, %v1109
  %v1117 = vsub.f32 %v1088, %v1110
  %v1118 = vsub.f32 %v1089, %v1111
  %v1119 = vmul.f32 %v1112, 2.0
  %v1120 = vmul.f32 %v1113, 2.0
  %v1121 = vmul.f32 %v1114, 2.0
  %v1122 = vmul.f32 %v1115, 2.0
  %v1123 = vmul.f32 %v1116, 2.0
  %v1124 = vmul.f32 %v1117, 2.0
  %v1125 = vmul.f32 %v1118, 2.0
  %v1126 = vadd.f32 %v1119, 1.0
  %v1127 = vadd.f32 %v1120, 1.0
  %v1128 = vadd.f32 %v1121, 1.0
  %v1129 = vadd.f32 %v1122, 1.0
  %v1130 = vadd.f32 %v1123, 1.0
  %v1131 = vadd.f32 %v1124, 1.0
  %v1132 = vadd.f32 %v1125, 1.0
  %v1133 = vsub.f32 %v1126, 28.0
  %v1134 = vsub.f32 %v1127, 28.0
  %v1135 = vsub.f32 %v1128, 28.0
  %v1136 = vsub.f32 %v1129, 28.0
  %v1137 = vsub.f32 %v1130, 28.0
  %v1138 = vsub.f32 %v1131, 28.0
  %v1139 = vsub.f32 %v1132, 28.0
  %v1140 = vmul.f32 %v1133, %v1090
  %v1141 = vmul.f32 %v1134, %v1090
  %v1142 = vmul.f32 %v1135, %v1090
  %v1143 = vmul.f32 %v1136, %v1090
  %v1144 = vmul.f32 %v1137, %v1090
  %v1145 = vmul.f32 %v1138, %v1090
  %v1146 = vmul.f32 %v1139, %v1090
  %v1147 = vmul.f32 %v1098, 2.0
  %v1148 = vmul.f32 %v1099, 2.0
  %v1149 = vmul.f32 %v1100, 2.0
  %v1150 = vmul.f32 %v1101, 2.0
  %v1151 = vmul.f32 %v1102, 2.0
  %v1152 = vmul.f32 %v1103, 2.0
  %v1153 = vmul.f32 %v1104, 2.0
  %v1154 = vadd.f32 %v1147, 1.0
  %v1155 = vadd.f32 %v1148, 1.0
  %v1156 = vadd.f32 %v1149, 1.0
  %v1157 = vadd.f32 %v1150, 1.0
  %v1158 = vadd.f32 %v1151, 1.0
  %v1159 = vadd.f32 %v1152, 1.0
  %v1160 = vadd.f32 %v1153, 1.0
  %v1161 = vsub.f32 %v1154, 28.0
  %v1162 = vsub.f32 %v1155, 28.0
  %v1163 = vsub.f32 %v1156, 28.0
  %v1164 = vsub.f32 %v1157, 28.0
  %v1165 = vsub.f32 %v1158, 28.0
  %v1166 = vsub.f32 %v1159, 28.0
  %v1167 = vsub.f32 %v1160, 28.0
  %v1168 = vmul.f32 %v1161, %v1090
  %v1169 = vmul.f32 %v1162, %v1090
  %v1170 = vmul.f32 %v1163, %v1090
  %v1171 = vmul.f32 %v1164, %v1090
  %v1172 = vmul.f32 %v1165, %v1090
  %v1173 = vmul.f32 %v1166, %v1090
  %v1174 = vmul.f32 %v1167, %v1090
  %1176 = vset.pattern.permute.xlu0 0
  %1177 = vperm.xlu0 %1176, %v1072
  %v1178 = vpop.permute.xlu0 %1177
  %v1180 = vmul.f32 %v1178, %v1140
  %v1181 = vmul.f32 %v1178, %v1141
  %v1182 = vmul.f32 %v1178, %v1142
  %v1183 = vmul.f32 %v1178, %v1143
  %v1184 = vmul.f32 %v1178, %v1144
  %v1185 = vmul.f32 %v1178, %v1145
  %v1186 = vmul.f32 %v1178, %v1146
  %1187 = vset.pattern.permute.xlu0 1
  %1188 = vperm.xlu0 %1187, %v1072
  %v1189 = vpop.permute.xlu0 %1188
  %v1191 = vmul.f32 %v1189, %v1168
  %v1192 = vmul.f32 %v1189, %v1169
  %v1193 = vmul.f32 %v1189, %v1170
  %v1194 = vmul.f32 %v1189, %v1171
  %v1195 = vmul.f32 %v1189, %v1172
  %v1196 = vmul.f32 %v1189, %v1173
  %v1197 = vmul.f32 %v1189, %v1174
  %v1198 = vadd.f32 %v1180, %v1191
  %v1199 = vadd.f32 %v1181, %v1192
  %v1200 = vadd.f32 %v1182, %v1193
  %v1201 = vadd.f32 %v1183, %v1194
  %v1202 = vadd.f32 %v1184, %v1195
  %v1203 = vadd.f32 %v1185, %v1196
  %v1204 = vadd.f32 %v1186, %v1197
  %1205 = vset.pattern.permute.xlu0 2
  %1206 = vperm.xlu0 %1205, %v1072
  %v1207 = vpop.permute.xlu0 %1206
  %v1209 = vadd.f32 %v1198, %v1207
  %v1210 = vadd.f32 %v1199, %v1207
  %v1211 = vadd.f32 %v1200, %v1207
  %v1212 = vadd.f32 %v1201, %v1207
  %v1213 = vadd.f32 %v1202, %v1207
  %v1214 = vadd.f32 %v1203, %v1207
  %v1215 = vadd.f32 %v1204, %v1207
  %1216 = vset.pattern.permute.xlu0 3
  %1217 = vperm.xlu0 %1216, %v1072
  %v1218 = vpop.permute.xlu0 %1217
  %v1220 = vmul.f32 %v1218, %v1140
  %v1221 = vmul.f32 %v1218, %v1141
  %v1222 = vmul.f32 %v1218, %v1142
  %v1223 = vmul.f32 %v1218, %v1143
  %v1224 = vmul.f32 %v1218, %v1144
  %v1225 = vmul.f32 %v1218, %v1145
  %v1226 = vmul.f32 %v1218, %v1146
  %1227 = vset.pattern.permute.xlu0 4
  %1228 = vperm.xlu0 %1227, %v1072
  %v1229 = vpop.permute.xlu0 %1228
  %v1231 = vmul.f32 %v1229, %v1168
  %v1232 = vmul.f32 %v1229, %v1169
  %v1233 = vmul.f32 %v1229, %v1170
  %v1234 = vmul.f32 %v1229, %v1171
  %v1235 = vmul.f32 %v1229, %v1172
  %v1236 = vmul.f32 %v1229, %v1173
  %v1237 = vmul.f32 %v1229, %v1174
  %v1238 = vadd.f32 %v1220, %v1231
  %v1239 = vadd.f32 %v1221, %v1232
  %v1240 = vadd.f32 %v1222, %v1233
  %v1241 = vadd.f32 %v1223, %v1234
  %v1242 = vadd.f32 %v1224, %v1235
  %v1243 = vadd.f32 %v1225, %v1236
  %v1244 = vadd.f32 %v1226, %v1237
  %1245 = vset.pattern.permute.xlu0 5
  %1246 = vperm.xlu0 %1245, %v1072
  %v1247 = vpop.permute.xlu0 %1246
  %v1249 = vadd.f32 %v1238, %v1247
  %v1250 = vadd.f32 %v1239, %v1247
  %v1251 = vadd.f32 %v1240, %v1247
  %v1252 = vadd.f32 %v1241, %v1247
  %v1253 = vadd.f32 %v1242, %v1247
  %v1254 = vadd.f32 %v1243, %v1247
  %v1255 = vadd.f32 %v1244, %v1247
  %v1256 = vadd.f32 %v1209, 1.0
  %v1257 = vadd.f32 %v1210, 1.0
  %v1258 = vadd.f32 %v1211, 1.0
  %v1259 = vadd.f32 %v1212, 1.0
  %v1260 = vadd.f32 %v1213, 1.0
  %v1261 = vadd.f32 %v1214, 1.0
  %v1262 = vadd.f32 %v1215, 1.0
  %v1263 = vmul.f32 %v1256, 28.0
  %v1264 = vmul.f32 %v1257, 28.0
  %v1265 = vmul.f32 %v1258, 28.0
  %v1266 = vmul.f32 %v1259, 28.0
  %v1267 = vmul.f32 %v1260, 28.0
  %v1268 = vmul.f32 %v1261, 28.0
  %v1269 = vmul.f32 %v1262, 28.0
  %v1270 = vsub.f32 %v1263, 1.0
  %v1271 = vsub.f32 %v1264, 1.0
  %v1272 = vsub.f32 %v1265, 1.0
  %v1273 = vsub.f32 %v1266, 1.0
  %v1274 = vsub.f32 %v1267, 1.0
  %v1275 = vsub.f32 %v1268, 1.0
  %v1276 = vsub.f32 %v1269, 1.0
  %v1277 = vmul.f32 %v1270, 0.5
  %v1278 = vmul.f32 %v1271, 0.5
  %v1279 = vmul.f32 %v1272, 0.5
  %v1280 = vmul.f32 %v1273, 0.5
  %v1281 = vmul.f32 %v1274, 0.5
  %v1282 = vmul.f32 %v1275, 0.5
  %v1283 = vmul.f32 %v1276, 0.5
  %v1284 = vadd.f32 %v1249, 1.0
  %v1285 = vadd.f32 %v1250, 1.0
  %v1286 = vadd.f32 %v1251, 1.0
  %v1287 = vadd.f32 %v1252, 1.0
  %v1288 = vadd.f32 %v1253, 1.0
  %v1289 = vadd.f32 %v1254, 1.0
  %v1290 = vadd.f32 %v1255, 1.0
  %v1291 = vmul.f32 %v1284, 28.0
  %v1292 = vmul.f32 %v1285, 28.0
  %v1293 = vmul.f32 %v1286, 28.0
  %v1294 = vmul.f32 %v1287, 28.0
  %v1295 = vmul.f32 %v1288, 28.0
  %v1296 = vmul.f32 %v1289, 28.0
  %v1297 = vmul.f32 %v1290, 28.0
  %v1298 = vsub.f32 %v1291, 1.0
  %v1299 = vsub.f32 %v1292, 1.0
  %v1300 = vsub.f32 %v1293, 1.0
  %v1301 = vsub.f32 %v1294, 1.0
  %v1302 = vsub.f32 %v1295, 1.0
  %v1303 = vsub.f32 %v1296, 1.0
  %v1304 = vsub.f32 %v1297, 1.0
  %v1305 = vmul.f32 %v1298, 0.5
  %v1306 = vmul.f32 %v1299, 0.5
  %v1307 = vmul.f32 %v1300, 0.5
  %v1308 = vmul.f32 %v1301, 0.5
  %v1309 = vmul.f32 %v1302, 0.5
  %v1310 = vmul.f32 %v1303, 0.5
  %v1311 = vmul.f32 %v1304, 0.5
  %v1312 = vlaneseq
  %v1313 = vshrl.u32 %v1312, 7
  %v1314 = vadd.s32 %v1313, 8
  %v1315 = vadd.s32 %v1313, 16
  %v1316 = vadd.s32 %v1313, 24
  %v1317 = vcvt.s32.f32 %v1313
  %v1318 = vcvt.s32.f32 %v1314
  %v1319 = vcvt.s32.f32 %v1315
  %v1320 = vcvt.s32.f32 %v1316
  %v1321 = vfloor.f32 %v1305
  %v1322 = vfloor.f32 %v1306
  %v1323 = vfloor.f32 %v1307
  %v1324 = vfloor.f32 %v1308
  %v1325 = vfloor.f32 %v1309
  %v1326 = vfloor.f32 %v1310
  %v1327 = vfloor.f32 %v1311
  %v1328 = vsub.f32 %v1305, %v1321
  %v1329 = vsub.f32 %v1306, %v1322
  %v1330 = vsub.f32 %v1307, %v1323
  %v1331 = vsub.f32 %v1308, %v1324
  %v1332 = vsub.f32 %v1309, %v1325
  %v1333 = vsub.f32 %v1310, %v1326
  %v1334 = vsub.f32 %v1311, %v1327
  %v1335 = vfloor.f32 %v1277
  %v1336 = vfloor.f32 %v1278
  %v1337 = vfloor.f32 %v1279
  %v1338 = vfloor.f32 %v1280
  %v1339 = vfloor.f32 %v1281
  %v1340 = vfloor.f32 %v1282
  %v1341 = vfloor.f32 %v1283
  %v1342 = vsub.f32 %v1277, %v1335
  %v1343 = vsub.f32 %v1278, %v1336
  %v1344 = vsub.f32 %v1279, %v1337
  %v1345 = vsub.f32 %v1280, %v1338
  %v1346 = vsub.f32 %v1281, %v1339
  %v1347 = vsub.f32 %v1282, %v1340
  %v1348 = vsub.f32 %v1283, %v1341
  %v1349 = vlaneseq
  %v1350 = vshrl.u32 %v1349, 7
  %v1351 = vsub.s32 0, %v1350
  %v1352 = vrot.slane %v1321, %v1351
  %v1353 = vlaneseq
  %v1354 = vshrl.u32 %v1353, 7
  %v1355 = vsub.s32 0, %v1354
  %v1356 = vrot.slane %v1322, %v1355
  %v1357 = vlaneseq
  %v1358 = vshrl.u32 %v1357, 7
  %v1359 = vsub.s32 0, %v1358
  %v1360 = vrot.slane %v1323, %v1359
  %v1361 = vlaneseq
  %v1362 = vshrl.u32 %v1361, 7
  %v1363 = vsub.s32 0, %v1362
  %v1364 = vrot.slane %v1324, %v1363
  %v1365 = vlaneseq
  %v1366 = vshrl.u32 %v1365, 7
  %v1367 = vsub.s32 0, %v1366
  %v1368 = vrot.slane %v1325, %v1367
  %v1369 = vlaneseq
  %v1370 = vshrl.u32 %v1369, 7
  %v1371 = vsub.s32 0, %v1370
  %v1372 = vrot.slane %v1326, %v1371
  %v1373 = vlaneseq
  %v1374 = vshrl.u32 %v1373, 7
  %v1375 = vsub.s32 0, %v1374
  %v1376 = vrot.slane %v1327, %v1375
  %vm1377 = vcmp.eq.f32.partialorder %v1317, %v1352
  %vm1378 = vcmp.eq.f32.partialorder %v1317, %v1356
  %vm1379 = vcmp.eq.f32.partialorder %v1317, %v1360
  %vm1380 = vcmp.eq.f32.partialorder %v1317, %v1364
  %vm1381 = vcmp.eq.f32.partialorder %v1317, %v1368
  %vm1382 = vcmp.eq.f32.partialorder %v1317, %v1372
  %vm1383 = vcmp.eq.f32.partialorder %v1317, %v1376
  %vm1384 = vcmp.eq.f32.partialorder %v1318, %v1352
  %vm1385 = vcmp.eq.f32.partialorder %v1318, %v1356
  %vm1386 = vcmp.eq.f32.partialorder %v1318, %v1360
  %vm1387 = vcmp.eq.f32.partialorder %v1318, %v1364
  %vm1388 = vcmp.eq.f32.partialorder %v1318, %v1368
  %vm1389 = vcmp.eq.f32.partialorder %v1318, %v1372
  %vm1390 = vcmp.eq.f32.partialorder %v1318, %v1376
  %vm1391 = vcmp.eq.f32.partialorder %v1319, %v1352
  %vm1392 = vcmp.eq.f32.partialorder %v1319, %v1356
  %vm1393 = vcmp.eq.f32.partialorder %v1319, %v1360
  %vm1394 = vcmp.eq.f32.partialorder %v1319, %v1364
  %vm1395 = vcmp.eq.f32.partialorder %v1319, %v1368
  %vm1396 = vcmp.eq.f32.partialorder %v1319, %v1372
  %vm1397 = vcmp.eq.f32.partialorder %v1319, %v1376
  %vm1398 = vcmp.eq.f32.partialorder %v1320, %v1352
  %vm1399 = vcmp.eq.f32.partialorder %v1320, %v1356
  %vm1400 = vcmp.eq.f32.partialorder %v1320, %v1360
  %vm1401 = vcmp.eq.f32.partialorder %v1320, %v1364
  %vm1402 = vcmp.eq.f32.partialorder %v1320, %v1368
  %vm1403 = vcmp.eq.f32.partialorder %v1320, %v1372
  %vm1404 = vcmp.eq.f32.partialorder %v1320, %v1376
  %v1405 = vsub.f32 1.0, %v1328
  %v1406 = vsub.f32 1.0, %v1329
  %v1407 = vsub.f32 1.0, %v1330
  %v1408 = vsub.f32 1.0, %v1331
  %v1409 = vsub.f32 1.0, %v1332
  %v1410 = vsub.f32 1.0, %v1333
  %v1411 = vsub.f32 1.0, %v1334
  %v1412 = vlaneseq
  %v1413 = vshrl.u32 %v1412, 7
  %v1414 = vsub.s32 0, %v1413
  %v1415 = vrot.slane %v1405, %v1414
  %v1416 = vlaneseq
  %v1417 = vshrl.u32 %v1416, 7
  %v1418 = vsub.s32 0, %v1417
  %v1419 = vrot.slane %v1406, %v1418
  %v1420 = vlaneseq
  %v1421 = vshrl.u32 %v1420, 7
  %v1422 = vsub.s32 0, %v1421
  %v1423 = vrot.slane %v1407, %v1422
  %v1424 = vlaneseq
  %v1425 = vshrl.u32 %v1424, 7
  %v1426 = vsub.s32 0, %v1425
  %v1427 = vrot.slane %v1408, %v1426
  %v1428 = vlaneseq
  %v1429 = vshrl.u32 %v1428, 7
  %v1430 = vsub.s32 0, %v1429
  %v1431 = vrot.slane %v1409, %v1430
  %v1432 = vlaneseq
  %v1433 = vshrl.u32 %v1432, 7
  %v1434 = vsub.s32 0, %v1433
  %v1435 = vrot.slane %v1410, %v1434
  %v1436 = vlaneseq
  %v1437 = vshrl.u32 %v1436, 7
  %v1438 = vsub.s32 0, %v1437
  %v1439 = vrot.slane %v1411, %v1438
  %v1440 = vsel %vm1377, %v1415, 0.0
  %v1441 = vsel %vm1378, %v1419, 0.0
  %v1442 = vsel %vm1379, %v1423, 0.0
  %v1443 = vsel %vm1380, %v1427, 0.0
  %v1444 = vsel %vm1381, %v1431, 0.0
  %v1445 = vsel %vm1382, %v1435, 0.0
  %v1446 = vsel %vm1383, %v1439, 0.0
  %v1447 = vsel %vm1384, %v1415, 0.0
  %v1448 = vsel %vm1385, %v1419, 0.0
  %v1449 = vsel %vm1386, %v1423, 0.0
  %v1450 = vsel %vm1387, %v1427, 0.0
  %v1451 = vsel %vm1388, %v1431, 0.0
  %v1452 = vsel %vm1389, %v1435, 0.0
  %v1453 = vsel %vm1390, %v1439, 0.0
  %v1454 = vsel %vm1391, %v1415, 0.0
  %v1455 = vsel %vm1392, %v1419, 0.0
  %v1456 = vsel %vm1393, %v1423, 0.0
  %v1457 = vsel %vm1394, %v1427, 0.0
  %v1458 = vsel %vm1395, %v1431, 0.0
  %v1459 = vsel %vm1396, %v1435, 0.0
  %v1460 = vsel %vm1397, %v1439, 0.0
  %v1461 = vsel %vm1398, %v1415, 0.0
  %v1462 = vsel %vm1399, %v1419, 0.0
  %v1463 = vsel %vm1400, %v1423, 0.0
  %v1464 = vsel %vm1401, %v1427, 0.0
  %v1465 = vsel %vm1402, %v1431, 0.0
  %v1466 = vsel %vm1403, %v1435, 0.0
  %v1467 = vsel %vm1404, %v1439, 0.0
  %v1468 = vadd.f32 %v1321, 1.0
  %v1469 = vadd.f32 %v1322, 1.0
  %v1470 = vadd.f32 %v1323, 1.0
  %v1471 = vadd.f32 %v1324, 1.0
  %v1472 = vadd.f32 %v1325, 1.0
  %v1473 = vadd.f32 %v1326, 1.0
  %v1474 = vadd.f32 %v1327, 1.0
  %v1475 = vlaneseq
  %v1476 = vshrl.u32 %v1475, 7
  %v1477 = vsub.s32 0, %v1476
  %v1478 = vrot.slane %v1468, %v1477
  %v1479 = vlaneseq
  %v1480 = vshrl.u32 %v1479, 7
  %v1481 = vsub.s32 0, %v1480
  %v1482 = vrot.slane %v1469, %v1481
  %v1483 = vlaneseq
  %v1484 = vshrl.u32 %v1483, 7
  %v1485 = vsub.s32 0, %v1484
  %v1486 = vrot.slane %v1470, %v1485
  %v1487 = vlaneseq
  %v1488 = vshrl.u32 %v1487, 7
  %v1489 = vsub.s32 0, %v1488
  %v1490 = vrot.slane %v1471, %v1489
  %v1491 = vlaneseq
  %v1492 = vshrl.u32 %v1491, 7
  %v1493 = vsub.s32 0, %v1492
  %v1494 = vrot.slane %v1472, %v1493
  %v1495 = vlaneseq
  %v1496 = vshrl.u32 %v1495, 7
  %v1497 = vsub.s32 0, %v1496
  %v1498 = vrot.slane %v1473, %v1497
  %v1499 = vlaneseq
  %v1500 = vshrl.u32 %v1499, 7
  %v1501 = vsub.s32 0, %v1500
  %v1502 = vrot.slane %v1474, %v1501
  %vm1503 = vcmp.eq.f32.partialorder %v1317, %v1478
  %vm1504 = vcmp.eq.f32.partialorder %v1317, %v1482
  %vm1505 = vcmp.eq.f32.partialorder %v1317, %v1486
  %vm1506 = vcmp.eq.f32.partialorder %v1317, %v1490
  %vm1507 = vcmp.eq.f32.partialorder %v1317, %v1494
  %vm1508 = vcmp.eq.f32.partialorder %v1317, %v1498
  %vm1509 = vcmp.eq.f32.partialorder %v1317, %v1502
  %vm1510 = vcmp.eq.f32.partialorder %v1318, %v1478
  %vm1511 = vcmp.eq.f32.partialorder %v1318, %v1482
  %vm1512 = vcmp.eq.f32.partialorder %v1318, %v1486
  %vm1513 = vcmp.eq.f32.partialorder %v1318, %v1490
  %vm1514 = vcmp.eq.f32.partialorder %v1318, %v1494
  %vm1515 = vcmp.eq.f32.partialorder %v1318, %v1498
  %vm1516 = vcmp.eq.f32.partialorder %v1318, %v1502
  %vm1517 = vcmp.eq.f32.partialorder %v1319, %v1478
  %vm1518 = vcmp.eq.f32.partialorder %v1319, %v1482
  %vm1519 = vcmp.eq.f32.partialorder %v1319, %v1486
  %vm1520 = vcmp.eq.f32.partialorder %v1319, %v1490
  %vm1521 = vcmp.eq.f32.partialorder %v1319, %v1494
  %vm1522 = vcmp.eq.f32.partialorder %v1319, %v1498
  %vm1523 = vcmp.eq.f32.partialorder %v1319, %v1502
  %vm1524 = vcmp.eq.f32.partialorder %v1320, %v1478
  %vm1525 = vcmp.eq.f32.partialorder %v1320, %v1482
  %vm1526 = vcmp.eq.f32.partialorder %v1320, %v1486
  %vm1527 = vcmp.eq.f32.partialorder %v1320, %v1490
  %vm1528 = vcmp.eq.f32.partialorder %v1320, %v1494
  %vm1529 = vcmp.eq.f32.partialorder %v1320, %v1498
  %vm1530 = vcmp.eq.f32.partialorder %v1320, %v1502
  %v1531 = vlaneseq
  %v1532 = vshrl.u32 %v1531, 7
  %v1533 = vsub.s32 0, %v1532
  %v1534 = vrot.slane %v1328, %v1533
  %v1535 = vlaneseq
  %v1536 = vshrl.u32 %v1535, 7
  %v1537 = vsub.s32 0, %v1536
  %v1538 = vrot.slane %v1329, %v1537
  %v1539 = vlaneseq
  %v1540 = vshrl.u32 %v1539, 7
  %v1541 = vsub.s32 0, %v1540
  %v1542 = vrot.slane %v1330, %v1541
  %v1543 = vlaneseq
  %v1544 = vshrl.u32 %v1543, 7
  %v1545 = vsub.s32 0, %v1544
  %v1546 = vrot.slane %v1331, %v1545
  %v1547 = vlaneseq
  %v1548 = vshrl.u32 %v1547, 7
  %v1549 = vsub.s32 0, %v1548
  %v1550 = vrot.slane %v1332, %v1549
  %v1551 = vlaneseq
  %v1552 = vshrl.u32 %v1551, 7
  %v1553 = vsub.s32 0, %v1552
  %v1554 = vrot.slane %v1333, %v1553
  %v1555 = vlaneseq
  %v1556 = vshrl.u32 %v1555, 7
  %v1557 = vsub.s32 0, %v1556
  %v1558 = vrot.slane %v1334, %v1557
  %v1559 = vsel %vm1503, %v1534, 0.0
  %v1560 = vsel %vm1504, %v1538, 0.0
  %v1561 = vsel %vm1505, %v1542, 0.0
  %v1562 = vsel %vm1506, %v1546, 0.0
  %v1563 = vsel %vm1507, %v1550, 0.0
  %v1564 = vsel %vm1508, %v1554, 0.0
  %v1565 = vsel %vm1509, %v1558, 0.0
  %v1566 = vsel %vm1510, %v1534, 0.0
  %v1567 = vsel %vm1511, %v1538, 0.0
  %v1568 = vsel %vm1512, %v1542, 0.0
  %v1569 = vsel %vm1513, %v1546, 0.0
  %v1570 = vsel %vm1514, %v1550, 0.0
  %v1571 = vsel %vm1515, %v1554, 0.0
  %v1572 = vsel %vm1516, %v1558, 0.0
  %v1573 = vsel %vm1517, %v1534, 0.0
  %v1574 = vsel %vm1518, %v1538, 0.0
  %v1575 = vsel %vm1519, %v1542, 0.0
  %v1576 = vsel %vm1520, %v1546, 0.0
  %v1577 = vsel %vm1521, %v1550, 0.0
  %v1578 = vsel %vm1522, %v1554, 0.0
  %v1579 = vsel %vm1523, %v1558, 0.0
  %v1580 = vsel %vm1524, %v1534, 0.0
  %v1581 = vsel %vm1525, %v1538, 0.0
  %v1582 = vsel %vm1526, %v1542, 0.0
  %v1583 = vsel %vm1527, %v1546, 0.0
  %v1584 = vsel %vm1528, %v1550, 0.0
  %v1585 = vsel %vm1529, %v1554, 0.0
  %v1586 = vsel %vm1530, %v1558, 0.0
  %v1587 = vadd.f32 %v1440, %v1559
  %v1588 = vadd.f32 %v1441, %v1560
  %v1589 = vadd.f32 %v1442, %v1561
  %v1590 = vadd.f32 %v1443, %v1562
  %v1591 = vadd.f32 %v1444, %v1563
  %v1592 = vadd.f32 %v1445, %v1564
  %v1593 = vadd.f32 %v1446, %v1565
  %v1594 = vadd.f32 %v1447, %v1566
  %v1595 = vadd.f32 %v1448, %v1567
  %v1596 = vadd.f32 %v1449, %v1568
  %v1597 = vadd.f32 %v1450, %v1569
  %v1598 = vadd.f32 %v1451, %v1570
  %v1599 = vadd.f32 %v1452, %v1571
  %v1600 = vadd.f32 %v1453, %v1572
  %v1601 = vadd.f32 %v1454, %v1573
  %v1602 = vadd.f32 %v1455, %v1574
  %v1603 = vadd.f32 %v1456, %v1575
  %v1604 = vadd.f32 %v1457, %v1576
  %v1605 = vadd.f32 %v1458, %v1577
  %v1606 = vadd.f32 %v1459, %v1578
  %v1607 = vadd.f32 %v1460, %v1579
  %v1608 = vadd.f32 %v1461, %v1580
  %v1609 = vadd.f32 %v1462, %v1581
  %v1610 = vadd.f32 %v1463, %v1582
  %v1611 = vadd.f32 %v1464, %v1583
  %v1612 = vadd.f32 %v1465, %v1584
  %v1613 = vadd.f32 %v1466, %v1585
  %v1614 = vadd.f32 %v1467, %v1586
  %v1615 = vlaneseq
  %v1616 = vshrl.u32 %v1615, 7
  %v1617 = vsub.s32 0, %v1616
  %v1618 = vrot.slane %v1335, %v1617
  %v1619 = vlaneseq
  %v1620 = vshrl.u32 %v1619, 7
  %v1621 = vsub.s32 0, %v1620
  %v1622 = vrot.slane %v1336, %v1621
  %v1623 = vlaneseq
  %v1624 = vshrl.u32 %v1623, 7
  %v1625 = vsub.s32 0, %v1624
  %v1626 = vrot.slane %v1337, %v1625
  %v1627 = vlaneseq
  %v1628 = vshrl.u32 %v1627, 7
  %v1629 = vsub.s32 0, %v1628
  %v1630 = vrot.slane %v1338, %v1629
  %v1631 = vlaneseq
  %v1632 = vshrl.u32 %v1631, 7
  %v1633 = vsub.s32 0, %v1632
  %v1634 = vrot.slane %v1339, %v1633
  %v1635 = vlaneseq
  %v1636 = vshrl.u32 %v1635, 7
  %v1637 = vsub.s32 0, %v1636
  %v1638 = vrot.slane %v1340, %v1637
  %v1639 = vlaneseq
  %v1640 = vshrl.u32 %v1639, 7
  %v1641 = vsub.s32 0, %v1640
  %v1642 = vrot.slane %v1341, %v1641
  %vm1643 = vcmp.eq.f32.partialorder %v1317, %v1618
  %vm1644 = vcmp.eq.f32.partialorder %v1317, %v1622
  %vm1645 = vcmp.eq.f32.partialorder %v1317, %v1626
  %vm1646 = vcmp.eq.f32.partialorder %v1317, %v1630
  %vm1647 = vcmp.eq.f32.partialorder %v1317, %v1634
  %vm1648 = vcmp.eq.f32.partialorder %v1317, %v1638
  %vm1649 = vcmp.eq.f32.partialorder %v1317, %v1642
  %vm1650 = vcmp.eq.f32.partialorder %v1318, %v1618
  %vm1651 = vcmp.eq.f32.partialorder %v1318, %v1622
  %vm1652 = vcmp.eq.f32.partialorder %v1318, %v1626
  %vm1653 = vcmp.eq.f32.partialorder %v1318, %v1630
  %vm1654 = vcmp.eq.f32.partialorder %v1318, %v1634
  %vm1655 = vcmp.eq.f32.partialorder %v1318, %v1638
  %vm1656 = vcmp.eq.f32.partialorder %v1318, %v1642
  %vm1657 = vcmp.eq.f32.partialorder %v1319, %v1618
  %vm1658 = vcmp.eq.f32.partialorder %v1319, %v1622
  %vm1659 = vcmp.eq.f32.partialorder %v1319, %v1626
  %vm1660 = vcmp.eq.f32.partialorder %v1319, %v1630
  %vm1661 = vcmp.eq.f32.partialorder %v1319, %v1634
  %vm1662 = vcmp.eq.f32.partialorder %v1319, %v1638
  %vm1663 = vcmp.eq.f32.partialorder %v1319, %v1642
  %vm1664 = vcmp.eq.f32.partialorder %v1320, %v1618
  %vm1665 = vcmp.eq.f32.partialorder %v1320, %v1622
  %vm1666 = vcmp.eq.f32.partialorder %v1320, %v1626
  %vm1667 = vcmp.eq.f32.partialorder %v1320, %v1630
  %vm1668 = vcmp.eq.f32.partialorder %v1320, %v1634
  %vm1669 = vcmp.eq.f32.partialorder %v1320, %v1638
  %vm1670 = vcmp.eq.f32.partialorder %v1320, %v1642
  %v1671 = vsub.f32 1.0, %v1342
  %v1672 = vsub.f32 1.0, %v1343
  %v1673 = vsub.f32 1.0, %v1344
  %v1674 = vsub.f32 1.0, %v1345
  %v1675 = vsub.f32 1.0, %v1346
  %v1676 = vsub.f32 1.0, %v1347
  %v1677 = vsub.f32 1.0, %v1348
  %v1678 = vlaneseq
  %v1679 = vshrl.u32 %v1678, 7
  %v1680 = vsub.s32 0, %v1679
  %v1681 = vrot.slane %v1671, %v1680
  %v1682 = vlaneseq
  %v1683 = vshrl.u32 %v1682, 7
  %v1684 = vsub.s32 0, %v1683
  %v1685 = vrot.slane %v1672, %v1684
  %v1686 = vlaneseq
  %v1687 = vshrl.u32 %v1686, 7
  %v1688 = vsub.s32 0, %v1687
  %v1689 = vrot.slane %v1673, %v1688
  %v1690 = vlaneseq
  %v1691 = vshrl.u32 %v1690, 7
  %v1692 = vsub.s32 0, %v1691
  %v1693 = vrot.slane %v1674, %v1692
  %v1694 = vlaneseq
  %v1695 = vshrl.u32 %v1694, 7
  %v1696 = vsub.s32 0, %v1695
  %v1697 = vrot.slane %v1675, %v1696
  %v1698 = vlaneseq
  %v1699 = vshrl.u32 %v1698, 7
  %v1700 = vsub.s32 0, %v1699
  %v1701 = vrot.slane %v1676, %v1700
  %v1702 = vlaneseq
  %v1703 = vshrl.u32 %v1702, 7
  %v1704 = vsub.s32 0, %v1703
  %v1705 = vrot.slane %v1677, %v1704
  %v1706 = vsel %vm1643, %v1681, 0.0
  %v1707 = vsel %vm1644, %v1685, 0.0
  %v1708 = vsel %vm1645, %v1689, 0.0
  %v1709 = vsel %vm1646, %v1693, 0.0
  %v1710 = vsel %vm1647, %v1697, 0.0
  %v1711 = vsel %vm1648, %v1701, 0.0
  %v1712 = vsel %vm1649, %v1705, 0.0
  %v1713 = vsel %vm1650, %v1681, 0.0
  %v1714 = vsel %vm1651, %v1685, 0.0
  %v1715 = vsel %vm1652, %v1689, 0.0
  %v1716 = vsel %vm1653, %v1693, 0.0
  %v1717 = vsel %vm1654, %v1697, 0.0
  %v1718 = vsel %vm1655, %v1701, 0.0
  %v1719 = vsel %vm1656, %v1705, 0.0
  %v1720 = vsel %vm1657, %v1681, 0.0
  %v1721 = vsel %vm1658, %v1685, 0.0
  %v1722 = vsel %vm1659, %v1689, 0.0
  %v1723 = vsel %vm1660, %v1693, 0.0
  %v1724 = vsel %vm1661, %v1697, 0.0
  %v1725 = vsel %vm1662, %v1701, 0.0
  %v1726 = vsel %vm1663, %v1705, 0.0
  %v1727 = vsel %vm1664, %v1681, 0.0
  %v1728 = vsel %vm1665, %v1685, 0.0
  %v1729 = vsel %vm1666, %v1689, 0.0
  %v1730 = vsel %vm1667, %v1693, 0.0
  %v1731 = vsel %vm1668, %v1697, 0.0
  %v1732 = vsel %vm1669, %v1701, 0.0
  %v1733 = vsel %vm1670, %v1705, 0.0
  %v1734 = vadd.f32 %v1335, 1.0
  %v1735 = vadd.f32 %v1336, 1.0
  %v1736 = vadd.f32 %v1337, 1.0
  %v1737 = vadd.f32 %v1338, 1.0
  %v1738 = vadd.f32 %v1339, 1.0
  %v1739 = vadd.f32 %v1340, 1.0
  %v1740 = vadd.f32 %v1341, 1.0
  %v1741 = vlaneseq
  %v1742 = vshrl.u32 %v1741, 7
  %v1743 = vsub.s32 0, %v1742
  %v1744 = vrot.slane %v1734, %v1743
  %v1745 = vlaneseq
  %v1746 = vshrl.u32 %v1745, 7
  %v1747 = vsub.s32 0, %v1746
  %v1748 = vrot.slane %v1735, %v1747
  %v1749 = vlaneseq
  %v1750 = vshrl.u32 %v1749, 7
  %v1751 = vsub.s32 0, %v1750
  %v1752 = vrot.slane %v1736, %v1751
  %v1753 = vlaneseq
  %v1754 = vshrl.u32 %v1753, 7
  %v1755 = vsub.s32 0, %v1754
  %v1756 = vrot.slane %v1737, %v1755
  %v1757 = vlaneseq
  %v1758 = vshrl.u32 %v1757, 7
  %v1759 = vsub.s32 0, %v1758
  %v1760 = vrot.slane %v1738, %v1759
  %v1761 = vlaneseq
  %v1762 = vshrl.u32 %v1761, 7
  %v1763 = vsub.s32 0, %v1762
  %v1764 = vrot.slane %v1739, %v1763
  %v1765 = vlaneseq
  %v1766 = vshrl.u32 %v1765, 7
  %v1767 = vsub.s32 0, %v1766
  %v1768 = vrot.slane %v1740, %v1767
  %vm1769 = vcmp.eq.f32.partialorder %v1317, %v1744
  %vm1770 = vcmp.eq.f32.partialorder %v1317, %v1748
  %vm1771 = vcmp.eq.f32.partialorder %v1317, %v1752
  %vm1772 = vcmp.eq.f32.partialorder %v1317, %v1756
  %vm1773 = vcmp.eq.f32.partialorder %v1317, %v1760
  %vm1774 = vcmp.eq.f32.partialorder %v1317, %v1764
  %vm1775 = vcmp.eq.f32.partialorder %v1317, %v1768
  %vm1776 = vcmp.eq.f32.partialorder %v1318, %v1744
  %vm1777 = vcmp.eq.f32.partialorder %v1318, %v1748
  %vm1778 = vcmp.eq.f32.partialorder %v1318, %v1752
  %vm1779 = vcmp.eq.f32.partialorder %v1318, %v1756
  %vm1780 = vcmp.eq.f32.partialorder %v1318, %v1760
  %vm1781 = vcmp.eq.f32.partialorder %v1318, %v1764
  %vm1782 = vcmp.eq.f32.partialorder %v1318, %v1768
  %vm1783 = vcmp.eq.f32.partialorder %v1319, %v1744
  %vm1784 = vcmp.eq.f32.partialorder %v1319, %v1748
  %vm1785 = vcmp.eq.f32.partialorder %v1319, %v1752
  %vm1786 = vcmp.eq.f32.partialorder %v1319, %v1756
  %vm1787 = vcmp.eq.f32.partialorder %v1319, %v1760
  %vm1788 = vcmp.eq.f32.partialorder %v1319, %v1764
  %vm1789 = vcmp.eq.f32.partialorder %v1319, %v1768
  %vm1790 = vcmp.eq.f32.partialorder %v1320, %v1744
  %vm1791 = vcmp.eq.f32.partialorder %v1320, %v1748
  %vm1792 = vcmp.eq.f32.partialorder %v1320, %v1752
  %vm1793 = vcmp.eq.f32.partialorder %v1320, %v1756
  %vm1794 = vcmp.eq.f32.partialorder %v1320, %v1760
  %vm1795 = vcmp.eq.f32.partialorder %v1320, %v1764
  %vm1796 = vcmp.eq.f32.partialorder %v1320, %v1768
  %v1797 = vlaneseq
  %v1798 = vshrl.u32 %v1797, 7
  %v1799 = vsub.s32 0, %v1798
  %v1800 = vrot.slane %v1342, %v1799
  %v1801 = vlaneseq
  %v1802 = vshrl.u32 %v1801, 7
  %v1803 = vsub.s32 0, %v1802
  %v1804 = vrot.slane %v1343, %v1803
  %v1805 = vlaneseq
  %v1806 = vshrl.u32 %v1805, 7
  %v1807 = vsub.s32 0, %v1806
  %v1808 = vrot.slane %v1344, %v1807
  %v1809 = vlaneseq
  %v1810 = vshrl.u32 %v1809, 7
  %v1811 = vsub.s32 0, %v1810
  %v1812 = vrot.slane %v1345, %v1811
  %v1813 = vlaneseq
  %v1814 = vshrl.u32 %v1813, 7
  %v1815 = vsub.s32 0, %v1814
  %v1816 = vrot.slane %v1346, %v1815
  %v1817 = vlaneseq
  %v1818 = vshrl.u32 %v1817, 7
  %v1819 = vsub.s32 0, %v1818
  %v1820 = vrot.slane %v1347, %v1819
  %v1821 = vlaneseq
  %v1822 = vshrl.u32 %v1821, 7
  %v1823 = vsub.s32 0, %v1822
  %v1824 = vrot.slane %v1348, %v1823
  %v1825 = vsel %vm1769, %v1800, 0.0
  %v1826 = vsel %vm1770, %v1804, 0.0
  %v1827 = vsel %vm1771, %v1808, 0.0
  %v1828 = vsel %vm1772, %v1812, 0.0
  %v1829 = vsel %vm1773, %v1816, 0.0
  %v1830 = vsel %vm1774, %v1820, 0.0
  %v1831 = vsel %vm1775, %v1824, 0.0
  %v1832 = vsel %vm1776, %v1800, 0.0
  %v1833 = vsel %vm1777, %v1804, 0.0
  %v1834 = vsel %vm1778, %v1808, 0.0
  %v1835 = vsel %vm1779, %v1812, 0.0
  %v1836 = vsel %vm1780, %v1816, 0.0
  %v1837 = vsel %vm1781, %v1820, 0.0
  %v1838 = vsel %vm1782, %v1824, 0.0
  %v1839 = vsel %vm1783, %v1800, 0.0
  %v1840 = vsel %vm1784, %v1804, 0.0
  %v1841 = vsel %vm1785, %v1808, 0.0
  %v1842 = vsel %vm1786, %v1812, 0.0
  %v1843 = vsel %vm1787, %v1816, 0.0
  %v1844 = vsel %vm1788, %v1820, 0.0
  %v1845 = vsel %vm1789, %v1824, 0.0
  %v1846 = vsel %vm1790, %v1800, 0.0
  %v1847 = vsel %vm1791, %v1804, 0.0
  %v1848 = vsel %vm1792, %v1808, 0.0
  %v1849 = vsel %vm1793, %v1812, 0.0
  %v1850 = vsel %vm1794, %v1816, 0.0
  %v1851 = vsel %vm1795, %v1820, 0.0
  %v1852 = vsel %vm1796, %v1824, 0.0
  %v1853 = vadd.f32 %v1706, %v1825
  %v1854 = vadd.f32 %v1707, %v1826
  %v1855 = vadd.f32 %v1708, %v1827
  %v1856 = vadd.f32 %v1709, %v1828
  %v1857 = vadd.f32 %v1710, %v1829
  %v1858 = vadd.f32 %v1711, %v1830
  %v1859 = vadd.f32 %v1712, %v1831
  %v1860 = vadd.f32 %v1713, %v1832
  %v1861 = vadd.f32 %v1714, %v1833
  %v1862 = vadd.f32 %v1715, %v1834
  %v1863 = vadd.f32 %v1716, %v1835
  %v1864 = vadd.f32 %v1717, %v1836
  %v1865 = vadd.f32 %v1718, %v1837
  %v1866 = vadd.f32 %v1719, %v1838
  %v1867 = vadd.f32 %v1720, %v1839
  %v1868 = vadd.f32 %v1721, %v1840
  %v1869 = vadd.f32 %v1722, %v1841
  %v1870 = vadd.f32 %v1723, %v1842
  %v1871 = vadd.f32 %v1724, %v1843
  %v1872 = vadd.f32 %v1725, %v1844
  %v1873 = vadd.f32 %v1726, %v1845
  %v1874 = vadd.f32 %v1727, %v1846
  %v1875 = vadd.f32 %v1728, %v1847
  %v1876 = vadd.f32 %v1729, %v1848
  %v1877 = vadd.f32 %v1730, %v1849
  %v1878 = vadd.f32 %v1731, %v1850
  %v1879 = vadd.f32 %v1732, %v1851
  %v1880 = vadd.f32 %v1733, %v1852
  %v1881 = vld [vmem:[%s7] sm:$0xff]
  %v1882 = vld [vmem:[%s7 + $0x8] sm:$0xff]
  %v1883 = vld [vmem:[%s7 + $0x10] sm:$0xff]
  %v1884 = vld [vmem:[%s7 + $0x18] sm:$0xf]
  %vm1885 = vcmask 228352
  %v1887 = vsel %vm1885, %v1881, 0
  %v1890 = vsel %vm1885, %v1882, 0
  %v1893 = vsel %vm1885, %v1883, 0
  %v1896 = vsel %vm1885, %v1884, 0
  %vm1898 = vcmask 1043456
  %v1900 = vsel %vm1898, %v1874, 0
  %v1903 = vsel %vm1898, %v1875, 0
  %v1906 = vsel %vm1898, %v1876, 0
  %v1909 = vsel %vm1898, %v1877, 0
  %v1912 = vsel %vm1898, %v1878, 0
  %v1915 = vsel %vm1898, %v1879, 0
  %v1918 = vsel %vm1898, %v1880, 0
  %1920 = vmatprep.subr.mxu0 %v1854
  %1921 = vmatpush1.msra.mxu0 %v1853
  %1922 = vmatprep.subr.mxu0 %v1861
  %1923 = vmatpush1.msra.mxu0 %v1860
  %1924 = vmatprep.subr.mxu0 %v1868
  %1925 = vmatpush1.msra.mxu0 %v1867
  %1926 = vmatprep.subr.mxu0 %v1903
  %1927 = vmatpush1.msra.mxu0 %v1900
  %1928 = vmatprep.subr.mxu0 0.0
  %1929 = vmatpush1.msra.mxu0 0.0
  %1930 = vmatprep.subr.mxu0 0.0
  %1931 = vmatpush1.msra.mxu0 0.0
  %1932 = vmatprep.subr.mxu0 0.0
  %1933 = vmatpush1.msra.mxu0 0.0
  %1934 = vmatprep.subr.mxu0 0.0
  %1935 = vmatpush1.msra.mxu0 0.0
  %1936 = vmatprep.subr.mxu0 0.0
  %1937 = vmatpush1.msra.mxu0 0.0
  %1938 = vmatprep.subr.mxu0 0.0
  %1939 = vmatpush1.msra.mxu0 0.0
  %1940 = vmatprep.subr.mxu0 0.0
  %1941 = vmatpush1.msra.mxu0 0.0
  %1942 = vmatprep.subr.mxu0 0.0
  %1943 = vmatpush1.msra.mxu0 0.0
  %1944 = vmatprep.subr.mxu0 0.0
  %1945 = vmatpush1.msra.mxu0 0.0
  %1946 = vmatprep.subr.mxu0 0.0
  %1947 = vmatpush1.msra.mxu0 0.0
  %1948 = vmatprep.subr.mxu0 0.0
  %1949 = vmatpush1.msra.mxu0 0.0
  %1950 = vmatprep.subr.mxu0 0.0
  %1951 = vmatpush1.msra.mxu0 0.0
  %1952 = vmatprep.subr.mxu0 0.0
  %1953 = vmatpush1.msra.mxu0 0.0
  %1954 = vmatprep.subr.mxu0 0.0
  %1955 = vmatpush1.msra.mxu0 0.0
  %1956 = vmatprep.subr.mxu0 0.0
  %1957 = vmatpush1.msra.mxu0 0.0
  %1958 = vmatprep.subr.mxu0 0.0
  %1959 = vmatpush1.msra.mxu0 0.0
  %1960 = vmatprep.subr.mxu0 0.0
  %1961 = vmatpush1.msra.mxu0 0.0
  %1962 = vmatprep.subr.mxu0 0.0
  %1963 = vmatpush1.msra.mxu0 0.0
  %1964 = vmatprep.subr.mxu0 0.0
  %1965 = vmatpush1.msra.mxu0 0.0
  %1966 = vmatprep.subr.mxu0 0.0
  %1967 = vmatpush1.msra.mxu0 0.0
  %1968 = vmatprep.subr.mxu0 0.0
  %1969 = vmatpush1.msra.mxu0 0.0
  %1970 = vmatprep.subr.mxu0 0.0
  %1971 = vmatpush1.msra.mxu0 0.0
  %1972 = vmatprep.subr.mxu0 0.0
  %1973 = vmatpush1.msra.mxu0 0.0
  %1974 = vmatprep.subr.mxu0 0.0
  %1975 = vmatpush1.msra.mxu0 0.0
  %1976 = vmatprep.subr.mxu0 0.0
  %1977 = vmatpush1.msra.mxu0 0.0
  %1978 = vmatprep.subr.mxu0 0.0
  %1979 = vmatpush1.msra.mxu0 0.0
  %1980 = vmatprep.subr.mxu0 0.0
  %1981 = vmatpush1.msra.mxu0 0.0
  %1982 = vmatprep.subr.mxu0 0.0
  %1983 = vmatpush1.msra.mxu0 0.0
  %1984 = vmatprep.mubr.f32.mxu0 0.0
  %1985 = vmatmul.mubr.f32.gmra.mrb[0].mxu0 %v1887
  %v1986 = vpop.f32.mrb[0].mxu0
  %v1987 = vadd.f32 0.0, %v1986
  %v1988 = vpop.f32.mrb[0].mxu0
  %v1989 = vadd.f32 0.0, %v1988
  %1990 = vmatprep.mubr.f32.mxu0 0.0
  %1991 = vmatmul.mubr.f32.gmra.mrb[0].mxu0 %v1890
  %v1992 = vpop.f32.mrb[0].mxu0
  %v1993 = vadd.f32 0.0, %v1992
  %v1994 = vpop.f32.mrb[0].mxu0
  %v1995 = vadd.f32 0.0, %v1994
  %1996 = vmatprep.mubr.f32.mxu0 0.0
  %1997 = vmatmul.mubr.f32.gmra.mrb[0].mxu0 %v1893
  %v1998 = vpop.f32.mrb[0].mxu0
  %v1999 = vadd.f32 0.0, %v1998
  %v2000 = vpop.f32.mrb[0].mxu0
  %v2001 = vadd.f32 0.0, %v2000
  %2002 = vmatprep.mubr.f32.mxu0 0.0
  %2003 = vmatmul.mubr.f32.gmra.mrb[0].mxu0 %v1896
  %v2004 = vpop.f32.mrb[0].mxu0
  %v2005 = vadd.f32 0.0, %v2004
  %v2006 = vpop.f32.mrb[0].mxu0
  %v2007 = vadd.f32 0.0, %v2006
  %2008 = vdwg.mxu0
  %2009 = vmatprep.subr.mxu0 %v1856
  %2010 = vmatpush1.msra.mxu0 %v1855
  %2011 = vmatprep.subr.mxu0 %v1863
  %2012 = vmatpush1.msra.mxu0 %v1862
  %2013 = vmatprep.subr.mxu0 %v1870
  %2014 = vmatpush1.msra.mxu0 %v1869
  %2015 = vmatprep.subr.mxu0 %v1909
  %2016 = vmatpush1.msra.mxu0 %v1906
  %2017 = vmatprep.subr.mxu0 0.0
  %2018 = vmatpush1.msra.mxu0 0.0
  %2019 = vmatprep.subr.mxu0 0.0
  %2020 = vmatpush1.msra.mxu0 0.0
  %2021 = vmatprep.subr.mxu0 0.0
  %2022 = vmatpush1.msra.mxu0 0.0
  %2023 = vmatprep.subr.mxu0 0.0
  %2024 = vmatpush1.msra.mxu0 0.0
  %2025 = vmatprep.subr.mxu0 0.0
  %2026 = vmatpush1.msra.mxu0 0.0
  %2027 = vmatprep.subr.mxu0 0.0
  %2028 = vmatpush1.msra.mxu0 0.0
  %2029 = vmatprep.subr.mxu0 0.0
  %2030 = vmatpush1.msra.mxu0 0.0
  %2031 = vmatprep.subr.mxu0 0.0
  %2032 = vmatpush1.msra.mxu0 0.0
  %2033 = vmatprep.subr.mxu0 0.0
  %2034 = vmatpush1.msra.mxu0 0.0
  %2035 = vmatprep.subr.mxu0 0.0
  %2036 = vmatpush1.msra.mxu0 0.0
  %2037 = vmatprep.subr.mxu0 0.0
  %2038 = vmatpush1.msra.mxu0 0.0
  %2039 = vmatprep.subr.mxu0 0.0
  %2040 = vmatpush1.msra.mxu0 0.0
  %2041 = vmatprep.subr.mxu0 0.0
  %2042 = vmatpush1.msra.mxu0 0.0
  %2043 = vmatprep.subr.mxu0 0.0
  %2044 = vmatpush1.msra.mxu0 0.0
  %2045 = vmatprep.subr.mxu0 0.0
  %2046 = vmatpush1.msra.mxu0 0.0
  %2047 = vmatprep.subr.mxu0 0.0
  %2048 = vmatpush1.msra.mxu0 0.0
  %2049 = vmatprep.subr.mxu0 0.0
  %2050 = vmatpush1.msra.mxu0 0.0
  %2051 = vmatprep.subr.mxu0 0.0
  %2052 = vmatpush1.msra.mxu0 0.0
  %2053 = vmatprep.subr.mxu0 0.0
  %2054 = vmatpush1.msra.mxu0 0.0
  %2055 = vmatprep.subr.mxu0 0.0
  %2056 = vmatpush1.msra.mxu0 0.0
  %2057 = vmatprep.subr.mxu0 0.0
  %2058 = vmatpush1.msra.mxu0 0.0
  %2059 = vmatprep.subr.mxu0 0.0
  %2060 = vmatpush1.msra.mxu0 0.0
  %2061 = vmatprep.subr.mxu0 0.0
  %2062 = vmatpush1.msra.mxu0 0.0
  %2063 = vmatprep.subr.mxu0 0.0
  %2064 = vmatpush1.msra.mxu0 0.0
  %2065 = vmatprep.subr.mxu0 0.0
  %2066 = vmatpush1.msra.mxu0 0.0
  %2067 = vmatprep.subr.mxu0 0.0
  %2068 = vmatpush1.msra.mxu0 0.0
  %2069 = vmatprep.subr.mxu0 0.0
  %2070 = vmatpush1.msra.mxu0 0.0
  %2071 = vmatprep.subr.mxu0 0.0
  %2072 = vmatpush1.msra.mxu0 0.0
  %2073 = vmatprep.mubr.f32.mxu0 0.0
  %2074 = vmatmul.mubr.f32.gmra.mrb[0].mxu0 %v1887
  %v2075 = vpop.f32.mrb[0].mxu0
  %v2076 = vadd.f32 0.0, %v2075
  %v2077 = vpop.f32.mrb[0].mxu0
  %v2078 = vadd.f32 0.0, %v2077
  %2079 = vmatprep.mubr.f32.mxu0 0.0
  %2080 = vmatmul.mubr.f32.gmra.mrb[0].mxu0 %v1890
  %v2081 = vpop.f32.mrb[0].mxu0
  %v2082 = vadd.f32 0.0, %v2081
  %v2083 = vpop.f32.mrb[0].mxu0
  %v2084 = vadd.f32 0.0, %v2083
  %2085 = vmatprep.mubr.f32.mxu0 0.0
  %2086 = vmatmul.mubr.f32.gmra.mrb[0].mxu0 %v1893
  %v2087 = vpop.f32.mrb[0].mxu0
  %v2088 = vadd.f32 0.0, %v2087
  %v2089 = vpop.f32.mrb[0].mxu0
  %v2090 = vadd.f32 0.0, %v2089
  %2091 = vmatprep.mubr.f32.mxu0 0.0
  %2092 = vmatmul.mubr.f32.gmra.mrb[0].mxu0 %v1896
  %v2093 = vpop.f32.mrb[0].mxu0
  %v2094 = vadd.f32 0.0, %v2093
  %v2095 = vpop.f32.mrb[0].mxu0
  %v2096 = vadd.f32 0.0, %v2095
  %2097 = vdwg.mxu0
  %2098 = vmatprep.subr.mxu0 %v1858
  %2099 = vmatpush1.msra.mxu0 %v1857
  %2100 = vmatprep.subr.mxu0 %v1865
  %2101 = vmatpush1.msra.mxu0 %v1864
  %2102 = vmatprep.subr.mxu0 %v1872
  %2103 = vmatpush1.msra.mxu0 %v1871
  %2104 = vmatprep.subr.mxu0 %v1915
  %2105 = vmatpush1.msra.mxu0 %v1912
  %2106 = vmatprep.subr.mxu0 0.0
  %2107 = vmatpush1.msra.mxu0 0.0
  %2108 = vmatprep.subr.mxu0 0.0
  %2109 = vmatpush1.msra.mxu0 0.0
  %2110 = vmatprep.subr.mxu0 0.0
  %2111 = vmatpush1.msra.mxu0 0.0
  %2112 = vmatprep.subr.mxu0 0.0
  %2113 = vmatpush1.msra.mxu0 0.0
  %2114 = vmatprep.subr.mxu0 0.0
  %2115 = vmatpush1.msra.mxu0 0.0
  %2116 = vmatprep.subr.mxu0 0.0
  %2117 = vmatpush1.msra.mxu0 0.0
  %2118 = vmatprep.subr.mxu0 0.0
  %2119 = vmatpush1.msra.mxu0 0.0
  %2120 = vmatprep.subr.mxu0 0.0
  %2121 = vmatpush1.msra.mxu0 0.0
  %2122 = vmatprep.subr.mxu0 0.0
  %2123 = vmatpush1.msra.mxu0 0.0
  %2124 = vmatprep.subr.mxu0 0.0
  %2125 = vmatpush1.msra.mxu0 0.0
  %2126 = vmatprep.subr.mxu0 0.0
  %2127 = vmatpush1.msra.mxu0 0.0
  %2128 = vmatprep.subr.mxu0 0.0
  %2129 = vmatpush1.msra.mxu0 0.0
  %2130 = vmatprep.subr.mxu0 0.0
  %2131 = vmatpush1.msra.mxu0 0.0
  %2132 = vmatprep.subr.mxu0 0.0
  %2133 = vmatpush1.msra.mxu0 0.0
  %2134 = vmatprep.subr.mxu0 0.0
  %2135 = vmatpush1.msra.mxu0 0.0
  %2136 = vmatprep.subr.mxu0 0.0
  %2137 = vmatpush1.msra.mxu0 0.0
  %2138 = vmatprep.subr.mxu0 0.0
  %2139 = vmatpush1.msra.mxu0 0.0
  %2140 = vmatprep.subr.mxu0 0.0
  %2141 = vmatpush1.msra.mxu0 0.0
  %2142 = vmatprep.subr.mxu0 0.0
  %2143 = vmatpush1.msra.mxu0 0.0
  %2144 = vmatprep.subr.mxu0 0.0
  %2145 = vmatpush1.msra.mxu0 0.0
  %2146 = vmatprep.subr.mxu0 0.0
  %2147 = vmatpush1.msra.mxu0 0.0
  %2148 = vmatprep.subr.mxu0 0.0
  %2149 = vmatpush1.msra.mxu0 0.0
  %2150 = vmatprep.subr.mxu0 0.0
  %2151 = vmatpush1.msra.mxu0 0.0
  %2152 = vmatprep.subr.mxu0 0.0
  %2153 = vmatpush1.msra.mxu0 0.0
  %2154 = vmatprep.subr.mxu0 0.0
  %2155 = vmatpush1.msra.mxu0 0.0
  %2156 = vmatprep.subr.mxu0 0.0
  %2157 = vmatpush1.msra.mxu0 0.0
  %2158 = vmatprep.subr.mxu0 0.0
  %2159 = vmatpush1.msra.mxu0 0.0
  %2160 = vmatprep.subr.mxu0 0.0
  %2161 = vmatpush1.msra.mxu0 0.0
  %2162 = vmatprep.mubr.f32.mxu0 0.0
  %2163 = vmatmul.mubr.f32.gmra.mrb[0].mxu0 %v1887
  %v2164 = vpop.f32.mrb[0].mxu0
  %v2165 = vadd.f32 0.0, %v2164
  %v2166 = vpop.f32.mrb[0].mxu0
  %v2167 = vadd.f32 0.0, %v2166
  %2168 = vmatprep.mubr.f32.mxu0 0.0
  %2169 = vmatmul.mubr.f32.gmra.mrb[0].mxu0 %v1890
  %v2170 = vpop.f32.mrb[0].mxu0
  %v2171 = vadd.f32 0.0, %v2170
  %v2172 = vpop.f32.mrb[0].mxu0
  %v2173 = vadd.f32 0.0, %v2172
  %2174 = vmatprep.mubr.f32.mxu0 0.0
  %2175 = vmatmul.mubr.f32.gmra.mrb[0].mxu0 %v1893
  %v2176 = vpop.f32.mrb[0].mxu0
  %v2177 = vadd.f32 0.0, %v2176
  %v2178 = vpop.f32.mrb[0].mxu0
  %v2179 = vadd.f32 0.0, %v2178
  %2180 = vmatprep.mubr.f32.mxu0 0.0
  %2181 = vmatmul.mubr.f32.gmra.mrb[0].mxu0 %v1896
  %v2182 = vpop.f32.mrb[0].mxu0
  %v2183 = vadd.f32 0.0, %v2182
  %v2184 = vpop.f32.mrb[0].mxu0
  %v2185 = vadd.f32 0.0, %v2184
  %2186 = vdwg.mxu0
  %2187 = vmatprep.subr.mxu0 0.0
  %2188 = vmatpush1.msra.mxu0 %v1859
  %2189 = vmatprep.subr.mxu0 0.0
  %2190 = vmatpush1.msra.mxu0 %v1866
  %2191 = vmatprep.subr.mxu0 0.0
  %2192 = vmatpush1.msra.mxu0 %v1873
  %2193 = vmatprep.subr.mxu0 0.0
  %2194 = vmatpush1.msra.mxu0 %v1918
  %2195 = vmatprep.subr.mxu0 0.0
  %2196 = vmatpush1.msra.mxu0 0.0
  %2197 = vmatprep.subr.mxu0 0.0
  %2198 = vmatpush1.msra.mxu0 0.0
  %2199 = vmatprep.subr.mxu0 0.0
  %2200 = vmatpush1.msra.mxu0 0.0
  %2201 = vmatprep.subr.mxu0 0.0
  %2202 = vmatpush1.msra.mxu0 0.0
  %2203 = vmatprep.subr.mxu0 0.0
  %2204 = vmatpush1.msra.mxu0 0.0
  %2205 = vmatprep.subr.mxu0 0.0
  %2206 = vmatpush1.msra.mxu0 0.0
  %2207 = vmatprep.subr.mxu0 0.0
  %2208 = vmatpush1.msra.mxu0 0.0
  %2209 = vmatprep.subr.mxu0 0.0
  %2210 = vmatpush1.msra.mxu0 0.0
  %2211 = vmatprep.subr.mxu0 0.0
  %2212 = vmatpush1.msra.mxu0 0.0
  %2213 = vmatprep.subr.mxu0 0.0
  %2214 = vmatpush1.msra.mxu0 0.0
  %2215 = vmatprep.subr.mxu0 0.0
  %2216 = vmatpush1.msra.mxu0 0.0
  %2217 = vmatprep.subr.mxu0 0.0
  %2218 = vmatpush1.msra.mxu0 0.0
  %2219 = vmatprep.subr.mxu0 0.0
  %2220 = vmatpush1.msra.mxu0 0.0
  %2221 = vmatprep.subr.mxu0 0.0
  %2222 = vmatpush1.msra.mxu0 0.0
  %2223 = vmatprep.subr.mxu0 0.0
  %2224 = vmatpush1.msra.mxu0 0.0
  %2225 = vmatprep.subr.mxu0 0.0
  %2226 = vmatpush1.msra.mxu0 0.0
  %2227 = vmatprep.subr.mxu0 0.0
  %2228 = vmatpush1.msra.mxu0 0.0
  %2229 = vmatprep.subr.mxu0 0.0
  %2230 = vmatpush1.msra.mxu0 0.0
  %2231 = vmatprep.subr.mxu0 0.0
  %2232 = vmatpush1.msra.mxu0 0.0
  %2233 = vmatprep.subr.mxu0 0.0
  %2234 = vmatpush1.msra.mxu0 0.0
  %2235 = vmatprep.subr.mxu0 0.0
  %2236 = vmatpush1.msra.mxu0 0.0
  %2237 = vmatprep.subr.mxu0 0.0
  %2238 = vmatpush1.msra.mxu0 0.0
  %2239 = vmatprep.subr.mxu0 0.0
  %2240 = vmatpush1.msra.mxu0 0.0
  %2241 = vmatprep.subr.mxu0 0.0
  %2242 = vmatpush1.msra.mxu0 0.0
  %2243 = vmatprep.subr.mxu0 0.0
  %2244 = vmatpush1.msra.mxu0 0.0
  %2245 = vmatprep.subr.mxu0 0.0
  %2246 = vmatpush1.msra.mxu0 0.0
  %2247 = vmatprep.subr.mxu0 0.0
  %2248 = vmatpush1.msra.mxu0 0.0
  %2249 = vmatprep.subr.mxu0 0.0
  %2250 = vmatpush1.msra.mxu0 0.0
  %2251 = vmatprep.mubr.f32.mxu0 0.0
  %2252 = vmatmul.mubr.f32.gmra.mrb[0].mxu0 %v1887
  %v2253 = vpop.f32.mrb[0].mxu0
  %v2254 = vadd.f32 0.0, %v2253
  %v2255 = vpop.f32.mrb[0].mxu0
  %2256 = vmatprep.mubr.f32.mxu0 0.0
  %2257 = vmatmul.mubr.f32.gmra.mrb[0].mxu0 %v1890
  %v2258 = vpop.f32.mrb[0].mxu0
  %v2259 = vadd.f32 0.0, %v2258
  %v2260 = vpop.f32.mrb[0].mxu0
  %2261 = vmatprep.mubr.f32.mxu0 0.0
  %2262 = vmatmul.mubr.f32.gmra.mrb[0].mxu0 %v1893
  %v2263 = vpop.f32.mrb[0].mxu0
  %v2264 = vadd.f32 0.0, %v2263
  %v2265 = vpop.f32.mrb[0].mxu0
  %2266 = vmatprep.mubr.f32.mxu0 0.0
  %2267 = vmatmul.mubr.f32.gmra.mrb[0].mxu0 %v1896
  %v2268 = vpop.f32.mrb[0].mxu0
  %v2269 = vadd.f32 0.0, %v2268
  %v2270 = vpop.f32.mrb[0].mxu0
  %2271 = vdwg.mxu0
  %v2272 = vmul.f32 %v1587, %v1987
  %v2273 = vmul.f32 %v1588, %v1989
  %v2274 = vmul.f32 %v1589, %v2076
  %v2275 = vmul.f32 %v1590, %v2078
  %v2276 = vmul.f32 %v1591, %v2165
  %v2277 = vmul.f32 %v1592, %v2167
  %v2278 = vmul.f32 %v1593, %v2254
  %v2279 = vmul.f32 %v1594, %v1993
  %v2280 = vmul.f32 %v1595, %v1995
  %v2281 = vmul.f32 %v1596, %v2082
  %v2282 = vmul.f32 %v1597, %v2084
  %v2283 = vmul.f32 %v1598, %v2171
  %v2284 = vmul.f32 %v1599, %v2173
  %v2285 = vmul.f32 %v1600, %v2259
  %v2286 = vmul.f32 %v1601, %v1999
  %v2287 = vmul.f32 %v1602, %v2001
  %v2288 = vmul.f32 %v1603, %v2088
  %v2289 = vmul.f32 %v1604, %v2090
  %v2290 = vmul.f32 %v1605, %v2177
  %v2291 = vmul.f32 %v1606, %v2179
  %v2292 = vmul.f32 %v1607, %v2264
  %v2293 = vmul.f32 %v1608, %v2005
  %v2294 = vmul.f32 %v1609, %v2007
  %v2295 = vmul.f32 %v1610, %v2094
  %v2296 = vmul.f32 %v1611, %v2096
  %v2297 = vmul.f32 %v1612, %v2183
  %v2298 = vmul.f32 %v1613, %v2185
  %v2299 = vmul.f32 %v1614, %v2269
  %v2300 = vadd.f32 %v2272, %v2279
  %v2301 = vadd.f32 %v2300, %v2286
  %v2302 = vsel %vm1898, %v2293, 0.0
  %v2303 = vadd.f32 %v2301, %v2302
  %v2304 = vrot.slane %v2303, 4
  %v2305 = vadd.f32 %v2303, %v2304
  %v2306 = vrot.slane %v2305, 2
  %v2307 = vadd.f32 %v2305, %v2306
  %v2308 = vrot.slane %v2307, 1
  %v2309 = vadd.f32 %v2307, %v2308
  %v2310 = vadd.f32 %v2273, %v2280
  %v2311 = vadd.f32 %v2310, %v2287
  %v2312 = vsel %vm1898, %v2294, 0.0
  %v2313 = vadd.f32 %v2311, %v2312
  %v2314 = vrot.slane %v2313, 4
  %v2315 = vadd.f32 %v2313, %v2314
  %v2316 = vrot.slane %v2315, 2
  %v2317 = vadd.f32 %v2315, %v2316
  %v2318 = vrot.slane %v2317, 1
  %v2319 = vadd.f32 %v2317, %v2318
  %v2320 = vadd.f32 %v2274, %v2281
  %v2321 = vadd.f32 %v2320, %v2288
  %v2322 = vsel %vm1898, %v2295, 0.0
  %v2323 = vadd.f32 %v2321, %v2322
  %v2324 = vrot.slane %v2323, 4
  %v2325 = vadd.f32 %v2323, %v2324
  %v2326 = vrot.slane %v2325, 2
  %v2327 = vadd.f32 %v2325, %v2326
  %v2328 = vrot.slane %v2327, 1
  %v2329 = vadd.f32 %v2327, %v2328
  %v2330 = vadd.f32 %v2275, %v2282
  %v2331 = vadd.f32 %v2330, %v2289
  %v2332 = vsel %vm1898, %v2296, 0.0
  %v2333 = vadd.f32 %v2331, %v2332
  %v2334 = vrot.slane %v2333, 4
  %v2335 = vadd.f32 %v2333, %v2334
  %v2336 = vrot.slane %v2335, 2
  %v2337 = vadd.f32 %v2335, %v2336
  %v2338 = vrot.slane %v2337, 1
  %v2339 = vadd.f32 %v2337, %v2338
  %v2340 = vadd.f32 %v2276, %v2283
  %v2341 = vadd.f32 %v2340, %v2290
  %v2342 = vsel %vm1898, %v2297, 0.0
  %v2343 = vadd.f32 %v2341, %v2342
  %v2344 = vrot.slane %v2343, 4
  %v2345 = vadd.f32 %v2343, %v2344
  %v2346 = vrot.slane %v2345, 2
  %v2347 = vadd.f32 %v2345, %v2346
  %v2348 = vrot.slane %v2347, 1
  %v2349 = vadd.f32 %v2347, %v2348
  %v2350 = vadd.f32 %v2277, %v2284
  %v2351 = vadd.f32 %v2350, %v2291
  %v2352 = vsel %vm1898, %v2298, 0.0
  %v2353 = vadd.f32 %v2351, %v2352
  %v2354 = vrot.slane %v2353, 4
  %v2355 = vadd.f32 %v2353, %v2354
  %v2356 = vrot.slane %v2355, 2
  %v2357 = vadd.f32 %v2355, %v2356
  %v2358 = vrot.slane %v2357, 1
  %v2359 = vadd.f32 %v2357, %v2358
  %vm2360 = vcmask 130048
  %v2361 = vsel %vm2360, %v2278, 0.0
  %v2362 = vsel %vm2360, %v2285, 0.0
  %v2363 = vadd.f32 %v2361, %v2362
  %v2364 = vsel %vm2360, %v2292, 0.0
  %v2365 = vadd.f32 %v2363, %v2364
  %vm2366 = vcmask 125952
  %v2367 = vsel %vm2366, %v2299, 0.0
  %v2368 = vadd.f32 %v2365, %v2367
  %v2369 = vrot.slane %v2368, 4
  %v2370 = vadd.f32 %v2368, %v2369
  %v2371 = vrot.slane %v2370, 2
  %v2372 = vadd.f32 %v2370, %v2371
  %v2373 = vrot.slane %v2372, 1
  %v2374 = vadd.f32 %v2372, %v2373
  %v2382 = vcombine.low %v2309, %v2319
  %v2383 = vcombine.low %v2329, %v2339
  %v2384 = vcombine.low %v2349, %v2359
  %v2386 = vunpack.c.l.s4 1966171168
  %v2387 = vunpack.c.0.s8 %v2386
  %v2388 = vlaneseq
  %v2389 = vshrl.u32 %v2388, 7
  %v2390 = vsub.s32 %v2387, %v2389
  %v2391 = vrot.slane %v2382, %v2390
  %v2393 = vunpack.c.l.s4 1966171168
  %v2394 = vunpack.c.0.s8 %v2393
  %v2395 = vlaneseq
  %v2396 = vshrl.u32 %v2395, 7
  %v2397 = vsub.s32 %v2394, %v2396
  %v2398 = vrot.slane %v2383, %v2397
  %v2400 = vunpack.c.l.s4 1966171168
  %v2401 = vunpack.c.0.s8 %v2400
  %v2402 = vlaneseq
  %v2403 = vshrl.u32 %v2402, 7
  %v2404 = vsub.s32 %v2401, %v2403
  %v2405 = vrot.slane %v2384, %v2404
  %v2407 = vunpack.c.l.s4 1966171168
  %v2408 = vunpack.c.0.s8 %v2407
  %v2409 = vlaneseq
  %v2410 = vshrl.u32 %v2409, 7
  %v2411 = vsub.s32 %v2408, %v2410
  %v2412 = vrot.slane %v2374, %v2411
  %v2413 = vcombine.low %v2391, %v2398
  %v2414 = vcombine.low %v2405, %v2412
  %v2416 = vunpack.c.l.s4 1966171168
  %v2417 = vunpack.c.0.s8 %v2416
  %v2418 = vlaneseq
  %v2419 = vshrl.u32 %v2418, 7
  %v2420 = vsub.s32 %v2417, %v2419
  %v2421 = vrot.slane %v2413, %v2420
  %v2423 = vunpack.c.l.s4 1966171168
  %v2424 = vunpack.c.0.s8 %v2423
  %v2425 = vlaneseq
  %v2426 = vshrl.u32 %v2425, 7
  %v2427 = vsub.s32 %v2424, %v2426
  %v2428 = vrot.slane %v2414, %v2427
  %v2429 = vcombine.low %v2421, %v2428
  %v2431 = vlaneseq
  %vm2432 = vcmp.ge.s32.totalorder %v2431, 0
  %vm2433 = vcmp.lt.s32.totalorder %v2431, 784
  %vm2434 = vmand %vm2432, %vm2433
  %2435 = vst.msk [vmem:[%s8] ss:$2 sm:$0x7f] %vm2434, %v2429
  %v2436 = vlaneseq
  %v2437 = vshrl.u32 %v2436, 7
  %v2438 = vsub.s32 1, %v2437
  %v2439 = vrot.slane %v1321, %v2438
  %v2440 = vlaneseq
  %v2441 = vshrl.u32 %v2440, 7
  %v2442 = vsub.s32 1, %v2441
  %v2443 = vrot.slane %v1322, %v2442
  %v2444 = vlaneseq
  %v2445 = vshrl.u32 %v2444, 7
  %v2446 = vsub.s32 1, %v2445
  %v2447 = vrot.slane %v1323, %v2446
  %v2448 = vlaneseq
  %v2449 = vshrl.u32 %v2448, 7
  %v2450 = vsub.s32 1, %v2449
  %v2451 = vrot.slane %v1324, %v2450
  %v2452 = vlaneseq
  %v2453 = vshrl.u32 %v2452, 7
  %v2454 = vsub.s32 1, %v2453
  %v2455 = vrot.slane %v1325, %v2454
  %v2456 = vlaneseq
  %v2457 = vshrl.u32 %v2456, 7
  %v2458 = vsub.s32 1, %v2457
  %v2459 = vrot.slane %v1326, %v2458
  %v2460 = vlaneseq
  %v2461 = vshrl.u32 %v2460, 7
  %v2462 = vsub.s32 1, %v2461
  %v2463 = vrot.slane %v1327, %v2462
  %vm2464 = vcmp.eq.f32.partialorder %v1317, %v2439
  %vm2465 = vcmp.eq.f32.partialorder %v1317, %v2443
  %vm2466 = vcmp.eq.f32.partialorder %v1317, %v2447
  %vm2467 = vcmp.eq.f32.partialorder %v1317, %v2451
  %vm2468 = vcmp.eq.f32.partialorder %v1317, %v2455
  %vm2469 = vcmp.eq.f32.partialorder %v1317, %v2459
  %vm2470 = vcmp.eq.f32.partialorder %v1317, %v2463
  %vm2471 = vcmp.eq.f32.partialorder %v1318, %v2439
  %vm2472 = vcmp.eq.f32.partialorder %v1318, %v2443
  %vm2473 = vcmp.eq.f32.partialorder %v1318, %v2447
  %vm2474 = vcmp.eq.f32.partialorder %v1318, %v2451
  %vm2475 = vcmp.eq.f32.partialorder %v1318, %v2455
  %vm2476 = vcmp.eq.f32.partialorder %v1318, %v2459
  %vm2477 = vcmp.eq.f32.partialorder %v1318, %v2463
  %vm2478 = vcmp.eq.f32.partialorder %v1319, %v2439
  %vm2479 = vcmp.eq.f32.partialorder %v1319, %v2443
  %vm2480 = vcmp.eq.f32.partialorder %v1319, %v2447
  %vm2481 = vcmp.eq.f32.partialorder %v1319, %v2451
  %vm2482 = vcmp.eq.f32.partialorder %v1319, %v2455
  %vm2483 = vcmp.eq.f32.partialorder %v1319, %v2459
  %vm2484 = vcmp.eq.f32.partialorder %v1319, %v2463
  %vm2485 = vcmp.eq.f32.partialorder %v1320, %v2439
  %vm2486 = vcmp.eq.f32.partialorder %v1320, %v2443
  %vm2487 = vcmp.eq.f32.partialorder %v1320, %v2447
  %vm2488 = vcmp.eq.f32.partialorder %v1320, %v2451
  %vm2489 = vcmp.eq.f32.partialorder %v1320, %v2455
  %vm2490 = vcmp.eq.f32.partialorder %v1320, %v2459
  %vm2491 = vcmp.eq.f32.partialorder %v1320, %v2463
  %v2492 = vlaneseq
  %v2493 = vshrl.u32 %v2492, 7
  %v2494 = vsub.s32 1, %v2493
  %v2495 = vrot.slane %v1405, %v2494
  %v2496 = vlaneseq
  %v2497 = vshrl.u32 %v2496, 7
  %v2498 = vsub.s32 1, %v2497
  %v2499 = vrot.slane %v1406, %v2498
  %v2500 = vlaneseq
  %v2501 = vshrl.u32 %v2500, 7
  %v2502 = vsub.s32 1, %v2501
  %v2503 = vrot.slane %v1407, %v2502
  %v2504 = vlaneseq
  %v2505 = vshrl.u32 %v2504, 7
  %v2506 = vsub.s32 1, %v2505
  %v2507 = vrot.slane %v1408, %v2506
  %v2508 = vlaneseq
  %v2509 = vshrl.u32 %v2508, 7
  %v2510 = vsub.s32 1, %v2509
  %v2511 = vrot.slane %v1409, %v2510
  %v2512 = vlaneseq
  %v2513 = vshrl.u32 %v2512, 7
  %v2514 = vsub.s32 1, %v2513
  %v2515 = vrot.slane %v1410, %v2514
  %v2516 = vlaneseq
  %v2517 = vshrl.u32 %v2516, 7
  %v2518 = vsub.s32 1, %v2517
  %v2519 = vrot.slane %v1411, %v2518
  %v2520 = vsel %vm2464, %v2495, 0.0
  %v2521 = vsel %vm2465, %v2499, 0.0
  %v2522 = vsel %vm2466, %v2503, 0.0
  %v2523 = vsel %vm2467, %v2507, 0.0
  %v2524 = vsel %vm2468, %v2511, 0.0
  %v2525 = vsel %vm2469, %v2515, 0.0
  %v2526 = vsel %vm2470, %v2519, 0.0
  %v2527 = vsel %vm2471, %v2495, 0.0
  %v2528 = vsel %vm2472, %v2499, 0.0
  %v2529 = vsel %vm2473, %v2503, 0.0
  %v2530 = vsel %vm2474, %v2507, 0.0
  %v2531 = vsel %vm2475, %v2511, 0.0
  %v2532 = vsel %vm2476, %v2515, 0.0
  %v2533 = vsel %vm2477, %v2519, 0.0
  %v2534 = vsel %vm2478, %v2495, 0.0
  %v2535 = vsel %vm2479, %v2499, 0.0
  %v2536 = vsel %vm2480, %v2503, 0.0
  %v2537 = vsel %vm2481, %v2507, 0.0
  %v2538 = vsel %vm2482, %v2511, 0.0
  %v2539 = vsel %vm2483, %v2515, 0.0
  %v2540 = vsel %vm2484, %v2519, 0.0
  %v2541 = vsel %vm2485, %v2495, 0.0
  %v2542 = vsel %vm2486, %v2499, 0.0
  %v2543 = vsel %vm2487, %v2503, 0.0
  %v2544 = vsel %vm2488, %v2507, 0.0
  %v2545 = vsel %vm2489, %v2511, 0.0
  %v2546 = vsel %vm2490, %v2515, 0.0
  %v2547 = vsel %vm2491, %v2519, 0.0
  %v2548 = vlaneseq
  %v2549 = vshrl.u32 %v2548, 7
  %v2550 = vsub.s32 1, %v2549
  %v2551 = vrot.slane %v1468, %v2550
  %v2552 = vlaneseq
  %v2553 = vshrl.u32 %v2552, 7
  %v2554 = vsub.s32 1, %v2553
  %v2555 = vrot.slane %v1469, %v2554
  %v2556 = vlaneseq
  %v2557 = vshrl.u32 %v2556, 7
  %v2558 = vsub.s32 1, %v2557
  %v2559 = vrot.slane %v1470, %v2558
  %v2560 = vlaneseq
  %v2561 = vshrl.u32 %v2560, 7
  %v2562 = vsub.s32 1, %v2561
  %v2563 = vrot.slane %v1471, %v2562
  %v2564 = vlaneseq
  %v2565 = vshrl.u32 %v2564, 7
  %v2566 = vsub.s32 1, %v2565
  %v2567 = vrot.slane %v1472, %v2566
  %v2568 = vlaneseq
  %v2569 = vshrl.u32 %v2568, 7
  %v2570 = vsub.s32 1, %v2569
  %v2571 = vrot.slane %v1473, %v2570
  %v2572 = vlaneseq
  %v2573 = vshrl.u32 %v2572, 7
  %v2574 = vsub.s32 1, %v2573
  %v2575 = vrot.slane %v1474, %v2574
  %vm2576 = vcmp.eq.f32.partialorder %v1317, %v2551
  %vm2577 = vcmp.eq.f32.partialorder %v1317, %v2555
  %vm2578 = vcmp.eq.f32.partialorder %v1317, %v2559
  %vm2579 = vcmp.eq.f32.partialorder %v1317, %v2563
  %vm2580 = vcmp.eq.f32.partialorder %v1317, %v2567
  %vm2581 = vcmp.eq.f32.partialorder %v1317, %v2571
  %vm2582 = vcmp.eq.f32.partialorder %v1317, %v2575
  %vm2583 = vcmp.eq.f32.partialorder %v1318, %v2551
  %vm2584 = vcmp.eq.f32.partialorder %v1318, %v2555
  %vm2585 = vcmp.eq.f32.partialorder %v1318, %v2559
  %vm2586 = vcmp.eq.f32.partialorder %v1318, %v2563
  %vm2587 = vcmp.eq.f32.partialorder %v1318, %v2567
  %vm2588 = vcmp.eq.f32.partialorder %v1318, %v2571
  %vm2589 = vcmp.eq.f32.partialorder %v1318, %v2575
  %vm2590 = vcmp.eq.f32.partialorder %v1319, %v2551
  %vm2591 = vcmp.eq.f32.partialorder %v1319, %v2555
  %vm2592 = vcmp.eq.f32.partialorder %v1319, %v2559
  %vm2593 = vcmp.eq.f32.partialorder %v1319, %v2563
  %vm2594 = vcmp.eq.f32.partialorder %v1319, %v2567
  %vm2595 = vcmp.eq.f32.partialorder %v1319, %v2571
  %vm2596 = vcmp.eq.f32.partialorder %v1319, %v2575
  %vm2597 = vcmp.eq.f32.partialorder %v1320, %v2551
  %vm2598 = vcmp.eq.f32.partialorder %v1320, %v2555
  %vm2599 = vcmp.eq.f32.partialorder %v1320, %v2559
  %vm2600 = vcmp.eq.f32.partialorder %v1320, %v2563
  %vm2601 = vcmp.eq.f32.partialorder %v1320, %v2567
  %vm2602 = vcmp.eq.f32.partialorder %v1320, %v2571
  %vm2603 = vcmp.eq.f32.partialorder %v1320, %v2575
  %v2604 = vlaneseq
  %v2605 = vshrl.u32 %v2604, 7
  %v2606 = vsub.s32 1, %v2605
  %v2607 = vrot.slane %v1328, %v2606
  %v2608 = vlaneseq
  %v2609 = vshrl.u32 %v2608, 7
  %v2610 = vsub.s32 1, %v2609
  %v2611 = vrot.slane %v1329, %v2610
  %v2612 = vlaneseq
  %v2613 = vshrl.u32 %v2612, 7
  %v2614 = vsub.s32 1, %v2613
  %v2615 = vrot.slane %v1330, %v2614
  %v2616 = vlaneseq
  %v2617 = vshrl.u32 %v2616, 7
  %v2618 = vsub.s32 1, %v2617
  %v2619 = vrot.slane %v1331, %v2618
  %v2620 = vlaneseq
  %v2621 = vshrl.u32 %v2620, 7
  %v2622 = vsub.s32 1, %v2621
  %v2623 = vrot.slane %v1332, %v2622
  %v2624 = vlaneseq
  %v2625 = vshrl.u32 %v2624, 7
  %v2626 = vsub.s32 1, %v2625
  %v2627 = vrot.slane %v1333, %v2626
  %v2628 = vlaneseq
  %v2629 = vshrl.u32 %v2628, 7
  %v2630 = vsub.s32 1, %v2629
  %v2631 = vrot.slane %v1334, %v2630
  %v2632 = vsel %vm2576, %v2607, 0.0
  %v2633 = vsel %vm2577, %v2611, 0.0
  %v2634 = vsel %vm2578, %v2615, 0.0
  %v2635 = vsel %vm2579, %v2619, 0.0
  %v2636 = vsel %vm2580, %v2623, 0.0
  %v2637 = vsel %vm2581, %v2627, 0.0
  %v2638 = vsel %vm2582, %v2631, 0.0
  %v2639 = vsel %vm2583, %v2607, 0.0
  %v2640 = vsel %vm2584, %v2611, 0.0
  %v2641 = vsel %vm2585, %v2615, 0.0
  %v2642 = vsel %vm2586, %v2619, 0.0
  %v2643 = vsel %vm2587, %v2623, 0.0
  %v2644 = vsel %vm2588, %v2627, 0.0
  %v2645 = vsel %vm2589, %v2631, 0.0
  %v2646 = vsel %vm2590, %v2607, 0.0
  %v2647 = vsel %vm2591, %v2611, 0.0
  %v2648 = vsel %vm2592, %v2615, 0.0
  %v2649 = vsel %vm2593, %v2619, 0.0
  %v2650 = vsel %vm2594, %v2623, 0.0
  %v2651 = vsel %vm2595, %v2627, 0.0
  %v2652 = vsel %vm2596, %v2631, 0.0
  %v2653 = vsel %vm2597, %v2607, 0.0
  %v2654 = vsel %vm2598, %v2611, 0.0
  %v2655 = vsel %vm2599, %v2615, 0.0
  %v2656 = vsel %vm2600, %v2619, 0.0
  %v2657 = vsel %vm2601, %v2623, 0.0
  %v2658 = vsel %vm2602, %v2627, 0.0
  %v2659 = vsel %vm2603, %v2631, 0.0
  %v2660 = vadd.f32 %v2520, %v2632
  %v2661 = vadd.f32 %v2521, %v2633
  %v2662 = vadd.f32 %v2522, %v2634
  %v2663 = vadd.f32 %v2523, %v2635
  %v2664 = vadd.f32 %v2524, %v2636
  %v2665 = vadd.f32 %v2525, %v2637
  %v2666 = vadd.f32 %v2526, %v2638
  %v2667 = vadd.f32 %v2527, %v2639
  %v2668 = vadd.f32 %v2528, %v2640
  %v2669 = vadd.f32 %v2529, %v2641
  %v2670 = vadd.f32 %v2530, %v2642
  %v2671 = vadd.f32 %v2531, %v2643
  %v2672 = vadd.f32 %v2532, %v2644
  %v2673 = vadd.f32 %v2533, %v2645
  %v2674 = vadd.f32 %v2534, %v2646
  %v2675 = vadd.f32 %v2535, %v2647
  %v2676 = vadd.f32 %v2536, %v2648
  %v2677 = vadd.f32 %v2537, %v2649
  %v2678 = vadd.f32 %v2538, %v2650
  %v2679 = vadd.f32 %v2539, %v2651
  %v2680 = vadd.f32 %v2540, %v2652
  %v2681 = vadd.f32 %v2541, %v2653
  %v2682 = vadd.f32 %v2542, %v2654
  %v2683 = vadd.f32 %v2543, %v2655
  %v2684 = vadd.f32 %v2544, %v2656
  %v2685 = vadd.f32 %v2545, %v2657
  %v2686 = vadd.f32 %v2546, %v2658
  %v2687 = vadd.f32 %v2547, %v2659
  %v2688 = vlaneseq
  %v2689 = vshrl.u32 %v2688, 7
  %v2690 = vsub.s32 1, %v2689
  %v2691 = vrot.slane %v1335, %v2690
  %v2692 = vlaneseq
  %v2693 = vshrl.u32 %v2692, 7
  %v2694 = vsub.s32 1, %v2693
  %v2695 = vrot.slane %v1336, %v2694
  %v2696 = vlaneseq
  %v2697 = vshrl.u32 %v2696, 7
  %v2698 = vsub.s32 1, %v2697
  %v2699 = vrot.slane %v1337, %v2698
  %v2700 = vlaneseq
  %v2701 = vshrl.u32 %v2700, 7
  %v2702 = vsub.s32 1, %v2701
  %v2703 = vrot.slane %v1338, %v2702
  %v2704 = vlaneseq
  %v2705 = vshrl.u32 %v2704, 7
  %v2706 = vsub.s32 1, %v2705
  %v2707 = vrot.slane %v1339, %v2706
  %v2708 = vlaneseq
  %v2709 = vshrl.u32 %v2708, 7
  %v2710 = vsub.s32 1, %v2709
  %v2711 = vrot.slane %v1340, %v2710
  %v2712 = vlaneseq
  %v2713 = vshrl.u32 %v2712, 7
  %v2714 = vsub.s32 1, %v2713
  %v2715 = vrot.slane %v1341, %v2714
  %vm2716 = vcmp.eq.f32.partialorder %v1317, %v2691
  %vm2717 = vcmp.eq.f32.partialorder %v1317, %v2695
  %vm2718 = vcmp.eq.f32.partialorder %v1317, %v2699
  %vm2719 = vcmp.eq.f32.partialorder %v1317, %v2703
  %vm2720 = vcmp.eq.f32.partialorder %v1317, %v2707
  %vm2721 = vcmp.eq.f32.partialorder %v1317, %v2711
  %vm2722 = vcmp.eq.f32.partialorder %v1317, %v2715
  %vm2723 = vcmp.eq.f32.partialorder %v1318, %v2691
  %vm2724 = vcmp.eq.f32.partialorder %v1318, %v2695
  %vm2725 = vcmp.eq.f32.partialorder %v1318, %v2699
  %vm2726 = vcmp.eq.f32.partialorder %v1318, %v2703
  %vm2727 = vcmp.eq.f32.partialorder %v1318, %v2707
  %vm2728 = vcmp.eq.f32.partialorder %v1318, %v2711
  %vm2729 = vcmp.eq.f32.partialorder %v1318, %v2715
  %vm2730 = vcmp.eq.f32.partialorder %v1319, %v2691
  %vm2731 = vcmp.eq.f32.partialorder %v1319, %v2695
  %vm2732 = vcmp.eq.f32.partialorder %v1319, %v2699
  %vm2733 = vcmp.eq.f32.partialorder %v1319, %v2703
  %vm2734 = vcmp.eq.f32.partialorder %v1319, %v2707
  %vm2735 = vcmp.eq.f32.partialorder %v1319, %v2711
  %vm2736 = vcmp.eq.f32.partialorder %v1319, %v2715
  %vm2737 = vcmp.eq.f32.partialorder %v1320, %v2691
  %vm2738 = vcmp.eq.f32.partialorder %v1320, %v2695
  %vm2739 = vcmp.eq.f32.partialorder %v1320, %v2699
  %vm2740 = vcmp.eq.f32.partialorder %v1320, %v2703
  %vm2741 = vcmp.eq.f32.partialorder %v1320, %v2707
  %vm2742 = vcmp.eq.f32.partialorder %v1320, %v2711
  %vm2743 = vcmp.eq.f32.partialorder %v1320, %v2715
  %v2744 = vlaneseq
  %v2745 = vshrl.u32 %v2744, 7
  %v2746 = vsub.s32 1, %v2745
  %v2747 = vrot.slane %v1671, %v2746
  %v2748 = vlaneseq
  %v2749 = vshrl.u32 %v2748, 7
  %v2750 = vsub.s32 1, %v2749
  %v2751 = vrot.slane %v1672, %v2750
  %v2752 = vlaneseq
  %v2753 = vshrl.u32 %v2752, 7
  %v2754 = vsub.s32 1, %v2753
  %v2755 = vrot.slane %v1673, %v2754
  %v2756 = vlaneseq
  %v2757 = vshrl.u32 %v2756, 7
  %v2758 = vsub.s32 1, %v2757
  %v2759 = vrot.slane %v1674, %v2758
  %v2760 = vlaneseq
  %v2761 = vshrl.u32 %v2760, 7
  %v2762 = vsub.s32 1, %v2761
  %v2763 = vrot.slane %v1675, %v2762
  %v2764 = vlaneseq
  %v2765 = vshrl.u32 %v2764, 7
  %v2766 = vsub.s32 1, %v2765
  %v2767 = vrot.slane %v1676, %v2766
  %v2768 = vlaneseq
  %v2769 = vshrl.u32 %v2768, 7
  %v2770 = vsub.s32 1, %v2769
  %v2771 = vrot.slane %v1677, %v2770
  %v2772 = vsel %vm2716, %v2747, 0.0
  %v2773 = vsel %vm2717, %v2751, 0.0
  %v2774 = vsel %vm2718, %v2755, 0.0
  %v2775 = vsel %vm2719, %v2759, 0.0
  %v2776 = vsel %vm2720, %v2763, 0.0
  %v2777 = vsel %vm2721, %v2767, 0.0
  %v2778 = vsel %vm2722, %v2771, 0.0
  %v2779 = vsel %vm2723, %v2747, 0.0
  %v2780 = vsel %vm2724, %v2751, 0.0
  %v2781 = vsel %vm2725, %v2755, 0.0
  %v2782 = vsel %vm2726, %v2759, 0.0
  %v2783 = vsel %vm2727, %v2763, 0.0
  %v2784 = vsel %vm2728, %v2767, 0.0
  %v2785 = vsel %vm2729, %v2771, 0.0
  %v2786 = vsel %vm2730, %v2747, 0.0
  %v2787 = vsel %vm2731, %v2751, 0.0
  %v2788 = vsel %vm2732, %v2755, 0.0
  %v2789 = vsel %vm2733, %v2759, 0.0
  %v2790 = vsel %vm2734, %v2763, 0.0
  %v2791 = vsel %vm2735, %v2767, 0.0
  %v2792 = vsel %vm2736, %v2771, 0.0
  %v2793 = vsel %vm2737, %v2747, 0.0
  %v2794 = vsel %vm2738, %v2751, 0.0
  %v2795 = vsel %vm2739, %v2755, 0.0
  %v2796 = vsel %vm2740, %v2759, 0.0
  %v2797 = vsel %vm2741, %v2763, 0.0
  %v2798 = vsel %vm2742, %v2767, 0.0
  %v2799 = vsel %vm2743, %v2771, 0.0
  %v2800 = vlaneseq
  %v2801 = vshrl.u32 %v2800, 7
  %v2802 = vsub.s32 1, %v2801
  %v2803 = vrot.slane %v1734, %v2802
  %v2804 = vlaneseq
  %v2805 = vshrl.u32 %v2804, 7
  %v2806 = vsub.s32 1, %v2805
  %v2807 = vrot.slane %v1735, %v2806
  %v2808 = vlaneseq
  %v2809 = vshrl.u32 %v2808, 7
  %v2810 = vsub.s32 1, %v2809
  %v2811 = vrot.slane %v1736, %v2810
  %v2812 = vlaneseq
  %v2813 = vshrl.u32 %v2812, 7
  %v2814 = vsub.s32 1, %v2813
  %v2815 = vrot.slane %v1737, %v2814
  %v2816 = vlaneseq
  %v2817 = vshrl.u32 %v2816, 7
  %v2818 = vsub.s32 1, %v2817
  %v2819 = vrot.slane %v1738, %v2818
  %v2820 = vlaneseq
  %v2821 = vshrl.u32 %v2820, 7
  %v2822 = vsub.s32 1, %v2821
  %v2823 = vrot.slane %v1739, %v2822
  %v2824 = vlaneseq
  %v2825 = vshrl.u32 %v2824, 7
  %v2826 = vsub.s32 1, %v2825
  %v2827 = vrot.slane %v1740, %v2826
  %vm2828 = vcmp.eq.f32.partialorder %v1317, %v2803
  %vm2829 = vcmp.eq.f32.partialorder %v1317, %v2807
  %vm2830 = vcmp.eq.f32.partialorder %v1317, %v2811
  %vm2831 = vcmp.eq.f32.partialorder %v1317, %v2815
  %vm2832 = vcmp.eq.f32.partialorder %v1317, %v2819
  %vm2833 = vcmp.eq.f32.partialorder %v1317, %v2823
  %vm2834 = vcmp.eq.f32.partialorder %v1317, %v2827
  %vm2835 = vcmp.eq.f32.partialorder %v1318, %v2803
  %vm2836 = vcmp.eq.f32.partialorder %v1318, %v2807
  %vm2837 = vcmp.eq.f32.partialorder %v1318, %v2811
  %vm2838 = vcmp.eq.f32.partialorder %v1318, %v2815
  %vm2839 = vcmp.eq.f32.partialorder %v1318, %v2819
  %vm2840 = vcmp.eq.f32.partialorder %v1318, %v2823
  %vm2841 = vcmp.eq.f32.partialorder %v1318, %v2827
  %vm2842 = vcmp.eq.f32.partialorder %v1319, %v2803
  %vm2843 = vcmp.eq.f32.partialorder %v1319, %v2807
  %vm2844 = vcmp.eq.f32.partialorder %v1319, %v2811
  %vm2845 = vcmp.eq.f32.partialorder %v1319, %v2815
  %vm2846 = vcmp.eq.f32.partialorder %v1319, %v2819
  %vm2847 = vcmp.eq.f32.partialorder %v1319, %v2823
  %vm2848 = vcmp.eq.f32.partialorder %v1319, %v2827
  %vm2849 = vcmp.eq.f32.partialorder %v1320, %v2803
  %vm2850 = vcmp.eq.f32.partialorder %v1320, %v2807
  %vm2851 = vcmp.eq.f32.partialorder %v1320, %v2811
  %vm2852 = vcmp.eq.f32.partialorder %v1320, %v2815
  %vm2853 = vcmp.eq.f32.partialorder %v1320, %v2819
  %vm2854 = vcmp.eq.f32.partialorder %v1320, %v2823
  %vm2855 = vcmp.eq.f32.partialorder %v1320, %v2827
  %v2856 = vlaneseq
  %v2857 = vshrl.u32 %v2856, 7
  %v2858 = vsub.s32 1, %v2857
  %v2859 = vrot.slane %v1342, %v2858
  %v2860 = vlaneseq
  %v2861 = vshrl.u32 %v2860, 7
  %v2862 = vsub.s32 1, %v2861
  %v2863 = vrot.slane %v1343, %v2862
  %v2864 = vlaneseq
  %v2865 = vshrl.u32 %v2864, 7
  %v2866 = vsub.s32 1, %v2865
  %v2867 = vrot.slane %v1344, %v2866
  %v2868 = vlaneseq
  %v2869 = vshrl.u32 %v2868, 7
  %v2870 = vsub.s32 1, %v2869
  %v2871 = vrot.slane %v1345, %v2870
  %v2872 = vlaneseq
  %v2873 = vshrl.u32 %v2872, 7
  %v2874 = vsub.s32 1, %v2873
  %v2875 = vrot.slane %v1346, %v2874
  %v2876 = vlaneseq
  %v2877 = vshrl.u32 %v2876, 7
  %v2878 = vsub.s32 1, %v2877
  %v2879 = vrot.slane %v1347, %v2878
  %v2880 = vlaneseq
  %v2881 = vshrl.u32 %v2880, 7
  %v2882 = vsub.s32 1, %v2881
  %v2883 = vrot.slane %v1348, %v2882
  %v2884 = vsel %vm2828, %v2859, 0.0
  %v2885 = vsel %vm2829, %v2863, 0.0
  %v2886 = vsel %vm2830, %v2867, 0.0
  %v2887 = vsel %vm2831, %v2871, 0.0
  %v2888 = vsel %vm2832, %v2875, 0.0
  %v2889 = vsel %vm2833, %v2879, 0.0
  %v2890 = vsel %vm2834, %v2883, 0.0
  %v2891 = vsel %vm2835, %v2859, 0.0
  %v2892 = vsel %vm2836, %v2863, 0.0
  %v2893 = vsel %vm2837, %v2867, 0.0
  %v2894 = vsel %vm2838, %v2871, 0.0
  %v2895 = vsel %vm2839, %v2875, 0.0
  %v2896 = vsel %vm2840, %v2879, 0.0
  %v2897 = vsel %vm2841, %v2883, 0.0
  %v2898 = vsel %vm2842, %v2859, 0.0
  %v2899 = vsel %vm2843, %v2863, 0.0
  %v2900 = vsel %vm2844, %v2867, 0.0
  %v2901 = vsel %vm2845, %v2871, 0.0
  %v2902 = vsel %vm2846, %v2875, 0.0
  %v2903 = vsel %vm2847, %v2879, 0.0
  %v2904 = vsel %vm2848, %v2883, 0.0
  %v2905 = vsel %vm2849, %v2859, 0.0
  %v2906 = vsel %vm2850, %v2863, 0.0
  %v2907 = vsel %vm2851, %v2867, 0.0
  %v2908 = vsel %vm2852, %v2871, 0.0
  %v2909 = vsel %vm2853, %v2875, 0.0
  %v2910 = vsel %vm2854, %v2879, 0.0
  %v2911 = vsel %vm2855, %v2883, 0.0
  %v2912 = vadd.f32 %v2772, %v2884
  %v2913 = vadd.f32 %v2773, %v2885
  %v2914 = vadd.f32 %v2774, %v2886
  %v2915 = vadd.f32 %v2775, %v2887
  %v2916 = vadd.f32 %v2776, %v2888
  %v2917 = vadd.f32 %v2777, %v2889
  %v2918 = vadd.f32 %v2778, %v2890
  %v2919 = vadd.f32 %v2779, %v2891
  %v2920 = vadd.f32 %v2780, %v2892
  %v2921 = vadd.f32 %v2781, %v2893
  %v2922 = vadd.f32 %v2782, %v2894
  %v2923 = vadd.f32 %v2783, %v2895
  %v2924 = vadd.f32 %v2784, %v2896
  %v2925 = vadd.f32 %v2785, %v2897
  %v2926 = vadd.f32 %v2786, %v2898
  %v2927 = vadd.f32 %v2787, %v2899
  %v2928 = vadd.f32 %v2788, %v2900
  %v2929 = vadd.f32 %v2789, %v2901
  %v2930 = vadd.f32 %v2790, %v2902
  %v2931 = vadd.f32 %v2791, %v2903
  %v2932 = vadd.f32 %v2792, %v2904
  %v2933 = vadd.f32 %v2793, %v2905
  %v2934 = vadd.f32 %v2794, %v2906
  %v2935 = vadd.f32 %v2795, %v2907
  %v2936 = vadd.f32 %v2796, %v2908
  %v2937 = vadd.f32 %v2797, %v2909
  %v2938 = vadd.f32 %v2798, %v2910
  %v2939 = vadd.f32 %v2799, %v2911
  %s2940 = scalar_lea.vmem %s7, 32
  %v2941 = vld [vmem:[%s2940] sm:$0xff]
  %v2942 = vld [vmem:[%s2940 + $0x8] sm:$0xff]
  %v2943 = vld [vmem:[%s2940 + $0x10] sm:$0xff]
  %v2944 = vld [vmem:[%s2940 + $0x18] sm:$0xf]
  %v2946 = vsel %vm1885, %v2941, 0
  %v2949 = vsel %vm1885, %v2942, 0
  %v2952 = vsel %vm1885, %v2943, 0
  %v2955 = vsel %vm1885, %v2944, 0
  %v2958 = vsel %vm1898, %v2933, 0
  %v2961 = vsel %vm1898, %v2934, 0
  %v2964 = vsel %vm1898, %v2935, 0
  %v2967 = vsel %vm1898, %v2936, 0
  %v2970 = vsel %vm1898, %v2937, 0
  %v2973 = vsel %vm1898, %v2938, 0
  %v2976 = vsel %vm1898, %v2939, 0
  %2978 = vmatprep.subr.mxu0 %v2913
  %2979 = vmatpush1.msra.mxu0 %v2912
  %2980 = vmatprep.subr.mxu0 %v2920
  %2981 = vmatpush1.msra.mxu0 %v2919
  %2982 = vmatprep.subr.mxu0 %v2927
  %2983 = vmatpush1.msra.mxu0 %v2926
  %2984 = vmatprep.subr.mxu0 %v2961
  %2985 = vmatpush1.msra.mxu0 %v2958
  %2986 = vmatprep.subr.mxu0 0.0
  %2987 = vmatpush1.msra.mxu0 0.0
  %2988 = vmatprep.subr.mxu0 0.0
  %2989 = vmatpush1.msra.mxu0 0.0
  %2990 = vmatprep.subr.mxu0 0.0
  %2991 = vmatpush1.msra.mxu0 0.0
  %2992 = vmatprep.subr.mxu0 0.0
  %2993 = vmatpush1.msra.mxu0 0.0
  %2994 = vmatprep.subr.mxu0 0.0
  %2995 = vmatpush1.msra.mxu0 0.0
  %2996 = vmatprep.subr.mxu0 0.0
  %2997 = vmatpush1.msra.mxu0 0.0
  %2998 = vmatprep.subr.mxu0 0.0
  %2999 = vmatpush1.msra.mxu0 0.0
  %3000 = vmatprep.subr.mxu0 0.0
  %3001 = vmatpush1.msra.mxu0 0.0
  %3002 = vmatprep.subr.mxu0 0.0
  %3003 = vmatpush1.msra.mxu0 0.0
  %3004 = vmatprep.subr.mxu0 0.0
  %3005 = vmatpush1.msra.mxu0 0.0
  %3006 = vmatprep.subr.mxu0 0.0
  %3007 = vmatpush1.msra.mxu0 0.0
  %3008 = vmatprep.subr.mxu0 0.0
  %3009 = vmatpush1.msra.mxu0 0.0
  %3010 = vmatprep.subr.mxu0 0.0
  %3011 = vmatpush1.msra.mxu0 0.0
  %3012 = vmatprep.subr.mxu0 0.0
  %3013 = vmatpush1.msra.mxu0 0.0
  %3014 = vmatprep.subr.mxu0 0.0
  %3015 = vmatpush1.msra.mxu0 0.0
  %3016 = vmatprep.subr.mxu0 0.0
  %3017 = vmatpush1.msra.mxu0 0.0
  %3018 = vmatprep.subr.mxu0 0.0
  %3019 = vmatpush1.msra.mxu0 0.0
  %3020 = vmatprep.subr.mxu0 0.0
  %3021 = vmatpush1.msra.mxu0 0.0
  %3022 = vmatprep.subr.mxu0 0.0
  %3023 = vmatpush1.msra.mxu0 0.0
  %3024 = vmatprep.subr.mxu0 0.0
  %3025 = vmatpush1.msra.mxu0 0.0
  %3026 = vmatprep.subr.mxu0 0.0
  %3027 = vmatpush1.msra.mxu0 0.0
  %3028 = vmatprep.subr.mxu0 0.0
  %3029 = vmatpush1.msra.mxu0 0.0
  %3030 = vmatprep.subr.mxu0 0.0
  %3031 = vmatpush1.msra.mxu0 0.0
  %3032 = vmatprep.subr.mxu0 0.0
  %3033 = vmatpush1.msra.mxu0 0.0
  %3034 = vmatprep.subr.mxu0 0.0
  %3035 = vmatpush1.msra.mxu0 0.0
  %3036 = vmatprep.subr.mxu0 0.0
  %3037 = vmatpush1.msra.mxu0 0.0
  %3038 = vmatprep.subr.mxu0 0.0
  %3039 = vmatpush1.msra.mxu0 0.0
  %3040 = vmatprep.subr.mxu0 0.0
  %3041 = vmatpush1.msra.mxu0 0.0
  %3042 = vmatprep.mubr.f32.mxu0 0.0
  %3043 = vmatmul.mubr.f32.gmra.mrb[0].mxu0 %v2946
  %v3044 = vpop.f32.mrb[0].mxu0
  %v3045 = vadd.f32 0.0, %v3044
  %v3046 = vpop.f32.mrb[0].mxu0
  %v3047 = vadd.f32 0.0, %v3046
  %3048 = vmatprep.mubr.f32.mxu0 0.0
  %3049 = vmatmul.mubr.f32.gmra.mrb[0].mxu0 %v2949
  %v3050 = vpop.f32.mrb[0].mxu0
  %v3051 = vadd.f32 0.0, %v3050
  %v3052 = vpop.f32.mrb[0].mxu0
  %v3053 = vadd.f32 0.0, %v3052
  %3054 = vmatprep.mubr.f32.mxu0 0.0
  %3055 = vmatmul.mubr.f32.gmra.mrb[0].mxu0 %v2952
  %v3056 = vpop.f32.mrb[0].mxu0
  %v3057 = vadd.f32 0.0, %v3056
  %v3058 = vpop.f32.mrb[0].mxu0
  %v3059 = vadd.f32 0.0, %v3058
  %3060 = vmatprep.mubr.f32.mxu0 0.0
  %3061 = vmatmul.mubr.f32.gmra.mrb[0].mxu0 %v2955
  %v3062 = vpop.f32.mrb[0].mxu0
  %v3063 = vadd.f32 0.0, %v3062
  %v3064 = vpop.f32.mrb[0].mxu0
  %v3065 = vadd.f32 0.0, %v3064
  %3066 = vdwg.mxu0
  %3067 = vmatprep.subr.mxu0 %v2915
  %3068 = vmatpush1.msra.mxu0 %v2914
  %3069 = vmatprep.subr.mxu0 %v2922
  %3070 = vmatpush1.msra.mxu0 %v2921
  %3071 = vmatprep.subr.mxu0 %v2929
  %3072 = vmatpush1.msra.mxu0 %v2928
  %3073 = vmatprep.subr.mxu0 %v2967
  %3074 = vmatpush1.msra.mxu0 %v2964
  %3075 = vmatprep.subr.mxu0 0.0
  %3076 = vmatpush1.msra.mxu0 0.0
  %3077 = vmatprep.subr.mxu0 0.0
  %3078 = vmatpush1.msra.mxu0 0.0
  %3079 = vmatprep.subr.mxu0 0.0
  %3080 = vmatpush1.msra.mxu0 0.0
  %3081 = vmatprep.subr.mxu0 0.0
  %3082 = vmatpush1.msra.mxu0 0.0
  %3083 = vmatprep.subr.mxu0 0.0
  %3084 = vmatpush1.msra.mxu0 0.0
  %3085 = vmatprep.subr.mxu0 0.0
  %3086 = vmatpush1.msra.mxu0 0.0
  %3087 = vmatprep.subr.mxu0 0.0
  %3088 = vmatpush1.msra.mxu0 0.0
  %3089 = vmatprep.subr.mxu0 0.0
  %3090 = vmatpush1.msra.mxu0 0.0
  %3091 = vmatprep.subr.mxu0 0.0
  %3092 = vmatpush1.msra.mxu0 0.0
  %3093 = vmatprep.subr.mxu0 0.0
  %3094 = vmatpush1.msra.mxu0 0.0
  %3095 = vmatprep.subr.mxu0 0.0
  %3096 = vmatpush1.msra.mxu0 0.0
  %3097 = vmatprep.subr.mxu0 0.0
  %3098 = vmatpush1.msra.mxu0 0.0
  %3099 = vmatprep.subr.mxu0 0.0
  %3100 = vmatpush1.msra.mxu0 0.0
  %3101 = vmatprep.subr.mxu0 0.0
  %3102 = vmatpush1.msra.mxu0 0.0
  %3103 = vmatprep.subr.mxu0 0.0
  %3104 = vmatpush1.msra.mxu0 0.0
  %3105 = vmatprep.subr.mxu0 0.0
  %3106 = vmatpush1.msra.mxu0 0.0
  %3107 = vmatprep.subr.mxu0 0.0
  %3108 = vmatpush1.msra.mxu0 0.0
  %3109 = vmatprep.subr.mxu0 0.0
  %3110 = vmatpush1.msra.mxu0 0.0
  %3111 = vmatprep.subr.mxu0 0.0
  %3112 = vmatpush1.msra.mxu0 0.0
  %3113 = vmatprep.subr.mxu0 0.0
  %3114 = vmatpush1.msra.mxu0 0.0
  %3115 = vmatprep.subr.mxu0 0.0
  %3116 = vmatpush1.msra.mxu0 0.0
  %3117 = vmatprep.subr.mxu0 0.0
  %3118 = vmatpush1.msra.mxu0 0.0
  %3119 = vmatprep.subr.mxu0 0.0
  %3120 = vmatpush1.msra.mxu0 0.0
  %3121 = vmatprep.subr.mxu0 0.0
  %3122 = vmatpush1.msra.mxu0 0.0
  %3123 = vmatprep.subr.mxu0 0.0
  %3124 = vmatpush1.msra.mxu0 0.0
  %3125 = vmatprep.subr.mxu0 0.0
  %3126 = vmatpush1.msra.mxu0 0.0
  %3127 = vmatprep.subr.mxu0 0.0
  %3128 = vmatpush1.msra.mxu0 0.0
  %3129 = vmatprep.subr.mxu0 0.0
  %3130 = vmatpush1.msra.mxu0 0.0
  %3131 = vmatprep.mubr.f32.mxu0 0.0
  %3132 = vmatmul.mubr.f32.gmra.mrb[0].mxu0 %v2946
  %v3133 = vpop.f32.mrb[0].mxu0
  %v3134 = vadd.f32 0.0, %v3133
  %v3135 = vpop.f32.mrb[0].mxu0
  %v3136 = vadd.f32 0.0, %v3135
  %3137 = vmatprep.mubr.f32.mxu0 0.0
  %3138 = vmatmul.mubr.f32.gmra.mrb[0].mxu0 %v2949
  %v3139 = vpop.f32.mrb[0].mxu0
  %v3140 = vadd.f32 0.0, %v3139
  %v3141 = vpop.f32.mrb[0].mxu0
  %v3142 = vadd.f32 0.0, %v3141
  %3143 = vmatprep.mubr.f32.mxu0 0.0
  %3144 = vmatmul.mubr.f32.gmra.mrb[0].mxu0 %v2952
  %v3145 = vpop.f32.mrb[0].mxu0
  %v3146 = vadd.f32 0.0, %v3145
  %v3147 = vpop.f32.mrb[0].mxu0
  %v3148 = vadd.f32 0.0, %v3147
  %3149 = vmatprep.mubr.f32.mxu0 0.0
  %3150 = vmatmul.mubr.f32.gmra.mrb[0].mxu0 %v2955
  %v3151 = vpop.f32.mrb[0].mxu0
  %v3152 = vadd.f32 0.0, %v3151
  %v3153 = vpop.f32.mrb[0].mxu0
  %v3154 = vadd.f32 0.0, %v3153
  %3155 = vdwg.mxu0
  %3156 = vmatprep.subr.mxu0 %v2917
  %3157 = vmatpush1.msra.mxu0 %v2916
  %3158 = vmatprep.subr.mxu0 %v2924
  %3159 = vmatpush1.msra.mxu0 %v2923
  %3160 = vmatprep.subr.mxu0 %v2931
  %3161 = vmatpush1.msra.mxu0 %v2930
  %3162 = vmatprep.subr.mxu0 %v2973
  %3163 = vmatpush1.msra.mxu0 %v2970
  %3164 = vmatprep.subr.mxu0 0.0
  %3165 = vmatpush1.msra.mxu0 0.0
  %3166 = vmatprep.subr.mxu0 0.0
  %3167 = vmatpush1.msra.mxu0 0.0
  %3168 = vmatprep.subr.mxu0 0.0
  %3169 = vmatpush1.msra.mxu0 0.0
  %3170 = vmatprep.subr.mxu0 0.0
  %3171 = vmatpush1.msra.mxu0 0.0
  %3172 = vmatprep.subr.mxu0 0.0
  %3173 = vmatpush1.msra.mxu0 0.0
  %3174 = vmatprep.subr.mxu0 0.0
  %3175 = vmatpush1.msra.mxu0 0.0
  %3176 = vmatprep.subr.mxu0 0.0
  %3177 = vmatpush1.msra.mxu0 0.0
  %3178 = vmatprep.subr.mxu0 0.0
  %3179 = vmatpush1.msra.mxu0 0.0
  %3180 = vmatprep.subr.mxu0 0.0
  %3181 = vmatpush1.msra.mxu0 0.0
  %3182 = vmatprep.subr.mxu0 0.0
  %3183 = vmatpush1.msra.mxu0 0.0
  %3184 = vmatprep.subr.mxu0 0.0
  %3185 = vmatpush1.msra.mxu0 0.0
  %3186 = vmatprep.subr.mxu0 0.0
  %3187 = vmatpush1.msra.mxu0 0.0
  %3188 = vmatprep.subr.mxu0 0.0
  %3189 = vmatpush1.msra.mxu0 0.0
  %3190 = vmatprep.subr.mxu0 0.0
  %3191 = vmatpush1.msra.mxu0 0.0
  %3192 = vmatprep.subr.mxu0 0.0
  %3193 = vmatpush1.msra.mxu0 0.0
  %3194 = vmatprep.subr.mxu0 0.0
  %3195 = vmatpush1.msra.mxu0 0.0
  %3196 = vmatprep.subr.mxu0 0.0
  %3197 = vmatpush1.msra.mxu0 0.0
  %3198 = vmatprep.subr.mxu0 0.0
  %3199 = vmatpush1.msra.mxu0 0.0
  %3200 = vmatprep.subr.mxu0 0.0
  %3201 = vmatpush1.msra.mxu0 0.0
  %3202 = vmatprep.subr.mxu0 0.0
  %3203 = vmatpush1.msra.mxu0 0.0
  %3204 = vmatprep.subr.mxu0 0.0
  %3205 = vmatpush1.msra.mxu0 0.0
  %3206 = vmatprep.subr.mxu0 0.0
  %3207 = vmatpush1.msra.mxu0 0.0
  %3208 = vmatprep.subr.mxu0 0.0
  %3209 = vmatpush1.msra.mxu0 0.0
  %3210 = vmatprep.subr.mxu0 0.0
  %3211 = vmatpush1.msra.mxu0 0.0
  %3212 = vmatprep.subr.mxu0 0.0
  %3213 = vmatpush1.msra.mxu0 0.0
  %3214 = vmatprep.subr.mxu0 0.0
  %3215 = vmatpush1.msra.mxu0 0.0
  %3216 = vmatprep.subr.mxu0 0.0
  %3217 = vmatpush1.msra.mxu0 0.0
  %3218 = vmatprep.subr.mxu0 0.0
  %3219 = vmatpush1.msra.mxu0 0.0
  %3220 = vmatprep.mubr.f32.mxu0 0.0
  %3221 = vmatmul.mubr.f32.gmra.mrb[0].mxu0 %v2946
  %v3222 = vpop.f32.mrb[0].mxu0
  %v3223 = vadd.f32 0.0, %v3222
  %v3224 = vpop.f32.mrb[0].mxu0
  %v3225 = vadd.f32 0.0, %v3224
  %3226 = vmatprep.mubr.f32.mxu0 0.0
  %3227 = vmatmul.mubr.f32.gmra.mrb[0].mxu0 %v2949
  %v3228 = vpop.f32.mrb[0].mxu0
  %v3229 = vadd.f32 0.0, %v3228
  %v3230 = vpop.f32.mrb[0].mxu0
  %v3231 = vadd.f32 0.0, %v3230
  %3232 = vmatprep.mubr.f32.mxu0 0.0
  %3233 = vmatmul.mubr.f32.gmra.mrb[0].mxu0 %v2952
  %v3234 = vpop.f32.mrb[0].mxu0
  %v3235 = vadd.f32 0.0, %v3234
  %v3236 = vpop.f32.mrb[0].mxu0
  %v3237 = vadd.f32 0.0, %v3236
  %3238 = vmatprep.mubr.f32.mxu0 0.0
  %3239 = vmatmul.mubr.f32.gmra.mrb[0].mxu0 %v2955
  %v3240 = vpop.f32.mrb[0].mxu0
  %v3241 = vadd.f32 0.0, %v3240
  %v3242 = vpop.f32.mrb[0].mxu0
  %v3243 = vadd.f32 0.0, %v3242
  %3244 = vdwg.mxu0
  %3245 = vmatprep.subr.mxu0 0.0
  %3246 = vmatpush1.msra.mxu0 %v2918
  %3247 = vmatprep.subr.mxu0 0.0
  %3248 = vmatpush1.msra.mxu0 %v2925
  %3249 = vmatprep.subr.mxu0 0.0
  %3250 = vmatpush1.msra.mxu0 %v2932
  %3251 = vmatprep.subr.mxu0 0.0
  %3252 = vmatpush1.msra.mxu0 %v2976
  %3253 = vmatprep.subr.mxu0 0.0
  %3254 = vmatpush1.msra.mxu0 0.0
  %3255 = vmatprep.subr.mxu0 0.0
  %3256 = vmatpush1.msra.mxu0 0.0
  %3257 = vmatprep.subr.mxu0 0.0
  %3258 = vmatpush1.msra.mxu0 0.0
  %3259 = vmatprep.subr.mxu0 0.0
  %3260 = vmatpush1.msra.mxu0 0.0
  %3261 = vmatprep.subr.mxu0 0.0
  %3262 = vmatpush1.msra.mxu0 0.0
  %3263 = vmatprep.subr.mxu0 0.0
  %3264 = vmatpush1.msra.mxu0 0.0
  %3265 = vmatprep.subr.mxu0 0.0
  %3266 = vmatpush1.msra.mxu0 0.0
  %3267 = vmatprep.subr.mxu0 0.0
  %3268 = vmatpush1.msra.mxu0 0.0
  %3269 = vmatprep.subr.mxu0 0.0
  %3270 = vmatpush1.msra.mxu0 0.0
  %3271 = vmatprep.subr.mxu0 0.0
  %3272 = vmatpush1.msra.mxu0 0.0
  %3273 = vmatprep.subr.mxu0 0.0
  %3274 = vmatpush1.msra.mxu0 0.0
  %3275 = vmatprep.subr.mxu0 0.0
  %3276 = vmatpush1.msra.mxu0 0.0
  %3277 = vmatprep.subr.mxu0 0.0
  %3278 = vmatpush1.msra.mxu0 0.0
  %3279 = vmatprep.subr.mxu0 0.0
  %3280 = vmatpush1.msra.mxu0 0.0
  %3281 = vmatprep.subr.mxu0 0.0
  %3282 = vmatpush1.msra.mxu0 0.0
  %3283 = vmatprep.subr.mxu0 0.0
  %3284 = vmatpush1.msra.mxu0 0.0
  %3285 = vmatprep.subr.mxu0 0.0
  %3286 = vmatpush1.msra.mxu0 0.0
  %3287 = vmatprep.subr.mxu0 0.0
  %3288 = vmatpush1.msra.mxu0 0.0
  %3289 = vmatprep.subr.mxu0 0.0
  %3290 = vmatpush1.msra.mxu0 0.0
  %3291 = vmatprep.subr.mxu0 0.0
  %3292 = vmatpush1.msra.mxu0 0.0
  %3293 = vmatprep.subr.mxu0 0.0
  %3294 = vmatpush1.msra.mxu0 0.0
  %3295 = vmatprep.subr.mxu0 0.0
  %3296 = vmatpush1.msra.mxu0 0.0
  %3297 = vmatprep.subr.mxu0 0.0
  %3298 = vmatpush1.msra.mxu0 0.0
  %3299 = vmatprep.subr.mxu0 0.0
  %3300 = vmatpush1.msra.mxu0 0.0
  %3301 = vmatprep.subr.mxu0 0.0
  %3302 = vmatpush1.msra.mxu0 0.0
  %3303 = vmatprep.subr.mxu0 0.0
  %3304 = vmatpush1.msra.mxu0 0.0
  %3305 = vmatprep.subr.mxu0 0.0
  %3306 = vmatpush1.msra.mxu0 0.0
  %3307 = vmatprep.subr.mxu0 0.0
  %3308 = vmatpush1.msra.mxu0 0.0
  %3309 = vmatprep.mubr.f32.mxu0 0.0
  %3310 = vmatmul.mubr.f32.gmra.mrb[0].mxu0 %v2946
  %v3311 = vpop.f32.mrb[0].mxu0
  %v3312 = vadd.f32 0.0, %v3311
  %v3313 = vpop.f32.mrb[0].mxu0
  %3314 = vmatprep.mubr.f32.mxu0 0.0
  %3315 = vmatmul.mubr.f32.gmra.mrb[0].mxu0 %v2949
  %v3316 = vpop.f32.mrb[0].mxu0
  %v3317 = vadd.f32 0.0, %v3316
  %v3318 = vpop.f32.mrb[0].mxu0
  %3319 = vmatprep.mubr.f32.mxu0 0.0
  %3320 = vmatmul.mubr.f32.gmra.mrb[0].mxu0 %v2952
  %v3321 = vpop.f32.mrb[0].mxu0
  %v3322 = vadd.f32 0.0, %v3321
  %v3323 = vpop.f32.mrb[0].mxu0
  %3324 = vmatprep.mubr.f32.mxu0 0.0
  %3325 = vmatmul.mubr.f32.gmra.mrb[0].mxu0 %v2955
  %v3326 = vpop.f32.mrb[0].mxu0
  %v3327 = vadd.f32 0.0, %v3326
  %v3328 = vpop.f32.mrb[0].mxu0
  %3329 = vdwg.mxu0
  %v3330 = vmul.f32 %v2660, %v3045
  %v3331 = vmul.f32 %v2661, %v3047
  %v3332 = vmul.f32 %v2662, %v3134
  %v3333 = vmul.f32 %v2663, %v3136
  %v3334 = vmul.f32 %v2664, %v3223
  %v3335 = vmul.f32 %v2665, %v3225
  %v3336 = vmul.f32 %v2666, %v3312
  %v3337 = vmul.f32 %v2667, %v3051
  %v3338 = vmul.f32 %v2668, %v3053
  %v3339 = vmul.f32 %v2669, %v3140
  %v3340 = vmul.f32 %v2670, %v3142
  %v3341 = vmul.f32 %v2671, %v3229
  %v3342 = vmul.f32 %v2672, %v3231
  %v3343 = vmul.f32 %v2673, %v3317
  %v3344 = vmul.f32 %v2674, %v3057
  %v3345 = vmul.f32 %v2675, %v3059
  %v3346 = vmul.f32 %v2676, %v3146
  %v3347 = vmul.f32 %v2677, %v3148
  %v3348 = vmul.f32 %v2678, %v3235
  %v3349 = vmul.f32 %v2679, %v3237
  %v3350 = vmul.f32 %v2680, %v3322
  %v3351 = vmul.f32 %v2681, %v3063
  %v3352 = vmul.f32 %v2682, %v3065
  %v3353 = vmul.f32 %v2683, %v3152
  %v3354 = vmul.f32 %v2684, %v3154
  %v3355 = vmul.f32 %v2685, %v3241
  %v3356 = vmul.f32 %v2686, %v3243
  %v3357 = vmul.f32 %v2687, %v3327
  %v3358 = vadd.f32 %v3330, %v3337
  %v3359 = vadd.f32 %v3358, %v3344
  %v3360 = vsel %vm1898, %v3351, 0.0
  %v3361 = vadd.f32 %v3359, %v3360
  %v3362 = vrot.slane %v3361, 4
  %v3363 = vadd.f32 %v3361, %v3362
  %v3364 = vrot.slane %v3363, 2
  %v3365 = vadd.f32 %v3363, %v3364
  %v3366 = vrot.slane %v3365, 1
  %v3367 = vadd.f32 %v3365, %v3366
  %v3368 = vadd.f32 %v3331, %v3338
  %v3369 = vadd.f32 %v3368, %v3345
  %v3370 = vsel %vm1898, %v3352, 0.0
  %v3371 = vadd.f32 %v3369, %v3370
  %v3372 = vrot.slane %v3371, 4
  %v3373 = vadd.f32 %v3371, %v3372
  %v3374 = vrot.slane %v3373, 2
  %v3375 = vadd.f32 %v3373, %v3374
  %v3376 = vrot.slane %v3375, 1
  %v3377 = vadd.f32 %v3375, %v3376
  %v3378 = vadd.f32 %v3332, %v3339
  %v3379 = vadd.f32 %v3378, %v3346
  %v3380 = vsel %vm1898, %v3353, 0.0
  %v3381 = vadd.f32 %v3379, %v3380
  %v3382 = vrot.slane %v3381, 4
  %v3383 = vadd.f32 %v3381, %v3382
  %v3384 = vrot.slane %v3383, 2
  %v3385 = vadd.f32 %v3383, %v3384
  %v3386 = vrot.slane %v3385, 1
  %v3387 = vadd.f32 %v3385, %v3386
  %v3388 = vadd.f32 %v3333, %v3340
  %v3389 = vadd.f32 %v3388, %v3347
  %v3390 = vsel %vm1898, %v3354, 0.0
  %v3391 = vadd.f32 %v3389, %v3390
  %v3392 = vrot.slane %v3391, 4
  %v3393 = vadd.f32 %v3391, %v3392
  %v3394 = vrot.slane %v3393, 2
  %v3395 = vadd.f32 %v3393, %v3394
  %v3396 = vrot.slane %v3395, 1
  %v3397 = vadd.f32 %v3395, %v3396
  %v3398 = vadd.f32 %v3334, %v3341
  %v3399 = vadd.f32 %v3398, %v3348
  %v3400 = vsel %vm1898, %v3355, 0.0
  %v3401 = vadd.f32 %v3399, %v3400
  %v3402 = vrot.slane %v3401, 4
  %v3403 = vadd.f32 %v3401, %v3402
  %v3404 = vrot.slane %v3403, 2
  %v3405 = vadd.f32 %v3403, %v3404
  %v3406 = vrot.slane %v3405, 1
  %v3407 = vadd.f32 %v3405, %v3406
  %v3408 = vadd.f32 %v3335, %v3342
  %v3409 = vadd.f32 %v3408, %v3349
  %v3410 = vsel %vm1898, %v3356, 0.0
  %v3411 = vadd.f32 %v3409, %v3410
  %v3412 = vrot.slane %v3411, 4
  %v3413 = vadd.f32 %v3411, %v3412
  %v3414 = vrot.slane %v3413, 2
  %v3415 = vadd.f32 %v3413, %v3414
  %v3416 = vrot.slane %v3415, 1
  %v3417 = vadd.f32 %v3415, %v3416
  %v3418 = vsel %vm2360, %v3336, 0.0
  %v3419 = vsel %vm2360, %v3343, 0.0
  %v3420 = vadd.f32 %v3418, %v3419
  %v3421 = vsel %vm2360, %v3350, 0.0
  %v3422 = vadd.f32 %v3420, %v3421
  %v3423 = vsel %vm2366, %v3357, 0.0
  %v3424 = vadd.f32 %v3422, %v3423
  %v3425 = vrot.slane %v3424, 4
  %v3426 = vadd.f32 %v3424, %v3425
  %v3427 = vrot.slane %v3426, 2
  %v3428 = vadd.f32 %v3426, %v3427
  %v3429 = vrot.slane %v3428, 1
  %v3430 = vadd.f32 %v3428, %v3429
  %v3438 = vcombine.low %v3367, %v3377
  %v3439 = vcombine.low %v3387, %v3397
  %v3440 = vcombine.low %v3407, %v3417
  %v3442 = vunpack.c.l.s4 1966171168
  %v3443 = vunpack.c.0.s8 %v3442
  %v3444 = vlaneseq
  %v3445 = vshrl.u32 %v3444, 7
  %v3446 = vsub.s32 %v3443, %v3445
  %v3447 = vrot.slane %v3438, %v3446
  %v3449 = vunpack.c.l.s4 1966171168
  %v3450 = vunpack.c.0.s8 %v3449
  %v3451 = vlaneseq
  %v3452 = vshrl.u32 %v3451, 7
  %v3453 = vsub.s32 %v3450, %v3452
  %v3454 = vrot.slane %v3439, %v3453
  %v3456 = vunpack.c.l.s4 1966171168
  %v3457 = vunpack.c.0.s8 %v3456
  %v3458 = vlaneseq
  %v3459 = vshrl.u32 %v3458, 7
  %v3460 = vsub.s32 %v3457, %v3459
  %v3461 = vrot.slane %v3440, %v3460
  %v3463 = vunpack.c.l.s4 1966171168
  %v3464 = vunpack.c.0.s8 %v3463
  %v3465 = vlaneseq
  %v3466 = vshrl.u32 %v3465, 7
  %v3467 = vsub.s32 %v3464, %v3466
  %v3468 = vrot.slane %v3430, %v3467
  %v3469 = vcombine.low %v3447, %v3454
  %v3470 = vcombine.low %v3461, %v3468
  %v3472 = vunpack.c.l.s4 1966171168
  %v3473 = vunpack.c.0.s8 %v3472
  %v3474 = vlaneseq
  %v3475 = vshrl.u32 %v3474, 7
  %v3476 = vsub.s32 %v3473, %v3475
  %v3477 = vrot.slane %v3469, %v3476
  %v3479 = vunpack.c.l.s4 1966171168
  %v3480 = vunpack.c.0.s8 %v3479
  %v3481 = vlaneseq
  %v3482 = vshrl.u32 %v3481, 7
  %v3483 = vsub.s32 %v3480, %v3482
  %v3484 = vrot.slane %v3470, %v3483
  %v3485 = vcombine.low %v3477, %v3484
  %s3487 = scalar_lea.vmem %s8, 1
  %3488 = vst.msk [vmem:[%s3487] ss:$2 sm:$0x7f] %vm2434, %v3485
  // Predicated region
  $region34: #{forward.5} parent=0 // pred_check
    _
  $region35: #{forward.5} parent=0 // pred_check_branch
    %3490 = sbr.rel (0) target = $region37
  $region36: #{forward.5} parent=0 // pred_region
    _
  $region37: #{forward.5} parent=0 // pred_fallthru
    _
  // Predicated region
  $region38: #{forward.5} parent=0 // pred_check
    _
  $region39: #{forward.5} parent=0 // pred_check_branch
    %3492 = sbr.rel (0) target = $region41
  $region40: #{forward.5} parent=0 // pred_region
    _
  $region41: #{forward.5} parent=0 // pred_fallthru
    _

// kernel: forward.6
$region0: #{forward.6}
  #allocation0 [shape = 'u32[]', space=smem, size = 0x4, offset = 0x4, fixed_abs, tag = 'smem constant byte address 0x4 - core index']
  #allocation1 [shape = 'u32[144,128]{1,0:T(1,128)}', space=vmem, size = 0x12000, scoped, tag = 'internal scratch']
  %s0 = inlined_call_operand.vmem [shape: f32[1152,25], index: 0, kind: input, shape index: {}]
  %s1 = inlined_call_operand.vmem [shape: f32[25,10], index: 1, kind: input, shape index: {}]
  %s2 = inlined_call_operand.vmem [shape: f32[1,10], index: 2, kind: input, shape index: {}]
  %s3 = inlined_call_operand.vmem [shape: f32[288,10], index: 3, kind: output, shape index: {}]
  %s4 = sld [smem:[#allocation0]]
  $region22: #{forward.6} parent=0
    _
  %s6 = ssub.s32 1, %s4
  %s7 = scalar_select 0, %s6, %s4
  // Predicated region
  $region2: #{forward.6} parent=0 // pred_check
    _
  $region3: #{forward.6} parent=0 // pred_check_branch
    %9 = sbr.rel (0) target = $region5
  $region4: #{forward.6} parent=0 // pred_region
    _
  $region5: #{forward.6} parent=0 // pred_fallthru
    _
  // Predicated region
  $region6: #{forward.6} parent=0 // pred_check
    _
  $region7: #{forward.6} parent=0 // pred_check_branch
    %11 = sbr.rel (0) target = $region9
  $region8: #{forward.6} parent=0 // pred_region
    _
  $region9: #{forward.6} parent=0 // pred_fallthru
    _
  // Predicated region
  $region10: #{forward.6} parent=0 // pred_check
    _
  $region11: #{forward.6} parent=0 // pred_check_branch
    %13 = sbr.rel (0) target = $region13
  $region12: #{forward.6} parent=0 // pred_region
    _
  $region13: #{forward.6} parent=0 // pred_fallthru
    _
  %v14 = vld [vmem:[%s0] sm:$0xff]
  %v15 = vld [vmem:[%s0 + $0x8] sm:$0xff]
  %v16 = vld [vmem:[%s0 + $0x10] sm:$0xff]
  %v17 = vld [vmem:[%s0 + $0x18] sm:$0xff]
  %v18 = vld [vmem:[%s0 + $0x20] sm:$0xff]
  %v19 = vld [vmem:[%s0 + $0x28] sm:$0xff]
  %v20 = vld [vmem:[%s0 + $0x30] sm:$0xff]
  %v21 = vld [vmem:[%s0 + $0x38] sm:$0xff]
  %v22 = vld [vmem:[%s0 + $0x40] sm:$0xff]
  %v23 = vld [vmem:[%s0 + $0x48] sm:$0xff]
  %v24 = vld [vmem:[%s0 + $0x50] sm:$0xff]
  %v25 = vld [vmem:[%s0 + $0x58] sm:$0xff]
  %v26 = vld [vmem:[%s0 + $0x60] sm:$0xff]
  %v27 = vld [vmem:[%s0 + $0x68] sm:$0xff]
  %v28 = vld [vmem:[%s0 + $0x70] sm:$0xff]
  %v29 = vld [vmem:[%s0 + $0x78] sm:$0xff]
  %v30 = vld [vmem:[%s0 + $0x80] sm:$0xff]
  %v31 = vld [vmem:[%s0 + $0x88] sm:$0xff]
  %v32 = vld [vmem:[%s0 + $0x90] sm:$0xff]
  %v33 = vld [vmem:[%s0 + $0x98] sm:$0xff]
  %v34 = vld [vmem:[%s0 + $0xa0] sm:$0xff]
  %v35 = vld [vmem:[%s0 + $0xa8] sm:$0xff]
  %v36 = vld [vmem:[%s0 + $0xb0] sm:$0xff]
  %v37 = vld [vmem:[%s0 + $0xb8] sm:$0xff]
  %v38 = vld [vmem:[%s0 + $0xc0] sm:$0xff]
  %v39 = vld [vmem:[%s0 + $0xc8] sm:$0xff]
  %v40 = vld [vmem:[%s0 + $0xd0] sm:$0xff]
  %v41 = vld [vmem:[%s0 + $0xd8] sm:$0xff]
  %v42 = vld [vmem:[%s0 + $0xe0] sm:$0xff]
  %v43 = vld [vmem:[%s0 + $0xe8] sm:$0xff]
  %v44 = vld [vmem:[%s0 + $0xf0] sm:$0xff]
  %v45 = vld [vmem:[%s0 + $0xf8] sm:$0xff]
  %v46 = vld [vmem:[%s0 + $0x100] sm:$0xff]
  %v47 = vld [vmem:[%s0 + $0x108] sm:$0xff]
  %v48 = vld [vmem:[%s0 + $0x110] sm:$0xff]
  %v49 = vld [vmem:[%s0 + $0x118] sm:$0xff]
  %v50 = vld [vmem:[%s0 + $0x120] sm:$0xff]
  %v51 = vld [vmem:[%s0 + $0x128] sm:$0xff]
  %v52 = vld [vmem:[%s0 + $0x130] sm:$0xff]
  %v53 = vld [vmem:[%s0 + $0x138] sm:$0xff]
  %v54 = vld [vmem:[%s0 + $0x140] sm:$0xff]
  %v55 = vld [vmem:[%s0 + $0x148] sm:$0xff]
  %v56 = vld [vmem:[%s0 + $0x150] sm:$0xff]
  %v57 = vld [vmem:[%s0 + $0x158] sm:$0xff]
  %v58 = vld [vmem:[%s0 + $0x160] sm:$0xff]
  %v59 = vld [vmem:[%s0 + $0x168] sm:$0xff]
  %v60 = vld [vmem:[%s0 + $0x170] sm:$0xff]
  %v61 = vld [vmem:[%s0 + $0x178] sm:$0xff]
  %v62 = vld [vmem:[%s0 + $0x180] sm:$0xff]
  %v63 = vld [vmem:[%s0 + $0x188] sm:$0xff]
  %v64 = vld [vmem:[%s0 + $0x190] sm:$0xff]
  %v65 = vld [vmem:[%s0 + $0x198] sm:$0xff]
  %v66 = vld [vmem:[%s0 + $0x1a0] sm:$0xff]
  %v67 = vld [vmem:[%s0 + $0x1a8] sm:$0xff]
  %v68 = vld [vmem:[%s0 + $0x1b0] sm:$0xff]
  %v69 = vld [vmem:[%s0 + $0x1b8] sm:$0xff]
  %v70 = vld [vmem:[%s0 + $0x1c0] sm:$0xff]
  %v71 = vld [vmem:[%s0 + $0x1c8] sm:$0xff]
  %v72 = vld [vmem:[%s0 + $0x1d0] sm:$0xff]
  %v73 = vld [vmem:[%s0 + $0x1d8] sm:$0xff]
  %v74 = vld [vmem:[%s0 + $0x1e0] sm:$0xff]
  %v75 = vld [vmem:[%s0 + $0x1e8] sm:$0xff]
  %v76 = vld [vmem:[%s0 + $0x1f0] sm:$0xff]
  %v77 = vld [vmem:[%s0 + $0x1f8] sm:$0xff]
  %v78 = vld [vmem:[%s0 + $0x200] sm:$0xff]
  %v79 = vld [vmem:[%s0 + $0x208] sm:$0xff]
  %v80 = vld [vmem:[%s0 + $0x210] sm:$0xff]
  %v81 = vld [vmem:[%s0 + $0x218] sm:$0xff]
  %v82 = vld [vmem:[%s0 + $0x220] sm:$0xff]
  %v83 = vld [vmem:[%s0 + $0x228] sm:$0xff]
  %v84 = vld [vmem:[%s0 + $0x230] sm:$0xff]
  %v85 = vld [vmem:[%s0 + $0x238] sm:$0xff]
  %v86 = vld [vmem:[%s0 + $0x240] sm:$0xff]
  %v87 = vld [vmem:[%s0 + $0x248] sm:$0xff]
  %v88 = vld [vmem:[%s0 + $0x250] sm:$0xff]
  %v89 = vld [vmem:[%s0 + $0x258] sm:$0xff]
  %v90 = vld [vmem:[%s0 + $0x260] sm:$0xff]
  %v91 = vld [vmem:[%s0 + $0x268] sm:$0xff]
  %v92 = vld [vmem:[%s0 + $0x270] sm:$0xff]
  %v93 = vld [vmem:[%s0 + $0x278] sm:$0xff]
  %v94 = vld [vmem:[%s0 + $0x280] sm:$0xff]
  %v95 = vld [vmem:[%s0 + $0x288] sm:$0xff]
  %v96 = vld [vmem:[%s0 + $0x290] sm:$0xff]
  %v97 = vld [vmem:[%s0 + $0x298] sm:$0xff]
  %v98 = vld [vmem:[%s0 + $0x2a0] sm:$0xff]
  %v99 = vld [vmem:[%s0 + $0x2a8] sm:$0xff]
  %v100 = vld [vmem:[%s0 + $0x2b0] sm:$0xff]
  %v101 = vld [vmem:[%s0 + $0x2b8] sm:$0xff]
  %v102 = vld [vmem:[%s0 + $0x2c0] sm:$0xff]
  %v103 = vld [vmem:[%s0 + $0x2c8] sm:$0xff]
  %v104 = vld [vmem:[%s0 + $0x2d0] sm:$0xff]
  %v105 = vld [vmem:[%s0 + $0x2d8] sm:$0xff]
  %v106 = vld [vmem:[%s0 + $0x2e0] sm:$0xff]
  %v107 = vld [vmem:[%s0 + $0x2e8] sm:$0xff]
  %v108 = vld [vmem:[%s0 + $0x2f0] sm:$0xff]
  %v109 = vld [vmem:[%s0 + $0x2f8] sm:$0xff]
  %v110 = vld [vmem:[%s0 + $0x300] sm:$0xff]
  %v111 = vld [vmem:[%s0 + $0x308] sm:$0xff]
  %v112 = vld [vmem:[%s0 + $0x310] sm:$0xff]
  %v113 = vld [vmem:[%s0 + $0x318] sm:$0xff]
  %v114 = vld [vmem:[%s0 + $0x320] sm:$0xff]
  %v115 = vld [vmem:[%s0 + $0x328] sm:$0xff]
  %v116 = vld [vmem:[%s0 + $0x330] sm:$0xff]
  %v117 = vld [vmem:[%s0 + $0x338] sm:$0xff]
  %v118 = vld [vmem:[%s0 + $0x340] sm:$0xff]
  %v119 = vld [vmem:[%s0 + $0x348] sm:$0xff]
  %v120 = vld [vmem:[%s0 + $0x350] sm:$0xff]
  %v121 = vld [vmem:[%s0 + $0x358] sm:$0xff]
  %v122 = vld [vmem:[%s0 + $0x360] sm:$0xff]
  %v123 = vld [vmem:[%s0 + $0x368] sm:$0xff]
  %v124 = vld [vmem:[%s0 + $0x370] sm:$0xff]
  %v125 = vld [vmem:[%s0 + $0x378] sm:$0xff]
  %v126 = vld [vmem:[%s0 + $0x380] sm:$0xff]
  %v127 = vld [vmem:[%s0 + $0x388] sm:$0xff]
  %v128 = vld [vmem:[%s0 + $0x390] sm:$0xff]
  %v129 = vld [vmem:[%s0 + $0x398] sm:$0xff]
  %v130 = vld [vmem:[%s0 + $0x3a0] sm:$0xff]
  %v131 = vld [vmem:[%s0 + $0x3a8] sm:$0xff]
  %v132 = vld [vmem:[%s0 + $0x3b0] sm:$0xff]
  %v133 = vld [vmem:[%s0 + $0x3b8] sm:$0xff]
  %v134 = vld [vmem:[%s0 + $0x3c0] sm:$0xff]
  %v135 = vld [vmem:[%s0 + $0x3c8] sm:$0xff]
  %v136 = vld [vmem:[%s0 + $0x3d0] sm:$0xff]
  %v137 = vld [vmem:[%s0 + $0x3d8] sm:$0xff]
  %v138 = vld [vmem:[%s0 + $0x3e0] sm:$0xff]
  %v139 = vld [vmem:[%s0 + $0x3e8] sm:$0xff]
  %v140 = vld [vmem:[%s0 + $0x3f0] sm:$0xff]
  %v141 = vld [vmem:[%s0 + $0x3f8] sm:$0xff]
  %v142 = vld [vmem:[%s0 + $0x400] sm:$0xff]
  %v143 = vld [vmem:[%s0 + $0x408] sm:$0xff]
  %v144 = vld [vmem:[%s0 + $0x410] sm:$0xff]
  %v145 = vld [vmem:[%s0 + $0x418] sm:$0xff]
  %v146 = vld [vmem:[%s0 + $0x420] sm:$0xff]
  %v147 = vld [vmem:[%s0 + $0x428] sm:$0xff]
  %v148 = vld [vmem:[%s0 + $0x430] sm:$0xff]
  %v149 = vld [vmem:[%s0 + $0x438] sm:$0xff]
  %v150 = vld [vmem:[%s0 + $0x440] sm:$0xff]
  %v151 = vld [vmem:[%s0 + $0x448] sm:$0xff]
  %v152 = vld [vmem:[%s0 + $0x450] sm:$0xff]
  %v153 = vld [vmem:[%s0 + $0x458] sm:$0xff]
  %v154 = vld [vmem:[%s0 + $0x460] sm:$0xff]
  %v155 = vld [vmem:[%s0 + $0x468] sm:$0xff]
  %v156 = vld [vmem:[%s0 + $0x470] sm:$0xff]
  %v157 = vld [vmem:[%s0 + $0x478] sm:$0xff]
  %v158 = vld [vmem:[%s1] sm:$0xff]
  %v159 = vld [vmem:[%s1 + $0x8] sm:$0xff]
  %v160 = vld [vmem:[%s1 + $0x10] sm:$0xff]
  %v161 = vld [vmem:[%s1 + $0x18] sm:$0x1]
  %v162 = vld [vmem:[%s2] sm:$0x1]
  %vm163 = vcmask 203776
  %v165 = vsel %vm163, %v14, 0
  %v168 = vsel %vm163, %v15, 0
  %v171 = vsel %vm163, %v16, 0
  %v174 = vsel %vm163, %v17, 0
  %v177 = vsel %vm163, %v18, 0
  %v180 = vsel %vm163, %v19, 0
  %v183 = vsel %vm163, %v20, 0
  %v186 = vsel %vm163, %v21, 0
  %v189 = vsel %vm163, %v22, 0
  %v192 = vsel %vm163, %v23, 0
  %v195 = vsel %vm163, %v24, 0
  %v198 = vsel %vm163, %v25, 0
  %v201 = vsel %vm163, %v26, 0
  %v204 = vsel %vm163, %v27, 0
  %v207 = vsel %vm163, %v28, 0
  %v210 = vsel %vm163, %v29, 0
  %v213 = vsel %vm163, %v30, 0
  %v216 = vsel %vm163, %v31, 0
  %v219 = vsel %vm163, %v32, 0
  %v222 = vsel %vm163, %v33, 0
  %v225 = vsel %vm163, %v34, 0
  %v228 = vsel %vm163, %v35, 0
  %v231 = vsel %vm163, %v36, 0
  %v234 = vsel %vm163, %v37, 0
  %v237 = vsel %vm163, %v38, 0
  %v240 = vsel %vm163, %v39, 0
  %v243 = vsel %vm163, %v40, 0
  %v246 = vsel %vm163, %v41, 0
  %v249 = vsel %vm163, %v42, 0
  %v252 = vsel %vm163, %v43, 0
  %v255 = vsel %vm163, %v44, 0
  %v258 = vsel %vm163, %v45, 0
  %v261 = vsel %vm163, %v46, 0
  %v264 = vsel %vm163, %v47, 0
  %v267 = vsel %vm163, %v48, 0
  %v270 = vsel %vm163, %v49, 0
  %v273 = vsel %vm163, %v50, 0
  %v276 = vsel %vm163, %v51, 0
  %v279 = vsel %vm163, %v52, 0
  %v282 = vsel %vm163, %v53, 0
  %v285 = vsel %vm163, %v54, 0
  %v288 = vsel %vm163, %v55, 0
  %v291 = vsel %vm163, %v56, 0
  %v294 = vsel %vm163, %v57, 0
  %v297 = vsel %vm163, %v58, 0
  %v300 = vsel %vm163, %v59, 0
  %v303 = vsel %vm163, %v60, 0
  %v306 = vsel %vm163, %v61, 0
  %v309 = vsel %vm163, %v62, 0
  %v312 = vsel %vm163, %v63, 0
  %v315 = vsel %vm163, %v64, 0
  %v318 = vsel %vm163, %v65, 0
  %v321 = vsel %vm163, %v66, 0
  %v324 = vsel %vm163, %v67, 0
  %v327 = vsel %vm163, %v68, 0
  %v330 = vsel %vm163, %v69, 0
  %v333 = vsel %vm163, %v70, 0
  %v336 = vsel %vm163, %v71, 0
  %v339 = vsel %vm163, %v72, 0
  %v342 = vsel %vm163, %v73, 0
  %v345 = vsel %vm163, %v74, 0
  %v348 = vsel %vm163, %v75, 0
  %v351 = vsel %vm163, %v76, 0
  %v354 = vsel %vm163, %v77, 0
  %v357 = vsel %vm163, %v78, 0
  %v360 = vsel %vm163, %v79, 0
  %v363 = vsel %vm163, %v80, 0
  %v366 = vsel %vm163, %v81, 0
  %v369 = vsel %vm163, %v82, 0
  %v372 = vsel %vm163, %v83, 0
  %v375 = vsel %vm163, %v84, 0
  %v378 = vsel %vm163, %v85, 0
  %v381 = vsel %vm163, %v86, 0
  %v384 = vsel %vm163, %v87, 0
  %v387 = vsel %vm163, %v88, 0
  %v390 = vsel %vm163, %v89, 0
  %v393 = vsel %vm163, %v90, 0
  %v396 = vsel %vm163, %v91, 0
  %v399 = vsel %vm163, %v92, 0
  %v402 = vsel %vm163, %v93, 0
  %v405 = vsel %vm163, %v94, 0
  %v408 = vsel %vm163, %v95, 0
  %v411 = vsel %vm163, %v96, 0
  %v414 = vsel %vm163, %v97, 0
  %v417 = vsel %vm163, %v98, 0
  %v420 = vsel %vm163, %v99, 0
  %v423 = vsel %vm163, %v100, 0
  %v426 = vsel %vm163, %v101, 0
  %v429 = vsel %vm163, %v102, 0
  %v432 = vsel %vm163, %v103, 0
  %v435 = vsel %vm163, %v104, 0
  %v438 = vsel %vm163, %v105, 0
  %v441 = vsel %vm163, %v106, 0
  %v444 = vsel %vm163, %v107, 0
  %v447 = vsel %vm163, %v108, 0
  %v450 = vsel %vm163, %v109, 0
  %v453 = vsel %vm163, %v110, 0
  %v456 = vsel %vm163, %v111, 0
  %v459 = vsel %vm163, %v112, 0
  %v462 = vsel %vm163, %v113, 0
  %v465 = vsel %vm163, %v114, 0
  %v468 = vsel %vm163, %v115, 0
  %v471 = vsel %vm163, %v116, 0
  %v474 = vsel %vm163, %v117, 0
  %v477 = vsel %vm163, %v118, 0
  %v480 = vsel %vm163, %v119, 0
  %v483 = vsel %vm163, %v120, 0
  %v486 = vsel %vm163, %v121, 0
  %v489 = vsel %vm163, %v122, 0
  %v492 = vsel %vm163, %v123, 0
  %v495 = vsel %vm163, %v124, 0
  %v498 = vsel %vm163, %v125, 0
  %v501 = vsel %vm163, %v126, 0
  %v504 = vsel %vm163, %v127, 0
  %v507 = vsel %vm163, %v128, 0
  %v510 = vsel %vm163, %v129, 0
  %v513 = vsel %vm163, %v130, 0
  %v516 = vsel %vm163, %v131, 0
  %v519 = vsel %vm163, %v132, 0
  %v522 = vsel %vm163, %v133, 0
  %v525 = vsel %vm163, %v134, 0
  %v528 = vsel %vm163, %v135, 0
  %v531 = vsel %vm163, %v136, 0
  %v534 = vsel %vm163, %v137, 0
  %v537 = vsel %vm163, %v138, 0
  %v540 = vsel %vm163, %v139, 0
  %v543 = vsel %vm163, %v140, 0
  %v546 = vsel %vm163, %v141, 0
  %v549 = vsel %vm163, %v142, 0
  %v552 = vsel %vm163, %v143, 0
  %v555 = vsel %vm163, %v144, 0
  %v558 = vsel %vm163, %v145, 0
  %v561 = vsel %vm163, %v146, 0
  %v564 = vsel %vm163, %v147, 0
  %v567 = vsel %vm163, %v148, 0
  %v570 = vsel %vm163, %v149, 0
  %v573 = vsel %vm163, %v150, 0
  %v576 = vsel %vm163, %v151, 0
  %v579 = vsel %vm163, %v152, 0
  %v582 = vsel %vm163, %v153, 0
  %v585 = vsel %vm163, %v154, 0
  %v588 = vsel %vm163, %v155, 0
  %v591 = vsel %vm163, %v156, 0
  %v594 = vsel %vm163, %v157, 0
  %vm596 = vcmask 1040384
  %v598 = vsel %vm596, %v161, 0
  %600 = vmatprep.subr.mxu0 0.0
  %601 = vmatpush1.msra.mxu0 %v158
  %602 = vmatprep.subr.mxu0 0.0
  %603 = vmatpush1.msra.mxu0 %v159
  %604 = vmatprep.subr.mxu0 0.0
  %605 = vmatpush1.msra.mxu0 %v160
  %606 = vmatprep.subr.mxu0 0.0
  %607 = vmatpush1.msra.mxu0 %v598
  %608 = vmatprep.subr.mxu0 0.0
  %609 = vmatpush1.msra.mxu0 0.0
  %610 = vmatprep.subr.mxu0 0.0
  %611 = vmatpush1.msra.mxu0 0.0
  %612 = vmatprep.subr.mxu0 0.0
  %613 = vmatpush1.msra.mxu0 0.0
  %614 = vmatprep.subr.mxu0 0.0
  %615 = vmatpush1.msra.mxu0 0.0
  %616 = vmatprep.subr.mxu0 0.0
  %617 = vmatpush1.msra.mxu0 0.0
  %618 = vmatprep.subr.mxu0 0.0
  %619 = vmatpush1.msra.mxu0 0.0
  %620 = vmatprep.subr.mxu0 0.0
  %621 = vmatpush1.msra.mxu0 0.0
  %622 = vmatprep.subr.mxu0 0.0
  %623 = vmatpush1.msra.mxu0 0.0
  %624 = vmatprep.subr.mxu0 0.0
  %625 = vmatpush1.msra.mxu0 0.0
  %626 = vmatprep.subr.mxu0 0.0
  %627 = vmatpush1.msra.mxu0 0.0
  %628 = vmatprep.subr.mxu0 0.0
  %629 = vmatpush1.msra.mxu0 0.0
  %630 = vmatprep.subr.mxu0 0.0
  %631 = vmatpush1.msra.mxu0 0.0
  %632 = vmatprep.subr.mxu0 0.0
  %633 = vmatpush1.msra.mxu0 0.0
  %634 = vmatprep.subr.mxu0 0.0
  %635 = vmatpush1.msra.mxu0 0.0
  %636 = vmatprep.subr.mxu0 0.0
  %637 = vmatpush1.msra.mxu0 0.0
  %638 = vmatprep.subr.mxu0 0.0
  %639 = vmatpush1.msra.mxu0 0.0
  %640 = vmatprep.subr.mxu0 0.0
  %641 = vmatpush1.msra.mxu0 0.0
  %642 = vmatprep.subr.mxu0 0.0
  %643 = vmatpush1.msra.mxu0 0.0
  %644 = vmatprep.subr.mxu0 0.0
  %645 = vmatpush1.msra.mxu0 0.0
  %646 = vmatprep.subr.mxu0 0.0
  %647 = vmatpush1.msra.mxu0 0.0
  %648 = vmatprep.subr.mxu0 0.0
  %649 = vmatpush1.msra.mxu0 0.0
  %650 = vmatprep.subr.mxu0 0.0
  %651 = vmatpush1.msra.mxu0 0.0
  %652 = vmatprep.subr.mxu0 0.0
  %653 = vmatpush1.msra.mxu0 0.0
  %654 = vmatprep.subr.mxu0 0.0
  %655 = vmatpush1.msra.mxu0 0.0
  %656 = vmatprep.subr.mxu0 0.0
  %657 = vmatpush1.msra.mxu0 0.0
  %658 = vmatprep.subr.mxu0 0.0
  %659 = vmatpush1.msra.mxu0 0.0
  %660 = vmatprep.subr.mxu0 0.0
  %661 = vmatpush1.msra.mxu0 0.0
  %662 = vmatprep.subr.mxu0 0.0
  %663 = vmatpush1.msra.mxu0 0.0
  %664 = vmatprep.mubr.f32.mxu0 0.0
  %665 = vmatmul.mubr.f32.gmra.mrb[0].mxu0 %v165
  %v666 = vpop.f32.mrb[0].mxu0
  %v667 = vadd.f32 0.0, %v666
  %v668 = vpop.f32.mrb[0].mxu0
  %669 = vmatprep.mubr.f32.mxu0 0.0
  %670 = vmatmul.mubr.f32.gmra.mrb[0].mxu0 %v168
  %v671 = vpop.f32.mrb[0].mxu0
  %v672 = vadd.f32 0.0, %v671
  %v673 = vpop.f32.mrb[0].mxu0
  %674 = vmatprep.mubr.f32.mxu0 0.0
  %675 = vmatmul.mubr.f32.gmra.mrb[0].mxu0 %v171
  %v676 = vpop.f32.mrb[0].mxu0
  %v677 = vadd.f32 0.0, %v676
  %v678 = vpop.f32.mrb[0].mxu0
  %679 = vmatprep.mubr.f32.mxu0 0.0
  %680 = vmatmul.mubr.f32.gmra.mrb[0].mxu0 %v174
  %v681 = vpop.f32.mrb[0].mxu0
  %v682 = vadd.f32 0.0, %v681
  %v683 = vpop.f32.mrb[0].mxu0
  %684 = vmatprep.mubr.f32.mxu0 0.0
  %685 = vmatmul.mubr.f32.gmra.mrb[0].mxu0 %v177
  %v686 = vpop.f32.mrb[0].mxu0
  %v687 = vadd.f32 0.0, %v686
  %v688 = vpop.f32.mrb[0].mxu0
  %689 = vmatprep.mubr.f32.mxu0 0.0
  %690 = vmatmul.mubr.f32.gmra.mrb[0].mxu0 %v180
  %v691 = vpop.f32.mrb[0].mxu0
  %v692 = vadd.f32 0.0, %v691
  %v693 = vpop.f32.mrb[0].mxu0
  %694 = vmatprep.mubr.f32.mxu0 0.0
  %695 = vmatmul.mubr.f32.gmra.mrb[0].mxu0 %v183
  %v696 = vpop.f32.mrb[0].mxu0
  %v697 = vadd.f32 0.0, %v696
  %v698 = vpop.f32.mrb[0].mxu0
  %699 = vmatprep.mubr.f32.mxu0 0.0
  %700 = vmatmul.mubr.f32.gmra.mrb[0].mxu0 %v186
  %v701 = vpop.f32.mrb[0].mxu0
  %v702 = vadd.f32 0.0, %v701
  %v703 = vpop.f32.mrb[0].mxu0
  %704 = vmatprep.mubr.f32.mxu0 0.0
  %705 = vmatmul.mubr.f32.gmra.mrb[0].mxu0 %v189
  %v706 = vpop.f32.mrb[0].mxu0
  %v707 = vadd.f32 0.0, %v706
  %v708 = vpop.f32.mrb[0].mxu0
  %709 = vmatprep.mubr.f32.mxu0 0.0
  %710 = vmatmul.mubr.f32.gmra.mrb[0].mxu0 %v192
  %v711 = vpop.f32.mrb[0].mxu0
  %v712 = vadd.f32 0.0, %v711
  %v713 = vpop.f32.mrb[0].mxu0
  %714 = vmatprep.mubr.f32.mxu0 0.0
  %715 = vmatmul.mubr.f32.gmra.mrb[0].mxu0 %v195
  %v716 = vpop.f32.mrb[0].mxu0
  %v717 = vadd.f32 0.0, %v716
  %v718 = vpop.f32.mrb[0].mxu0
  %719 = vmatprep.mubr.f32.mxu0 0.0
  %720 = vmatmul.mubr.f32.gmra.mrb[0].mxu0 %v198
  %v721 = vpop.f32.mrb[0].mxu0
  %v722 = vadd.f32 0.0, %v721
  %v723 = vpop.f32.mrb[0].mxu0
  %724 = vmatprep.mubr.f32.mxu0 0.0
  %725 = vmatmul.mubr.f32.gmra.mrb[0].mxu0 %v201
  %v726 = vpop.f32.mrb[0].mxu0
  %v727 = vadd.f32 0.0, %v726
  %v728 = vpop.f32.mrb[0].mxu0
  %729 = vmatprep.mubr.f32.mxu0 0.0
  %730 = vmatmul.mubr.f32.gmra.mrb[0].mxu0 %v204
  %v731 = vpop.f32.mrb[0].mxu0
  %v732 = vadd.f32 0.0, %v731
  %v733 = vpop.f32.mrb[0].mxu0
  %734 = vmatprep.mubr.f32.mxu0 0.0
  %735 = vmatmul.mubr.f32.gmra.mrb[0].mxu0 %v207
  %v736 = vpop.f32.mrb[0].mxu0
  %v737 = vadd.f32 0.0, %v736
  %v738 = vpop.f32.mrb[0].mxu0
  %739 = vmatprep.mubr.f32.mxu0 0.0
  %740 = vmatmul.mubr.f32.gmra.mrb[0].mxu0 %v210
  %v741 = vpop.f32.mrb[0].mxu0
  %v742 = vadd.f32 0.0, %v741
  %v743 = vpop.f32.mrb[0].mxu0
  %744 = vmatprep.mubr.f32.mxu0 0.0
  %745 = vmatmul.mubr.f32.gmra.mrb[0].mxu0 %v213
  %v746 = vpop.f32.mrb[0].mxu0
  %v747 = vadd.f32 0.0, %v746
  %v748 = vpop.f32.mrb[0].mxu0
  %749 = vmatprep.mubr.f32.mxu0 0.0
  %750 = vmatmul.mubr.f32.gmra.mrb[0].mxu0 %v216
  %v751 = vpop.f32.mrb[0].mxu0
  %v752 = vadd.f32 0.0, %v751
  %v753 = vpop.f32.mrb[0].mxu0
  %754 = vmatprep.mubr.f32.mxu0 0.0
  %755 = vmatmul.mubr.f32.gmra.mrb[0].mxu0 %v219
  %v756 = vpop.f32.mrb[0].mxu0
  %v757 = vadd.f32 0.0, %v756
  %v758 = vpop.f32.mrb[0].mxu0
  %759 = vmatprep.mubr.f32.mxu0 0.0
  %760 = vmatmul.mubr.f32.gmra.mrb[0].mxu0 %v222
  %v761 = vpop.f32.mrb[0].mxu0
  %v762 = vadd.f32 0.0, %v761
  %v763 = vpop.f32.mrb[0].mxu0
  %764 = vmatprep.mubr.f32.mxu0 0.0
  %765 = vmatmul.mubr.f32.gmra.mrb[0].mxu0 %v225
  %v766 = vpop.f32.mrb[0].mxu0
  %v767 = vadd.f32 0.0, %v766
  %v768 = vpop.f32.mrb[0].mxu0
  %769 = vmatprep.mubr.f32.mxu0 0.0
  %770 = vmatmul.mubr.f32.gmra.mrb[0].mxu0 %v228
  %v771 = vpop.f32.mrb[0].mxu0
  %v772 = vadd.f32 0.0, %v771
  %v773 = vpop.f32.mrb[0].mxu0
  %774 = vmatprep.mubr.f32.mxu0 0.0
  %775 = vmatmul.mubr.f32.gmra.mrb[0].mxu0 %v231
  %v776 = vpop.f32.mrb[0].mxu0
  %v777 = vadd.f32 0.0, %v776
  %v778 = vpop.f32.mrb[0].mxu0
  %779 = vmatprep.mubr.f32.mxu0 0.0
  %780 = vmatmul.mubr.f32.gmra.mrb[0].mxu0 %v234
  %v781 = vpop.f32.mrb[0].mxu0
  %v782 = vadd.f32 0.0, %v781
  %v783 = vpop.f32.mrb[0].mxu0
  %784 = vmatprep.mubr.f32.mxu0 0.0
  %785 = vmatmul.mubr.f32.gmra.mrb[0].mxu0 %v237
  %v786 = vpop.f32.mrb[0].mxu0
  %v787 = vadd.f32 0.0, %v786
  %v788 = vpop.f32.mrb[0].mxu0
  %789 = vmatprep.mubr.f32.mxu0 0.0
  %790 = vmatmul.mubr.f32.gmra.mrb[0].mxu0 %v240
  %v791 = vpop.f32.mrb[0].mxu0
  %v792 = vadd.f32 0.0, %v791
  %v793 = vpop.f32.mrb[0].mxu0
  %794 = vmatprep.mubr.f32.mxu0 0.0
  %795 = vmatmul.mubr.f32.gmra.mrb[0].mxu0 %v243
  %v796 = vpop.f32.mrb[0].mxu0
  %v797 = vadd.f32 0.0, %v796
  %v798 = vpop.f32.mrb[0].mxu0
  %799 = vmatprep.mubr.f32.mxu0 0.0
  %800 = vmatmul.mubr.f32.gmra.mrb[0].mxu0 %v246
  %v801 = vpop.f32.mrb[0].mxu0
  %v802 = vadd.f32 0.0, %v801
  %v803 = vpop.f32.mrb[0].mxu0
  %804 = vmatprep.mubr.f32.mxu0 0.0
  %805 = vmatmul.mubr.f32.gmra.mrb[0].mxu0 %v249
  %v806 = vpop.f32.mrb[0].mxu0
  %v807 = vadd.f32 0.0, %v806
  %v808 = vpop.f32.mrb[0].mxu0
  %809 = vmatprep.mubr.f32.mxu0 0.0
  %810 = vmatmul.mubr.f32.gmra.mrb[0].mxu0 %v252
  %v811 = vpop.f32.mrb[0].mxu0
  %v812 = vadd.f32 0.0, %v811
  %v813 = vpop.f32.mrb[0].mxu0
  %814 = vmatprep.mubr.f32.mxu0 0.0
  %815 = vmatmul.mubr.f32.gmra.mrb[0].mxu0 %v255
  %v816 = vpop.f32.mrb[0].mxu0
  %v817 = vadd.f32 0.0, %v816
  %v818 = vpop.f32.mrb[0].mxu0
  %819 = vmatprep.mubr.f32.mxu0 0.0
  %820 = vmatmul.mubr.f32.gmra.mrb[0].mxu0 %v258
  %v821 = vpop.f32.mrb[0].mxu0
  %v822 = vadd.f32 0.0, %v821
  %v823 = vpop.f32.mrb[0].mxu0
  %824 = vmatprep.mubr.f32.mxu0 0.0
  %825 = vmatmul.mubr.f32.gmra.mrb[0].mxu0 %v261
  %v826 = vpop.f32.mrb[0].mxu0
  %v827 = vadd.f32 0.0, %v826
  %v828 = vpop.f32.mrb[0].mxu0
  %829 = vmatprep.mubr.f32.mxu0 0.0
  %830 = vmatmul.mubr.f32.gmra.mrb[0].mxu0 %v264
  %v831 = vpop.f32.mrb[0].mxu0
  %v832 = vadd.f32 0.0, %v831
  %v833 = vpop.f32.mrb[0].mxu0
  %834 = vmatprep.mubr.f32.mxu0 0.0
  %835 = vmatmul.mubr.f32.gmra.mrb[0].mxu0 %v267
  %v836 = vpop.f32.mrb[0].mxu0
  %v837 = vadd.f32 0.0, %v836
  %v838 = vpop.f32.mrb[0].mxu0
  %839 = vmatprep.mubr.f32.mxu0 0.0
  %840 = vmatmul.mubr.f32.gmra.mrb[0].mxu0 %v270
  %v841 = vpop.f32.mrb[0].mxu0
  %v842 = vadd.f32 0.0, %v841
  %v843 = vpop.f32.mrb[0].mxu0
  %844 = vmatprep.mubr.f32.mxu0 0.0
  %845 = vmatmul.mubr.f32.gmra.mrb[0].mxu0 %v273
  %v846 = vpop.f32.mrb[0].mxu0
  %v847 = vadd.f32 0.0, %v846
  %v848 = vpop.f32.mrb[0].mxu0
  %849 = vmatprep.mubr.f32.mxu0 0.0
  %850 = vmatmul.mubr.f32.gmra.mrb[0].mxu0 %v276
  %v851 = vpop.f32.mrb[0].mxu0
  %v852 = vadd.f32 0.0, %v851
  %v853 = vpop.f32.mrb[0].mxu0
  %854 = vmatprep.mubr.f32.mxu0 0.0
  %855 = vmatmul.mubr.f32.gmra.mrb[0].mxu0 %v279
  %v856 = vpop.f32.mrb[0].mxu0
  %v857 = vadd.f32 0.0, %v856
  %v858 = vpop.f32.mrb[0].mxu0
  %859 = vmatprep.mubr.f32.mxu0 0.0
  %860 = vmatmul.mubr.f32.gmra.mrb[0].mxu0 %v282
  %v861 = vpop.f32.mrb[0].mxu0
  %v862 = vadd.f32 0.0, %v861
  %v863 = vpop.f32.mrb[0].mxu0
  %864 = vmatprep.mubr.f32.mxu0 0.0
  %865 = vmatmul.mubr.f32.gmra.mrb[0].mxu0 %v285
  %v866 = vpop.f32.mrb[0].mxu0
  %v867 = vadd.f32 0.0, %v866
  %v868 = vpop.f32.mrb[0].mxu0
  %869 = vmatprep.mubr.f32.mxu0 0.0
  %870 = vmatmul.mubr.f32.gmra.mrb[0].mxu0 %v288
  %v871 = vpop.f32.mrb[0].mxu0
  %v872 = vadd.f32 0.0, %v871
  %v873 = vpop.f32.mrb[0].mxu0
  %874 = vmatprep.mubr.f32.mxu0 0.0
  %875 = vmatmul.mubr.f32.gmra.mrb[0].mxu0 %v291
  %v876 = vpop.f32.mrb[0].mxu0
  %v877 = vadd.f32 0.0, %v876
  %v878 = vpop.f32.mrb[0].mxu0
  %879 = vmatprep.mubr.f32.mxu0 0.0
  %880 = vmatmul.mubr.f32.gmra.mrb[0].mxu0 %v294
  %v881 = vpop.f32.mrb[0].mxu0
  %v882 = vadd.f32 0.0, %v881
  %v883 = vpop.f32.mrb[0].mxu0
  %884 = vmatprep.mubr.f32.mxu0 0.0
  %885 = vmatmul.mubr.f32.gmra.mrb[0].mxu0 %v297
  %v886 = vpop.f32.mrb[0].mxu0
  %v887 = vadd.f32 0.0, %v886
  %v888 = vpop.f32.mrb[0].mxu0
  %889 = vmatprep.mubr.f32.mxu0 0.0
  %890 = vmatmul.mubr.f32.gmra.mrb[0].mxu0 %v300
  %v891 = vpop.f32.mrb[0].mxu0
  %v892 = vadd.f32 0.0, %v891
  %v893 = vpop.f32.mrb[0].mxu0
  %894 = vmatprep.mubr.f32.mxu0 0.0
  %895 = vmatmul.mubr.f32.gmra.mrb[0].mxu0 %v303
  %v896 = vpop.f32.mrb[0].mxu0
  %v897 = vadd.f32 0.0, %v896
  %v898 = vpop.f32.mrb[0].mxu0
  %899 = vmatprep.mubr.f32.mxu0 0.0
  %900 = vmatmul.mubr.f32.gmra.mrb[0].mxu0 %v306
  %v901 = vpop.f32.mrb[0].mxu0
  %v902 = vadd.f32 0.0, %v901
  %v903 = vpop.f32.mrb[0].mxu0
  %904 = vmatprep.mubr.f32.mxu0 0.0
  %905 = vmatmul.mubr.f32.gmra.mrb[0].mxu0 %v309
  %v906 = vpop.f32.mrb[0].mxu0
  %v907 = vadd.f32 0.0, %v906
  %v908 = vpop.f32.mrb[0].mxu0
  %909 = vmatprep.mubr.f32.mxu0 0.0
  %910 = vmatmul.mubr.f32.gmra.mrb[0].mxu0 %v312
  %v911 = vpop.f32.mrb[0].mxu0
  %v912 = vadd.f32 0.0, %v911
  %v913 = vpop.f32.mrb[0].mxu0
  %914 = vmatprep.mubr.f32.mxu0 0.0
  %915 = vmatmul.mubr.f32.gmra.mrb[0].mxu0 %v315
  %v916 = vpop.f32.mrb[0].mxu0
  %v917 = vadd.f32 0.0, %v916
  %v918 = vpop.f32.mrb[0].mxu0
  %919 = vmatprep.mubr.f32.mxu0 0.0
  %920 = vmatmul.mubr.f32.gmra.mrb[0].mxu0 %v318
  %v921 = vpop.f32.mrb[0].mxu0
  %v922 = vadd.f32 0.0, %v921
  %v923 = vpop.f32.mrb[0].mxu0
  %924 = vmatprep.mubr.f32.mxu0 0.0
  %925 = vmatmul.mubr.f32.gmra.mrb[0].mxu0 %v321
  %v926 = vpop.f32.mrb[0].mxu0
  %v927 = vadd.f32 0.0, %v926
  %v928 = vpop.f32.mrb[0].mxu0
  %929 = vmatprep.mubr.f32.mxu0 0.0
  %930 = vmatmul.mubr.f32.gmra.mrb[0].mxu0 %v324
  %v931 = vpop.f32.mrb[0].mxu0
  %v932 = vadd.f32 0.0, %v931
  %v933 = vpop.f32.mrb[0].mxu0
  %934 = vmatprep.mubr.f32.mxu0 0.0
  %935 = vmatmul.mubr.f32.gmra.mrb[0].mxu0 %v327
  %v936 = vpop.f32.mrb[0].mxu0
  %v937 = vadd.f32 0.0, %v936
  %v938 = vpop.f32.mrb[0].mxu0
  %939 = vmatprep.mubr.f32.mxu0 0.0
  %940 = vmatmul.mubr.f32.gmra.mrb[0].mxu0 %v330
  %v941 = vpop.f32.mrb[0].mxu0
  %v942 = vadd.f32 0.0, %v941
  %v943 = vpop.f32.mrb[0].mxu0
  %944 = vmatprep.mubr.f32.mxu0 0.0
  %945 = vmatmul.mubr.f32.gmra.mrb[0].mxu0 %v333
  %v946 = vpop.f32.mrb[0].mxu0
  %v947 = vadd.f32 0.0, %v946
  %v948 = vpop.f32.mrb[0].mxu0
  %949 = vmatprep.mubr.f32.mxu0 0.0
  %950 = vmatmul.mubr.f32.gmra.mrb[0].mxu0 %v336
  %v951 = vpop.f32.mrb[0].mxu0
  %v952 = vadd.f32 0.0, %v951
  %v953 = vpop.f32.mrb[0].mxu0
  %954 = vmatprep.mubr.f32.mxu0 0.0
  %955 = vmatmul.mubr.f32.gmra.mrb[0].mxu0 %v339
  %v956 = vpop.f32.mrb[0].mxu0
  %v957 = vadd.f32 0.0, %v956
  %v958 = vpop.f32.mrb[0].mxu0
  %959 = vmatprep.mubr.f32.mxu0 0.0
  %960 = vmatmul.mubr.f32.gmra.mrb[0].mxu0 %v342
  %v961 = vpop.f32.mrb[0].mxu0
  %v962 = vadd.f32 0.0, %v961
  %v963 = vpop.f32.mrb[0].mxu0
  %964 = vmatprep.mubr.f32.mxu0 0.0
  %965 = vmatmul.mubr.f32.gmra.mrb[0].mxu0 %v345
  %v966 = vpop.f32.mrb[0].mxu0
  %v967 = vadd.f32 0.0, %v966
  %v968 = vpop.f32.mrb[0].mxu0
  %969 = vmatprep.mubr.f32.mxu0 0.0
  %970 = vmatmul.mubr.f32.gmra.mrb[0].mxu0 %v348
  %v971 = vpop.f32.mrb[0].mxu0
  %v972 = vadd.f32 0.0, %v971
  %v973 = vpop.f32.mrb[0].mxu0
  %974 = vmatprep.mubr.f32.mxu0 0.0
  %975 = vmatmul.mubr.f32.gmra.mrb[0].mxu0 %v351
  %v976 = vpop.f32.mrb[0].mxu0
  %v977 = vadd.f32 0.0, %v976
  %v978 = vpop.f32.mrb[0].mxu0
  %979 = vmatprep.mubr.f32.mxu0 0.0
  %980 = vmatmul.mubr.f32.gmra.mrb[0].mxu0 %v354
  %v981 = vpop.f32.mrb[0].mxu0
  %v982 = vadd.f32 0.0, %v981
  %v983 = vpop.f32.mrb[0].mxu0
  %984 = vmatprep.mubr.f32.mxu0 0.0
  %985 = vmatmul.mubr.f32.gmra.mrb[0].mxu0 %v357
  %v986 = vpop.f32.mrb[0].mxu0
  %v987 = vadd.f32 0.0, %v986
  %v988 = vpop.f32.mrb[0].mxu0
  %989 = vmatprep.mubr.f32.mxu0 0.0
  %990 = vmatmul.mubr.f32.gmra.mrb[0].mxu0 %v360
  %v991 = vpop.f32.mrb[0].mxu0
  %v992 = vadd.f32 0.0, %v991
  %v993 = vpop.f32.mrb[0].mxu0
  %994 = vmatprep.mubr.f32.mxu0 0.0
  %995 = vmatmul.mubr.f32.gmra.mrb[0].mxu0 %v363
  %v996 = vpop.f32.mrb[0].mxu0
  %v997 = vadd.f32 0.0, %v996
  %v998 = vpop.f32.mrb[0].mxu0
  %999 = vmatprep.mubr.f32.mxu0 0.0
  %1000 = vmatmul.mubr.f32.gmra.mrb[0].mxu0 %v366
  %v1001 = vpop.f32.mrb[0].mxu0
  %v1002 = vadd.f32 0.0, %v1001
  %v1003 = vpop.f32.mrb[0].mxu0
  %1004 = vmatprep.mubr.f32.mxu0 0.0
  %1005 = vmatmul.mubr.f32.gmra.mrb[0].mxu0 %v369
  %v1006 = vpop.f32.mrb[0].mxu0
  %v1007 = vadd.f32 0.0, %v1006
  %v1008 = vpop.f32.mrb[0].mxu0
  %1009 = vmatprep.mubr.f32.mxu0 0.0
  %1010 = vmatmul.mubr.f32.gmra.mrb[0].mxu0 %v372
  %v1011 = vpop.f32.mrb[0].mxu0
  %v1012 = vadd.f32 0.0, %v1011
  %v1013 = vpop.f32.mrb[0].mxu0
  %1014 = vmatprep.mubr.f32.mxu0 0.0
  %1015 = vmatmul.mubr.f32.gmra.mrb[0].mxu0 %v375
  %v1016 = vpop.f32.mrb[0].mxu0
  %v1017 = vadd.f32 0.0, %v1016
  %v1018 = vpop.f32.mrb[0].mxu0
  %1019 = vmatprep.mubr.f32.mxu0 0.0
  %1020 = vmatmul.mubr.f32.gmra.mrb[0].mxu0 %v378
  %v1021 = vpop.f32.mrb[0].mxu0
  %v1022 = vadd.f32 0.0, %v1021
  %v1023 = vpop.f32.mrb[0].mxu0
  %1024 = vmatprep.mubr.f32.mxu0 0.0
  %1025 = vmatmul.mubr.f32.gmra.mrb[0].mxu0 %v381
  %v1026 = vpop.f32.mrb[0].mxu0
  %v1027 = vadd.f32 0.0, %v1026
  %v1028 = vpop.f32.mrb[0].mxu0
  %1029 = vmatprep.mubr.f32.mxu0 0.0
  %1030 = vmatmul.mubr.f32.gmra.mrb[0].mxu0 %v384
  %v1031 = vpop.f32.mrb[0].mxu0
  %v1032 = vadd.f32 0.0, %v1031
  %v1033 = vpop.f32.mrb[0].mxu0
  %1034 = vmatprep.mubr.f32.mxu0 0.0
  %1035 = vmatmul.mubr.f32.gmra.mrb[0].mxu0 %v387
  %v1036 = vpop.f32.mrb[0].mxu0
  %v1037 = vadd.f32 0.0, %v1036
  %v1038 = vpop.f32.mrb[0].mxu0
  %1039 = vmatprep.mubr.f32.mxu0 0.0
  %1040 = vmatmul.mubr.f32.gmra.mrb[0].mxu0 %v390
  %v1041 = vpop.f32.mrb[0].mxu0
  %v1042 = vadd.f32 0.0, %v1041
  %v1043 = vpop.f32.mrb[0].mxu0
  %1044 = vmatprep.mubr.f32.mxu0 0.0
  %1045 = vmatmul.mubr.f32.gmra.mrb[0].mxu0 %v393
  %v1046 = vpop.f32.mrb[0].mxu0
  %v1047 = vadd.f32 0.0, %v1046
  %v1048 = vpop.f32.mrb[0].mxu0
  %1049 = vmatprep.mubr.f32.mxu0 0.0
  %1050 = vmatmul.mubr.f32.gmra.mrb[0].mxu0 %v396
  %v1051 = vpop.f32.mrb[0].mxu0
  %v1052 = vadd.f32 0.0, %v1051
  %v1053 = vpop.f32.mrb[0].mxu0
  %1054 = vmatprep.mubr.f32.mxu0 0.0
  %1055 = vmatmul.mubr.f32.gmra.mrb[0].mxu0 %v399
  %v1056 = vpop.f32.mrb[0].mxu0
  %v1057 = vadd.f32 0.0, %v1056
  %v1058 = vpop.f32.mrb[0].mxu0
  %1059 = vmatprep.mubr.f32.mxu0 0.0
  %1060 = vmatmul.mubr.f32.gmra.mrb[0].mxu0 %v402
  %v1061 = vpop.f32.mrb[0].mxu0
  %v1062 = vadd.f32 0.0, %v1061
  %v1063 = vpop.f32.mrb[0].mxu0
  %1064 = vmatprep.mubr.f32.mxu0 0.0
  %1065 = vmatmul.mubr.f32.gmra.mrb[0].mxu0 %v405
  %v1066 = vpop.f32.mrb[0].mxu0
  %v1067 = vadd.f32 0.0, %v1066
  %v1068 = vpop.f32.mrb[0].mxu0
  %1069 = vmatprep.mubr.f32.mxu0 0.0
  %1070 = vmatmul.mubr.f32.gmra.mrb[0].mxu0 %v408
  %v1071 = vpop.f32.mrb[0].mxu0
  %v1072 = vadd.f32 0.0, %v1071
  %v1073 = vpop.f32.mrb[0].mxu0
  %1074 = vmatprep.mubr.f32.mxu0 0.0
  %1075 = vmatmul.mubr.f32.gmra.mrb[0].mxu0 %v411
  %v1076 = vpop.f32.mrb[0].mxu0
  %v1077 = vadd.f32 0.0, %v1076
  %v1078 = vpop.f32.mrb[0].mxu0
  %1079 = vmatprep.mubr.f32.mxu0 0.0
  %1080 = vmatmul.mubr.f32.gmra.mrb[0].mxu0 %v414
  %v1081 = vpop.f32.mrb[0].mxu0
  %v1082 = vadd.f32 0.0, %v1081
  %v1083 = vpop.f32.mrb[0].mxu0
  %1084 = vmatprep.mubr.f32.mxu0 0.0
  %1085 = vmatmul.mubr.f32.gmra.mrb[0].mxu0 %v417
  %v1086 = vpop.f32.mrb[0].mxu0
  %v1087 = vadd.f32 0.0, %v1086
  %v1088 = vpop.f32.mrb[0].mxu0
  %1089 = vmatprep.mubr.f32.mxu0 0.0
  %1090 = vmatmul.mubr.f32.gmra.mrb[0].mxu0 %v420
  %v1091 = vpop.f32.mrb[0].mxu0
  %v1092 = vadd.f32 0.0, %v1091
  %v1093 = vpop.f32.mrb[0].mxu0
  %1094 = vmatprep.mubr.f32.mxu0 0.0
  %1095 = vmatmul.mubr.f32.gmra.mrb[0].mxu0 %v423
  %v1096 = vpop.f32.mrb[0].mxu0
  %v1097 = vadd.f32 0.0, %v1096
  %v1098 = vpop.f32.mrb[0].mxu0
  %1099 = vmatprep.mubr.f32.mxu0 0.0
  %1100 = vmatmul.mubr.f32.gmra.mrb[0].mxu0 %v426
  %v1101 = vpop.f32.mrb[0].mxu0
  %v1102 = vadd.f32 0.0, %v1101
  %v1103 = vpop.f32.mrb[0].mxu0
  %1104 = vmatprep.mubr.f32.mxu0 0.0
  %1105 = vmatmul.mubr.f32.gmra.mrb[0].mxu0 %v429
  %v1106 = vpop.f32.mrb[0].mxu0
  %v1107 = vadd.f32 0.0, %v1106
  %v1108 = vpop.f32.mrb[0].mxu0
  %1109 = vmatprep.mubr.f32.mxu0 0.0
  %1110 = vmatmul.mubr.f32.gmra.mrb[0].mxu0 %v432
  %v1111 = vpop.f32.mrb[0].mxu0
  %v1112 = vadd.f32 0.0, %v1111
  %v1113 = vpop.f32.mrb[0].mxu0
  %1114 = vmatprep.mubr.f32.mxu0 0.0
  %1115 = vmatmul.mubr.f32.gmra.mrb[0].mxu0 %v435
  %v1116 = vpop.f32.mrb[0].mxu0
  %v1117 = vadd.f32 0.0, %v1116
  %v1118 = vpop.f32.mrb[0].mxu0
  %1119 = vmatprep.mubr.f32.mxu0 0.0
  %1120 = vmatmul.mubr.f32.gmra.mrb[0].mxu0 %v438
  %v1121 = vpop.f32.mrb[0].mxu0
  %v1122 = vadd.f32 0.0, %v1121
  %v1123 = vpop.f32.mrb[0].mxu0
  %1124 = vmatprep.mubr.f32.mxu0 0.0
  %1125 = vmatmul.mubr.f32.gmra.mrb[0].mxu0 %v441
  %v1126 = vpop.f32.mrb[0].mxu0
  %v1127 = vadd.f32 0.0, %v1126
  %v1128 = vpop.f32.mrb[0].mxu0
  %1129 = vmatprep.mubr.f32.mxu0 0.0
  %1130 = vmatmul.mubr.f32.gmra.mrb[0].mxu0 %v444
  %v1131 = vpop.f32.mrb[0].mxu0
  %v1132 = vadd.f32 0.0, %v1131
  %v1133 = vpop.f32.mrb[0].mxu0
  %1134 = vmatprep.mubr.f32.mxu0 0.0
  %1135 = vmatmul.mubr.f32.gmra.mrb[0].mxu0 %v447
  %v1136 = vpop.f32.mrb[0].mxu0
  %v1137 = vadd.f32 0.0, %v1136
  %v1138 = vpop.f32.mrb[0].mxu0
  %1139 = vmatprep.mubr.f32.mxu0 0.0
  %1140 = vmatmul.mubr.f32.gmra.mrb[0].mxu0 %v450
  %v1141 = vpop.f32.mrb[0].mxu0
  %v1142 = vadd.f32 0.0, %v1141
  %v1143 = vpop.f32.mrb[0].mxu0
  %1144 = vmatprep.mubr.f32.mxu0 0.0
  %1145 = vmatmul.mubr.f32.gmra.mrb[0].mxu0 %v453
  %v1146 = vpop.f32.mrb[0].mxu0
  %v1147 = vadd.f32 0.0, %v1146
  %v1148 = vpop.f32.mrb[0].mxu0
  %1149 = vmatprep.mubr.f32.mxu0 0.0
  %1150 = vmatmul.mubr.f32.gmra.mrb[0].mxu0 %v456
  %v1151 = vpop.f32.mrb[0].mxu0
  %v1152 = vadd.f32 0.0, %v1151
  %v1153 = vpop.f32.mrb[0].mxu0
  %1154 = vmatprep.mubr.f32.mxu0 0.0
  %1155 = vmatmul.mubr.f32.gmra.mrb[0].mxu0 %v459
  %v1156 = vpop.f32.mrb[0].mxu0
  %v1157 = vadd.f32 0.0, %v1156
  %v1158 = vpop.f32.mrb[0].mxu0
  %1159 = vmatprep.mubr.f32.mxu0 0.0
  %1160 = vmatmul.mubr.f32.gmra.mrb[0].mxu0 %v462
  %v1161 = vpop.f32.mrb[0].mxu0
  %v1162 = vadd.f32 0.0, %v1161
  %v1163 = vpop.f32.mrb[0].mxu0
  %1164 = vmatprep.mubr.f32.mxu0 0.0
  %1165 = vmatmul.mubr.f32.gmra.mrb[0].mxu0 %v465
  %v1166 = vpop.f32.mrb[0].mxu0
  %v1167 = vadd.f32 0.0, %v1166
  %v1168 = vpop.f32.mrb[0].mxu0
  %1169 = vmatprep.mubr.f32.mxu0 0.0
  %1170 = vmatmul.mubr.f32.gmra.mrb[0].mxu0 %v468
  %v1171 = vpop.f32.mrb[0].mxu0
  %v1172 = vadd.f32 0.0, %v1171
  %v1173 = vpop.f32.mrb[0].mxu0
  %1174 = vmatprep.mubr.f32.mxu0 0.0
  %1175 = vmatmul.mubr.f32.gmra.mrb[0].mxu0 %v471
  %v1176 = vpop.f32.mrb[0].mxu0
  %v1177 = vadd.f32 0.0, %v1176
  %v1178 = vpop.f32.mrb[0].mxu0
  %1179 = vmatprep.mubr.f32.mxu0 0.0
  %1180 = vmatmul.mubr.f32.gmra.mrb[0].mxu0 %v474
  %v1181 = vpop.f32.mrb[0].mxu0
  %v1182 = vadd.f32 0.0, %v1181
  %v1183 = vpop.f32.mrb[0].mxu0
  %1184 = vmatprep.mubr.f32.mxu0 0.0
  %1185 = vmatmul.mubr.f32.gmra.mrb[0].mxu0 %v477
  %v1186 = vpop.f32.mrb[0].mxu0
  %v1187 = vadd.f32 0.0, %v1186
  %v1188 = vpop.f32.mrb[0].mxu0
  %1189 = vmatprep.mubr.f32.mxu0 0.0
  %1190 = vmatmul.mubr.f32.gmra.mrb[0].mxu0 %v480
  %v1191 = vpop.f32.mrb[0].mxu0
  %v1192 = vadd.f32 0.0, %v1191
  %v1193 = vpop.f32.mrb[0].mxu0
  %1194 = vmatprep.mubr.f32.mxu0 0.0
  %1195 = vmatmul.mubr.f32.gmra.mrb[0].mxu0 %v483
  %v1196 = vpop.f32.mrb[0].mxu0
  %v1197 = vadd.f32 0.0, %v1196
  %v1198 = vpop.f32.mrb[0].mxu0
  %1199 = vmatprep.mubr.f32.mxu0 0.0
  %1200 = vmatmul.mubr.f32.gmra.mrb[0].mxu0 %v486
  %v1201 = vpop.f32.mrb[0].mxu0
  %v1202 = vadd.f32 0.0, %v1201
  %v1203 = vpop.f32.mrb[0].mxu0
  %1204 = vmatprep.mubr.f32.mxu0 0.0
  %1205 = vmatmul.mubr.f32.gmra.mrb[0].mxu0 %v489
  %v1206 = vpop.f32.mrb[0].mxu0
  %v1207 = vadd.f32 0.0, %v1206
  %v1208 = vpop.f32.mrb[0].mxu0
  %1209 = vmatprep.mubr.f32.mxu0 0.0
  %1210 = vmatmul.mubr.f32.gmra.mrb[0].mxu0 %v492
  %v1211 = vpop.f32.mrb[0].mxu0
  %v1212 = vadd.f32 0.0, %v1211
  %v1213 = vpop.f32.mrb[0].mxu0
  %1214 = vmatprep.mubr.f32.mxu0 0.0
  %1215 = vmatmul.mubr.f32.gmra.mrb[0].mxu0 %v495
  %v1216 = vpop.f32.mrb[0].mxu0
  %v1217 = vadd.f32 0.0, %v1216
  %v1218 = vpop.f32.mrb[0].mxu0
  %1219 = vmatprep.mubr.f32.mxu0 0.0
  %1220 = vmatmul.mubr.f32.gmra.mrb[0].mxu0 %v498
  %v1221 = vpop.f32.mrb[0].mxu0
  %v1222 = vadd.f32 0.0, %v1221
  %v1223 = vpop.f32.mrb[0].mxu0
  %1224 = vmatprep.mubr.f32.mxu0 0.0
  %1225 = vmatmul.mubr.f32.gmra.mrb[0].mxu0 %v501
  %v1226 = vpop.f32.mrb[0].mxu0
  %v1227 = vadd.f32 0.0, %v1226
  %v1228 = vpop.f32.mrb[0].mxu0
  %1229 = vmatprep.mubr.f32.mxu0 0.0
  %1230 = vmatmul.mubr.f32.gmra.mrb[0].mxu0 %v504
  %v1231 = vpop.f32.mrb[0].mxu0
  %v1232 = vadd.f32 0.0, %v1231
  %v1233 = vpop.f32.mrb[0].mxu0
  %1234 = vmatprep.mubr.f32.mxu0 0.0
  %1235 = vmatmul.mubr.f32.gmra.mrb[0].mxu0 %v507
  %v1236 = vpop.f32.mrb[0].mxu0
  %v1237 = vadd.f32 0.0, %v1236
  %v1238 = vpop.f32.mrb[0].mxu0
  %1239 = vmatprep.mubr.f32.mxu0 0.0
  %1240 = vmatmul.mubr.f32.gmra.mrb[0].mxu0 %v510
  %v1241 = vpop.f32.mrb[0].mxu0
  %v1242 = vadd.f32 0.0, %v1241
  %v1243 = vpop.f32.mrb[0].mxu0
  %1244 = vmatprep.mubr.f32.mxu0 0.0
  %1245 = vmatmul.mubr.f32.gmra.mrb[0].mxu0 %v513
  %v1246 = vpop.f32.mrb[0].mxu0
  %v1247 = vadd.f32 0.0, %v1246
  %v1248 = vpop.f32.mrb[0].mxu0
  %1249 = vmatprep.mubr.f32.mxu0 0.0
  %1250 = vmatmul.mubr.f32.gmra.mrb[0].mxu0 %v516
  %v1251 = vpop.f32.mrb[0].mxu0
  %v1252 = vadd.f32 0.0, %v1251
  %v1253 = vpop.f32.mrb[0].mxu0
  %1254 = vmatprep.mubr.f32.mxu0 0.0
  %1255 = vmatmul.mubr.f32.gmra.mrb[0].mxu0 %v519
  %v1256 = vpop.f32.mrb[0].mxu0
  %v1257 = vadd.f32 0.0, %v1256
  %v1258 = vpop.f32.mrb[0].mxu0
  %1259 = vmatprep.mubr.f32.mxu0 0.0
  %1260 = vmatmul.mubr.f32.gmra.mrb[0].mxu0 %v522
  %v1261 = vpop.f32.mrb[0].mxu0
  %v1262 = vadd.f32 0.0, %v1261
  %v1263 = vpop.f32.mrb[0].mxu0
  %1264 = vmatprep.mubr.f32.mxu0 0.0
  %1265 = vmatmul.mubr.f32.gmra.mrb[0].mxu0 %v525
  %v1266 = vpop.f32.mrb[0].mxu0
  %v1267 = vadd.f32 0.0, %v1266
  %v1268 = vpop.f32.mrb[0].mxu0
  %1269 = vmatprep.mubr.f32.mxu0 0.0
  %1270 = vmatmul.mubr.f32.gmra.mrb[0].mxu0 %v528
  %v1271 = vpop.f32.mrb[0].mxu0
  %v1272 = vadd.f32 0.0, %v1271
  %v1273 = vpop.f32.mrb[0].mxu0
  %1274 = vmatprep.mubr.f32.mxu0 0.0
  %1275 = vmatmul.mubr.f32.gmra.mrb[0].mxu0 %v531
  %v1276 = vpop.f32.mrb[0].mxu0
  %v1277 = vadd.f32 0.0, %v1276
  %v1278 = vpop.f32.mrb[0].mxu0
  %1279 = vmatprep.mubr.f32.mxu0 0.0
  %1280 = vmatmul.mubr.f32.gmra.mrb[0].mxu0 %v534
  %v1281 = vpop.f32.mrb[0].mxu0
  %v1282 = vadd.f32 0.0, %v1281
  %v1283 = vpop.f32.mrb[0].mxu0
  %1284 = vmatprep.mubr.f32.mxu0 0.0
  %1285 = vmatmul.mubr.f32.gmra.mrb[0].mxu0 %v537
  %v1286 = vpop.f32.mrb[0].mxu0
  %v1287 = vadd.f32 0.0, %v1286
  %v1288 = vpop.f32.mrb[0].mxu0
  %1289 = vmatprep.mubr.f32.mxu0 0.0
  %1290 = vmatmul.mubr.f32.gmra.mrb[0].mxu0 %v540
  %v1291 = vpop.f32.mrb[0].mxu0
  %v1292 = vadd.f32 0.0, %v1291
  %v1293 = vpop.f32.mrb[0].mxu0
  %1294 = vmatprep.mubr.f32.mxu0 0.0
  %1295 = vmatmul.mubr.f32.gmra.mrb[0].mxu0 %v543
  %v1296 = vpop.f32.mrb[0].mxu0
  %v1297 = vadd.f32 0.0, %v1296
  %v1298 = vpop.f32.mrb[0].mxu0
  %1299 = vmatprep.mubr.f32.mxu0 0.0
  %1300 = vmatmul.mubr.f32.gmra.mrb[0].mxu0 %v546
  %v1301 = vpop.f32.mrb[0].mxu0
  %v1302 = vadd.f32 0.0, %v1301
  %v1303 = vpop.f32.mrb[0].mxu0
  %1304 = vmatprep.mubr.f32.mxu0 0.0
  %1305 = vmatmul.mubr.f32.gmra.mrb[0].mxu0 %v549
  %v1306 = vpop.f32.mrb[0].mxu0
  %v1307 = vadd.f32 0.0, %v1306
  %v1308 = vpop.f32.mrb[0].mxu0
  %1309 = vmatprep.mubr.f32.mxu0 0.0
  %1310 = vmatmul.mubr.f32.gmra.mrb[0].mxu0 %v552
  %v1311 = vpop.f32.mrb[0].mxu0
  %v1312 = vadd.f32 0.0, %v1311
  %v1313 = vpop.f32.mrb[0].mxu0
  %1314 = vmatprep.mubr.f32.mxu0 0.0
  %1315 = vmatmul.mubr.f32.gmra.mrb[0].mxu0 %v555
  %v1316 = vpop.f32.mrb[0].mxu0
  %v1317 = vadd.f32 0.0, %v1316
  %v1318 = vpop.f32.mrb[0].mxu0
  %1319 = vmatprep.mubr.f32.mxu0 0.0
  %1320 = vmatmul.mubr.f32.gmra.mrb[0].mxu0 %v558
  %v1321 = vpop.f32.mrb[0].mxu0
  %v1322 = vadd.f32 0.0, %v1321
  %v1323 = vpop.f32.mrb[0].mxu0
  %1324 = vmatprep.mubr.f32.mxu0 0.0
  %1325 = vmatmul.mubr.f32.gmra.mrb[0].mxu0 %v561
  %v1326 = vpop.f32.mrb[0].mxu0
  %v1327 = vadd.f32 0.0, %v1326
  %v1328 = vpop.f32.mrb[0].mxu0
  %1329 = vmatprep.mubr.f32.mxu0 0.0
  %1330 = vmatmul.mubr.f32.gmra.mrb[0].mxu0 %v564
  %v1331 = vpop.f32.mrb[0].mxu0
  %v1332 = vadd.f32 0.0, %v1331
  %v1333 = vpop.f32.mrb[0].mxu0
  %1334 = vmatprep.mubr.f32.mxu0 0.0
  %1335 = vmatmul.mubr.f32.gmra.mrb[0].mxu0 %v567
  %v1336 = vpop.f32.mrb[0].mxu0
  %v1337 = vadd.f32 0.0, %v1336
  %v1338 = vpop.f32.mrb[0].mxu0
  %1339 = vmatprep.mubr.f32.mxu0 0.0
  %1340 = vmatmul.mubr.f32.gmra.mrb[0].mxu0 %v570
  %v1341 = vpop.f32.mrb[0].mxu0
  %v1342 = vadd.f32 0.0, %v1341
  %v1343 = vpop.f32.mrb[0].mxu0
  %1344 = vmatprep.mubr.f32.mxu0 0.0
  %1345 = vmatmul.mubr.f32.gmra.mrb[0].mxu0 %v573
  %v1346 = vpop.f32.mrb[0].mxu0
  %v1347 = vadd.f32 0.0, %v1346
  %v1348 = vpop.f32.mrb[0].mxu0
  %1349 = vmatprep.mubr.f32.mxu0 0.0
  %1350 = vmatmul.mubr.f32.gmra.mrb[0].mxu0 %v576
  %v1351 = vpop.f32.mrb[0].mxu0
  %v1352 = vadd.f32 0.0, %v1351
  %v1353 = vpop.f32.mrb[0].mxu0
  %1354 = vmatprep.mubr.f32.mxu0 0.0
  %1355 = vmatmul.mubr.f32.gmra.mrb[0].mxu0 %v579
  %v1356 = vpop.f32.mrb[0].mxu0
  %v1357 = vadd.f32 0.0, %v1356
  %v1358 = vpop.f32.mrb[0].mxu0
  %1359 = vmatprep.mubr.f32.mxu0 0.0
  %1360 = vmatmul.mubr.f32.gmra.mrb[0].mxu0 %v582
  %v1361 = vpop.f32.mrb[0].mxu0
  %v1362 = vadd.f32 0.0, %v1361
  %v1363 = vpop.f32.mrb[0].mxu0
  %1364 = vmatprep.mubr.f32.mxu0 0.0
  %1365 = vmatmul.mubr.f32.gmra.mrb[0].mxu0 %v585
  %v1366 = vpop.f32.mrb[0].mxu0
  %v1367 = vadd.f32 0.0, %v1366
  %v1368 = vpop.f32.mrb[0].mxu0
  %1369 = vmatprep.mubr.f32.mxu0 0.0
  %1370 = vmatmul.mubr.f32.gmra.mrb[0].mxu0 %v588
  %v1371 = vpop.f32.mrb[0].mxu0
  %v1372 = vadd.f32 0.0, %v1371
  %v1373 = vpop.f32.mrb[0].mxu0
  %1374 = vmatprep.mubr.f32.mxu0 0.0
  %1375 = vmatmul.mubr.f32.gmra.mrb[0].mxu0 %v591
  %v1376 = vpop.f32.mrb[0].mxu0
  %v1377 = vadd.f32 0.0, %v1376
  %v1378 = vpop.f32.mrb[0].mxu0
  %1379 = vmatprep.mubr.f32.mxu0 0.0
  %1380 = vmatmul.mubr.f32.gmra.mrb[0].mxu0 %v594
  %v1381 = vpop.f32.mrb[0].mxu0
  %v1382 = vadd.f32 0.0, %v1381
  %v1383 = vpop.f32.mrb[0].mxu0
  %1384 = vdwg.mxu0
  %v1385 = vmax.f32 %v667, %v847
  %v1386 = vmax.f32 %v672, %v852
  %v1387 = vmax.f32 %v677, %v857
  %v1388 = vmax.f32 %v682, %v862
  %v1389 = vmax.f32 %v687, %v867
  %v1390 = vmax.f32 %v692, %v872
  %v1391 = vmax.f32 %v697, %v877
  %v1392 = vmax.f32 %v702, %v882
  %v1393 = vmax.f32 %v707, %v887
  %v1394 = vmax.f32 %v712, %v892
  %v1395 = vmax.f32 %v717, %v897
  %v1396 = vmax.f32 %v722, %v902
  %v1397 = vmax.f32 %v727, %v907
  %v1398 = vmax.f32 %v732, %v912
  %v1399 = vmax.f32 %v737, %v917
  %v1400 = vmax.f32 %v742, %v922
  %v1401 = vmax.f32 %v747, %v927
  %v1402 = vmax.f32 %v752, %v932
  %v1403 = vmax.f32 %v757, %v937
  %v1404 = vmax.f32 %v762, %v942
  %v1405 = vmax.f32 %v767, %v947
  %v1406 = vmax.f32 %v772, %v952
  %v1407 = vmax.f32 %v777, %v957
  %v1408 = vmax.f32 %v782, %v962
  %v1409 = vmax.f32 %v787, %v967
  %v1410 = vmax.f32 %v792, %v972
  %v1411 = vmax.f32 %v797, %v977
  %v1412 = vmax.f32 %v802, %v982
  %v1413 = vmax.f32 %v807, %v987
  %v1414 = vmax.f32 %v812, %v992
  %v1415 = vmax.f32 %v817, %v997
  %v1416 = vmax.f32 %v822, %v1002
  %v1417 = vmax.f32 %v827, %v1007
  %v1418 = vmax.f32 %v832, %v1012
  %v1419 = vmax.f32 %v837, %v1017
  %v1420 = vmax.f32 %v842, %v1022
  %v1421 = vmax.f32 %v1027, %v1207
  %v1422 = vmax.f32 %v1032, %v1212
  %v1423 = vmax.f32 %v1037, %v1217
  %v1424 = vmax.f32 %v1042, %v1222
  %v1425 = vmax.f32 %v1047, %v1227
  %v1426 = vmax.f32 %v1052, %v1232
  %v1427 = vmax.f32 %v1057, %v1237
  %v1428 = vmax.f32 %v1062, %v1242
  %v1429 = vmax.f32 %v1067, %v1247
  %v1430 = vmax.f32 %v1072, %v1252
  %v1431 = vmax.f32 %v1077, %v1257
  %v1432 = vmax.f32 %v1082, %v1262
  %v1433 = vmax.f32 %v1087, %v1267
  %v1434 = vmax.f32 %v1092, %v1272
  %v1435 = vmax.f32 %v1097, %v1277
  %v1436 = vmax.f32 %v1102, %v1282
  %v1437 = vmax.f32 %v1107, %v1287
  %v1438 = vmax.f32 %v1112, %v1292
  %v1439 = vmax.f32 %v1117, %v1297
  %v1440 = vmax.f32 %v1122, %v1302
  %v1441 = vmax.f32 %v1127, %v1307
  %v1442 = vmax.f32 %v1132, %v1312
  %v1443 = vmax.f32 %v1137, %v1317
  %v1444 = vmax.f32 %v1142, %v1322
  %v1445 = vmax.f32 %v1147, %v1327
  %v1446 = vmax.f32 %v1152, %v1332
  %v1447 = vmax.f32 %v1157, %v1337
  %v1448 = vmax.f32 %v1162, %v1342
  %v1449 = vmax.f32 %v1167, %v1347
  %v1450 = vmax.f32 %v1172, %v1352
  %v1451 = vmax.f32 %v1177, %v1357
  %v1452 = vmax.f32 %v1182, %v1362
  %v1453 = vmax.f32 %v1187, %v1367
  %v1454 = vmax.f32 %v1192, %v1372
  %v1455 = vmax.f32 %v1197, %v1377
  %v1456 = vmax.f32 %v1202, %v1382
  %v1457 = vmax.f32 %v1385, %v1421
  %v1458 = vmax.f32 %v1386, %v1422
  %v1459 = vmax.f32 %v1387, %v1423
  %v1460 = vmax.f32 %v1388, %v1424
  %v1461 = vmax.f32 %v1389, %v1425
  %v1462 = vmax.f32 %v1390, %v1426
  %v1463 = vmax.f32 %v1391, %v1427
  %v1464 = vmax.f32 %v1392, %v1428
  %v1465 = vmax.f32 %v1393, %v1429
  %v1466 = vmax.f32 %v1394, %v1430
  %v1467 = vmax.f32 %v1395, %v1431
  %v1468 = vmax.f32 %v1396, %v1432
  %v1469 = vmax.f32 %v1397, %v1433
  %v1470 = vmax.f32 %v1398, %v1434
  %v1471 = vmax.f32 %v1399, %v1435
  %v1472 = vmax.f32 %v1400, %v1436
  %v1473 = vmax.f32 %v1401, %v1437
  %v1474 = vmax.f32 %v1402, %v1438
  %v1475 = vmax.f32 %v1403, %v1439
  %v1476 = vmax.f32 %v1404, %v1440
  %v1477 = vmax.f32 %v1405, %v1441
  %v1478 = vmax.f32 %v1406, %v1442
  %v1479 = vmax.f32 %v1407, %v1443
  %v1480 = vmax.f32 %v1408, %v1444
  %v1481 = vmax.f32 %v1409, %v1445
  %v1482 = vmax.f32 %v1410, %v1446
  %v1483 = vmax.f32 %v1411, %v1447
  %v1484 = vmax.f32 %v1412, %v1448
  %v1485 = vmax.f32 %v1413, %v1449
  %v1486 = vmax.f32 %v1414, %v1450
  %v1487 = vmax.f32 %v1415, %v1451
  %v1488 = vmax.f32 %v1416, %v1452
  %v1489 = vmax.f32 %v1417, %v1453
  %v1490 = vmax.f32 %v1418, %v1454
  %v1491 = vmax.f32 %v1419, %v1455
  %v1492 = vmax.f32 %v1420, %v1456
  %v1494 = vlaneseq
  %v1495 = vshrl.u32 %v1494, 7
  %v1496 = vsub.s32 0, %v1495
  %v1497 = vrot.slane %v162, %v1496
  %v1499 = vadd.f32 %v1457, %v1497
  %v1500 = vadd.f32 %v1458, %v1497
  %v1501 = vadd.f32 %v1459, %v1497
  %v1502 = vadd.f32 %v1460, %v1497
  %v1503 = vadd.f32 %v1461, %v1497
  %v1504 = vadd.f32 %v1462, %v1497
  %v1505 = vadd.f32 %v1463, %v1497
  %v1506 = vadd.f32 %v1464, %v1497
  %v1507 = vadd.f32 %v1465, %v1497
  %v1508 = vadd.f32 %v1466, %v1497
  %v1509 = vadd.f32 %v1467, %v1497
  %v1510 = vadd.f32 %v1468, %v1497
  %v1511 = vadd.f32 %v1469, %v1497
  %v1512 = vadd.f32 %v1470, %v1497
  %v1513 = vadd.f32 %v1471, %v1497
  %v1514 = vadd.f32 %v1472, %v1497
  %v1515 = vadd.f32 %v1473, %v1497
  %v1516 = vadd.f32 %v1474, %v1497
  %v1517 = vadd.f32 %v1475, %v1497
  %v1518 = vadd.f32 %v1476, %v1497
  %v1519 = vadd.f32 %v1477, %v1497
  %v1520 = vadd.f32 %v1478, %v1497
  %v1521 = vadd.f32 %v1479, %v1497
  %v1522 = vadd.f32 %v1480, %v1497
  %v1523 = vadd.f32 %v1481, %v1497
  %v1524 = vadd.f32 %v1482, %v1497
  %v1525 = vadd.f32 %v1483, %v1497
  %v1526 = vadd.f32 %v1484, %v1497
  %v1527 = vadd.f32 %v1485, %v1497
  %v1528 = vadd.f32 %v1486, %v1497
  %v1529 = vadd.f32 %v1487, %v1497
  %v1530 = vadd.f32 %v1488, %v1497
  %v1531 = vadd.f32 %v1489, %v1497
  %v1532 = vadd.f32 %v1490, %v1497
  %v1533 = vadd.f32 %v1491, %v1497
  %v1534 = vadd.f32 %v1492, %v1497
  %v1535 = vmax.f32 %v1499, 0.0
  %v1536 = vmax.f32 %v1500, 0.0
  %v1537 = vmax.f32 %v1501, 0.0
  %v1538 = vmax.f32 %v1502, 0.0
  %v1539 = vmax.f32 %v1503, 0.0
  %v1540 = vmax.f32 %v1504, 0.0
  %v1541 = vmax.f32 %v1505, 0.0
  %v1542 = vmax.f32 %v1506, 0.0
  %v1543 = vmax.f32 %v1507, 0.0
  %v1544 = vmax.f32 %v1508, 0.0
  %v1545 = vmax.f32 %v1509, 0.0
  %v1546 = vmax.f32 %v1510, 0.0
  %v1547 = vmax.f32 %v1511, 0.0
  %v1548 = vmax.f32 %v1512, 0.0
  %v1549 = vmax.f32 %v1513, 0.0
  %v1550 = vmax.f32 %v1514, 0.0
  %v1551 = vmax.f32 %v1515, 0.0
  %v1552 = vmax.f32 %v1516, 0.0
  %v1553 = vmax.f32 %v1517, 0.0
  %v1554 = vmax.f32 %v1518, 0.0
  %v1555 = vmax.f32 %v1519, 0.0
  %v1556 = vmax.f32 %v1520, 0.0
  %v1557 = vmax.f32 %v1521, 0.0
  %v1558 = vmax.f32 %v1522, 0.0
  %v1559 = vmax.f32 %v1523, 0.0
  %v1560 = vmax.f32 %v1524, 0.0
  %v1561 = vmax.f32 %v1525, 0.0
  %v1562 = vmax.f32 %v1526, 0.0
  %v1563 = vmax.f32 %v1527, 0.0
  %v1564 = vmax.f32 %v1528, 0.0
  %v1565 = vmax.f32 %v1529, 0.0
  %v1566 = vmax.f32 %v1530, 0.0
  %v1567 = vmax.f32 %v1531, 0.0
  %v1568 = vmax.f32 %v1532, 0.0
  %v1569 = vmax.f32 %v1533, 0.0
  %v1570 = vmax.f32 %v1534, 0.0
  %vm1571 = vcmask 80896
  %1572 = vst.msk [vmem:[%s3] sm:$0xff] %vm1571, %v1535
  %1573 = vst.msk [vmem:[%s3 + $0x8] sm:$0xff] %vm1571, %v1536
  %1574 = vst.msk [vmem:[%s3 + $0x10] sm:$0xff] %vm1571, %v1537
  %1575 = vst.msk [vmem:[%s3 + $0x18] sm:$0xff] %vm1571, %v1538
  %1576 = vst.msk [vmem:[%s3 + $0x20] sm:$0xff] %vm1571, %v1539
  %1577 = vst.msk [vmem:[%s3 + $0x28] sm:$0xff] %vm1571, %v1540
  %1578 = vst.msk [vmem:[%s3 + $0x30] sm:$0xff] %vm1571, %v1541
  %1579 = vst.msk [vmem:[%s3 + $0x38] sm:$0xff] %vm1571, %v1542
  %1580 = vst.msk [vmem:[%s3 + $0x40] sm:$0xff] %vm1571, %v1543
  %1581 = vst.msk [vmem:[%s3 + $0x48] sm:$0xff] %vm1571, %v1544
  %1582 = vst.msk [vmem:[%s3 + $0x50] sm:$0xff] %vm1571, %v1545
  %1583 = vst.msk [vmem:[%s3 + $0x58] sm:$0xff] %vm1571, %v1546
  %1584 = vst.msk [vmem:[%s3 + $0x60] sm:$0xff] %vm1571, %v1547
  %1585 = vst.msk [vmem:[%s3 + $0x68] sm:$0xff] %vm1571, %v1548
  %1586 = vst.msk [vmem:[%s3 + $0x70] sm:$0xff] %vm1571, %v1549
  %1587 = vst.msk [vmem:[%s3 + $0x78] sm:$0xff] %vm1571, %v1550
  %1588 = vst.msk [vmem:[%s3 + $0x80] sm:$0xff] %vm1571, %v1551
  %1589 = vst.msk [vmem:[%s3 + $0x88] sm:$0xff] %vm1571, %v1552
  %1590 = vst.msk [vmem:[%s3 + $0x90] sm:$0xff] %vm1571, %v1553
  %1591 = vst.msk [vmem:[%s3 + $0x98] sm:$0xff] %vm1571, %v1554
  %1592 = vst.msk [vmem:[%s3 + $0xa0] sm:$0xff] %vm1571, %v1555
  %1593 = vst.msk [vmem:[%s3 + $0xa8] sm:$0xff] %vm1571, %v1556
  %1594 = vst.msk [vmem:[%s3 + $0xb0] sm:$0xff] %vm1571, %v1557
  %1595 = vst.msk [vmem:[%s3 + $0xb8] sm:$0xff] %vm1571, %v1558
  %1596 = vst.msk [vmem:[%s3 + $0xc0] sm:$0xff] %vm1571, %v1559
  %1597 = vst.msk [vmem:[%s3 + $0xc8] sm:$0xff] %vm1571, %v1560
  %1598 = vst.msk [vmem:[%s3 + $0xd0] sm:$0xff] %vm1571, %v1561
  %1599 = vst.msk [vmem:[%s3 + $0xd8] sm:$0xff] %vm1571, %v1562
  %1600 = vst.msk [vmem:[%s3 + $0xe0] sm:$0xff] %vm1571, %v1563
  %1601 = vst.msk [vmem:[%s3 + $0xe8] sm:$0xff] %vm1571, %v1564
  %1602 = vst.msk [vmem:[%s3 + $0xf0] sm:$0xff] %vm1571, %v1565
  %1603 = vst.msk [vmem:[%s3 + $0xf8] sm:$0xff] %vm1571, %v1566
  %1604 = vst.msk [vmem:[%s3 + $0x100] sm:$0xff] %vm1571, %v1567
  %1605 = vst.msk [vmem:[%s3 + $0x108] sm:$0xff] %vm1571, %v1568
  %1606 = vst.msk [vmem:[%s3 + $0x110] sm:$0xff] %vm1571, %v1569
  %1607 = vst.msk [vmem:[%s3 + $0x118] sm:$0xff] %vm1571, %v1570
  // Predicated region
  $region14: #{forward.6} parent=0 // pred_check
    _
  $region15: #{forward.6} parent=0 // pred_check_branch
    %1609 = sbr.rel (0) target = $region17
  $region16: #{forward.6} parent=0 // pred_region
    _
  $region17: #{forward.6} parent=0 // pred_fallthru
    _
  // Predicated region
  $region18: #{forward.6} parent=0 // pred_check
    _
  $region19: #{forward.6} parent=0 // pred_check_branch
    %1611 = sbr.rel (0) target = $region21
  $region20: #{forward.6} parent=0 // pred_region
    _
  $region21: #{forward.6} parent=0 // pred_fallthru
    _

// kernel: forward.7
$region0: #{forward.7}
  #allocation0 [shape = 'u32[]', space=smem, size = 0x4, offset = 0x4, fixed_abs, tag = 'smem constant byte address 0x4 - core index']
  #allocation1 [shape = 'u32[144,128]{1,0:T(1,128)}', space=vmem, size = 0x12000, scoped, tag = 'internal scratch']
  %s0 = inlined_call_operand.vmem [shape: f32[128,250], index: 0, kind: input, shape index: {}]
  %s1 = inlined_call_operand.vmem [shape: f32[250,20], index: 1, kind: input, shape index: {}]
  %s2 = inlined_call_operand.vmem [shape: f32[1,20], index: 2, kind: input, shape index: {}]
  %s3 = inlined_call_operand.vmem [shape: f32[16,20,160], index: 3, kind: input, shape index: {}]
  %s4 = inlined_call_operand.vmem [shape: f32[1,160], index: 4, kind: input, shape index: {}]
  %s5 = inlined_call_operand.vmem [shape: f32[160,10], index: 5, kind: input, shape index: {}]
  %s6 = inlined_call_operand.vmem [shape: f32[1,10], index: 6, kind: input, shape index: {}]
  %s7 = inlined_call_operand.hbm [shape: f32[2,10], index: 7, kind: output, shape index: {}]
  %s8 = sld [smem:[#allocation0]]
  $region38: #{forward.7} parent=0
    _
  %s10 = ssub.s32 1, %s8
  %s11 = scalar_select 0, %s10, %s8
  $region1: #{forward.7} parent=0
    #allocation2 [shape = 'u8[1024]{0}', space=vmem, size = 0x400, scoped, tag = 'output window, operand 0, single buffered']
    #allocation3 [shape = 's32[1]{0}', space=sflag, size = 0x4, scoped, tag = 'scoped memory for forward.7']
    %12 = vsyncpa [#allocation3], 0
    // Predicated region
    $region2: #{forward.7} parent=1 // pred_check
      _
    $region3: #{forward.7} parent=1 // pred_check_branch
      %14 = sbr.rel (0) target = $region5
    $region4: #{forward.7} parent=1 // pred_region
      _
    $region5: #{forward.7} parent=1 // pred_fallthru
      _
    // Predicated region
    $region6: #{forward.7} parent=1 // pred_check
      _
    $region7: #{forward.7} parent=1 // pred_check_branch
      %16 = sbr.rel (0) target = $region9
    $region8: #{forward.7} parent=1 // pred_region
      _
    $region9: #{forward.7} parent=1 // pred_fallthru
      _
    // Predicated region
    $region10: #{forward.7} parent=1 // pred_check
      _
    $region11: #{forward.7} parent=1 // pred_check_branch
      %18 = sbr.rel (0) target = $region13
    $region12: #{forward.7} parent=1 // pred_region
      _
    $region13: #{forward.7} parent=1 // pred_fallthru
      _
    // Predicated region
    $region14: #{forward.7} parent=1 // pred_check
      _
    $region15: #{forward.7} parent=1 // pred_check_branch
      %20 = sbr.rel (0) target = $region17
    $region16: #{forward.7} parent=1 // pred_region
      _
    $region17: #{forward.7} parent=1 // pred_fallthru
      _
    // Predicated region
    $region18: #{forward.7} parent=1 // pred_check
      _
    $region19: #{forward.7} parent=1 // pred_check_branch
      %22 = sbr.rel (0) target = $region21
    $region20: #{forward.7} parent=1 // pred_region
      _
    $region21: #{forward.7} parent=1 // pred_fallthru
      _
    // Predicated region
    $region22: #{forward.7} parent=1 // pred_check
      _
    $region23: #{forward.7} parent=1 // pred_check_branch
      %24 = sbr.rel (0) target = $region25
    $region24: #{forward.7} parent=1 // pred_region
      _
    $region25: #{forward.7} parent=1 // pred_fallthru
      _
    // Predicated region
    $region26: #{forward.7} parent=1 // pred_check
      _
    $region27: #{forward.7} parent=1 // pred_check_branch
      %26 = sbr.rel (0) target = $region29
    $region28: #{forward.7} parent=1 // pred_region
      _
    $region29: #{forward.7} parent=1 // pred_fallthru
      _
    %v27 = vld [vmem:[%s0] sm:$0xff]
    %v28 = vld [vmem:[%s0 + $0x8] sm:$0xff]
    %v29 = vld [vmem:[%s0 + $0x10] sm:$0xff]
    %v30 = vld [vmem:[%s0 + $0x18] sm:$0xff]
    %v31 = vld [vmem:[%s0 + $0x20] sm:$0xff]
    %v32 = vld [vmem:[%s0 + $0x28] sm:$0xff]
    %v33 = vld [vmem:[%s0 + $0x30] sm:$0xff]
    %v34 = vld [vmem:[%s0 + $0x38] sm:$0xff]
    %v35 = vld [vmem:[%s0 + $0x40] sm:$0xff]
    %v36 = vld [vmem:[%s0 + $0x48] sm:$0xff]
    %v37 = vld [vmem:[%s0 + $0x50] sm:$0xff]
    %v38 = vld [vmem:[%s0 + $0x58] sm:$0xff]
    %v39 = vld [vmem:[%s0 + $0x60] sm:$0xff]
    %v40 = vld [vmem:[%s0 + $0x68] sm:$0xff]
    %v41 = vld [vmem:[%s0 + $0x70] sm:$0xff]
    %v42 = vld [vmem:[%s0 + $0x78] sm:$0xff]
    %v43 = vld [vmem:[%s0 + $0x80] sm:$0xff]
    %v44 = vld [vmem:[%s0 + $0x88] sm:$0xff]
    %v45 = vld [vmem:[%s0 + $0x90] sm:$0xff]
    %v46 = vld [vmem:[%s0 + $0x98] sm:$0xff]
    %v47 = vld [vmem:[%s0 + $0xa0] sm:$0xff]
    %v48 = vld [vmem:[%s0 + $0xa8] sm:$0xff]
    %v49 = vld [vmem:[%s0 + $0xb0] sm:$0xff]
    %v50 = vld [vmem:[%s0 + $0xb8] sm:$0xff]
    %v51 = vld [vmem:[%s0 + $0xc0] sm:$0xff]
    %v52 = vld [vmem:[%s0 + $0xc8] sm:$0xff]
    %v53 = vld [vmem:[%s0 + $0xd0] sm:$0xff]
    %v54 = vld [vmem:[%s0 + $0xd8] sm:$0xff]
    %v55 = vld [vmem:[%s0 + $0xe0] sm:$0xff]
    %v56 = vld [vmem:[%s0 + $0xe8] sm:$0xff]
    %v57 = vld [vmem:[%s0 + $0xf0] sm:$0xff]
    %v58 = vld [vmem:[%s0 + $0xf8] sm:$0xff]
    %v59 = vld [vmem:[%s1] sm:$0xff]
    %v60 = vld [vmem:[%s1 + $0x8] sm:$0xff]
    %v61 = vld [vmem:[%s1 + $0x10] sm:$0xff]
    %v62 = vld [vmem:[%s1 + $0x18] sm:$0xff]
    %v63 = vld [vmem:[%s1 + $0x20] sm:$0xff]
    %v64 = vld [vmem:[%s1 + $0x28] sm:$0xff]
    %v65 = vld [vmem:[%s1 + $0x30] sm:$0xff]
    %v66 = vld [vmem:[%s1 + $0x38] sm:$0xff]
    %v67 = vld [vmem:[%s1 + $0x40] sm:$0xff]
    %v68 = vld [vmem:[%s1 + $0x48] sm:$0xff]
    %v69 = vld [vmem:[%s1 + $0x50] sm:$0xff]
    %v70 = vld [vmem:[%s1 + $0x58] sm:$0xff]
    %v71 = vld [vmem:[%s1 + $0x60] sm:$0xff]
    %v72 = vld [vmem:[%s1 + $0x68] sm:$0xff]
    %v73 = vld [vmem:[%s1 + $0x70] sm:$0xff]
    %v74 = vld [vmem:[%s1 + $0x78] sm:$0xff]
    %v75 = vld [vmem:[%s1 + $0x80] sm:$0xff]
    %v76 = vld [vmem:[%s1 + $0x88] sm:$0xff]
    %v77 = vld [vmem:[%s1 + $0x90] sm:$0xff]
    %v78 = vld [vmem:[%s1 + $0x98] sm:$0xff]
    %v79 = vld [vmem:[%s1 + $0xa0] sm:$0xff]
    %v80 = vld [vmem:[%s1 + $0xa8] sm:$0xff]
    %v81 = vld [vmem:[%s1 + $0xb0] sm:$0xff]
    %v82 = vld [vmem:[%s1 + $0xb8] sm:$0xff]
    %v83 = vld [vmem:[%s1 + $0xc0] sm:$0xff]
    %v84 = vld [vmem:[%s1 + $0xc8] sm:$0xff]
    %v85 = vld [vmem:[%s1 + $0xd0] sm:$0xff]
    %v86 = vld [vmem:[%s1 + $0xd8] sm:$0xff]
    %v87 = vld [vmem:[%s1 + $0xe0] sm:$0xff]
    %v88 = vld [vmem:[%s1 + $0xe8] sm:$0xff]
    %v89 = vld [vmem:[%s1 + $0xf0] sm:$0xff]
    %v90 = vld [vmem:[%s1 + $0xf8] sm:$0x3]
    %v91 = vld [vmem:[%s2] sm:$0x1]
    %vm92 = vcmask 998400
    %v94 = vsel %vm92, %v28, 0
    %v97 = vsel %vm92, %v30, 0
    %v100 = vsel %vm92, %v32, 0
    %v103 = vsel %vm92, %v34, 0
    %v106 = vsel %vm92, %v36, 0
    %v109 = vsel %vm92, %v38, 0
    %v112 = vsel %vm92, %v40, 0
    %v115 = vsel %vm92, %v42, 0
    %v118 = vsel %vm92, %v44, 0
    %v121 = vsel %vm92, %v46, 0
    %v124 = vsel %vm92, %v48, 0
    %v127 = vsel %vm92, %v50, 0
    %v130 = vsel %vm92, %v52, 0
    %v133 = vsel %vm92, %v54, 0
    %v136 = vsel %vm92, %v56, 0
    %v139 = vsel %vm92, %v58, 0
    %vm141 = vcmask 1041408
    %v143 = vsel %vm141, %v90, 0
    %145 = vmatprep.subr.mxu0 0.0
    %146 = vmatpush1.msra.mxu0 %v59
    %147 = vmatprep.subr.mxu0 0.0
    %148 = vmatpush1.msra.mxu0 %v60
    %149 = vmatprep.subr.mxu0 0.0
    %150 = vmatpush1.msra.mxu0 %v61
    %151 = vmatprep.subr.mxu0 0.0
    %152 = vmatpush1.msra.mxu0 %v62
    %153 = vmatprep.subr.mxu0 0.0
    %154 = vmatpush1.msra.mxu0 %v63
    %155 = vmatprep.subr.mxu0 0.0
    %156 = vmatpush1.msra.mxu0 %v64
    %157 = vmatprep.subr.mxu0 0.0
    %158 = vmatpush1.msra.mxu0 %v65
    %159 = vmatprep.subr.mxu0 0.0
    %160 = vmatpush1.msra.mxu0 %v66
    %161 = vmatprep.subr.mxu0 0.0
    %162 = vmatpush1.msra.mxu0 %v67
    %163 = vmatprep.subr.mxu0 0.0
    %164 = vmatpush1.msra.mxu0 %v68
    %165 = vmatprep.subr.mxu0 0.0
    %166 = vmatpush1.msra.mxu0 %v69
    %167 = vmatprep.subr.mxu0 0.0
    %168 = vmatpush1.msra.mxu0 %v70
    %169 = vmatprep.subr.mxu0 0.0
    %170 = vmatpush1.msra.mxu0 %v71
    %171 = vmatprep.subr.mxu0 0.0
    %172 = vmatpush1.msra.mxu0 %v72
    %173 = vmatprep.subr.mxu0 0.0
    %174 = vmatpush1.msra.mxu0 %v73
    %175 = vmatprep.subr.mxu0 0.0
    %176 = vmatpush1.msra.mxu0 %v74
    %177 = vmatprep.subr.mxu0 0.0
    %178 = vmatpush1.msra.mxu0 %v75
    %179 = vmatprep.subr.mxu0 0.0
    %180 = vmatpush1.msra.mxu0 %v76
    %181 = vmatprep.subr.mxu0 0.0
    %182 = vmatpush1.msra.mxu0 %v77
    %183 = vmatprep.subr.mxu0 0.0
    %184 = vmatpush1.msra.mxu0 %v78
    %185 = vmatprep.subr.mxu0 0.0
    %186 = vmatpush1.msra.mxu0 %v79
    %187 = vmatprep.subr.mxu0 0.0
    %188 = vmatpush1.msra.mxu0 %v80
    %189 = vmatprep.subr.mxu0 0.0
    %190 = vmatpush1.msra.mxu0 %v81
    %191 = vmatprep.subr.mxu0 0.0
    %192 = vmatpush1.msra.mxu0 %v82
    %193 = vmatprep.subr.mxu0 0.0
    %194 = vmatpush1.msra.mxu0 %v83
    %195 = vmatprep.subr.mxu0 0.0
    %196 = vmatpush1.msra.mxu0 %v84
    %197 = vmatprep.subr.mxu0 0.0
    %198 = vmatpush1.msra.mxu0 %v85
    %199 = vmatprep.subr.mxu0 0.0
    %200 = vmatpush1.msra.mxu0 %v86
    %201 = vmatprep.subr.mxu0 0.0
    %202 = vmatpush1.msra.mxu0 %v87
    %203 = vmatprep.subr.mxu0 0.0
    %204 = vmatpush1.msra.mxu0 %v88
    %205 = vmatprep.subr.mxu0 0.0
    %206 = vmatpush1.msra.mxu0 %v89
    %207 = vmatprep.subr.mxu0 0.0
    %208 = vmatpush1.msra.mxu0 %v143
    %209 = vmatprep.mubr.f32.mxu0 %v94
    %210 = vmatmul.mubr.f32.gmra.mrb[0].mxu0 %v27
    %v211 = vpop.f32.mrb[0].mxu0
    %v212 = vadd.f32 0.0, %v211
    %v213 = vpop.f32.mrb[0].mxu0
    %214 = vmatprep.mubr.f32.mxu0 %v97
    %215 = vmatmul.mubr.f32.gmra.mrb[0].mxu0 %v29
    %v216 = vpop.f32.mrb[0].mxu0
    %v217 = vadd.f32 0.0, %v216
    %v218 = vpop.f32.mrb[0].mxu0
    %219 = vmatprep.mubr.f32.mxu0 %v100
    %220 = vmatmul.mubr.f32.gmra.mrb[0].mxu0 %v31
    %v221 = vpop.f32.mrb[0].mxu0
    %v222 = vadd.f32 0.0, %v221
    %v223 = vpop.f32.mrb[0].mxu0
    %224 = vmatprep.mubr.f32.mxu0 %v103
    %225 = vmatmul.mubr.f32.gmra.mrb[0].mxu0 %v33
    %v226 = vpop.f32.mrb[0].mxu0
    %v227 = vadd.f32 0.0, %v226
    %v228 = vpop.f32.mrb[0].mxu0
    %229 = vmatprep.mubr.f32.mxu0 %v106
    %230 = vmatmul.mubr.f32.gmra.mrb[0].mxu0 %v35
    %v231 = vpop.f32.mrb[0].mxu0
    %v232 = vadd.f32 0.0, %v231
    %v233 = vpop.f32.mrb[0].mxu0
    %234 = vmatprep.mubr.f32.mxu0 %v109
    %235 = vmatmul.mubr.f32.gmra.mrb[0].mxu0 %v37
    %v236 = vpop.f32.mrb[0].mxu0
    %v237 = vadd.f32 0.0, %v236
    %v238 = vpop.f32.mrb[0].mxu0
    %239 = vmatprep.mubr.f32.mxu0 %v112
    %240 = vmatmul.mubr.f32.gmra.mrb[0].mxu0 %v39
    %v241 = vpop.f32.mrb[0].mxu0
    %v242 = vadd.f32 0.0, %v241
    %v243 = vpop.f32.mrb[0].mxu0
    %244 = vmatprep.mubr.f32.mxu0 %v115
    %245 = vmatmul.mubr.f32.gmra.mrb[0].mxu0 %v41
    %v246 = vpop.f32.mrb[0].mxu0
    %v247 = vadd.f32 0.0, %v246
    %v248 = vpop.f32.mrb[0].mxu0
    %249 = vmatprep.mubr.f32.mxu0 %v118
    %250 = vmatmul.mubr.f32.gmra.mrb[0].mxu0 %v43
    %v251 = vpop.f32.mrb[0].mxu0
    %v252 = vadd.f32 0.0, %v251
    %v253 = vpop.f32.mrb[0].mxu0
    %254 = vmatprep.mubr.f32.mxu0 %v121
    %255 = vmatmul.mubr.f32.gmra.mrb[0].mxu0 %v45
    %v256 = vpop.f32.mrb[0].mxu0
    %v257 = vadd.f32 0.0, %v256
    %v258 = vpop.f32.mrb[0].mxu0
    %259 = vmatprep.mubr.f32.mxu0 %v124
    %260 = vmatmul.mubr.f32.gmra.mrb[0].mxu0 %v47
    %v261 = vpop.f32.mrb[0].mxu0
    %v262 = vadd.f32 0.0, %v261
    %v263 = vpop.f32.mrb[0].mxu0
    %264 = vmatprep.mubr.f32.mxu0 %v127
    %265 = vmatmul.mubr.f32.gmra.mrb[0].mxu0 %v49
    %v266 = vpop.f32.mrb[0].mxu0
    %v267 = vadd.f32 0.0, %v266
    %v268 = vpop.f32.mrb[0].mxu0
    %269 = vmatprep.mubr.f32.mxu0 %v130
    %270 = vmatmul.mubr.f32.gmra.mrb[0].mxu0 %v51
    %v271 = vpop.f32.mrb[0].mxu0
    %v272 = vadd.f32 0.0, %v271
    %v273 = vpop.f32.mrb[0].mxu0
    %274 = vmatprep.mubr.f32.mxu0 %v133
    %275 = vmatmul.mubr.f32.gmra.mrb[0].mxu0 %v53
    %v276 = vpop.f32.mrb[0].mxu0
    %v277 = vadd.f32 0.0, %v276
    %v278 = vpop.f32.mrb[0].mxu0
    %279 = vmatprep.mubr.f32.mxu0 %v136
    %280 = vmatmul.mubr.f32.gmra.mrb[0].mxu0 %v55
    %v281 = vpop.f32.mrb[0].mxu0
    %v282 = vadd.f32 0.0, %v281
    %v283 = vpop.f32.mrb[0].mxu0
    %284 = vmatprep.mubr.f32.mxu0 %v139
    %285 = vmatmul.mubr.f32.gmra.mrb[0].mxu0 %v57
    %v286 = vpop.f32.mrb[0].mxu0
    %v287 = vadd.f32 0.0, %v286
    %v288 = vpop.f32.mrb[0].mxu0
    %289 = vdwg.mxu0
    %v290 = vmax.f32 %v212, %v232
    %v291 = vmax.f32 %v217, %v237
    %v292 = vmax.f32 %v222, %v242
    %v293 = vmax.f32 %v227, %v247
    %v294 = vmax.f32 %v252, %v272
    %v295 = vmax.f32 %v257, %v277
    %v296 = vmax.f32 %v262, %v282
    %v297 = vmax.f32 %v267, %v287
    %v298 = vmax.f32 %v290, %v294
    %v299 = vmax.f32 %v291, %v295
    %v300 = vmax.f32 %v292, %v296
    %v301 = vmax.f32 %v293, %v297
    %v303 = vlaneseq
    %v304 = vshrl.u32 %v303, 7
    %v305 = vsub.s32 0, %v304
    %v306 = vrot.slane %v91, %v305
    %v308 = vadd.f32 %v298, %v306
    %v309 = vadd.f32 %v299, %v306
    %v310 = vadd.f32 %v300, %v306
    %v311 = vadd.f32 %v301, %v306
    %v312 = vmax.f32 %v308, 0.0
    %v313 = vmax.f32 %v309, 0.0
    %v314 = vmax.f32 %v310, 0.0
    %v315 = vmax.f32 %v311, 0.0
    %v316 = vld [vmem:[%s3] sm:$0xff]
    %v317 = vld [vmem:[%s3 + $0x8] sm:$0xff]
    %v318 = vld [vmem:[%s3 + $0x10] sm:$0xff]
    %v319 = vld [vmem:[%s3 + $0x18] sm:$0xff]
    %v320 = vld [vmem:[%s3 + $0x20] sm:$0xf]
    %v321 = vld [vmem:[%s3 + $0x28] sm:$0xf]
    %s322 = scalar_lea.vmem %s3, 48
    %v323 = vld [vmem:[%s322] sm:$0xff]
    %v324 = vld [vmem:[%s322 + $0x8] sm:$0xff]
    %v325 = vld [vmem:[%s322 + $0x10] sm:$0xff]
    %v326 = vld [vmem:[%s322 + $0x18] sm:$0xff]
    %v327 = vld [vmem:[%s322 + $0x20] sm:$0xf]
    %v328 = vld [vmem:[%s322 + $0x28] sm:$0xf]
    %v330 = vrot.slane %v312, 2
    %vm331 = vcmask 162816
    %v332 = vsel %vm331, %v330, 0
    %vm334 = vcmask 1043456
    %v336 = vsel %vm334, %v327, 0
    %v339 = vsel %vm334, %v328, 0
    %341 = vmatprep.subr.mxu0 %v324
    %342 = vmatpush1.msra.mxu0 %v323
    %343 = vmatprep.subr.mxu0 %v326
    %344 = vmatpush1.msra.mxu0 %v325
    %345 = vmatprep.subr.mxu0 %v339
    %346 = vmatpush1.msra.mxu0 %v336
    %347 = vmatprep.subr.mxu0 0.0
    %348 = vmatpush1.msra.mxu0 0.0
    %349 = vmatprep.subr.mxu0 0.0
    %350 = vmatpush1.msra.mxu0 0.0
    %351 = vmatprep.subr.mxu0 0.0
    %352 = vmatpush1.msra.mxu0 0.0
    %353 = vmatprep.subr.mxu0 0.0
    %354 = vmatpush1.msra.mxu0 0.0
    %355 = vmatprep.subr.mxu0 0.0
    %356 = vmatpush1.msra.mxu0 0.0
    %357 = vmatprep.subr.mxu0 0.0
    %358 = vmatpush1.msra.mxu0 0.0
    %359 = vmatprep.subr.mxu0 0.0
    %360 = vmatpush1.msra.mxu0 0.0
    %361 = vmatprep.subr.mxu0 0.0
    %362 = vmatpush1.msra.mxu0 0.0
    %363 = vmatprep.subr.mxu0 0.0
    %364 = vmatpush1.msra.mxu0 0.0
    %365 = vmatprep.subr.mxu0 0.0
    %366 = vmatpush1.msra.mxu0 0.0
    %367 = vmatprep.subr.mxu0 0.0
    %368 = vmatpush1.msra.mxu0 0.0
    %369 = vmatprep.subr.mxu0 0.0
    %370 = vmatpush1.msra.mxu0 0.0
    %371 = vmatprep.subr.mxu0 0.0
    %372 = vmatpush1.msra.mxu0 0.0
    %373 = vmatprep.subr.mxu0 0.0
    %374 = vmatpush1.msra.mxu0 0.0
    %375 = vmatprep.subr.mxu0 0.0
    %376 = vmatpush1.msra.mxu0 0.0
    %377 = vmatprep.subr.mxu0 0.0
    %378 = vmatpush1.msra.mxu0 0.0
    %379 = vmatprep.subr.mxu0 0.0
    %380 = vmatpush1.msra.mxu0 0.0
    %381 = vmatprep.subr.mxu0 0.0
    %382 = vmatpush1.msra.mxu0 0.0
    %383 = vmatprep.subr.mxu0 0.0
    %384 = vmatpush1.msra.mxu0 0.0
    %385 = vmatprep.subr.mxu0 0.0
    %386 = vmatpush1.msra.mxu0 0.0
    %387 = vmatprep.subr.mxu0 0.0
    %388 = vmatpush1.msra.mxu0 0.0
    %389 = vmatprep.subr.mxu0 0.0
    %390 = vmatpush1.msra.mxu0 0.0
    %391 = vmatprep.subr.mxu0 0.0
    %392 = vmatpush1.msra.mxu0 0.0
    %393 = vmatprep.subr.mxu0 0.0
    %394 = vmatpush1.msra.mxu0 0.0
    %395 = vmatprep.subr.mxu0 0.0
    %396 = vmatpush1.msra.mxu0 0.0
    %397 = vmatprep.subr.mxu0 0.0
    %398 = vmatpush1.msra.mxu0 0.0
    %399 = vmatprep.subr.mxu0 0.0
    %400 = vmatpush1.msra.mxu0 0.0
    %401 = vmatprep.subr.mxu0 0.0
    %402 = vmatpush1.msra.mxu0 0.0
    %403 = vmatprep.subr.mxu0 0.0
    %404 = vmatpush1.msra.mxu0 0.0
    %405 = vmatprep.mubr.f32.mxu0 0.0
    %406 = vmatmul.mubr.f32.gmra.mrb[0].mxu0 %v332
    %v407 = vpop.f32.mrb[0].mxu0
    %v408 = vadd.f32 0.0, %v407
    %v409 = vpop.f32.mrb[0].mxu0
    %v410 = vadd.f32 0.0, %v409
    %411 = vdwg.mxu0
    %v412 = vsel %vm331, %v312, 0
    %v415 = vsel %vm334, %v320, 0
    %v418 = vsel %vm334, %v321, 0
    %420 = vmatprep.subr.mxu0 %v317
    %421 = vmatpush1.msra.mxu0 %v316
    %422 = vmatprep.subr.mxu0 %v319
    %423 = vmatpush1.msra.mxu0 %v318
    %424 = vmatprep.subr.mxu0 %v418
    %425 = vmatpush1.msra.mxu0 %v415
    %426 = vmatprep.subr.mxu0 0.0
    %427 = vmatpush1.msra.mxu0 0.0
    %428 = vmatprep.subr.mxu0 0.0
    %429 = vmatpush1.msra.mxu0 0.0
    %430 = vmatprep.subr.mxu0 0.0
    %431 = vmatpush1.msra.mxu0 0.0
    %432 = vmatprep.subr.mxu0 0.0
    %433 = vmatpush1.msra.mxu0 0.0
    %434 = vmatprep.subr.mxu0 0.0
    %435 = vmatpush1.msra.mxu0 0.0
    %436 = vmatprep.subr.mxu0 0.0
    %437 = vmatpush1.msra.mxu0 0.0
    %438 = vmatprep.subr.mxu0 0.0
    %439 = vmatpush1.msra.mxu0 0.0
    %440 = vmatprep.subr.mxu0 0.0
    %441 = vmatpush1.msra.mxu0 0.0
    %442 = vmatprep.subr.mxu0 0.0
    %443 = vmatpush1.msra.mxu0 0.0
    %444 = vmatprep.subr.mxu0 0.0
    %445 = vmatpush1.msra.mxu0 0.0
    %446 = vmatprep.subr.mxu0 0.0
    %447 = vmatpush1.msra.mxu0 0.0
    %448 = vmatprep.subr.mxu0 0.0
    %449 = vmatpush1.msra.mxu0 0.0
    %450 = vmatprep.subr.mxu0 0.0
    %451 = vmatpush1.msra.mxu0 0.0
    %452 = vmatprep.subr.mxu0 0.0
    %453 = vmatpush1.msra.mxu0 0.0
    %454 = vmatprep.subr.mxu0 0.0
    %455 = vmatpush1.msra.mxu0 0.0
    %456 = vmatprep.subr.mxu0 0.0
    %457 = vmatpush1.msra.mxu0 0.0
    %458 = vmatprep.subr.mxu0 0.0
    %459 = vmatpush1.msra.mxu0 0.0
    %460 = vmatprep.subr.mxu0 0.0
    %461 = vmatpush1.msra.mxu0 0.0
    %462 = vmatprep.subr.mxu0 0.0
    %463 = vmatpush1.msra.mxu0 0.0
    %464 = vmatprep.subr.mxu0 0.0
    %465 = vmatpush1.msra.mxu0 0.0
    %466 = vmatprep.subr.mxu0 0.0
    %467 = vmatpush1.msra.mxu0 0.0
    %468 = vmatprep.subr.mxu0 0.0
    %469 = vmatpush1.msra.mxu0 0.0
    %470 = vmatprep.subr.mxu0 0.0
    %471 = vmatpush1.msra.mxu0 0.0
    %472 = vmatprep.subr.mxu0 0.0
    %473 = vmatpush1.msra.mxu0 0.0
    %474 = vmatprep.subr.mxu0 0.0
    %475 = vmatpush1.msra.mxu0 0.0
    %476 = vmatprep.subr.mxu0 0.0
    %477 = vmatpush1.msra.mxu0 0.0
    %478 = vmatprep.subr.mxu0 0.0
    %479 = vmatpush1.msra.mxu0 0.0
    %480 = vmatprep.subr.mxu0 0.0
    %481 = vmatpush1.msra.mxu0 0.0
    %482 = vmatprep.subr.mxu0 0.0
    %483 = vmatpush1.msra.mxu0 0.0
    %484 = vmatprep.mubr.f32.mxu0 0.0
    %485 = vmatmul.mubr.f32.gmra.mrb[0].mxu0 %v412
    %v486 = vpop.f32.mrb[0].mxu0
    %v487 = vadd.f32 %v408, %v486
    %v488 = vpop.f32.mrb[0].mxu0
    %v489 = vadd.f32 %v410, %v488
    %490 = vdwg.mxu0
    %s491 = scalar_lea.vmem %s3, 96
    %v492 = vld [vmem:[%s491] sm:$0xff]
    %v493 = vld [vmem:[%s491 + $0x8] sm:$0xff]
    %v494 = vld [vmem:[%s491 + $0x10] sm:$0xff]
    %v495 = vld [vmem:[%s491 + $0x18] sm:$0xff]
    %v496 = vld [vmem:[%s491 + $0x20] sm:$0xf]
    %v497 = vld [vmem:[%s491 + $0x28] sm:$0xf]
    %v498 = vrot.slane %v312, 4
    %v499 = vsel %vm331, %v498, 0
    %v502 = vsel %vm334, %v496, 0
    %v505 = vsel %vm334, %v497, 0
    %507 = vmatprep.subr.mxu0 %v493
    %508 = vmatpush1.msra.mxu0 %v492
    %509 = vmatprep.subr.mxu0 %v495
    %510 = vmatpush1.msra.mxu0 %v494
    %511 = vmatprep.subr.mxu0 %v505
    %512 = vmatpush1.msra.mxu0 %v502
    %513 = vmatprep.subr.mxu0 0.0
    %514 = vmatpush1.msra.mxu0 0.0
    %515 = vmatprep.subr.mxu0 0.0
    %516 = vmatpush1.msra.mxu0 0.0
    %517 = vmatprep.subr.mxu0 0.0
    %518 = vmatpush1.msra.mxu0 0.0
    %519 = vmatprep.subr.mxu0 0.0
    %520 = vmatpush1.msra.mxu0 0.0
    %521 = vmatprep.subr.mxu0 0.0
    %522 = vmatpush1.msra.mxu0 0.0
    %523 = vmatprep.subr.mxu0 0.0
    %524 = vmatpush1.msra.mxu0 0.0
    %525 = vmatprep.subr.mxu0 0.0
    %526 = vmatpush1.msra.mxu0 0.0
    %527 = vmatprep.subr.mxu0 0.0
    %528 = vmatpush1.msra.mxu0 0.0
    %529 = vmatprep.subr.mxu0 0.0
    %530 = vmatpush1.msra.mxu0 0.0
    %531 = vmatprep.subr.mxu0 0.0
    %532 = vmatpush1.msra.mxu0 0.0
    %533 = vmatprep.subr.mxu0 0.0
    %534 = vmatpush1.msra.mxu0 0.0
    %535 = vmatprep.subr.mxu0 0.0
    %536 = vmatpush1.msra.mxu0 0.0
    %537 = vmatprep.subr.mxu0 0.0
    %538 = vmatpush1.msra.mxu0 0.0
    %539 = vmatprep.subr.mxu0 0.0
    %540 = vmatpush1.msra.mxu0 0.0
    %541 = vmatprep.subr.mxu0 0.0
    %542 = vmatpush1.msra.mxu0 0.0
    %543 = vmatprep.subr.mxu0 0.0
    %544 = vmatpush1.msra.mxu0 0.0
    %545 = vmatprep.subr.mxu0 0.0
    %546 = vmatpush1.msra.mxu0 0.0
    %547 = vmatprep.subr.mxu0 0.0
    %548 = vmatpush1.msra.mxu0 0.0
    %549 = vmatprep.subr.mxu0 0.0
    %550 = vmatpush1.msra.mxu0 0.0
    %551 = vmatprep.subr.mxu0 0.0
    %552 = vmatpush1.msra.mxu0 0.0
    %553 = vmatprep.subr.mxu0 0.0
    %554 = vmatpush1.msra.mxu0 0.0
    %555 = vmatprep.subr.mxu0 0.0
    %556 = vmatpush1.msra.mxu0 0.0
    %557 = vmatprep.subr.mxu0 0.0
    %558 = vmatpush1.msra.mxu0 0.0
    %559 = vmatprep.subr.mxu0 0.0
    %560 = vmatpush1.msra.mxu0 0.0
    %561 = vmatprep.subr.mxu0 0.0
    %562 = vmatpush1.msra.mxu0 0.0
    %563 = vmatprep.subr.mxu0 0.0
    %564 = vmatpush1.msra.mxu0 0.0
    %565 = vmatprep.subr.mxu0 0.0
    %566 = vmatpush1.msra.mxu0 0.0
    %567 = vmatprep.subr.mxu0 0.0
    %568 = vmatpush1.msra.mxu0 0.0
    %569 = vmatprep.subr.mxu0 0.0
    %570 = vmatpush1.msra.mxu0 0.0
    %571 = vmatprep.mubr.f32.mxu0 0.0
    %572 = vmatmul.mubr.f32.gmra.mrb[0].mxu0 %v499
    %v573 = vpop.f32.mrb[0].mxu0
    %v574 = vadd.f32 0.0, %v573
    %v575 = vpop.f32.mrb[0].mxu0
    %v576 = vadd.f32 0.0, %v575
    %577 = vdwg.mxu0
    %v578 = vadd.f32 %v487, %v574
    %v579 = vadd.f32 %v489, %v576
    %s580 = scalar_lea.vmem %s3, 144
    %v581 = vld [vmem:[%s580] sm:$0xff]
    %v582 = vld [vmem:[%s580 + $0x8] sm:$0xff]
    %v583 = vld [vmem:[%s580 + $0x10] sm:$0xff]
    %v584 = vld [vmem:[%s580 + $0x18] sm:$0xff]
    %v585 = vld [vmem:[%s580 + $0x20] sm:$0xf]
    %v586 = vld [vmem:[%s580 + $0x28] sm:$0xf]
    %v587 = vrot.slane %v312, 6
    %v588 = vsel %vm331, %v587, 0
    %v591 = vsel %vm334, %v585, 0
    %v594 = vsel %vm334, %v586, 0
    %596 = vmatprep.subr.mxu0 %v582
    %597 = vmatpush1.msra.mxu0 %v581
    %598 = vmatprep.subr.mxu0 %v584
    %599 = vmatpush1.msra.mxu0 %v583
    %600 = vmatprep.subr.mxu0 %v594
    %601 = vmatpush1.msra.mxu0 %v591
    %602 = vmatprep.subr.mxu0 0.0
    %603 = vmatpush1.msra.mxu0 0.0
    %604 = vmatprep.subr.mxu0 0.0
    %605 = vmatpush1.msra.mxu0 0.0
    %606 = vmatprep.subr.mxu0 0.0
    %607 = vmatpush1.msra.mxu0 0.0
    %608 = vmatprep.subr.mxu0 0.0
    %609 = vmatpush1.msra.mxu0 0.0
    %610 = vmatprep.subr.mxu0 0.0
    %611 = vmatpush1.msra.mxu0 0.0
    %612 = vmatprep.subr.mxu0 0.0
    %613 = vmatpush1.msra.mxu0 0.0
    %614 = vmatprep.subr.mxu0 0.0
    %615 = vmatpush1.msra.mxu0 0.0
    %616 = vmatprep.subr.mxu0 0.0
    %617 = vmatpush1.msra.mxu0 0.0
    %618 = vmatprep.subr.mxu0 0.0
    %619 = vmatpush1.msra.mxu0 0.0
    %620 = vmatprep.subr.mxu0 0.0
    %621 = vmatpush1.msra.mxu0 0.0
    %622 = vmatprep.subr.mxu0 0.0
    %623 = vmatpush1.msra.mxu0 0.0
    %624 = vmatprep.subr.mxu0 0.0
    %625 = vmatpush1.msra.mxu0 0.0
    %626 = vmatprep.subr.mxu0 0.0
    %627 = vmatpush1.msra.mxu0 0.0
    %628 = vmatprep.subr.mxu0 0.0
    %629 = vmatpush1.msra.mxu0 0.0
    %630 = vmatprep.subr.mxu0 0.0
    %631 = vmatpush1.msra.mxu0 0.0
    %632 = vmatprep.subr.mxu0 0.0
    %633 = vmatpush1.msra.mxu0 0.0
    %634 = vmatprep.subr.mxu0 0.0
    %635 = vmatpush1.msra.mxu0 0.0
    %636 = vmatprep.subr.mxu0 0.0
    %637 = vmatpush1.msra.mxu0 0.0
    %638 = vmatprep.subr.mxu0 0.0
    %639 = vmatpush1.msra.mxu0 0.0
    %640 = vmatprep.subr.mxu0 0.0
    %641 = vmatpush1.msra.mxu0 0.0
    %642 = vmatprep.subr.mxu0 0.0
    %643 = vmatpush1.msra.mxu0 0.0
    %644 = vmatprep.subr.mxu0 0.0
    %645 = vmatpush1.msra.mxu0 0.0
    %646 = vmatprep.subr.mxu0 0.0
    %647 = vmatpush1.msra.mxu0 0.0
    %648 = vmatprep.subr.mxu0 0.0
    %649 = vmatpush1.msra.mxu0 0.0
    %650 = vmatprep.subr.mxu0 0.0
    %651 = vmatpush1.msra.mxu0 0.0
    %652 = vmatprep.subr.mxu0 0.0
    %653 = vmatpush1.msra.mxu0 0.0
    %654 = vmatprep.subr.mxu0 0.0
    %655 = vmatpush1.msra.mxu0 0.0
    %656 = vmatprep.subr.mxu0 0.0
    %657 = vmatpush1.msra.mxu0 0.0
    %658 = vmatprep.subr.mxu0 0.0
    %659 = vmatpush1.msra.mxu0 0.0
    %660 = vmatprep.mubr.f32.mxu0 0.0
    %661 = vmatmul.mubr.f32.gmra.mrb[0].mxu0 %v588
    %v662 = vpop.f32.mrb[0].mxu0
    %v663 = vadd.f32 0.0, %v662
    %v664 = vpop.f32.mrb[0].mxu0
    %v665 = vadd.f32 0.0, %v664
    %666 = vdwg.mxu0
    %v667 = vadd.f32 %v578, %v663
    %v668 = vadd.f32 %v579, %v665
    %s669 = scalar_lea.vmem %s3, 192
    %v670 = vld [vmem:[%s669] sm:$0xff]
    %v671 = vld [vmem:[%s669 + $0x8] sm:$0xff]
    %v672 = vld [vmem:[%s669 + $0x10] sm:$0xff]
    %v673 = vld [vmem:[%s669 + $0x18] sm:$0xff]
    %v674 = vld [vmem:[%s669 + $0x20] sm:$0xf]
    %v675 = vld [vmem:[%s669 + $0x28] sm:$0xf]
    %v677 = vsel %vm331, %v313, 0
    %v680 = vsel %vm334, %v674, 0
    %v683 = vsel %vm334, %v675, 0
    %685 = vmatprep.subr.mxu0 %v671
    %686 = vmatpush1.msra.mxu0 %v670
    %687 = vmatprep.subr.mxu0 %v673
    %688 = vmatpush1.msra.mxu0 %v672
    %689 = vmatprep.subr.mxu0 %v683
    %690 = vmatpush1.msra.mxu0 %v680
    %691 = vmatprep.subr.mxu0 0.0
    %692 = vmatpush1.msra.mxu0 0.0
    %693 = vmatprep.subr.mxu0 0.0
    %694 = vmatpush1.msra.mxu0 0.0
    %695 = vmatprep.subr.mxu0 0.0
    %696 = vmatpush1.msra.mxu0 0.0
    %697 = vmatprep.subr.mxu0 0.0
    %698 = vmatpush1.msra.mxu0 0.0
    %699 = vmatprep.subr.mxu0 0.0
    %700 = vmatpush1.msra.mxu0 0.0
    %701 = vmatprep.subr.mxu0 0.0
    %702 = vmatpush1.msra.mxu0 0.0
    %703 = vmatprep.subr.mxu0 0.0
    %704 = vmatpush1.msra.mxu0 0.0
    %705 = vmatprep.subr.mxu0 0.0
    %706 = vmatpush1.msra.mxu0 0.0
    %707 = vmatprep.subr.mxu0 0.0
    %708 = vmatpush1.msra.mxu0 0.0
    %709 = vmatprep.subr.mxu0 0.0
    %710 = vmatpush1.msra.mxu0 0.0
    %711 = vmatprep.subr.mxu0 0.0
    %712 = vmatpush1.msra.mxu0 0.0
    %713 = vmatprep.subr.mxu0 0.0
    %714 = vmatpush1.msra.mxu0 0.0
    %715 = vmatprep.subr.mxu0 0.0
    %716 = vmatpush1.msra.mxu0 0.0
    %717 = vmatprep.subr.mxu0 0.0
    %718 = vmatpush1.msra.mxu0 0.0
    %719 = vmatprep.subr.mxu0 0.0
    %720 = vmatpush1.msra.mxu0 0.0
    %721 = vmatprep.subr.mxu0 0.0
    %722 = vmatpush1.msra.mxu0 0.0
    %723 = vmatprep.subr.mxu0 0.0
    %724 = vmatpush1.msra.mxu0 0.0
    %725 = vmatprep.subr.mxu0 0.0
    %726 = vmatpush1.msra.mxu0 0.0
    %727 = vmatprep.subr.mxu0 0.0
    %728 = vmatpush1.msra.mxu0 0.0
    %729 = vmatprep.subr.mxu0 0.0
    %730 = vmatpush1.msra.mxu0 0.0
    %731 = vmatprep.subr.mxu0 0.0
    %732 = vmatpush1.msra.mxu0 0.0
    %733 = vmatprep.subr.mxu0 0.0
    %734 = vmatpush1.msra.mxu0 0.0
    %735 = vmatprep.subr.mxu0 0.0
    %736 = vmatpush1.msra.mxu0 0.0
    %737 = vmatprep.subr.mxu0 0.0
    %738 = vmatpush1.msra.mxu0 0.0
    %739 = vmatprep.subr.mxu0 0.0
    %740 = vmatpush1.msra.mxu0 0.0
    %741 = vmatprep.subr.mxu0 0.0
    %742 = vmatpush1.msra.mxu0 0.0
    %743 = vmatprep.subr.mxu0 0.0
    %744 = vmatpush1.msra.mxu0 0.0
    %745 = vmatprep.subr.mxu0 0.0
    %746 = vmatpush1.msra.mxu0 0.0
    %747 = vmatprep.subr.mxu0 0.0
    %748 = vmatpush1.msra.mxu0 0.0
    %749 = vmatprep.mubr.f32.mxu0 0.0
    %750 = vmatmul.mubr.f32.gmra.mrb[0].mxu0 %v677
    %v751 = vpop.f32.mrb[0].mxu0
    %v752 = vadd.f32 0.0, %v751
    %v753 = vpop.f32.mrb[0].mxu0
    %v754 = vadd.f32 0.0, %v753
    %755 = vdwg.mxu0
    %v756 = vadd.f32 %v667, %v752
    %v757 = vadd.f32 %v668, %v754
    %s758 = scalar_lea.vmem %s3, 240
    %v759 = vld [vmem:[%s758] sm:$0xff]
    %v760 = vld [vmem:[%s758 + $0x8] sm:$0xff]
    %v761 = vld [vmem:[%s758 + $0x10] sm:$0xff]
    %v762 = vld [vmem:[%s758 + $0x18] sm:$0xff]
    %v763 = vld [vmem:[%s758 + $0x20] sm:$0xf]
    %v764 = vld [vmem:[%s758 + $0x28] sm:$0xf]
    %v765 = vrot.slane %v313, 2
    %v766 = vsel %vm331, %v765, 0
    %v769 = vsel %vm334, %v763, 0
    %v772 = vsel %vm334, %v764, 0
    %774 = vmatprep.subr.mxu0 %v760
    %775 = vmatpush1.msra.mxu0 %v759
    %776 = vmatprep.subr.mxu0 %v762
    %777 = vmatpush1.msra.mxu0 %v761
    %778 = vmatprep.subr.mxu0 %v772
    %779 = vmatpush1.msra.mxu0 %v769
    %780 = vmatprep.subr.mxu0 0.0
    %781 = vmatpush1.msra.mxu0 0.0
    %782 = vmatprep.subr.mxu0 0.0
    %783 = vmatpush1.msra.mxu0 0.0
    %784 = vmatprep.subr.mxu0 0.0
    %785 = vmatpush1.msra.mxu0 0.0
    %786 = vmatprep.subr.mxu0 0.0
    %787 = vmatpush1.msra.mxu0 0.0
    %788 = vmatprep.subr.mxu0 0.0
    %789 = vmatpush1.msra.mxu0 0.0
    %790 = vmatprep.subr.mxu0 0.0
    %791 = vmatpush1.msra.mxu0 0.0
    %792 = vmatprep.subr.mxu0 0.0
    %793 = vmatpush1.msra.mxu0 0.0
    %794 = vmatprep.subr.mxu0 0.0
    %795 = vmatpush1.msra.mxu0 0.0
    %796 = vmatprep.subr.mxu0 0.0
    %797 = vmatpush1.msra.mxu0 0.0
    %798 = vmatprep.subr.mxu0 0.0
    %799 = vmatpush1.msra.mxu0 0.0
    %800 = vmatprep.subr.mxu0 0.0
    %801 = vmatpush1.msra.mxu0 0.0
    %802 = vmatprep.subr.mxu0 0.0
    %803 = vmatpush1.msra.mxu0 0.0
    %804 = vmatprep.subr.mxu0 0.0
    %805 = vmatpush1.msra.mxu0 0.0
    %806 = vmatprep.subr.mxu0 0.0
    %807 = vmatpush1.msra.mxu0 0.0
    %808 = vmatprep.subr.mxu0 0.0
    %809 = vmatpush1.msra.mxu0 0.0
    %810 = vmatprep.subr.mxu0 0.0
    %811 = vmatpush1.msra.mxu0 0.0
    %812 = vmatprep.subr.mxu0 0.0
    %813 = vmatpush1.msra.mxu0 0.0
    %814 = vmatprep.subr.mxu0 0.0
    %815 = vmatpush1.msra.mxu0 0.0
    %816 = vmatprep.subr.mxu0 0.0
    %817 = vmatpush1.msra.mxu0 0.0
    %818 = vmatprep.subr.mxu0 0.0
    %819 = vmatpush1.msra.mxu0 0.0
    %820 = vmatprep.subr.mxu0 0.0
    %821 = vmatpush1.msra.mxu0 0.0
    %822 = vmatprep.subr.mxu0 0.0
    %823 = vmatpush1.msra.mxu0 0.0
    %824 = vmatprep.subr.mxu0 0.0
    %825 = vmatpush1.msra.mxu0 0.0
    %826 = vmatprep.subr.mxu0 0.0
    %827 = vmatpush1.msra.mxu0 0.0
    %828 = vmatprep.subr.mxu0 0.0
    %829 = vmatpush1.msra.mxu0 0.0
    %830 = vmatprep.subr.mxu0 0.0
    %831 = vmatpush1.msra.mxu0 0.0
    %832 = vmatprep.subr.mxu0 0.0
    %833 = vmatpush1.msra.mxu0 0.0
    %834 = vmatprep.subr.mxu0 0.0
    %835 = vmatpush1.msra.mxu0 0.0
    %836 = vmatprep.subr.mxu0 0.0
    %837 = vmatpush1.msra.mxu0 0.0
    %838 = vmatprep.mubr.f32.mxu0 0.0
    %839 = vmatmul.mubr.f32.gmra.mrb[0].mxu0 %v766
    %v840 = vpop.f32.mrb[0].mxu0
    %v841 = vadd.f32 0.0, %v840
    %v842 = vpop.f32.mrb[0].mxu0
    %v843 = vadd.f32 0.0, %v842
    %844 = vdwg.mxu0
    %v845 = vadd.f32 %v756, %v841
    %v846 = vadd.f32 %v757, %v843
    %s847 = scalar_lea.vmem %s3, 288
    %v848 = vld [vmem:[%s847] sm:$0xff]
    %v849 = vld [vmem:[%s847 + $0x8] sm:$0xff]
    %v850 = vld [vmem:[%s847 + $0x10] sm:$0xff]
    %v851 = vld [vmem:[%s847 + $0x18] sm:$0xff]
    %v852 = vld [vmem:[%s847 + $0x20] sm:$0xf]
    %v853 = vld [vmem:[%s847 + $0x28] sm:$0xf]
    %v854 = vrot.slane %v313, 4
    %v855 = vsel %vm331, %v854, 0
    %v858 = vsel %vm334, %v852, 0
    %v861 = vsel %vm334, %v853, 0
    %863 = vmatprep.subr.mxu0 %v849
    %864 = vmatpush1.msra.mxu0 %v848
    %865 = vmatprep.subr.mxu0 %v851
    %866 = vmatpush1.msra.mxu0 %v850
    %867 = vmatprep.subr.mxu0 %v861
    %868 = vmatpush1.msra.mxu0 %v858
    %869 = vmatprep.subr.mxu0 0.0
    %870 = vmatpush1.msra.mxu0 0.0
    %871 = vmatprep.subr.mxu0 0.0
    %872 = vmatpush1.msra.mxu0 0.0
    %873 = vmatprep.subr.mxu0 0.0
    %874 = vmatpush1.msra.mxu0 0.0
    %875 = vmatprep.subr.mxu0 0.0
    %876 = vmatpush1.msra.mxu0 0.0
    %877 = vmatprep.subr.mxu0 0.0
    %878 = vmatpush1.msra.mxu0 0.0
    %879 = vmatprep.subr.mxu0 0.0
    %880 = vmatpush1.msra.mxu0 0.0
    %881 = vmatprep.subr.mxu0 0.0
    %882 = vmatpush1.msra.mxu0 0.0
    %883 = vmatprep.subr.mxu0 0.0
    %884 = vmatpush1.msra.mxu0 0.0
    %885 = vmatprep.subr.mxu0 0.0
    %886 = vmatpush1.msra.mxu0 0.0
    %887 = vmatprep.subr.mxu0 0.0
    %888 = vmatpush1.msra.mxu0 0.0
    %889 = vmatprep.subr.mxu0 0.0
    %890 = vmatpush1.msra.mxu0 0.0
    %891 = vmatprep.subr.mxu0 0.0
    %892 = vmatpush1.msra.mxu0 0.0
    %893 = vmatprep.subr.mxu0 0.0
    %894 = vmatpush1.msra.mxu0 0.0
    %895 = vmatprep.subr.mxu0 0.0
    %896 = vmatpush1.msra.mxu0 0.0
    %897 = vmatprep.subr.mxu0 0.0
    %898 = vmatpush1.msra.mxu0 0.0
    %899 = vmatprep.subr.mxu0 0.0
    %900 = vmatpush1.msra.mxu0 0.0
    %901 = vmatprep.subr.mxu0 0.0
    %902 = vmatpush1.msra.mxu0 0.0
    %903 = vmatprep.subr.mxu0 0.0
    %904 = vmatpush1.msra.mxu0 0.0
    %905 = vmatprep.subr.mxu0 0.0
    %906 = vmatpush1.msra.mxu0 0.0
    %907 = vmatprep.subr.mxu0 0.0
    %908 = vmatpush1.msra.mxu0 0.0
    %909 = vmatprep.subr.mxu0 0.0
    %910 = vmatpush1.msra.mxu0 0.0
    %911 = vmatprep.subr.mxu0 0.0
    %912 = vmatpush1.msra.mxu0 0.0
    %913 = vmatprep.subr.mxu0 0.0
    %914 = vmatpush1.msra.mxu0 0.0
    %915 = vmatprep.subr.mxu0 0.0
    %916 = vmatpush1.msra.mxu0 0.0
    %917 = vmatprep.subr.mxu0 0.0
    %918 = vmatpush1.msra.mxu0 0.0
    %919 = vmatprep.subr.mxu0 0.0
    %920 = vmatpush1.msra.mxu0 0.0
    %921 = vmatprep.subr.mxu0 0.0
    %922 = vmatpush1.msra.mxu0 0.0
    %923 = vmatprep.subr.mxu0 0.0
    %924 = vmatpush1.msra.mxu0 0.0
    %925 = vmatprep.subr.mxu0 0.0
    %926 = vmatpush1.msra.mxu0 0.0
    %927 = vmatprep.mubr.f32.mxu0 0.0
    %928 = vmatmul.mubr.f32.gmra.mrb[0].mxu0 %v855
    %v929 = vpop.f32.mrb[0].mxu0
    %v930 = vadd.f32 0.0, %v929
    %v931 = vpop.f32.mrb[0].mxu0
    %v932 = vadd.f32 0.0, %v931
    %933 = vdwg.mxu0
    %v934 = vadd.f32 %v845, %v930
    %v935 = vadd.f32 %v846, %v932
    %s936 = scalar_lea.vmem %s3, 336
    %v937 = vld [vmem:[%s936] sm:$0xff]
    %v938 = vld [vmem:[%s936 + $0x8] sm:$0xff]
    %v939 = vld [vmem:[%s936 + $0x10] sm:$0xff]
    %v940 = vld [vmem:[%s936 + $0x18] sm:$0xff]
    %v941 = vld [vmem:[%s936 + $0x20] sm:$0xf]
    %v942 = vld [vmem:[%s936 + $0x28] sm:$0xf]
    %v943 = vrot.slane %v313, 6
    %v944 = vsel %vm331, %v943, 0
    %v947 = vsel %vm334, %v941, 0
    %v950 = vsel %vm334, %v942, 0
    %952 = vmatprep.subr.mxu0 %v938
    %953 = vmatpush1.msra.mxu0 %v937
    %954 = vmatprep.subr.mxu0 %v940
    %955 = vmatpush1.msra.mxu0 %v939
    %956 = vmatprep.subr.mxu0 %v950
    %957 = vmatpush1.msra.mxu0 %v947
    %958 = vmatprep.subr.mxu0 0.0
    %959 = vmatpush1.msra.mxu0 0.0
    %960 = vmatprep.subr.mxu0 0.0
    %961 = vmatpush1.msra.mxu0 0.0
    %962 = vmatprep.subr.mxu0 0.0
    %963 = vmatpush1.msra.mxu0 0.0
    %964 = vmatprep.subr.mxu0 0.0
    %965 = vmatpush1.msra.mxu0 0.0
    %966 = vmatprep.subr.mxu0 0.0
    %967 = vmatpush1.msra.mxu0 0.0
    %968 = vmatprep.subr.mxu0 0.0
    %969 = vmatpush1.msra.mxu0 0.0
    %970 = vmatprep.subr.mxu0 0.0
    %971 = vmatpush1.msra.mxu0 0.0
    %972 = vmatprep.subr.mxu0 0.0
    %973 = vmatpush1.msra.mxu0 0.0
    %974 = vmatprep.subr.mxu0 0.0
    %975 = vmatpush1.msra.mxu0 0.0
    %976 = vmatprep.subr.mxu0 0.0
    %977 = vmatpush1.msra.mxu0 0.0
    %978 = vmatprep.subr.mxu0 0.0
    %979 = vmatpush1.msra.mxu0 0.0
    %980 = vmatprep.subr.mxu0 0.0
    %981 = vmatpush1.msra.mxu0 0.0
    %982 = vmatprep.subr.mxu0 0.0
    %983 = vmatpush1.msra.mxu0 0.0
    %984 = vmatprep.subr.mxu0 0.0
    %985 = vmatpush1.msra.mxu0 0.0
    %986 = vmatprep.subr.mxu0 0.0
    %987 = vmatpush1.msra.mxu0 0.0
    %988 = vmatprep.subr.mxu0 0.0
    %989 = vmatpush1.msra.mxu0 0.0
    %990 = vmatprep.subr.mxu0 0.0
    %991 = vmatpush1.msra.mxu0 0.0
    %992 = vmatprep.subr.mxu0 0.0
    %993 = vmatpush1.msra.mxu0 0.0
    %994 = vmatprep.subr.mxu0 0.0
    %995 = vmatpush1.msra.mxu0 0.0
    %996 = vmatprep.subr.mxu0 0.0
    %997 = vmatpush1.msra.mxu0 0.0
    %998 = vmatprep.subr.mxu0 0.0
    %999 = vmatpush1.msra.mxu0 0.0
    %1000 = vmatprep.subr.mxu0 0.0
    %1001 = vmatpush1.msra.mxu0 0.0
    %1002 = vmatprep.subr.mxu0 0.0
    %1003 = vmatpush1.msra.mxu0 0.0
    %1004 = vmatprep.subr.mxu0 0.0
    %1005 = vmatpush1.msra.mxu0 0.0
    %1006 = vmatprep.subr.mxu0 0.0
    %1007 = vmatpush1.msra.mxu0 0.0
    %1008 = vmatprep.subr.mxu0 0.0
    %1009 = vmatpush1.msra.mxu0 0.0
    %1010 = vmatprep.subr.mxu0 0.0
    %1011 = vmatpush1.msra.mxu0 0.0
    %1012 = vmatprep.subr.mxu0 0.0
    %1013 = vmatpush1.msra.mxu0 0.0
    %1014 = vmatprep.subr.mxu0 0.0
    %1015 = vmatpush1.msra.mxu0 0.0
    %1016 = vmatprep.mubr.f32.mxu0 0.0
    %1017 = vmatmul.mubr.f32.gmra.mrb[0].mxu0 %v944
    %v1018 = vpop.f32.mrb[0].mxu0
    %v1019 = vadd.f32 0.0, %v1018
    %v1020 = vpop.f32.mrb[0].mxu0
    %v1021 = vadd.f32 0.0, %v1020
    %1022 = vdwg.mxu0
    %v1023 = vadd.f32 %v934, %v1019
    %v1024 = vadd.f32 %v935, %v1021
    %s1025 = scalar_lea.vmem %s3, 384
    %v1026 = vld [vmem:[%s1025] sm:$0xff]
    %v1027 = vld [vmem:[%s1025 + $0x8] sm:$0xff]
    %v1028 = vld [vmem:[%s1025 + $0x10] sm:$0xff]
    %v1029 = vld [vmem:[%s1025 + $0x18] sm:$0xff]
    %v1030 = vld [vmem:[%s1025 + $0x20] sm:$0xf]
    %v1031 = vld [vmem:[%s1025 + $0x28] sm:$0xf]
    %v1033 = vsel %vm331, %v314, 0
    %v1036 = vsel %vm334, %v1030, 0
    %v1039 = vsel %vm334, %v1031, 0
    %1041 = vmatprep.subr.mxu0 %v1027
    %1042 = vmatpush1.msra.mxu0 %v1026
    %1043 = vmatprep.subr.mxu0 %v1029
    %1044 = vmatpush1.msra.mxu0 %v1028
    %1045 = vmatprep.subr.mxu0 %v1039
    %1046 = vmatpush1.msra.mxu0 %v1036
    %1047 = vmatprep.subr.mxu0 0.0
    %1048 = vmatpush1.msra.mxu0 0.0
    %1049 = vmatprep.subr.mxu0 0.0
    %1050 = vmatpush1.msra.mxu0 0.0
    %1051 = vmatprep.subr.mxu0 0.0
    %1052 = vmatpush1.msra.mxu0 0.0
    %1053 = vmatprep.subr.mxu0 0.0
    %1054 = vmatpush1.msra.mxu0 0.0
    %1055 = vmatprep.subr.mxu0 0.0
    %1056 = vmatpush1.msra.mxu0 0.0
    %1057 = vmatprep.subr.mxu0 0.0
    %1058 = vmatpush1.msra.mxu0 0.0
    %1059 = vmatprep.subr.mxu0 0.0
    %1060 = vmatpush1.msra.mxu0 0.0
    %1061 = vmatprep.subr.mxu0 0.0
    %1062 = vmatpush1.msra.mxu0 0.0
    %1063 = vmatprep.subr.mxu0 0.0
    %1064 = vmatpush1.msra.mxu0 0.0
    %1065 = vmatprep.subr.mxu0 0.0
    %1066 = vmatpush1.msra.mxu0 0.0
    %1067 = vmatprep.subr.mxu0 0.0
    %1068 = vmatpush1.msra.mxu0 0.0
    %1069 = vmatprep.subr.mxu0 0.0
    %1070 = vmatpush1.msra.mxu0 0.0
    %1071 = vmatprep.subr.mxu0 0.0
    %1072 = vmatpush1.msra.mxu0 0.0
    %1073 = vmatprep.subr.mxu0 0.0
    %1074 = vmatpush1.msra.mxu0 0.0
    %1075 = vmatprep.subr.mxu0 0.0
    %1076 = vmatpush1.msra.mxu0 0.0
    %1077 = vmatprep.subr.mxu0 0.0
    %1078 = vmatpush1.msra.mxu0 0.0
    %1079 = vmatprep.subr.mxu0 0.0
    %1080 = vmatpush1.msra.mxu0 0.0
    %1081 = vmatprep.subr.mxu0 0.0
    %1082 = vmatpush1.msra.mxu0 0.0
    %1083 = vmatprep.subr.mxu0 0.0
    %1084 = vmatpush1.msra.mxu0 0.0
    %1085 = vmatprep.subr.mxu0 0.0
    %1086 = vmatpush1.msra.mxu0 0.0
    %1087 = vmatprep.subr.mxu0 0.0
    %1088 = vmatpush1.msra.mxu0 0.0
    %1089 = vmatprep.subr.mxu0 0.0
    %1090 = vmatpush1.msra.mxu0 0.0
    %1091 = vmatprep.subr.mxu0 0.0
    %1092 = vmatpush1.msra.mxu0 0.0
    %1093 = vmatprep.subr.mxu0 0.0
    %1094 = vmatpush1.msra.mxu0 0.0
    %1095 = vmatprep.subr.mxu0 0.0
    %1096 = vmatpush1.msra.mxu0 0.0
    %1097 = vmatprep.subr.mxu0 0.0
    %1098 = vmatpush1.msra.mxu0 0.0
    %1099 = vmatprep.subr.mxu0 0.0
    %1100 = vmatpush1.msra.mxu0 0.0
    %1101 = vmatprep.subr.mxu0 0.0
    %1102 = vmatpush1.msra.mxu0 0.0
    %1103 = vmatprep.subr.mxu0 0.0
    %1104 = vmatpush1.msra.mxu0 0.0
    %1105 = vmatprep.mubr.f32.mxu0 0.0
    %1106 = vmatmul.mubr.f32.gmra.mrb[0].mxu0 %v1033
    %v1107 = vpop.f32.mrb[0].mxu0
    %v1108 = vadd.f32 0.0, %v1107
    %v1109 = vpop.f32.mrb[0].mxu0
    %v1110 = vadd.f32 0.0, %v1109
    %1111 = vdwg.mxu0
    %v1112 = vadd.f32 %v1023, %v1108
    %v1113 = vadd.f32 %v1024, %v1110
    %s1114 = scalar_lea.vmem %s3, 432
    %v1115 = vld [vmem:[%s1114] sm:$0xff]
    %v1116 = vld [vmem:[%s1114 + $0x8] sm:$0xff]
    %v1117 = vld [vmem:[%s1114 + $0x10] sm:$0xff]
    %v1118 = vld [vmem:[%s1114 + $0x18] sm:$0xff]
    %v1119 = vld [vmem:[%s1114 + $0x20] sm:$0xf]
    %v1120 = vld [vmem:[%s1114 + $0x28] sm:$0xf]
    %v1121 = vrot.slane %v314, 2
    %v1122 = vsel %vm331, %v1121, 0
    %v1125 = vsel %vm334, %v1119, 0
    %v1128 = vsel %vm334, %v1120, 0
    %1130 = vmatprep.subr.mxu0 %v1116
    %1131 = vmatpush1.msra.mxu0 %v1115
    %1132 = vmatprep.subr.mxu0 %v1118
    %1133 = vmatpush1.msra.mxu0 %v1117
    %1134 = vmatprep.subr.mxu0 %v1128
    %1135 = vmatpush1.msra.mxu0 %v1125
    %1136 = vmatprep.subr.mxu0 0.0
    %1137 = vmatpush1.msra.mxu0 0.0
    %1138 = vmatprep.subr.mxu0 0.0
    %1139 = vmatpush1.msra.mxu0 0.0
    %1140 = vmatprep.subr.mxu0 0.0
    %1141 = vmatpush1.msra.mxu0 0.0
    %1142 = vmatprep.subr.mxu0 0.0
    %1143 = vmatpush1.msra.mxu0 0.0
    %1144 = vmatprep.subr.mxu0 0.0
    %1145 = vmatpush1.msra.mxu0 0.0
    %1146 = vmatprep.subr.mxu0 0.0
    %1147 = vmatpush1.msra.mxu0 0.0
    %1148 = vmatprep.subr.mxu0 0.0
    %1149 = vmatpush1.msra.mxu0 0.0
    %1150 = vmatprep.subr.mxu0 0.0
    %1151 = vmatpush1.msra.mxu0 0.0
    %1152 = vmatprep.subr.mxu0 0.0
    %1153 = vmatpush1.msra.mxu0 0.0
    %1154 = vmatprep.subr.mxu0 0.0
    %1155 = vmatpush1.msra.mxu0 0.0
    %1156 = vmatprep.subr.mxu0 0.0
    %1157 = vmatpush1.msra.mxu0 0.0
    %1158 = vmatprep.subr.mxu0 0.0
    %1159 = vmatpush1.msra.mxu0 0.0
    %1160 = vmatprep.subr.mxu0 0.0
    %1161 = vmatpush1.msra.mxu0 0.0
    %1162 = vmatprep.subr.mxu0 0.0
    %1163 = vmatpush1.msra.mxu0 0.0
    %1164 = vmatprep.subr.mxu0 0.0
    %1165 = vmatpush1.msra.mxu0 0.0
    %1166 = vmatprep.subr.mxu0 0.0
    %1167 = vmatpush1.msra.mxu0 0.0
    %1168 = vmatprep.subr.mxu0 0.0
    %1169 = vmatpush1.msra.mxu0 0.0
    %1170 = vmatprep.subr.mxu0 0.0
    %1171 = vmatpush1.msra.mxu0 0.0
    %1172 = vmatprep.subr.mxu0 0.0
    %1173 = vmatpush1.msra.mxu0 0.0
    %1174 = vmatprep.subr.mxu0 0.0
    %1175 = vmatpush1.msra.mxu0 0.0
    %1176 = vmatprep.subr.mxu0 0.0
    %1177 = vmatpush1.msra.mxu0 0.0
    %1178 = vmatprep.subr.mxu0 0.0
    %1179 = vmatpush1.msra.mxu0 0.0
    %1180 = vmatprep.subr.mxu0 0.0
    %1181 = vmatpush1.msra.mxu0 0.0
    %1182 = vmatprep.subr.mxu0 0.0
    %1183 = vmatpush1.msra.mxu0 0.0
    %1184 = vmatprep.subr.mxu0 0.0
    %1185 = vmatpush1.msra.mxu0 0.0
    %1186 = vmatprep.subr.mxu0 0.0
    %1187 = vmatpush1.msra.mxu0 0.0
    %1188 = vmatprep.subr.mxu0 0.0
    %1189 = vmatpush1.msra.mxu0 0.0
    %1190 = vmatprep.subr.mxu0 0.0
    %1191 = vmatpush1.msra.mxu0 0.0
    %1192 = vmatprep.subr.mxu0 0.0
    %1193 = vmatpush1.msra.mxu0 0.0
    %1194 = vmatprep.mubr.f32.mxu0 0.0
    %1195 = vmatmul.mubr.f32.gmra.mrb[0].mxu0 %v1122
    %v1196 = vpop.f32.mrb[0].mxu0
    %v1197 = vadd.f32 0.0, %v1196
    %v1198 = vpop.f32.mrb[0].mxu0
    %v1199 = vadd.f32 0.0, %v1198
    %1200 = vdwg.mxu0
    %v1201 = vadd.f32 %v1112, %v1197
    %v1202 = vadd.f32 %v1113, %v1199
    %s1203 = scalar_lea.vmem %s3, 480
    %v1204 = vld [vmem:[%s1203] sm:$0xff]
    %v1205 = vld [vmem:[%s1203 + $0x8] sm:$0xff]
    %v1206 = vld [vmem:[%s1203 + $0x10] sm:$0xff]
    %v1207 = vld [vmem:[%s1203 + $0x18] sm:$0xff]
    %v1208 = vld [vmem:[%s1203 + $0x20] sm:$0xf]
    %v1209 = vld [vmem:[%s1203 + $0x28] sm:$0xf]
    %v1210 = vrot.slane %v314, 4
    %v1211 = vsel %vm331, %v1210, 0
    %v1214 = vsel %vm334, %v1208, 0
    %v1217 = vsel %vm334, %v1209, 0
    %1219 = vmatprep.subr.mxu0 %v1205
    %1220 = vmatpush1.msra.mxu0 %v1204
    %1221 = vmatprep.subr.mxu0 %v1207
    %1222 = vmatpush1.msra.mxu0 %v1206
    %1223 = vmatprep.subr.mxu0 %v1217
    %1224 = vmatpush1.msra.mxu0 %v1214
    %1225 = vmatprep.subr.mxu0 0.0
    %1226 = vmatpush1.msra.mxu0 0.0
    %1227 = vmatprep.subr.mxu0 0.0
    %1228 = vmatpush1.msra.mxu0 0.0
    %1229 = vmatprep.subr.mxu0 0.0
    %1230 = vmatpush1.msra.mxu0 0.0
    %1231 = vmatprep.subr.mxu0 0.0
    %1232 = vmatpush1.msra.mxu0 0.0
    %1233 = vmatprep.subr.mxu0 0.0
    %1234 = vmatpush1.msra.mxu0 0.0
    %1235 = vmatprep.subr.mxu0 0.0
    %1236 = vmatpush1.msra.mxu0 0.0
    %1237 = vmatprep.subr.mxu0 0.0
    %1238 = vmatpush1.msra.mxu0 0.0
    %1239 = vmatprep.subr.mxu0 0.0
    %1240 = vmatpush1.msra.mxu0 0.0
    %1241 = vmatprep.subr.mxu0 0.0
    %1242 = vmatpush1.msra.mxu0 0.0
    %1243 = vmatprep.subr.mxu0 0.0
    %1244 = vmatpush1.msra.mxu0 0.0
    %1245 = vmatprep.subr.mxu0 0.0
    %1246 = vmatpush1.msra.mxu0 0.0
    %1247 = vmatprep.subr.mxu0 0.0
    %1248 = vmatpush1.msra.mxu0 0.0
    %1249 = vmatprep.subr.mxu0 0.0
    %1250 = vmatpush1.msra.mxu0 0.0
    %1251 = vmatprep.subr.mxu0 0.0
    %1252 = vmatpush1.msra.mxu0 0.0
    %1253 = vmatprep.subr.mxu0 0.0
    %1254 = vmatpush1.msra.mxu0 0.0
    %1255 = vmatprep.subr.mxu0 0.0
    %1256 = vmatpush1.msra.mxu0 0.0
    %1257 = vmatprep.subr.mxu0 0.0
    %1258 = vmatpush1.msra.mxu0 0.0
    %1259 = vmatprep.subr.mxu0 0.0
    %1260 = vmatpush1.msra.mxu0 0.0
    %1261 = vmatprep.subr.mxu0 0.0
    %1262 = vmatpush1.msra.mxu0 0.0
    %1263 = vmatprep.subr.mxu0 0.0
    %1264 = vmatpush1.msra.mxu0 0.0
    %1265 = vmatprep.subr.mxu0 0.0
    %1266 = vmatpush1.msra.mxu0 0.0
    %1267 = vmatprep.subr.mxu0 0.0
    %1268 = vmatpush1.msra.mxu0 0.0
    %1269 = vmatprep.subr.mxu0 0.0
    %1270 = vmatpush1.msra.mxu0 0.0
    %1271 = vmatprep.subr.mxu0 0.0
    %1272 = vmatpush1.msra.mxu0 0.0
    %1273 = vmatprep.subr.mxu0 0.0
    %1274 = vmatpush1.msra.mxu0 0.0
    %1275 = vmatprep.subr.mxu0 0.0
    %1276 = vmatpush1.msra.mxu0 0.0
    %1277 = vmatprep.subr.mxu0 0.0
    %1278 = vmatpush1.msra.mxu0 0.0
    %1279 = vmatprep.subr.mxu0 0.0
    %1280 = vmatpush1.msra.mxu0 0.0
    %1281 = vmatprep.subr.mxu0 0.0
    %1282 = vmatpush1.msra.mxu0 0.0
    %1283 = vmatprep.mubr.f32.mxu0 0.0
    %1284 = vmatmul.mubr.f32.gmra.mrb[0].mxu0 %v1211
    %v1285 = vpop.f32.mrb[0].mxu0
    %v1286 = vadd.f32 0.0, %v1285
    %v1287 = vpop.f32.mrb[0].mxu0
    %v1288 = vadd.f32 0.0, %v1287
    %1289 = vdwg.mxu0
    %v1290 = vadd.f32 %v1201, %v1286
    %v1291 = vadd.f32 %v1202, %v1288
    %s1292 = scalar_lea.vmem %s3, 528
    %v1293 = vld [vmem:[%s1292] sm:$0xff]
    %v1294 = vld [vmem:[%s1292 + $0x8] sm:$0xff]
    %v1295 = vld [vmem:[%s1292 + $0x10] sm:$0xff]
    %v1296 = vld [vmem:[%s1292 + $0x18] sm:$0xff]
    %v1297 = vld [vmem:[%s1292 + $0x20] sm:$0xf]
    %v1298 = vld [vmem:[%s1292 + $0x28] sm:$0xf]
    %v1299 = vrot.slane %v314, 6
    %v1300 = vsel %vm331, %v1299, 0
    %v1303 = vsel %vm334, %v1297, 0
    %v1306 = vsel %vm334, %v1298, 0
    %1308 = vmatprep.subr.mxu0 %v1294
    %1309 = vmatpush1.msra.mxu0 %v1293
    %1310 = vmatprep.subr.mxu0 %v1296
    %1311 = vmatpush1.msra.mxu0 %v1295
    %1312 = vmatprep.subr.mxu0 %v1306
    %1313 = vmatpush1.msra.mxu0 %v1303
    %1314 = vmatprep.subr.mxu0 0.0
    %1315 = vmatpush1.msra.mxu0 0.0
    %1316 = vmatprep.subr.mxu0 0.0
    %1317 = vmatpush1.msra.mxu0 0.0
    %1318 = vmatprep.subr.mxu0 0.0
    %1319 = vmatpush1.msra.mxu0 0.0
    %1320 = vmatprep.subr.mxu0 0.0
    %1321 = vmatpush1.msra.mxu0 0.0
    %1322 = vmatprep.subr.mxu0 0.0
    %1323 = vmatpush1.msra.mxu0 0.0
    %1324 = vmatprep.subr.mxu0 0.0
    %1325 = vmatpush1.msra.mxu0 0.0
    %1326 = vmatprep.subr.mxu0 0.0
    %1327 = vmatpush1.msra.mxu0 0.0
    %1328 = vmatprep.subr.mxu0 0.0
    %1329 = vmatpush1.msra.mxu0 0.0
    %1330 = vmatprep.subr.mxu0 0.0
    %1331 = vmatpush1.msra.mxu0 0.0
    %1332 = vmatprep.subr.mxu0 0.0
    %1333 = vmatpush1.msra.mxu0 0.0
    %1334 = vmatprep.subr.mxu0 0.0
    %1335 = vmatpush1.msra.mxu0 0.0
    %1336 = vmatprep.subr.mxu0 0.0
    %1337 = vmatpush1.msra.mxu0 0.0
    %1338 = vmatprep.subr.mxu0 0.0
    %1339 = vmatpush1.msra.mxu0 0.0
    %1340 = vmatprep.subr.mxu0 0.0
    %1341 = vmatpush1.msra.mxu0 0.0
    %1342 = vmatprep.subr.mxu0 0.0
    %1343 = vmatpush1.msra.mxu0 0.0
    %1344 = vmatprep.subr.mxu0 0.0
    %1345 = vmatpush1.msra.mxu0 0.0
    %1346 = vmatprep.subr.mxu0 0.0
    %1347 = vmatpush1.msra.mxu0 0.0
    %1348 = vmatprep.subr.mxu0 0.0
    %1349 = vmatpush1.msra.mxu0 0.0
    %1350 = vmatprep.subr.mxu0 0.0
    %1351 = vmatpush1.msra.mxu0 0.0
    %1352 = vmatprep.subr.mxu0 0.0
    %1353 = vmatpush1.msra.mxu0 0.0
    %1354 = vmatprep.subr.mxu0 0.0
    %1355 = vmatpush1.msra.mxu0 0.0
    %1356 = vmatprep.subr.mxu0 0.0
    %1357 = vmatpush1.msra.mxu0 0.0
    %1358 = vmatprep.subr.mxu0 0.0
    %1359 = vmatpush1.msra.mxu0 0.0
    %1360 = vmatprep.subr.mxu0 0.0
    %1361 = vmatpush1.msra.mxu0 0.0
    %1362 = vmatprep.subr.mxu0 0.0
    %1363 = vmatpush1.msra.mxu0 0.0
    %1364 = vmatprep.subr.mxu0 0.0
    %1365 = vmatpush1.msra.mxu0 0.0
    %1366 = vmatprep.subr.mxu0 0.0
    %1367 = vmatpush1.msra.mxu0 0.0
    %1368 = vmatprep.subr.mxu0 0.0
    %1369 = vmatpush1.msra.mxu0 0.0
    %1370 = vmatprep.subr.mxu0 0.0
    %1371 = vmatpush1.msra.mxu0 0.0
    %1372 = vmatprep.mubr.f32.mxu0 0.0
    %1373 = vmatmul.mubr.f32.gmra.mrb[0].mxu0 %v1300
    %v1374 = vpop.f32.mrb[0].mxu0
    %v1375 = vadd.f32 0.0, %v1374
    %v1376 = vpop.f32.mrb[0].mxu0
    %v1377 = vadd.f32 0.0, %v1376
    %1378 = vdwg.mxu0
    %v1379 = vadd.f32 %v1290, %v1375
    %v1380 = vadd.f32 %v1291, %v1377
    %s1381 = scalar_lea.vmem %s3, 576
    %v1382 = vld [vmem:[%s1381] sm:$0xff]
    %v1383 = vld [vmem:[%s1381 + $0x8] sm:$0xff]
    %v1384 = vld [vmem:[%s1381 + $0x10] sm:$0xff]
    %v1385 = vld [vmem:[%s1381 + $0x18] sm:$0xff]
    %v1386 = vld [vmem:[%s1381 + $0x20] sm:$0xf]
    %v1387 = vld [vmem:[%s1381 + $0x28] sm:$0xf]
    %v1389 = vsel %vm331, %v315, 0
    %v1392 = vsel %vm334, %v1386, 0
    %v1395 = vsel %vm334, %v1387, 0
    %1397 = vmatprep.subr.mxu0 %v1383
    %1398 = vmatpush1.msra.mxu0 %v1382
    %1399 = vmatprep.subr.mxu0 %v1385
    %1400 = vmatpush1.msra.mxu0 %v1384
    %1401 = vmatprep.subr.mxu0 %v1395
    %1402 = vmatpush1.msra.mxu0 %v1392
    %1403 = vmatprep.subr.mxu0 0.0
    %1404 = vmatpush1.msra.mxu0 0.0
    %1405 = vmatprep.subr.mxu0 0.0
    %1406 = vmatpush1.msra.mxu0 0.0
    %1407 = vmatprep.subr.mxu0 0.0
    %1408 = vmatpush1.msra.mxu0 0.0
    %1409 = vmatprep.subr.mxu0 0.0
    %1410 = vmatpush1.msra.mxu0 0.0
    %1411 = vmatprep.subr.mxu0 0.0
    %1412 = vmatpush1.msra.mxu0 0.0
    %1413 = vmatprep.subr.mxu0 0.0
    %1414 = vmatpush1.msra.mxu0 0.0
    %1415 = vmatprep.subr.mxu0 0.0
    %1416 = vmatpush1.msra.mxu0 0.0
    %1417 = vmatprep.subr.mxu0 0.0
    %1418 = vmatpush1.msra.mxu0 0.0
    %1419 = vmatprep.subr.mxu0 0.0
    %1420 = vmatpush1.msra.mxu0 0.0
    %1421 = vmatprep.subr.mxu0 0.0
    %1422 = vmatpush1.msra.mxu0 0.0
    %1423 = vmatprep.subr.mxu0 0.0
    %1424 = vmatpush1.msra.mxu0 0.0
    %1425 = vmatprep.subr.mxu0 0.0
    %1426 = vmatpush1.msra.mxu0 0.0
    %1427 = vmatprep.subr.mxu0 0.0
    %1428 = vmatpush1.msra.mxu0 0.0
    %1429 = vmatprep.subr.mxu0 0.0
    %1430 = vmatpush1.msra.mxu0 0.0
    %1431 = vmatprep.subr.mxu0 0.0
    %1432 = vmatpush1.msra.mxu0 0.0
    %1433 = vmatprep.subr.mxu0 0.0
    %1434 = vmatpush1.msra.mxu0 0.0
    %1435 = vmatprep.subr.mxu0 0.0
    %1436 = vmatpush1.msra.mxu0 0.0
    %1437 = vmatprep.subr.mxu0 0.0
    %1438 = vmatpush1.msra.mxu0 0.0
    %1439 = vmatprep.subr.mxu0 0.0
    %1440 = vmatpush1.msra.mxu0 0.0
    %1441 = vmatprep.subr.mxu0 0.0
    %1442 = vmatpush1.msra.mxu0 0.0
    %1443 = vmatprep.subr.mxu0 0.0
    %1444 = vmatpush1.msra.mxu0 0.0
    %1445 = vmatprep.subr.mxu0 0.0
    %1446 = vmatpush1.msra.mxu0 0.0
    %1447 = vmatprep.subr.mxu0 0.0
    %1448 = vmatpush1.msra.mxu0 0.0
    %1449 = vmatprep.subr.mxu0 0.0
    %1450 = vmatpush1.msra.mxu0 0.0
    %1451 = vmatprep.subr.mxu0 0.0
    %1452 = vmatpush1.msra.mxu0 0.0
    %1453 = vmatprep.subr.mxu0 0.0
    %1454 = vmatpush1.msra.mxu0 0.0
    %1455 = vmatprep.subr.mxu0 0.0
    %1456 = vmatpush1.msra.mxu0 0.0
    %1457 = vmatprep.subr.mxu0 0.0
    %1458 = vmatpush1.msra.mxu0 0.0
    %1459 = vmatprep.subr.mxu0 0.0
    %1460 = vmatpush1.msra.mxu0 0.0
    %1461 = vmatprep.mubr.f32.mxu0 0.0
    %1462 = vmatmul.mubr.f32.gmra.mrb[0].mxu0 %v1389
    %v1463 = vpop.f32.mrb[0].mxu0
    %v1464 = vadd.f32 0.0, %v1463
    %v1465 = vpop.f32.mrb[0].mxu0
    %v1466 = vadd.f32 0.0, %v1465
    %1467 = vdwg.mxu0
    %v1468 = vadd.f32 %v1379, %v1464
    %v1469 = vadd.f32 %v1380, %v1466
    %s1470 = scalar_lea.vmem %s3, 624
    %v1471 = vld [vmem:[%s1470] sm:$0xff]
    %v1472 = vld [vmem:[%s1470 + $0x8] sm:$0xff]
    %v1473 = vld [vmem:[%s1470 + $0x10] sm:$0xff]
    %v1474 = vld [vmem:[%s1470 + $0x18] sm:$0xff]
    %v1475 = vld [vmem:[%s1470 + $0x20] sm:$0xf]
    %v1476 = vld [vmem:[%s1470 + $0x28] sm:$0xf]
    %v1477 = vrot.slane %v315, 2
    %v1478 = vsel %vm331, %v1477, 0
    %v1481 = vsel %vm334, %v1475, 0
    %v1484 = vsel %vm334, %v1476, 0
    %1486 = vmatprep.subr.mxu0 %v1472
    %1487 = vmatpush1.msra.mxu0 %v1471
    %1488 = vmatprep.subr.mxu0 %v1474
    %1489 = vmatpush1.msra.mxu0 %v1473
    %1490 = vmatprep.subr.mxu0 %v1484
    %1491 = vmatpush1.msra.mxu0 %v1481
    %1492 = vmatprep.subr.mxu0 0.0
    %1493 = vmatpush1.msra.mxu0 0.0
    %1494 = vmatprep.subr.mxu0 0.0
    %1495 = vmatpush1.msra.mxu0 0.0
    %1496 = vmatprep.subr.mxu0 0.0
    %1497 = vmatpush1.msra.mxu0 0.0
    %1498 = vmatprep.subr.mxu0 0.0
    %1499 = vmatpush1.msra.mxu0 0.0
    %1500 = vmatprep.subr.mxu0 0.0
    %1501 = vmatpush1.msra.mxu0 0.0
    %1502 = vmatprep.subr.mxu0 0.0
    %1503 = vmatpush1.msra.mxu0 0.0
    %1504 = vmatprep.subr.mxu0 0.0
    %1505 = vmatpush1.msra.mxu0 0.0
    %1506 = vmatprep.subr.mxu0 0.0
    %1507 = vmatpush1.msra.mxu0 0.0
    %1508 = vmatprep.subr.mxu0 0.0
    %1509 = vmatpush1.msra.mxu0 0.0
    %1510 = vmatprep.subr.mxu0 0.0
    %1511 = vmatpush1.msra.mxu0 0.0
    %1512 = vmatprep.subr.mxu0 0.0
    %1513 = vmatpush1.msra.mxu0 0.0
    %1514 = vmatprep.subr.mxu0 0.0
    %1515 = vmatpush1.msra.mxu0 0.0
    %1516 = vmatprep.subr.mxu0 0.0
    %1517 = vmatpush1.msra.mxu0 0.0
    %1518 = vmatprep.subr.mxu0 0.0
    %1519 = vmatpush1.msra.mxu0 0.0
    %1520 = vmatprep.subr.mxu0 0.0
    %1521 = vmatpush1.msra.mxu0 0.0
    %1522 = vmatprep.subr.mxu0 0.0
    %1523 = vmatpush1.msra.mxu0 0.0
    %1524 = vmatprep.subr.mxu0 0.0
    %1525 = vmatpush1.msra.mxu0 0.0
    %1526 = vmatprep.subr.mxu0 0.0
    %1527 = vmatpush1.msra.mxu0 0.0
    %1528 = vmatprep.subr.mxu0 0.0
    %1529 = vmatpush1.msra.mxu0 0.0
    %1530 = vmatprep.subr.mxu0 0.0
    %1531 = vmatpush1.msra.mxu0 0.0
    %1532 = vmatprep.subr.mxu0 0.0
    %1533 = vmatpush1.msra.mxu0 0.0
    %1534 = vmatprep.subr.mxu0 0.0
    %1535 = vmatpush1.msra.mxu0 0.0
    %1536 = vmatprep.subr.mxu0 0.0
    %1537 = vmatpush1.msra.mxu0 0.0
    %1538 = vmatprep.subr.mxu0 0.0
    %1539 = vmatpush1.msra.mxu0 0.0
    %1540 = vmatprep.subr.mxu0 0.0
    %1541 = vmatpush1.msra.mxu0 0.0
    %1542 = vmatprep.subr.mxu0 0.0
    %1543 = vmatpush1.msra.mxu0 0.0
    %1544 = vmatprep.subr.mxu0 0.0
    %1545 = vmatpush1.msra.mxu0 0.0
    %1546 = vmatprep.subr.mxu0 0.0
    %1547 = vmatpush1.msra.mxu0 0.0
    %1548 = vmatprep.subr.mxu0 0.0
    %1549 = vmatpush1.msra.mxu0 0.0
    %1550 = vmatprep.mubr.f32.mxu0 0.0
    %1551 = vmatmul.mubr.f32.gmra.mrb[0].mxu0 %v1478
    %v1552 = vpop.f32.mrb[0].mxu0
    %v1553 = vadd.f32 0.0, %v1552
    %v1554 = vpop.f32.mrb[0].mxu0
    %v1555 = vadd.f32 0.0, %v1554
    %1556 = vdwg.mxu0
    %v1557 = vadd.f32 %v1468, %v1553
    %v1558 = vadd.f32 %v1469, %v1555
    %s1559 = scalar_lea.vmem %s3, 672
    %v1560 = vld [vmem:[%s1559] sm:$0xff]
    %v1561 = vld [vmem:[%s1559 + $0x8] sm:$0xff]
    %v1562 = vld [vmem:[%s1559 + $0x10] sm:$0xff]
    %v1563 = vld [vmem:[%s1559 + $0x18] sm:$0xff]
    %v1564 = vld [vmem:[%s1559 + $0x20] sm:$0xf]
    %v1565 = vld [vmem:[%s1559 + $0x28] sm:$0xf]
    %v1566 = vrot.slane %v315, 4
    %v1567 = vsel %vm331, %v1566, 0
    %v1570 = vsel %vm334, %v1564, 0
    %v1573 = vsel %vm334, %v1565, 0
    %1575 = vmatprep.subr.mxu0 %v1561
    %1576 = vmatpush1.msra.mxu0 %v1560
    %1577 = vmatprep.subr.mxu0 %v1563
    %1578 = vmatpush1.msra.mxu0 %v1562
    %1579 = vmatprep.subr.mxu0 %v1573
    %1580 = vmatpush1.msra.mxu0 %v1570
    %1581 = vmatprep.subr.mxu0 0.0
    %1582 = vmatpush1.msra.mxu0 0.0
    %1583 = vmatprep.subr.mxu0 0.0
    %1584 = vmatpush1.msra.mxu0 0.0
    %1585 = vmatprep.subr.mxu0 0.0
    %1586 = vmatpush1.msra.mxu0 0.0
    %1587 = vmatprep.subr.mxu0 0.0
    %1588 = vmatpush1.msra.mxu0 0.0
    %1589 = vmatprep.subr.mxu0 0.0
    %1590 = vmatpush1.msra.mxu0 0.0
    %1591 = vmatprep.subr.mxu0 0.0
    %1592 = vmatpush1.msra.mxu0 0.0
    %1593 = vmatprep.subr.mxu0 0.0
    %1594 = vmatpush1.msra.mxu0 0.0
    %1595 = vmatprep.subr.mxu0 0.0
    %1596 = vmatpush1.msra.mxu0 0.0
    %1597 = vmatprep.subr.mxu0 0.0
    %1598 = vmatpush1.msra.mxu0 0.0
    %1599 = vmatprep.subr.mxu0 0.0
    %1600 = vmatpush1.msra.mxu0 0.0
    %1601 = vmatprep.subr.mxu0 0.0
    %1602 = vmatpush1.msra.mxu0 0.0
    %1603 = vmatprep.subr.mxu0 0.0
    %1604 = vmatpush1.msra.mxu0 0.0
    %1605 = vmatprep.subr.mxu0 0.0
    %1606 = vmatpush1.msra.mxu0 0.0
    %1607 = vmatprep.subr.mxu0 0.0
    %1608 = vmatpush1.msra.mxu0 0.0
    %1609 = vmatprep.subr.mxu0 0.0
    %1610 = vmatpush1.msra.mxu0 0.0
    %1611 = vmatprep.subr.mxu0 0.0
    %1612 = vmatpush1.msra.mxu0 0.0
    %1613 = vmatprep.subr.mxu0 0.0
    %1614 = vmatpush1.msra.mxu0 0.0
    %1615 = vmatprep.subr.mxu0 0.0
    %1616 = vmatpush1.msra.mxu0 0.0
    %1617 = vmatprep.subr.mxu0 0.0
    %1618 = vmatpush1.msra.mxu0 0.0
    %1619 = vmatprep.subr.mxu0 0.0
    %1620 = vmatpush1.msra.mxu0 0.0
    %1621 = vmatprep.subr.mxu0 0.0
    %1622 = vmatpush1.msra.mxu0 0.0
    %1623 = vmatprep.subr.mxu0 0.0
    %1624 = vmatpush1.msra.mxu0 0.0
    %1625 = vmatprep.subr.mxu0 0.0
    %1626 = vmatpush1.msra.mxu0 0.0
    %1627 = vmatprep.subr.mxu0 0.0
    %1628 = vmatpush1.msra.mxu0 0.0
    %1629 = vmatprep.subr.mxu0 0.0
    %1630 = vmatpush1.msra.mxu0 0.0
    %1631 = vmatprep.subr.mxu0 0.0
    %1632 = vmatpush1.msra.mxu0 0.0
    %1633 = vmatprep.subr.mxu0 0.0
    %1634 = vmatpush1.msra.mxu0 0.0
    %1635 = vmatprep.subr.mxu0 0.0
    %1636 = vmatpush1.msra.mxu0 0.0
    %1637 = vmatprep.subr.mxu0 0.0
    %1638 = vmatpush1.msra.mxu0 0.0
    %1639 = vmatprep.mubr.f32.mxu0 0.0
    %1640 = vmatmul.mubr.f32.gmra.mrb[0].mxu0 %v1567
    %v1641 = vpop.f32.mrb[0].mxu0
    %v1642 = vadd.f32 0.0, %v1641
    %v1643 = vpop.f32.mrb[0].mxu0
    %v1644 = vadd.f32 0.0, %v1643
    %1645 = vdwg.mxu0
    %v1646 = vadd.f32 %v1557, %v1642
    %v1647 = vadd.f32 %v1558, %v1644
    %s1648 = scalar_lea.vmem %s3, 720
    %v1649 = vld [vmem:[%s1648] sm:$0xff]
    %v1650 = vld [vmem:[%s1648 + $0x8] sm:$0xff]
    %v1651 = vld [vmem:[%s1648 + $0x10] sm:$0xff]
    %v1652 = vld [vmem:[%s1648 + $0x18] sm:$0xff]
    %v1653 = vld [vmem:[%s1648 + $0x20] sm:$0xf]
    %v1654 = vld [vmem:[%s1648 + $0x28] sm:$0xf]
    %v1655 = vrot.slane %v315, 6
    %v1656 = vsel %vm331, %v1655, 0
    %v1659 = vsel %vm334, %v1653, 0
    %v1662 = vsel %vm334, %v1654, 0
    %1664 = vmatprep.subr.mxu0 %v1650
    %1665 = vmatpush1.msra.mxu0 %v1649
    %1666 = vmatprep.subr.mxu0 %v1652
    %1667 = vmatpush1.msra.mxu0 %v1651
    %1668 = vmatprep.subr.mxu0 %v1662
    %1669 = vmatpush1.msra.mxu0 %v1659
    %1670 = vmatprep.subr.mxu0 0.0
    %1671 = vmatpush1.msra.mxu0 0.0
    %1672 = vmatprep.subr.mxu0 0.0
    %1673 = vmatpush1.msra.mxu0 0.0
    %1674 = vmatprep.subr.mxu0 0.0
    %1675 = vmatpush1.msra.mxu0 0.0
    %1676 = vmatprep.subr.mxu0 0.0
    %1677 = vmatpush1.msra.mxu0 0.0
    %1678 = vmatprep.subr.mxu0 0.0
    %1679 = vmatpush1.msra.mxu0 0.0
    %1680 = vmatprep.subr.mxu0 0.0
    %1681 = vmatpush1.msra.mxu0 0.0
    %1682 = vmatprep.subr.mxu0 0.0
    %1683 = vmatpush1.msra.mxu0 0.0
    %1684 = vmatprep.subr.mxu0 0.0
    %1685 = vmatpush1.msra.mxu0 0.0
    %1686 = vmatprep.subr.mxu0 0.0
    %1687 = vmatpush1.msra.mxu0 0.0
    %1688 = vmatprep.subr.mxu0 0.0
    %1689 = vmatpush1.msra.mxu0 0.0
    %1690 = vmatprep.subr.mxu0 0.0
    %1691 = vmatpush1.msra.mxu0 0.0
    %1692 = vmatprep.subr.mxu0 0.0
    %1693 = vmatpush1.msra.mxu0 0.0
    %1694 = vmatprep.subr.mxu0 0.0
    %1695 = vmatpush1.msra.mxu0 0.0
    %1696 = vmatprep.subr.mxu0 0.0
    %1697 = vmatpush1.msra.mxu0 0.0
    %1698 = vmatprep.subr.mxu0 0.0
    %1699 = vmatpush1.msra.mxu0 0.0
    %1700 = vmatprep.subr.mxu0 0.0
    %1701 = vmatpush1.msra.mxu0 0.0
    %1702 = vmatprep.subr.mxu0 0.0
    %1703 = vmatpush1.msra.mxu0 0.0
    %1704 = vmatprep.subr.mxu0 0.0
    %1705 = vmatpush1.msra.mxu0 0.0
    %1706 = vmatprep.subr.mxu0 0.0
    %1707 = vmatpush1.msra.mxu0 0.0
    %1708 = vmatprep.subr.mxu0 0.0
    %1709 = vmatpush1.msra.mxu0 0.0
    %1710 = vmatprep.subr.mxu0 0.0
    %1711 = vmatpush1.msra.mxu0 0.0
    %1712 = vmatprep.subr.mxu0 0.0
    %1713 = vmatpush1.msra.mxu0 0.0
    %1714 = vmatprep.subr.mxu0 0.0
    %1715 = vmatpush1.msra.mxu0 0.0
    %1716 = vmatprep.subr.mxu0 0.0
    %1717 = vmatpush1.msra.mxu0 0.0
    %1718 = vmatprep.subr.mxu0 0.0
    %1719 = vmatpush1.msra.mxu0 0.0
    %1720 = vmatprep.subr.mxu0 0.0
    %1721 = vmatpush1.msra.mxu0 0.0
    %1722 = vmatprep.subr.mxu0 0.0
    %1723 = vmatpush1.msra.mxu0 0.0
    %1724 = vmatprep.subr.mxu0 0.0
    %1725 = vmatpush1.msra.mxu0 0.0
    %1726 = vmatprep.subr.mxu0 0.0
    %1727 = vmatpush1.msra.mxu0 0.0
    %1728 = vmatprep.mubr.f32.mxu0 0.0
    %1729 = vmatmul.mubr.f32.gmra.mrb[0].mxu0 %v1656
    %v1730 = vpop.f32.mrb[0].mxu0
    %v1731 = vadd.f32 0.0, %v1730
    %v1732 = vpop.f32.mrb[0].mxu0
    %v1733 = vadd.f32 0.0, %v1732
    %1734 = vdwg.mxu0
    %v1735 = vadd.f32 %v1646, %v1731
    %v1736 = vadd.f32 %v1647, %v1733
    %v1737 = vld [vmem:[%s4] sm:$0x3]
    %v1739 = vlaneseq
    %v1740 = vshrl.u32 %v1739, 7
    %v1741 = vsub.s32 0, %v1740
    %v1742 = vrot.slane %v1737, %v1741
    %v1743 = vlaneseq
    %v1744 = vshrl.u32 %v1743, 7
    %v1745 = vsub.s32 1, %v1744
    %v1746 = vrot.slane %v1737, %v1745
    %v1749 = vadd.f32 %v1735, %v1742
    %v1750 = vadd.f32 %v1736, %v1746
    %v1751 = vmax.f32 %v1749, 0.0
    %v1752 = vmax.f32 %v1750, 0.0
    %v1753 = vld [vmem:[%s5] sm:$0xff]
    %v1754 = vld [vmem:[%s5 + $0x8] sm:$0xff]
    %v1755 = vld [vmem:[%s5 + $0x10] sm:$0xff]
    %v1756 = vld [vmem:[%s5 + $0x18] sm:$0xff]
    %v1757 = vld [vmem:[%s5 + $0x20] sm:$0xff]
    %v1758 = vld [vmem:[%s5 + $0x28] sm:$0xff]
    %v1759 = vld [vmem:[%s5 + $0x30] sm:$0xff]
    %v1760 = vld [vmem:[%s5 + $0x38] sm:$0xff]
    %v1761 = vld [vmem:[%s5 + $0x40] sm:$0xff]
    %v1762 = vld [vmem:[%s5 + $0x48] sm:$0xff]
    %v1763 = vld [vmem:[%s5 + $0x50] sm:$0xff]
    %v1764 = vld [vmem:[%s5 + $0x58] sm:$0xff]
    %v1765 = vld [vmem:[%s5 + $0x60] sm:$0xff]
    %v1766 = vld [vmem:[%s5 + $0x68] sm:$0xff]
    %v1767 = vld [vmem:[%s5 + $0x70] sm:$0xff]
    %v1768 = vld [vmem:[%s5 + $0x78] sm:$0xff]
    %v1769 = vld [vmem:[%s5 + $0x80] sm:$0xff]
    %v1770 = vld [vmem:[%s5 + $0x88] sm:$0xff]
    %v1771 = vld [vmem:[%s5 + $0x90] sm:$0xff]
    %v1772 = vld [vmem:[%s5 + $0x98] sm:$0xff]
    %v1773 = vld [vmem:[%s6] sm:$0x1]
    %v1775 = vlaneseq
    %v1776 = vshrl.u32 %v1775, 7
    %v1777 = vsub.s32 0, %v1776
    %v1778 = vrot.slane %v1773, %v1777
    %vm1780 = vcmask 261120
    %v1782 = vsel %vm1780, %v1752, 0
    %1784 = vmatprep.subr.mxu0 0.0
    %1785 = vmatpush1.msra.mxu0 %v1753
    %1786 = vmatprep.subr.mxu0 0.0
    %1787 = vmatpush1.msra.mxu0 %v1754
    %1788 = vmatprep.subr.mxu0 0.0
    %1789 = vmatpush1.msra.mxu0 %v1755
    %1790 = vmatprep.subr.mxu0 0.0
    %1791 = vmatpush1.msra.mxu0 %v1756
    %1792 = vmatprep.subr.mxu0 0.0
    %1793 = vmatpush1.msra.mxu0 %v1757
    %1794 = vmatprep.subr.mxu0 0.0
    %1795 = vmatpush1.msra.mxu0 %v1758
    %1796 = vmatprep.subr.mxu0 0.0
    %1797 = vmatpush1.msra.mxu0 %v1759
    %1798 = vmatprep.subr.mxu0 0.0
    %1799 = vmatpush1.msra.mxu0 %v1760
    %1800 = vmatprep.subr.mxu0 0.0
    %1801 = vmatpush1.msra.mxu0 %v1761
    %1802 = vmatprep.subr.mxu0 0.0
    %1803 = vmatpush1.msra.mxu0 %v1762
    %1804 = vmatprep.subr.mxu0 0.0
    %1805 = vmatpush1.msra.mxu0 %v1763
    %1806 = vmatprep.subr.mxu0 0.0
    %1807 = vmatpush1.msra.mxu0 %v1764
    %1808 = vmatprep.subr.mxu0 0.0
    %1809 = vmatpush1.msra.mxu0 %v1765
    %1810 = vmatprep.subr.mxu0 0.0
    %1811 = vmatpush1.msra.mxu0 %v1766
    %1812 = vmatprep.subr.mxu0 0.0
    %1813 = vmatpush1.msra.mxu0 %v1767
    %1814 = vmatprep.subr.mxu0 0.0
    %1815 = vmatpush1.msra.mxu0 %v1768
    %1816 = vmatprep.subr.mxu0 0.0
    %1817 = vmatpush1.msra.mxu0 %v1769
    %1818 = vmatprep.subr.mxu0 0.0
    %1819 = vmatpush1.msra.mxu0 %v1770
    %1820 = vmatprep.subr.mxu0 0.0
    %1821 = vmatpush1.msra.mxu0 %v1771
    %1822 = vmatprep.subr.mxu0 0.0
    %1823 = vmatpush1.msra.mxu0 %v1772
    %1824 = vmatprep.subr.mxu0 0.0
    %1825 = vmatpush1.msra.mxu0 0.0
    %1826 = vmatprep.subr.mxu0 0.0
    %1827 = vmatpush1.msra.mxu0 0.0
    %1828 = vmatprep.subr.mxu0 0.0
    %1829 = vmatpush1.msra.mxu0 0.0
    %1830 = vmatprep.subr.mxu0 0.0
    %1831 = vmatpush1.msra.mxu0 0.0
    %1832 = vmatprep.subr.mxu0 0.0
    %1833 = vmatpush1.msra.mxu0 0.0
    %1834 = vmatprep.subr.mxu0 0.0
    %1835 = vmatpush1.msra.mxu0 0.0
    %1836 = vmatprep.subr.mxu0 0.0
    %1837 = vmatpush1.msra.mxu0 0.0
    %1838 = vmatprep.subr.mxu0 0.0
    %1839 = vmatpush1.msra.mxu0 0.0
    %1840 = vmatprep.subr.mxu0 0.0
    %1841 = vmatpush1.msra.mxu0 0.0
    %1842 = vmatprep.subr.mxu0 0.0
    %1843 = vmatpush1.msra.mxu0 0.0
    %1844 = vmatprep.subr.mxu0 0.0
    %1845 = vmatpush1.msra.mxu0 0.0
    %1846 = vmatprep.subr.mxu0 0.0
    %1847 = vmatpush1.msra.mxu0 0.0
    %1848 = vmatprep.mubr.f32.mxu0 %v1782
    %1849 = vmatmul.mubr.f32.gmra.mrb[0].mxu0 %v1751
    %v1850 = vpop.f32.mrb[0].mxu0
    %v1851 = vadd.f32 %v1778, %v1850
    %v1852 = vpop.f32.mrb[0].mxu0
    %1853 = vdwg.mxu0
    %vm1854 = vcmask 74752
    %v1855 = vsel %vm1854, %v1851, -inf
    %1856 = vmax.xlane.f32.xlu0 %v1855
    %v1857 = vpop.xlane.xlu0 %1856
    %v1858 = vsub.f32 %v1851, %v1857
    %v1859 = vmul.f32 %v1858, 1.442695
    %v1860 = vpow.pop %v1859
    %v1861 = vsel %vm1854, %v1860, 0.0
    %1862 = vadd.xlane.f32.xlu0 %v1861
    %v1863 = vpop.xlane.xlu0 %1862
    %v1864 = vlog2.pop %v1863
    %v1865 = vmul.f32 %v1864, 0.6931472
    %v1866 = vsub.f32 %v1858, %v1865
    %1867 = vst.msk [vmem:[#allocation2] sm:$0x3] %vm1854, %v1866
    // Predicated region
    $region30: #{forward.7} parent=1 // pred_check
      _
    $region31: #{forward.7} parent=1 // pred_check_branch
      %1869 = sbr.rel (0) target = $region33
    $region32: #{forward.7} parent=1 // pred_region
      %s1871 = ssub.s32 32, 32
      %1872 = vsyncadd [#allocation3], %s1871
      %s1874 = sshll.u32 [#allocation2], 4
      %s1875 = int_to_ptr.vmem [resolvable:$true] %s1874
      %1877 = dma.vmem_to_hbm [thread:$0]  %s1875, 32, %s7, [#allocation3]
    $region33: #{forward.7} parent=1 // pred_fallthru
      _
    // Predicated region
    $region34: #{forward.7} parent=1 // pred_check
      _
    $region35: #{forward.7} parent=1 // pred_check_branch
      %1879 = sbr.rel (0) target = $region37
    $region36: #{forward.7} parent=1 // pred_region
      %1880 = dma.done [#allocation3], 32
    $region37: #{forward.7} parent=1 // pred_fallthru
      _
    %1881 = vsyncpa [#allocation3], 1

</llo_original>
